<compile_context>
chip_gen: v5e
topology: v5e:2x2
jax: 0.10.0
libtpu: 0.0.40
codegen_flags: <defaults>
</compile_context>

<pallas_src>
import jax
import jax.numpy as jnp
from jax.experimental import pallas as pl
from jax.experimental.pallas import tpu as pltpu

LANE = 128          # TPU lane width; channel dims are padded to multiples of this.


# ----------------------------------------------------------------------------
# small helpers
# ----------------------------------------------------------------------------
def _round_up(x, m):
    return ((x + m - 1) // m) * m


def _tile_rows(M, cap=512):
    """Pick an M tile (<=cap, multiple of 8 or full dim) and the padded M."""
    tm = min(cap, _round_up(M, 8))
    mp = _round_up(M, tm)
    return tm, mp


def _vmem_limit(tm, K, tn):
    # double-buffered bf16 inputs + double-buffered f32 output, 2x headroom.
    need = 2 * (tm * K * 2) + 2 * (K * tn * 2) + 2 * (tm * tn * 4)
    return int(min(max(2 * need + (4 << 20), 16 << 20), 48 << 20))


# ----------------------------------------------------------------------------
# Pallas kernels
# ----------------------------------------------------------------------------
def _matmul_kernel(x_ref, w_ref, o_ref):
    """One (TM, K) @ (K, TN) MXU matmul per grid point, f32 accumulation."""
    o_ref[...] = jnp.dot(x_ref[...], w_ref[...],
                         preferred_element_type=jnp.float32)


def matmul_bf16(x, w):
    """x: (M, K), w: (K, Np) with Np % 128 == 0  ->  (M, Np) float32.

    bf16 MXU operands / f32 accumulation.  K is kept whole (the 3x3 taps are
    folded into K by the conv wrapper), N is lane-dense, and the grid is
    (M tiles, N tiles) marked parallel so multi-TC chips can shard it.
    """
    M, K = x.shape
    K2, Np = w.shape
    assert K == K2 and Np % LANE == 0
    tm, mp = _tile_rows(M)
    if mp != M:
        x = jnp.pad(x, ((0, mp - M), (0, 0)))
    tn = 256 if Np % 256 == 0 else LANE
    out = pl.pallas_call(
        _matmul_kernel,
        out_shape=jax.ShapeDtypeStruct((mp, Np), jnp.float32),
        grid=(mp // tm, Np // tn),
        in_specs=[pl.BlockSpec((tm, K), lambda i, j: (i, 0)),
                  pl.BlockSpec((K, tn), lambda i, j: (0, j))],
        out_specs=pl.BlockSpec((tm, tn), lambda i, j: (i, j)),
        compiler_params=pltpu.CompilerParams(
            dimension_semantics=("parallel", "parallel"),
            vmem_limit_bytes=_vmem_limit(tm, K, tn)),
    )(x.astype(jnp.bfloat16), w.astype(jnp.bfloat16))
    return out[:M] if mp != M else out


def _bn_stats_kernel(x_ref, s_ref, q_ref):
    """Pass 1: accumulate per-channel sum / sum-of-squares over M tiles."""
    @pl.when(pl.program_id(0) == 0)
    def _():
        s_ref[...] = jnp.zeros_like(s_ref)
        q_ref[...] = jnp.zeros_like(q_ref)

    x = x_ref[...]
    s_ref[...] += jnp.sum(x, axis=0, keepdims=True)
    q_ref[...] += jnp.sum(x * x, axis=0, keepdims=True)


def _scale_shift_relu_kernel(x_ref, a_ref, b_ref, o_ref):
    """Pass 2: fused y = relu(x * scale + shift)."""
    o_ref[...] = jnp.maximum(x_ref[...] * a_ref[...] + b_ref[...], 0.0)


def bn_relu(x_nhwc, gamma, beta, eps=1e-5):
    """BatchNorm2d with batch statistics (track_running_stats=False, biased
    variance, eps=1e-5) + affine + ReLU.  Two tiled Pallas passes."""
    N, H, W, C = x_nhwc.shape
    M = N * H * W
    x2 = x_nhwc.reshape(M, C)
    tm, mp = _tile_rows(M)
    if mp != M:
        x2 = jnp.pad(x2, ((0, mp - M), (0, 0)))   # zero rows: no effect on sums

    s, q = pl.pallas_call(
        _bn_stats_kernel,
        out_shape=(jax.ShapeDtypeStruct((1, C), jnp.float32),
                   jax.ShapeDtypeStruct((1, C), jnp.float32)),
        grid=(mp // tm,),
        in_specs=[pl.BlockSpec((tm, C), lambda i: (i, 0))],
        out_specs=(pl.BlockSpec((1, C), lambda i: (0, 0)),
                   pl.BlockSpec((1, C), lambda i: (0, 0))),
        compiler_params=pltpu.CompilerParams(
            dimension_semantics=("arbitrary",)),
    )(x2)

    # tiny (1, C) math in plain JAX (divide by the TRUE row count M)
    mean = s / M
    var = jnp.maximum(q / M - mean * mean, 0.0)          # biased variance
    scale = gamma.reshape(1, C) * jax.lax.rsqrt(var + eps)
    shift = beta.reshape(1, C) - mean * scale

    y = pl.pallas_call(
        _scale_shift_relu_kernel,
        out_shape=jax.ShapeDtypeStruct((mp, C), jnp.float32),
        grid=(mp // tm,),
        in_specs=[pl.BlockSpec((tm, C), lambda i: (i, 0)),
                  pl.BlockSpec((1, C), lambda i: (0, 0)),
                  pl.BlockSpec((1, C), lambda i: (0, 0))],
        out_specs=pl.BlockSpec((tm, C), lambda i: (i, 0)),
        compiler_params=pltpu.CompilerParams(
            dimension_semantics=("parallel",)),
    )(x2, scale, shift)
    if mp != M:
        y = y[:M]
    return y.reshape(N, H, W, C)


def _avgpool_kernel(x_ref, o_ref):
    """x: (HW, N*C) -> (1, N*C) spatial mean (single vectorized reduce)."""
    o_ref[...] = jnp.mean(x_ref[...], axis=0, keepdims=True)


def global_avg_pool(x_nhwc):
    """adaptive_avg_pool2d(., 1) + flatten  ->  (N, C)."""
    N, H, W, C = x_nhwc.shape
    xt = jnp.transpose(x_nhwc.reshape(N, H * W, C), (1, 0, 2)).reshape(H * W, N * C)
    pooled = pl.pallas_call(
        _avgpool_kernel,
        out_shape=jax.ShapeDtypeStruct((1, N * C), jnp.float32),
        in_specs=[pl.BlockSpec(memory_space=pltpu.MemorySpace.VMEM)],
        out_specs=pl.BlockSpec(memory_space=pltpu.MemorySpace.VMEM),
    )(xt)
    return pooled.reshape(N, C)


def _softmax_xent_kernel(s_ref, y_ref, o_ref):
    """Mean cross entropy.  s: (N, K) logits, y: (N, 1) int32 labels, o: (1, 1)."""
    s = s_ref[...]
    labels = y_ref[...]
    m = jnp.max(s, axis=-1, keepdims=True)
    lse = jnp.log(jnp.sum(jnp.exp(s - m), axis=-1, keepdims=True)) + m
    cols = jax.lax.broadcasted_iota(jnp.int32, s.shape, 1)
    picked = jnp.sum(jnp.where(cols == labels, s, 0.0), axis=-1, keepdims=True)
    o_ref[...] = jnp.mean(lse - picked, keepdims=True)


def cross_entropy_mean(score, labels):
    N, _ = score.shape
    loss = pl.pallas_call(
        _softmax_xent_kernel,
        out_shape=jax.ShapeDtypeStruct((1, 1), jnp.float32),
        in_specs=[pl.BlockSpec(memory_space=pltpu.MemorySpace.VMEM)] * 2,
        out_specs=pl.BlockSpec(memory_space=pltpu.MemorySpace.VMEM),
    )(score, labels.reshape(N, 1).astype(jnp.int32))
    return loss[0, 0]


# ----------------------------------------------------------------------------
# Conv / linear wrappers (glue: pad, stride-subsampled im2col, reshape)
# ----------------------------------------------------------------------------
def conv3x3(x, w_mat, stride=1):
    """3x3 conv, padding=1, no bias.  Taps are subsampled for stride>1 BEFORE
    the matmul; the 9 taps are folded into K (one bf16 im2col slab)."""
    N, H, W, C = x.shape
    Ho = (H - 1) // stride + 1
    Wo = (W - 1) // stride + 1
    xp = jnp.pad(x, ((0, 0), (1, 1), (1, 1), (0, 0))).astype(jnp.bfloat16)
    taps = [xp[:, kh:kh + stride * (Ho - 1) + 1:stride,
               kw:kw + stride * (Wo - 1) + 1:stride, :]
            for kh in range(3) for kw in range(3)]
    col = jnp.concatenate(taps, axis=-1).reshape(N * Ho * Wo, 9 * C)
    y = matmul_bf16(col, w_mat)                      # (M, Cout_pad) f32
    return y.reshape(N, Ho, Wo, -1)


def conv1x1(x, w_mat, stride=1):
    """1x1 conv, padding=0, no bias (input subsampled before the matmul)."""
    if stride > 1:
        x = x[:, ::stride, ::stride, :]
    N, H, W, C = x.shape
    y = matmul_bf16(x.reshape(N * H * W, C), w_mat)
    return y.reshape(N, H, W, -1)


def linear(x, w_mat, b):
    """Dense layer on padded features; padded weight rows/cols are zero."""
    y = matmul_bf16(x, w_mat)                        # (batch, ncls_pad) f32
    return y[:, :b.shape[0]] + b[None, :]


# ----------------------------------------------------------------------------
# Model: pre-activation block + ResNet forward
# ----------------------------------------------------------------------------
def block_forward(x, blk):
    # out = relu(n1(scaler(x)))   (scaler = Identity, cfg['scale']=False)
    out = bn_relu(x, blk['n1_g'], blk['n1_b'])
    if 'sc_w' in blk:
        shortcut = conv1x1(out, blk['sc_w'], blk['stride'])
    else:
        shortcut = x
    out = conv3x3(out, blk['conv1_w'], blk['stride'])
    out = bn_relu(out, blk['n2_g'], blk['n2_b'])
    out = conv3x3(out, blk['conv2_w'], 1)
    return out + shortcut


def resnet_forward(params, img_nchw, labels):
    # layout: NCHW (PyTorch) -> NHWC so channels map onto TPU lanes
    x = jnp.transpose(img_nchw, (0, 2, 3, 1)).astype(jnp.float32)
    cin_p = params['conv1_w'].shape[0] // 9
    if cin_p != x.shape[-1]:
        x = jnp.pad(x, ((0, 0), (0, 0), (0, 0), (0, cin_p - x.shape[-1])))
    out = conv3x3(x, params['conv1_w'], 1)
    for blocks in params['layers']:
        for blk in blocks:
            out = block_forward(out, blk)
    out = bn_relu(out, params['n4_g'], params['n4_b'])   # relu(n4(scaler(out)))
    pooled = global_avg_pool(out)                        # adaptive_avg_pool2d(.,1)+view
    score = linear(pooled, params['lin_w'], params['lin_b'])
    # TODO(synk): cfg['mask'] label-split masking branch not implemented (cfg['mask']=False).
    loss = cross_entropy_mean(score, labels)             # reduction=True (mean)
    return {'score': score, 'loss': loss}


# ----------------------------------------------------------------------------
# Deterministic parameter construction (weights pre-padded to lane-dense
# channel widths and pre-flattened to (K, N) matmul layout, stored in bf16).
# ----------------------------------------------------------------------------
def init_params(key, data_shape, hidden_size, num_blocks, num_classes):
    keys = iter(jax.random.split(key, 256))

    def conv_w(k, ksz, cin, cout, cin_p, cout_p):
        std = (2.0 / (ksz * ksz * cin)) ** 0.5
        w = std * jax.random.normal(k, (ksz, ksz, cin, cout), jnp.float32)
        w = jnp.pad(w, ((0, 0), (0, 0), (0, cin_p - cin), (0, cout_p - cout)))
        return w.reshape(ksz * ksz * cin_p, cout_p).astype(jnp.bfloat16)

    def bn_p(c, c_p):     # padded gamma=0 / beta=0 keep padded channels at 0
        return (jnp.pad(jnp.ones((c,), jnp.float32), (0, c_p - c)),
                jnp.zeros((c_p,), jnp.float32))

    cin, cin_p = data_shape[0], _round_up(data_shape[0], 8)
    h0_p = _round_up(hidden_size[0], LANE)
    params = {'conv1_w': conv_w(next(keys), 3, cin, hidden_size[0], cin_p, h0_p)}
    in_planes, in_p = hidden_size[0], h0_p
    layers = []
    for li, planes in enumerate(hidden_size):
        planes_p = _round_up(planes, LANE)
        strides = [1 if li == 0 else 2] + [1] * (num_blocks[li] - 1)
        blocks = []
        for s in strides:
            blk = {'stride': s}                      # python int (static)
            blk['n1_g'], blk['n1_b'] = bn_p(in_planes, in_p)
            blk['conv1_w'] = conv_w(next(keys), 3, in_planes, planes, in_p, planes_p)
            blk['n2_g'], blk['n2_b'] = bn_p(planes, planes_p)
            blk['conv2_w'] = conv_w(next(keys), 3, planes, planes, planes_p, planes_p)
            if s != 1 or in_planes != planes:        # expansion = 1
                blk['sc_w'] = conv_w(next(keys), 1, in_planes, planes, in_p, planes_p)
            blocks.append(blk)
            in_planes, in_p = planes, planes_p
        layers.append(blocks)
    params['layers'] = layers
    params['n4_g'], params['n4_b'] = bn_p(in_planes, in_p)
    bound = 1.0 / (in_planes ** 0.5)
    ncls_p = _round_up(num_classes, LANE)
    lw = jax.random.uniform(next(keys), (in_planes, num_classes),
                            jnp.float32, -bound, bound)
    params['lin_w'] = jnp.pad(lw, ((0, in_p - in_planes),
                                   (0, ncls_p - num_classes))).astype(jnp.bfloat16)
    params['lin_b'] = jax.random.uniform(next(keys), (num_classes,),
                                         jnp.float32, -bound, bound)
    return params


if __name__ == "__main__":
    key = jax.random.PRNGKey(0)
    k_param, k_img, k_lbl = jax.random.split(key, 3)

    data_shape = (3, 16, 16)          # (C, H, W) like PyTorch
    hidden_size = [4, 8, 16, 32]
    num_blocks = [1, 1, 1, 1]
    num_classes = 10
    batch = 2

    params = init_params(k_param, data_shape, hidden_size, num_blocks, num_classes)
    img = jax.random.normal(k_img, (batch,) + data_shape, jnp.float32)    # NCHW
    labels = jax.random.randint(k_lbl, (batch,), 0, num_classes)

    fwd = jax.jit(lambda im, lb: resnet_forward(params, im, lb))
    out = fwd(img, labels)
    jax.block_until_ready((out['score'], out['loss']))

    assert out['score'].shape == (batch, num_classes)
    assert out['loss'].shape == ()
    print("KERNEL_OK")
</pallas_src>

<mosaic_0001>
module attributes {stable_mosaic.version = 11 : i64} {
  func.func @_matmul_kernel(%arg0: i32, %arg1: i32, %arg2: memref<512x72xbf16, #tpu.memory_space<vmem>>, %arg3: memref<72x128xbf16, #tpu.memory_space<vmem>>, %arg4: memref<512x128xf32, #tpu.memory_space<vmem>>) attributes {dimension_semantics = [#tpu.dimension_semantics<parallel>, #tpu.dimension_semantics<parallel>], iteration_bounds = array<i64: 1, 1>, scalar_prefetch = 0 : i64, scratch_operands = 0 : i64, tpu.core_type = #tpu.core_type<tc>, window_params = [{transform_indices = @transform_0, window_bounds = array<i64: 512, 72>}, {transform_indices = @transform_1, window_bounds = array<i64: 72, 128>}, {transform_indices = @transform_2, window_bounds = array<i64: 512, 128>}]} {
    %c0 = arith.constant 0 : index
    %c0_0 = arith.constant 0 : index
    %0 = vector.load %arg2[%c0, %c0_0] : memref<512x72xbf16, #tpu.memory_space<vmem>>, vector<512x72xbf16>
    %c0_1 = arith.constant 0 : index
    %c0_2 = arith.constant 0 : index
    %1 = vector.load %arg3[%c0_1, %c0_2] : memref<72x128xbf16, #tpu.memory_space<vmem>>, vector<72x128xbf16>
    %cst = arith.constant dense<0.000000e+00> : vector<512x128xf32>
    %2 = tpu.matmul %0, %1, %cst {dimension_numbers = #tpu.dot_dimension_numbers<[1], [0], [0], [1], [0, 0, 1, 1], [], []>} : vector<512x72xbf16>, vector<72x128xbf16>, vector<512x128xf32> -> vector<512x128xf32>
    %c0_3 = arith.constant 0 : index
    %c0_4 = arith.constant 0 : index
    %3 = vector.load %arg4[%c0_3, %c0_4] : memref<512x128xf32, #tpu.memory_space<vmem>>, vector<512x128xf32>
    tpu.vector_store %arg4[%c0_3, %c0_4], %2 {strides = array<i32>} : memref<512x128xf32, #tpu.memory_space<vmem>>, vector<512x128xf32>,
    return
  }
  func.func @transform_0(%arg0: i32, %arg1: i32) -> (i32, i32) {
    %c0_i32 = arith.constant 0 : i32
    %c0_i32_0 = arith.constant 0 : i32
    return %arg0, %c0_i32 : i32, i32
  }
  func.func @transform_1(%arg0: i32, %arg1: i32) -> (i32, i32) {
    %c0_i32 = arith.constant 0 : i32
    %c0_i32_0 = arith.constant 0 : i32
    return %c0_i32, %arg1 : i32, i32
  }
  func.func @transform_2(%arg0: i32, %arg1: i32) -> (i32, i32) {
    %c0_i32 = arith.constant 0 : i32
    return %arg0, %arg1 : i32, i32
  }
}

module attributes {stable_mosaic.version = 11 : i64} {
  func.func @_bn_stats_kernel(%arg0: i32, %arg1: memref<512x128xf32, #tpu.memory_space<vmem>>, %arg2: memref<1x128xf32, #tpu.memory_space<vmem>>, %arg3: memref<1x128xf32, #tpu.memory_space<vmem>>) attributes {dimension_semantics = [#tpu.dimension_semantics<arbitrary>], iteration_bounds = array<i64: 1>, scalar_prefetch = 0 : i64, scratch_operands = 0 : i64, tpu.core_type = #tpu.core_type<tc>, window_params = [{transform_indices = @transform_0, window_bounds = array<i64: 512, 128>}, {pipeline_mode = #tpu.pipeline_mode<synchronous>, transform_indices = @transform_1, window_bounds = array<i64: 1, 128>}, {pipeline_mode = #tpu.pipeline_mode<synchronous>, transform_indices = @transform_2, window_bounds = array<i64: 1, 128>}]} {
    %c0_i32 = arith.constant 0 : i32
    %0 = arith.cmpi eq, %arg0, %c0_i32 : i32
    %1 = arith.extui %0 : i1 to i32
    %c0_i32_0 = arith.constant 0 : i32
    %2 = arith.cmpi ne, %1, %c0_i32_0 : i32
    scf.if %2 {
      %cst_11 = arith.constant 0.000000e+00 : f32
      %15 = vector.broadcast %cst_11 : f32 to vector<1x128xf32>
      %c0_12 = arith.constant 0 : index
      %c0_13 = arith.constant 0 : index
      %16 = vector.load %arg2[%c0_12, %c0_13] : memref<1x128xf32, #tpu.memory_space<vmem>>, vector<1x128xf32>
      tpu.vector_store %arg2[%c0_12, %c0_13], %15 {strides = array<i32>} : memref<1x128xf32, #tpu.memory_space<vmem>>, vector<1x128xf32>,
      %cst_14 = arith.constant 0.000000e+00 : f32
      %17 = vector.broadcast %cst_14 : f32 to vector<1x128xf32>
      %c0_15 = arith.constant 0 : index
      %c0_16 = arith.constant 0 : index
      %18 = vector.load %arg3[%c0_15, %c0_16] : memref<1x128xf32, #tpu.memory_space<vmem>>, vector<1x128xf32>
      tpu.vector_store %arg3[%c0_15, %c0_16], %17 {strides = array<i32>} : memref<1x128xf32, #tpu.memory_space<vmem>>, vector<1x128xf32>,
    } else {
    }
    %c0 = arith.constant 0 : index
    %c0_1 = arith.constant 0 : index
    %3 = vector.load %arg1[%c0, %c0_1] : memref<512x128xf32, #tpu.memory_space<vmem>>, vector<512x128xf32>
    %c0_2 = arith.constant 0 : index
    %c0_3 = arith.constant 0 : index
    %4 = vector.load %arg2[%c0_2, %c0_3] : memref<1x128xf32, #tpu.memory_space<vmem>>, vector<1x128xf32>
    %cst = arith.constant dense<0.000000e+00> : vector<128xf32>
    %5 = vector.multi_reduction <add>, %3, %cst [0] : vector<512x128xf32> to vector<128xf32>
    %6 = vector.shape_cast %5 : vector<128xf32> to vector<1x128xf32>
    %7 = arith.addf %4, %6 : vector<1x128xf32>
    %c0_4 = arith.constant 0 : index
    %c0_5 = arith.constant 0 : index
    %8 = vector.load %arg2[%c0_4, %c0_5] : memref<1x128xf32, #tpu.memory_space<vmem>>, vector<1x128xf32>
    tpu.vector_store %arg2[%c0_4, %c0_5], %7 {strides = array<i32>} : memref<1x128xf32, #tpu.memory_space<vmem>>, vector<1x128xf32>,
    %c0_6 = arith.constant 0 : index
    %c0_7 = arith.constant 0 : index
    %9 = vector.load %arg3[%c0_6, %c0_7] : memref<1x128xf32, #tpu.memory_space<vmem>>, vector<1x128xf32>
    %10 = arith.mulf %3, %3 : vector<512x128xf32>
    %cst_8 = arith.constant dense<0.000000e+00> : vector<128xf32>
    %11 = vector.multi_reduction <add>, %10, %cst_8 [0] : vector<512x128xf32> to vector<128xf32>
    %12 = vector.shape_cast %11 : vector<128xf32> to vector<1x128xf32>
    %13 = arith.addf %9, %12 : vector<1x128xf32>
    %c0_9 = arith.constant 0 : index
    %c0_10 = arith.constant 0 : index
    %14 = vector.load %arg3[%c0_9, %c0_10] : memref<1x128xf32, #tpu.memory_space<vmem>>, vector<1x128xf32>
    tpu.vector_store %arg3[%c0_9, %c0_10], %13 {strides = array<i32>} : memref<1x128xf32, #tpu.memory_space<vmem>>, vector<1x128xf32>,
    return
  }
  func.func @transform_0(%arg0: i32) -> (i32, i32) {
    %c0_i32 = arith.constant 0 : i32
    %c0_i32_0 = arith.constant 0 : i32
    return %arg0, %c0_i32 : i32, i32
  }
  func.func @transform_1(%arg0: i32) -> (i32, i32) {
    %c0_i32 = arith.constant 0 : i32
    %c0_i32_0 = arith.constant 0 : i32
    %c0_i32_1 = arith.constant 0 : i32
    return %c0_i32, %c0_i32_0 : i32, i32
  }
  func.func @transform_2(%arg0: i32) -> (i32, i32) {
    %c0_i32 = arith.constant 0 : i32
    %c0_i32_0 = arith.constant 0 : i32
    %c0_i32_1 = arith.constant 0 : i32
    return %c0_i32, %c0_i32_0 : i32, i32
  }
}

module attributes {stable_mosaic.version = 11 : i64} {
  func.func @_scale_shift_relu_kernel(%arg0: i32, %arg1: memref<512x128xf32, #tpu.memory_space<vmem>>, %arg2: memref<1x128xf32, #tpu.memory_space<vmem>>, %arg3: memref<1x128xf32, #tpu.memory_space<vmem>>, %arg4: memref<512x128xf32, #tpu.memory_space<vmem>>) attributes {dimension_semantics = [#tpu.dimension_semantics<parallel>], iteration_bounds = array<i64: 1>, scalar_prefetch = 0 : i64, scratch_operands = 0 : i64, tpu.core_type = #tpu.core_type<tc>, window_params = [{transform_indices = @transform_0, window_bounds = array<i64: 512, 128>}, {pipeline_mode = #tpu.pipeline_mode<synchronous>, transform_indices = @transform_1, window_bounds = array<i64: 1, 128>}, {pipeline_mode = #tpu.pipeline_mode<synchronous>, transform_indices = @transform_2, window_bounds = array<i64: 1, 128>}, {transform_indices = @transform_3, window_bounds = array<i64: 512, 128>}]} {
    %c0 = arith.constant 0 : index
    %c0_0 = arith.constant 0 : index
    %0 = vector.load %arg1[%c0, %c0_0] : memref<512x128xf32, #tpu.memory_space<vmem>>, vector<512x128xf32>
    %c0_1 = arith.constant 0 : index
    %c0_2 = arith.constant 0 : index
    %1 = vector.load %arg2[%c0_1, %c0_2] : memref<1x128xf32, #tpu.memory_space<vmem>>, vector<1x128xf32>
    %2 = vector.broadcast %1 : vector<1x128xf32> to vector<512x128xf32>
    %3 = arith.mulf %0, %2 : vector<512x128xf32>
    %c0_3 = arith.constant 0 : index
    %c0_4 = arith.constant 0 : index
    %4 = vector.load %arg3[%c0_3, %c0_4] : memref<1x128xf32, #tpu.memory_space<vmem>>, vector<1x128xf32>
    %5 = vector.broadcast %4 : vector<1x128xf32> to vector<512x128xf32>
    %6 = arith.addf %3, %5 : vector<512x128xf32>
    %cst = arith.constant 0.000000e+00 : f32
    %7 = vector.broadcast %cst : f32 to vector<512x128xf32>
    %8 = arith.maximumf %6, %7 : vector<512x128xf32>
    %c0_5 = arith.constant 0 : index
    %c0_6 = arith.constant 0 : index
    %9 = vector.load %arg4[%c0_5, %c0_6] : memref<512x128xf32, #tpu.memory_space<vmem>>, vector<512x128xf32>
    tpu.vector_store %arg4[%c0_5, %c0_6], %8 {strides = array<i32>} : memref<512x128xf32, #tpu.memory_space<vmem>>, vector<512x128xf32>,
    return
  }
  func.func @transform_0(%arg0: i32) -> (i32, i32) {
    %c0_i32 = arith.constant 0 : i32
    %c0_i32_0 = arith.constant 0 : i32
    return %arg0, %c0_i32 : i32, i32
  }
  func.func @transform_1(%arg0: i32) -> (i32, i32) {
    %c0_i32 = arith.constant 0 : i32
    %c0_i32_0 = arith.constant 0 : i32
    %c0_i32_1 = arith.constant 0 : i32
    return %c0_i32, %c0_i32_0 : i32, i32
  }
  func.func @transform_2(%arg0: i32) -> (i32, i32) {
    %c0_i32 = arith.constant 0 : i32
    %c0_i32_0 = arith.constant 0 : i32
    %c0_i32_1 = arith.constant 0 : i32
    return %c0_i32, %c0_i32_0 : i32, i32
  }
  func.func @transform_3(%arg0: i32) -> (i32, i32) {
    %c0_i32 = arith.constant 0 : i32
    %c0_i32_0 = arith.constant 0 : i32
    return %arg0, %c0_i32 : i32, i32
  }
}

module attributes {stable_mosaic.version = 11 : i64} {
  func.func @_matmul_kernel(%arg0: i32, %arg1: i32, %arg2: memref<512x1152xbf16, #tpu.memory_space<vmem>>, %arg3: memref<1152x128xbf16, #tpu.memory_space<vmem>>, %arg4: memref<512x128xf32, #tpu.memory_space<vmem>>) attributes {dimension_semantics = [#tpu.dimension_semantics<parallel>, #tpu.dimension_semantics<parallel>], iteration_bounds = array<i64: 1, 1>, scalar_prefetch = 0 : i64, scratch_operands = 0 : i64, tpu.core_type = #tpu.core_type<tc>, window_params = [{transform_indices = @transform_0, window_bounds = array<i64: 512, 1152>}, {transform_indices = @transform_1, window_bounds = array<i64: 1152, 128>}, {transform_indices = @transform_2, window_bounds = array<i64: 512, 128>}]} {
    %c0 = arith.constant 0 : index
    %c0_0 = arith.constant 0 : index
    %0 = vector.load %arg2[%c0, %c0_0] : memref<512x1152xbf16, #tpu.memory_space<vmem>>, vector<512x1152xbf16>
    %c0_1 = arith.constant 0 : index
    %c0_2 = arith.constant 0 : index
    %1 = vector.load %arg3[%c0_1, %c0_2] : memref<1152x128xbf16, #tpu.memory_space<vmem>>, vector<1152x128xbf16>
    %cst = arith.constant dense<0.000000e+00> : vector<512x128xf32>
    %2 = tpu.matmul %0, %1, %cst {dimension_numbers = #tpu.dot_dimension_numbers<[1], [0], [0], [1], [0, 0, 1, 1], [], []>} : vector<512x1152xbf16>, vector<1152x128xbf16>, vector<512x128xf32> -> vector<512x128xf32>
    %c0_3 = arith.constant 0 : index
    %c0_4 = arith.constant 0 : index
    %3 = vector.load %arg4[%c0_3, %c0_4] : memref<512x128xf32, #tpu.memory_space<vmem>>, vector<512x128xf32>
    tpu.vector_store %arg4[%c0_3, %c0_4], %2 {strides = array<i32>} : memref<512x128xf32, #tpu.memory_space<vmem>>, vector<512x128xf32>,
    return
  }
  func.func @transform_0(%arg0: i32, %arg1: i32) -> (i32, i32) {
    %c0_i32 = arith.constant 0 : i32
    %c0_i32_0 = arith.constant 0 : i32
    return %arg0, %c0_i32 : i32, i32
  }
  func.func @transform_1(%arg0: i32, %arg1: i32) -> (i32, i32) {
    %c0_i32 = arith.constant 0 : i32
    %c0_i32_0 = arith.constant 0 : i32
    return %c0_i32, %arg1 : i32, i32
  }
  func.func @transform_2(%arg0: i32, %arg1: i32) -> (i32, i32) {
    %c0_i32 = arith.constant 0 : i32
    return %arg0, %arg1 : i32, i32
  }
}

module attributes {stable_mosaic.version = 11 : i64} {
  func.func @_scale_shift_relu_kernel(%arg0: i32, %arg1: memref<128x128xf32, #tpu.memory_space<vmem>>, %arg2: memref<1x128xf32, #tpu.memory_space<vmem>>, %arg3: memref<1x128xf32, #tpu.memory_space<vmem>>, %arg4: memref<128x128xf32, #tpu.memory_space<vmem>>) attributes {dimension_semantics = [#tpu.dimension_semantics<parallel>], iteration_bounds = array<i64: 1>, scalar_prefetch = 0 : i64, scratch_operands = 0 : i64, tpu.core_type = #tpu.core_type<tc>, window_params = [{transform_indices = @transform_0, window_bounds = array<i64: 128, 128>}, {pipeline_mode = #tpu.pipeline_mode<synchronous>, transform_indices = @transform_1, window_bounds = array<i64: 1, 128>}, {pipeline_mode = #tpu.pipeline_mode<synchronous>, transform_indices = @transform_2, window_bounds = array<i64: 1, 128>}, {transform_indices = @transform_3, window_bounds = array<i64: 128, 128>}]} {
    %c0 = arith.constant 0 : index
    %c0_0 = arith.constant 0 : index
    %0 = vector.load %arg1[%c0, %c0_0] : memref<128x128xf32, #tpu.memory_space<vmem>>, vector<128x128xf32>
    %c0_1 = arith.constant 0 : index
    %c0_2 = arith.constant 0 : index
    %1 = vector.load %arg2[%c0_1, %c0_2] : memref<1x128xf32, #tpu.memory_space<vmem>>, vector<1x128xf32>
    %2 = vector.broadcast %1 : vector<1x128xf32> to vector<128x128xf32>
    %3 = arith.mulf %0, %2 : vector<128x128xf32>
    %c0_3 = arith.constant 0 : index
    %c0_4 = arith.constant 0 : index
    %4 = vector.load %arg3[%c0_3, %c0_4] : memref<1x128xf32, #tpu.memory_space<vmem>>, vector<1x128xf32>
    %5 = vector.broadcast %4 : vector<1x128xf32> to vector<128x128xf32>
    %6 = arith.addf %3, %5 : vector<128x128xf32>
    %cst = arith.constant 0.000000e+00 : f32
    %7 = vector.broadcast %cst : f32 to vector<128x128xf32>
    %8 = arith.maximumf %6, %7 : vector<128x128xf32>
    %c0_5 = arith.constant 0 : index
    %c0_6 = arith.constant 0 : index
    %9 = vector.load %arg4[%c0_5, %c0_6] : memref<128x128xf32, #tpu.memory_space<vmem>>, vector<128x128xf32>
    tpu.vector_store %arg4[%c0_5, %c0_6], %8 {strides = array<i32>} : memref<128x128xf32, #tpu.memory_space<vmem>>, vector<128x128xf32>,
    return
  }
  func.func @transform_0(%arg0: i32) -> (i32, i32) {
    %c0_i32 = arith.constant 0 : i32
    %c0_i32_0 = arith.constant 0 : i32
    return %arg0, %c0_i32 : i32, i32
  }
  func.func @transform_1(%arg0: i32) -> (i32, i32) {
    %c0_i32 = arith.constant 0 : i32
    %c0_i32_0 = arith.constant 0 : i32
    %c0_i32_1 = arith.constant 0 : i32
    return %c0_i32, %c0_i32_0 : i32, i32
  }
  func.func @transform_2(%arg0: i32) -> (i32, i32) {
    %c0_i32 = arith.constant 0 : i32
    %c0_i32_0 = arith.constant 0 : i32
    %c0_i32_1 = arith.constant 0 : i32
    return %c0_i32, %c0_i32_0 : i32, i32
  }
  func.func @transform_3(%arg0: i32) -> (i32, i32) {
    %c0_i32 = arith.constant 0 : i32
    %c0_i32_0 = arith.constant 0 : i32
    return %arg0, %c0_i32 : i32, i32
  }
}

module attributes {stable_mosaic.version = 11 : i64} {
  func.func @_bn_stats_kernel(%arg0: i32, %arg1: memref<128x128xf32, #tpu.memory_space<vmem>>, %arg2: memref<1x128xf32, #tpu.memory_space<vmem>>, %arg3: memref<1x128xf32, #tpu.memory_space<vmem>>) attributes {dimension_semantics = [#tpu.dimension_semantics<arbitrary>], iteration_bounds = array<i64: 1>, scalar_prefetch = 0 : i64, scratch_operands = 0 : i64, tpu.core_type = #tpu.core_type<tc>, window_params = [{transform_indices = @transform_0, window_bounds = array<i64: 128, 128>}, {pipeline_mode = #tpu.pipeline_mode<synchronous>, transform_indices = @transform_1, window_bounds = array<i64: 1, 128>}, {pipeline_mode = #tpu.pipeline_mode<synchronous>, transform_indices = @transform_2, window_bounds = array<i64: 1, 128>}]} {
    %c0_i32 = arith.constant 0 : i32
    %0 = arith.cmpi eq, %arg0, %c0_i32 : i32
    %1 = arith.extui %0 : i1 to i32
    %c0_i32_0 = arith.constant 0 : i32
    %2 = arith.cmpi ne, %1, %c0_i32_0 : i32
    scf.if %2 {
      %cst_11 = arith.constant 0.000000e+00 : f32
      %15 = vector.broadcast %cst_11 : f32 to vector<1x128xf32>
      %c0_12 = arith.constant 0 : index
      %c0_13 = arith.constant 0 : index
      %16 = vector.load %arg2[%c0_12, %c0_13] : memref<1x128xf32, #tpu.memory_space<vmem>>, vector<1x128xf32>
      tpu.vector_store %arg2[%c0_12, %c0_13], %15 {strides = array<i32>} : memref<1x128xf32, #tpu.memory_space<vmem>>, vector<1x128xf32>,
      %cst_14 = arith.constant 0.000000e+00 : f32
      %17 = vector.broadcast %cst_14 : f32 to vector<1x128xf32>
      %c0_15 = arith.constant 0 : index
      %c0_16 = arith.constant 0 : index
      %18 = vector.load %arg3[%c0_15, %c0_16] : memref<1x128xf32, #tpu.memory_space<vmem>>, vector<1x128xf32>
      tpu.vector_store %arg3[%c0_15, %c0_16], %17 {strides = array<i32>} : memref<1x128xf32, #tpu.memory_space<vmem>>, vector<1x128xf32>,
    } else {
    }
    %c0 = arith.constant 0 : index
    %c0_1 = arith.constant 0 : index
    %3 = vector.load %arg1[%c0, %c0_1] : memref<128x128xf32, #tpu.memory_space<vmem>>, vector<128x128xf32>
    %c0_2 = arith.constant 0 : index
    %c0_3 = arith.constant 0 : index
    %4 = vector.load %arg2[%c0_2, %c0_3] : memref<1x128xf32, #tpu.memory_space<vmem>>, vector<1x128xf32>
    %cst = arith.constant dense<0.000000e+00> : vector<128xf32>
    %5 = vector.multi_reduction <add>, %3, %cst [0] : vector<128x128xf32> to vector<128xf32>
    %6 = vector.shape_cast %5 : vector<128xf32> to vector<1x128xf32>
    %7 = arith.addf %4, %6 : vector<1x128xf32>
    %c0_4 = arith.constant 0 : index
    %c0_5 = arith.constant 0 : index
    %8 = vector.load %arg2[%c0_4, %c0_5] : memref<1x128xf32, #tpu.memory_space<vmem>>, vector<1x128xf32>
    tpu.vector_store %arg2[%c0_4, %c0_5], %7 {strides = array<i32>} : memref<1x128xf32, #tpu.memory_space<vmem>>, vector<1x128xf32>,
    %c0_6 = arith.constant 0 : index
    %c0_7 = arith.constant 0 : index
    %9 = vector.load %arg3[%c0_6, %c0_7] : memref<1x128xf32, #tpu.memory_space<vmem>>, vector<1x128xf32>
    %10 = arith.mulf %3, %3 : vector<128x128xf32>
    %cst_8 = arith.constant dense<0.000000e+00> : vector<128xf32>
    %11 = vector.multi_reduction <add>, %10, %cst_8 [0] : vector<128x128xf32> to vector<128xf32>
    %12 = vector.shape_cast %11 : vector<128xf32> to vector<1x128xf32>
    %13 = arith.addf %9, %12 : vector<1x128xf32>
    %c0_9 = arith.constant 0 : index
    %c0_10 = arith.constant 0 : index
    %14 = vector.load %arg3[%c0_9, %c0_10] : memref<1x128xf32, #tpu.memory_space<vmem>>, vector<1x128xf32>
    tpu.vector_store %arg3[%c0_9, %c0_10], %13 {strides = array<i32>} : memref<1x128xf32, #tpu.memory_space<vmem>>, vector<1x128xf32>,
    return
  }
  func.func @transform_0(%arg0: i32) -> (i32, i32) {
    %c0_i32 = arith.constant 0 : i32
    %c0_i32_0 = arith.constant 0 : i32
    return %arg0, %c0_i32 : i32, i32
  }
  func.func @transform_1(%arg0: i32) -> (i32, i32) {
    %c0_i32 = arith.constant 0 : i32
    %c0_i32_0 = arith.constant 0 : i32
    %c0_i32_1 = arith.constant 0 : i32
    return %c0_i32, %c0_i32_0 : i32, i32
  }
  func.func @transform_2(%arg0: i32) -> (i32, i32) {
    %c0_i32 = arith.constant 0 : i32
    %c0_i32_0 = arith.constant 0 : i32
    %c0_i32_1 = arith.constant 0 : i32
    return %c0_i32, %c0_i32_0 : i32, i32
  }
}

module attributes {stable_mosaic.version = 11 : i64} {
  func.func @_matmul_kernel(%arg0: i32, %arg1: i32, %arg2: memref<128x1152xbf16, #tpu.memory_space<vmem>>, %arg3: memref<1152x128xbf16, #tpu.memory_space<vmem>>, %arg4: memref<128x128xf32, #tpu.memory_space<vmem>>) attributes {dimension_semantics = [#tpu.dimension_semantics<parallel>, #tpu.dimension_semantics<parallel>], iteration_bounds = array<i64: 1, 1>, scalar_prefetch = 0 : i64, scratch_operands = 0 : i64, tpu.core_type = #tpu.core_type<tc>, window_params = [{transform_indices = @transform_0, window_bounds = array<i64: 128, 1152>}, {transform_indices = @transform_1, window_bounds = array<i64: 1152, 128>}, {transform_indices = @transform_2, window_bounds = array<i64: 128, 128>}]} {
    %c0 = arith.constant 0 : index
    %c0_0 = arith.constant 0 : index
    %0 = vector.load %arg2[%c0, %c0_0] : memref<128x1152xbf16, #tpu.memory_space<vmem>>, vector<128x1152xbf16>
    %c0_1 = arith.constant 0 : index
    %c0_2 = arith.constant 0 : index
    %1 = vector.load %arg3[%c0_1, %c0_2] : memref<1152x128xbf16, #tpu.memory_space<vmem>>, vector<1152x128xbf16>
    %cst = arith.constant dense<0.000000e+00> : vector<128x128xf32>
    %2 = tpu.matmul %0, %1, %cst {dimension_numbers = #tpu.dot_dimension_numbers<[1], [0], [0], [1], [0, 0, 1, 1], [], []>} : vector<128x1152xbf16>, vector<1152x128xbf16>, vector<128x128xf32> -> vector<128x128xf32>
    %c0_3 = arith.constant 0 : index
    %c0_4 = arith.constant 0 : index
    %3 = vector.load %arg4[%c0_3, %c0_4] : memref<128x128xf32, #tpu.memory_space<vmem>>, vector<128x128xf32>
    tpu.vector_store %arg4[%c0_3, %c0_4], %2 {strides = array<i32>} : memref<128x128xf32, #tpu.memory_space<vmem>>, vector<128x128xf32>,
    return
  }
  func.func @transform_0(%arg0: i32, %arg1: i32) -> (i32, i32) {
    %c0_i32 = arith.constant 0 : i32
    %c0_i32_0 = arith.constant 0 : i32
    return %arg0, %c0_i32 : i32, i32
  }
  func.func @transform_1(%arg0: i32, %arg1: i32) -> (i32, i32) {
    %c0_i32 = arith.constant 0 : i32
    %c0_i32_0 = arith.constant 0 : i32
    return %c0_i32, %arg1 : i32, i32
  }
  func.func @transform_2(%arg0: i32, %arg1: i32) -> (i32, i32) {
    %c0_i32 = arith.constant 0 : i32
    return %arg0, %arg1 : i32, i32
  }
}

module attributes {stable_mosaic.version = 11 : i64} {
  func.func @_matmul_kernel(%arg0: i32, %arg1: i32, %arg2: memref<128x128xbf16, #tpu.memory_space<vmem>>, %arg3: memref<128x128xbf16, #tpu.memory_space<vmem>>, %arg4: memref<128x128xf32, #tpu.memory_space<vmem>>) attributes {dimension_semantics = [#tpu.dimension_semantics<parallel>, #tpu.dimension_semantics<parallel>], iteration_bounds = array<i64: 1, 1>, scalar_prefetch = 0 : i64, scratch_operands = 0 : i64, tpu.core_type = #tpu.core_type<tc>, window_params = [{transform_indices = @transform_0, window_bounds = array<i64: 128, 128>}, {transform_indices = @transform_1, window_bounds = array<i64: 128, 128>}, {transform_indices = @transform_2, window_bounds = array<i64: 128, 128>}]} {
    %c0 = arith.constant 0 : index
    %c0_0 = arith.constant 0 : index
    %0 = vector.load %arg2[%c0, %c0_0] : memref<128x128xbf16, #tpu.memory_space<vmem>>, vector<128x128xbf16>
    %c0_1 = arith.constant 0 : index
    %c0_2 = arith.constant 0 : index
    %1 = vector.load %arg3[%c0_1, %c0_2] : memref<128x128xbf16, #tpu.memory_space<vmem>>, vector<128x128xbf16>
    %cst = arith.constant dense<0.000000e+00> : vector<128x128xf32>
    %2 = tpu.matmul %0, %1, %cst {dimension_numbers = #tpu.dot_dimension_numbers<[1], [0], [0], [1], [0, 0, 1, 1], [], []>} : vector<128x128xbf16>, vector<128x128xbf16>, vector<128x128xf32> -> vector<128x128xf32>
    %c0_3 = arith.constant 0 : index
    %c0_4 = arith.constant 0 : index
    %3 = vector.load %arg4[%c0_3, %c0_4] : memref<128x128xf32, #tpu.memory_space<vmem>>, vector<128x128xf32>
    tpu.vector_store %arg4[%c0_3, %c0_4], %2 {strides = array<i32>} : memref<128x128xf32, #tpu.memory_space<vmem>>, vector<128x128xf32>,
    return
  }
  func.func @transform_0(%arg0: i32, %arg1: i32) -> (i32, i32) {
    %c0_i32 = arith.constant 0 : i32
    %c0_i32_0 = arith.constant 0 : i32
    return %arg0, %c0_i32 : i32, i32
  }
  func.func @transform_1(%arg0: i32, %arg1: i32) -> (i32, i32) {
    %c0_i32 = arith.constant 0 : i32
    %c0_i32_0 = arith.constant 0 : i32
    return %c0_i32, %arg1 : i32, i32
  }
  func.func @transform_2(%arg0: i32, %arg1: i32) -> (i32, i32) {
    %c0_i32 = arith.constant 0 : i32
    return %arg0, %arg1 : i32, i32
  }
}

module attributes {stable_mosaic.version = 11 : i64} {
  func.func @_bn_stats_kernel(%arg0: i32, %arg1: memref<32x128xf32, #tpu.memory_space<vmem>>, %arg2: memref<1x128xf32, #tpu.memory_space<vmem>>, %arg3: memref<1x128xf32, #tpu.memory_space<vmem>>) attributes {dimension_semantics = [#tpu.dimension_semantics<arbitrary>], iteration_bounds = array<i64: 1>, scalar_prefetch = 0 : i64, scratch_operands = 0 : i64, tpu.core_type = #tpu.core_type<tc>, window_params = [{transform_indices = @transform_0, window_bounds = array<i64: 32, 128>}, {pipeline_mode = #tpu.pipeline_mode<synchronous>, transform_indices = @transform_1, window_bounds = array<i64: 1, 128>}, {pipeline_mode = #tpu.pipeline_mode<synchronous>, transform_indices = @transform_2, window_bounds = array<i64: 1, 128>}]} {
    %c0_i32 = arith.constant 0 : i32
    %0 = arith.cmpi eq, %arg0, %c0_i32 : i32
    %1 = arith.extui %0 : i1 to i32
    %c0_i32_0 = arith.constant 0 : i32
    %2 = arith.cmpi ne, %1, %c0_i32_0 : i32
    scf.if %2 {
      %cst_11 = arith.constant 0.000000e+00 : f32
      %15 = vector.broadcast %cst_11 : f32 to vector<1x128xf32>
      %c0_12 = arith.constant 0 : index
      %c0_13 = arith.constant 0 : index
      %16 = vector.load %arg2[%c0_12, %c0_13] : memref<1x128xf32, #tpu.memory_space<vmem>>, vector<1x128xf32>
      tpu.vector_store %arg2[%c0_12, %c0_13], %15 {strides = array<i32>} : memref<1x128xf32, #tpu.memory_space<vmem>>, vector<1x128xf32>,
      %cst_14 = arith.constant 0.000000e+00 : f32
      %17 = vector.broadcast %cst_14 : f32 to vector<1x128xf32>
      %c0_15 = arith.constant 0 : index
      %c0_16 = arith.constant 0 : index
      %18 = vector.load %arg3[%c0_15, %c0_16] : memref<1x128xf32, #tpu.memory_space<vmem>>, vector<1x128xf32>
      tpu.vector_store %arg3[%c0_15, %c0_16], %17 {strides = array<i32>} : memref<1x128xf32, #tpu.memory_space<vmem>>, vector<1x128xf32>,
    } else {
    }
    %c0 = arith.constant 0 : index
    %c0_1 = arith.constant 0 : index
    %3 = vector.load %arg1[%c0, %c0_1] : memref<32x128xf32, #tpu.memory_space<vmem>>, vector<32x128xf32>
    %c0_2 = arith.constant 0 : index
    %c0_3 = arith.constant 0 : index
    %4 = vector.load %arg2[%c0_2, %c0_3] : memref<1x128xf32, #tpu.memory_space<vmem>>, vector<1x128xf32>
    %cst = arith.constant dense<0.000000e+00> : vector<128xf32>
    %5 = vector.multi_reduction <add>, %3, %cst [0] : vector<32x128xf32> to vector<128xf32>
    %6 = vector.shape_cast %5 : vector<128xf32> to vector<1x128xf32>
    %7 = arith.addf %4, %6 : vector<1x128xf32>
    %c0_4 = arith.constant 0 : index
    %c0_5 = arith.constant 0 : index
    %8 = vector.load %arg2[%c0_4, %c0_5] : memref<1x128xf32, #tpu.memory_space<vmem>>, vector<1x128xf32>
    tpu.vector_store %arg2[%c0_4, %c0_5], %7 {strides = array<i32>} : memref<1x128xf32, #tpu.memory_space<vmem>>, vector<1x128xf32>,
    %c0_6 = arith.constant 0 : index
    %c0_7 = arith.constant 0 : index
    %9 = vector.load %arg3[%c0_6, %c0_7] : memref<1x128xf32, #tpu.memory_space<vmem>>, vector<1x128xf32>
    %10 = arith.mulf %3, %3 : vector<32x128xf32>
    %cst_8 = arith.constant dense<0.000000e+00> : vector<128xf32>
    %11 = vector.multi_reduction <add>, %10, %cst_8 [0] : vector<32x128xf32> to vector<128xf32>
    %12 = vector.shape_cast %11 : vector<128xf32> to vector<1x128xf32>
    %13 = arith.addf %9, %12 : vector<1x128xf32>
    %c0_9 = arith.constant 0 : index
    %c0_10 = arith.constant 0 : index
    %14 = vector.load %arg3[%c0_9, %c0_10] : memref<1x128xf32, #tpu.memory_space<vmem>>, vector<1x128xf32>
    tpu.vector_store %arg3[%c0_9, %c0_10], %13 {strides = array<i32>} : memref<1x128xf32, #tpu.memory_space<vmem>>, vector<1x128xf32>,
    return
  }
  func.func @transform_0(%arg0: i32) -> (i32, i32) {
    %c0_i32 = arith.constant 0 : i32
    %c0_i32_0 = arith.constant 0 : i32
    return %arg0, %c0_i32 : i32, i32
  }
  func.func @transform_1(%arg0: i32) -> (i32, i32) {
    %c0_i32 = arith.constant 0 : i32
    %c0_i32_0 = arith.constant 0 : i32
    %c0_i32_1 = arith.constant 0 : i32
    return %c0_i32, %c0_i32_0 : i32, i32
  }
  func.func @transform_2(%arg0: i32) -> (i32, i32) {
    %c0_i32 = arith.constant 0 : i32
    %c0_i32_0 = arith.constant 0 : i32
    %c0_i32_1 = arith.constant 0 : i32
    return %c0_i32, %c0_i32_0 : i32, i32
  }
}

module attributes {stable_mosaic.version = 11 : i64} {
  func.func @_matmul_kernel(%arg0: i32, %arg1: i32, %arg2: memref<32x1152xbf16, #tpu.memory_space<vmem>>, %arg3: memref<1152x128xbf16, #tpu.memory_space<vmem>>, %arg4: memref<32x128xf32, #tpu.memory_space<vmem>>) attributes {dimension_semantics = [#tpu.dimension_semantics<parallel>, #tpu.dimension_semantics<parallel>], iteration_bounds = array<i64: 1, 1>, scalar_prefetch = 0 : i64, scratch_operands = 0 : i64, tpu.core_type = #tpu.core_type<tc>, window_params = [{transform_indices = @transform_0, window_bounds = array<i64: 32, 1152>}, {transform_indices = @transform_1, window_bounds = array<i64: 1152, 128>}, {transform_indices = @transform_2, window_bounds = array<i64: 32, 128>}]} {
    %c0 = arith.constant 0 : index
    %c0_0 = arith.constant 0 : index
    %0 = vector.load %arg2[%c0, %c0_0] : memref<32x1152xbf16, #tpu.memory_space<vmem>>, vector<32x1152xbf16>
    %c0_1 = arith.constant 0 : index
    %c0_2 = arith.constant 0 : index
    %1 = vector.load %arg3[%c0_1, %c0_2] : memref<1152x128xbf16, #tpu.memory_space<vmem>>, vector<1152x128xbf16>
    %cst = arith.constant dense<0.000000e+00> : vector<32x128xf32>
    %2 = tpu.matmul %0, %1, %cst {dimension_numbers = #tpu.dot_dimension_numbers<[1], [0], [0], [1], [0, 0, 1, 1], [], []>} : vector<32x1152xbf16>, vector<1152x128xbf16>, vector<32x128xf32> -> vector<32x128xf32>
    %c0_3 = arith.constant 0 : index
    %c0_4 = arith.constant 0 : index
    %3 = vector.load %arg4[%c0_3, %c0_4] : memref<32x128xf32, #tpu.memory_space<vmem>>, vector<32x128xf32>
    tpu.vector_store %arg4[%c0_3, %c0_4], %2 {strides = array<i32>} : memref<32x128xf32, #tpu.memory_space<vmem>>, vector<32x128xf32>,
    return
  }
  func.func @transform_0(%arg0: i32, %arg1: i32) -> (i32, i32) {
    %c0_i32 = arith.constant 0 : i32
    %c0_i32_0 = arith.constant 0 : i32
    return %arg0, %c0_i32 : i32, i32
  }
  func.func @transform_1(%arg0: i32, %arg1: i32) -> (i32, i32) {
    %c0_i32 = arith.constant 0 : i32
    %c0_i32_0 = arith.constant 0 : i32
    return %c0_i32, %arg1 : i32, i32
  }
  func.func @transform_2(%arg0: i32, %arg1: i32) -> (i32, i32) {
    %c0_i32 = arith.constant 0 : i32
    return %arg0, %arg1 : i32, i32
  }
}

module attributes {stable_mosaic.version = 11 : i64} {
  func.func @_scale_shift_relu_kernel(%arg0: i32, %arg1: memref<32x128xf32, #tpu.memory_space<vmem>>, %arg2: memref<1x128xf32, #tpu.memory_space<vmem>>, %arg3: memref<1x128xf32, #tpu.memory_space<vmem>>, %arg4: memref<32x128xf32, #tpu.memory_space<vmem>>) attributes {dimension_semantics = [#tpu.dimension_semantics<parallel>], iteration_bounds = array<i64: 1>, scalar_prefetch = 0 : i64, scratch_operands = 0 : i64, tpu.core_type = #tpu.core_type<tc>, window_params = [{transform_indices = @transform_0, window_bounds = array<i64: 32, 128>}, {pipeline_mode = #tpu.pipeline_mode<synchronous>, transform_indices = @transform_1, window_bounds = array<i64: 1, 128>}, {pipeline_mode = #tpu.pipeline_mode<synchronous>, transform_indices = @transform_2, window_bounds = array<i64: 1, 128>}, {transform_indices = @transform_3, window_bounds = array<i64: 32, 128>}]} {
    %c0 = arith.constant 0 : index
    %c0_0 = arith.constant 0 : index
    %0 = vector.load %arg1[%c0, %c0_0] : memref<32x128xf32, #tpu.memory_space<vmem>>, vector<32x128xf32>
    %c0_1 = arith.constant 0 : index
    %c0_2 = arith.constant 0 : index
    %1 = vector.load %arg2[%c0_1, %c0_2] : memref<1x128xf32, #tpu.memory_space<vmem>>, vector<1x128xf32>
    %2 = vector.broadcast %1 : vector<1x128xf32> to vector<32x128xf32>
    %3 = arith.mulf %0, %2 : vector<32x128xf32>
    %c0_3 = arith.constant 0 : index
    %c0_4 = arith.constant 0 : index
    %4 = vector.load %arg3[%c0_3, %c0_4] : memref<1x128xf32, #tpu.memory_space<vmem>>, vector<1x128xf32>
    %5 = vector.broadcast %4 : vector<1x128xf32> to vector<32x128xf32>
    %6 = arith.addf %3, %5 : vector<32x128xf32>
    %cst = arith.constant 0.000000e+00 : f32
    %7 = vector.broadcast %cst : f32 to vector<32x128xf32>
    %8 = arith.maximumf %6, %7 : vector<32x128xf32>
    %c0_5 = arith.constant 0 : index
    %c0_6 = arith.constant 0 : index
    %9 = vector.load %arg4[%c0_5, %c0_6] : memref<32x128xf32, #tpu.memory_space<vmem>>, vector<32x128xf32>
    tpu.vector_store %arg4[%c0_5, %c0_6], %8 {strides = array<i32>} : memref<32x128xf32, #tpu.memory_space<vmem>>, vector<32x128xf32>,
    return
  }
  func.func @transform_0(%arg0: i32) -> (i32, i32) {
    %c0_i32 = arith.constant 0 : i32
    %c0_i32_0 = arith.constant 0 : i32
    return %arg0, %c0_i32 : i32, i32
  }
  func.func @transform_1(%arg0: i32) -> (i32, i32) {
    %c0_i32 = arith.constant 0 : i32
    %c0_i32_0 = arith.constant 0 : i32
    %c0_i32_1 = arith.constant 0 : i32
    return %c0_i32, %c0_i32_0 : i32, i32
  }
  func.func @transform_2(%arg0: i32) -> (i32, i32) {
    %c0_i32 = arith.constant 0 : i32
    %c0_i32_0 = arith.constant 0 : i32
    %c0_i32_1 = arith.constant 0 : i32
    return %c0_i32, %c0_i32_0 : i32, i32
  }
  func.func @transform_3(%arg0: i32) -> (i32, i32) {
    %c0_i32 = arith.constant 0 : i32
    %c0_i32_0 = arith.constant 0 : i32
    return %arg0, %c0_i32 : i32, i32
  }
}

module attributes {stable_mosaic.version = 11 : i64} {
  func.func @_matmul_kernel(%arg0: i32, %arg1: i32, %arg2: memref<32x128xbf16, #tpu.memory_space<vmem>>, %arg3: memref<128x128xbf16, #tpu.memory_space<vmem>>, %arg4: memref<32x128xf32, #tpu.memory_space<vmem>>) attributes {dimension_semantics = [#tpu.dimension_semantics<parallel>, #tpu.dimension_semantics<parallel>], iteration_bounds = array<i64: 1, 1>, scalar_prefetch = 0 : i64, scratch_operands = 0 : i64, tpu.core_type = #tpu.core_type<tc>, window_params = [{transform_indices = @transform_0, window_bounds = array<i64: 32, 128>}, {transform_indices = @transform_1, window_bounds = array<i64: 128, 128>}, {transform_indices = @transform_2, window_bounds = array<i64: 32, 128>}]} {
    %c0 = arith.constant 0 : index
    %c0_0 = arith.constant 0 : index
    %0 = vector.load %arg2[%c0, %c0_0] : memref<32x128xbf16, #tpu.memory_space<vmem>>, vector<32x128xbf16>
    %c0_1 = arith.constant 0 : index
    %c0_2 = arith.constant 0 : index
    %1 = vector.load %arg3[%c0_1, %c0_2] : memref<128x128xbf16, #tpu.memory_space<vmem>>, vector<128x128xbf16>
    %cst = arith.constant dense<0.000000e+00> : vector<32x128xf32>
    %2 = tpu.matmul %0, %1, %cst {dimension_numbers = #tpu.dot_dimension_numbers<[1], [0], [0], [1], [0, 0, 1, 1], [], []>} : vector<32x128xbf16>, vector<128x128xbf16>, vector<32x128xf32> -> vector<32x128xf32>
    %c0_3 = arith.constant 0 : index
    %c0_4 = arith.constant 0 : index
    %3 = vector.load %arg4[%c0_3, %c0_4] : memref<32x128xf32, #tpu.memory_space<vmem>>, vector<32x128xf32>
    tpu.vector_store %arg4[%c0_3, %c0_4], %2 {strides = array<i32>} : memref<32x128xf32, #tpu.memory_space<vmem>>, vector<32x128xf32>,
    return
  }
  func.func @transform_0(%arg0: i32, %arg1: i32) -> (i32, i32) {
    %c0_i32 = arith.constant 0 : i32
    %c0_i32_0 = arith.constant 0 : i32
    return %arg0, %c0_i32 : i32, i32
  }
  func.func @transform_1(%arg0: i32, %arg1: i32) -> (i32, i32) {
    %c0_i32 = arith.constant 0 : i32
    %c0_i32_0 = arith.constant 0 : i32
    return %c0_i32, %arg1 : i32, i32
  }
  func.func @transform_2(%arg0: i32, %arg1: i32) -> (i32, i32) {
    %c0_i32 = arith.constant 0 : i32
    return %arg0, %arg1 : i32, i32
  }
}

module attributes {stable_mosaic.version = 11 : i64} {
  func.func @_matmul_kernel(%arg0: i32, %arg1: i32, %arg2: memref<8x1152xbf16, #tpu.memory_space<vmem>>, %arg3: memref<1152x128xbf16, #tpu.memory_space<vmem>>, %arg4: memref<8x128xf32, #tpu.memory_space<vmem>>) attributes {dimension_semantics = [#tpu.dimension_semantics<parallel>, #tpu.dimension_semantics<parallel>], iteration_bounds = array<i64: 1, 1>, scalar_prefetch = 0 : i64, scratch_operands = 0 : i64, tpu.core_type = #tpu.core_type<tc>, window_params = [{transform_indices = @transform_0, window_bounds = array<i64: 8, 1152>}, {transform_indices = @transform_1, window_bounds = array<i64: 1152, 128>}, {transform_indices = @transform_2, window_bounds = array<i64: 8, 128>}]} {
    %c0 = arith.constant 0 : index
    %c0_0 = arith.constant 0 : index
    %0 = vector.load %arg2[%c0, %c0_0] : memref<8x1152xbf16, #tpu.memory_space<vmem>>, vector<8x1152xbf16>
    %c0_1 = arith.constant 0 : index
    %c0_2 = arith.constant 0 : index
    %1 = vector.load %arg3[%c0_1, %c0_2] : memref<1152x128xbf16, #tpu.memory_space<vmem>>, vector<1152x128xbf16>
    %cst = arith.constant dense<0.000000e+00> : vector<8x128xf32>
    %2 = tpu.matmul %0, %1, %cst {dimension_numbers = #tpu.dot_dimension_numbers<[1], [0], [0], [1], [0, 0, 1, 1], [], []>} : vector<8x1152xbf16>, vector<1152x128xbf16>, vector<8x128xf32> -> vector<8x128xf32>
    %c0_3 = arith.constant 0 : index
    %c0_4 = arith.constant 0 : index
    %3 = vector.load %arg4[%c0_3, %c0_4] : memref<8x128xf32, #tpu.memory_space<vmem>>, vector<8x128xf32>
    tpu.vector_store %arg4[%c0_3, %c0_4], %2 {strides = array<i32>} : memref<8x128xf32, #tpu.memory_space<vmem>>, vector<8x128xf32>,
    return
  }
  func.func @transform_0(%arg0: i32, %arg1: i32) -> (i32, i32) {
    %c0_i32 = arith.constant 0 : i32
    %c0_i32_0 = arith.constant 0 : i32
    return %arg0, %c0_i32 : i32, i32
  }
  func.func @transform_1(%arg0: i32, %arg1: i32) -> (i32, i32) {
    %c0_i32 = arith.constant 0 : i32
    %c0_i32_0 = arith.constant 0 : i32
    return %c0_i32, %arg1 : i32, i32
  }
  func.func @transform_2(%arg0: i32, %arg1: i32) -> (i32, i32) {
    %c0_i32 = arith.constant 0 : i32
    return %arg0, %arg1 : i32, i32
  }
}

module attributes {stable_mosaic.version = 11 : i64} {
  func.func @_bn_stats_kernel(%arg0: i32, %arg1: memref<8x128xf32, #tpu.memory_space<vmem>>, %arg2: memref<1x128xf32, #tpu.memory_space<vmem>>, %arg3: memref<1x128xf32, #tpu.memory_space<vmem>>) attributes {dimension_semantics = [#tpu.dimension_semantics<arbitrary>], iteration_bounds = array<i64: 1>, scalar_prefetch = 0 : i64, scratch_operands = 0 : i64, tpu.core_type = #tpu.core_type<tc>, window_params = [{transform_indices = @transform_0, window_bounds = array<i64: 8, 128>}, {pipeline_mode = #tpu.pipeline_mode<synchronous>, transform_indices = @transform_1, window_bounds = array<i64: 1, 128>}, {pipeline_mode = #tpu.pipeline_mode<synchronous>, transform_indices = @transform_2, window_bounds = array<i64: 1, 128>}]} {
    %c0_i32 = arith.constant 0 : i32
    %0 = arith.cmpi eq, %arg0, %c0_i32 : i32
    %1 = arith.extui %0 : i1 to i32
    %c0_i32_0 = arith.constant 0 : i32
    %2 = arith.cmpi ne, %1, %c0_i32_0 : i32
    scf.if %2 {
      %cst_11 = arith.constant 0.000000e+00 : f32
      %15 = vector.broadcast %cst_11 : f32 to vector<1x128xf32>
      %c0_12 = arith.constant 0 : index
      %c0_13 = arith.constant 0 : index
      %16 = vector.load %arg2[%c0_12, %c0_13] : memref<1x128xf32, #tpu.memory_space<vmem>>, vector<1x128xf32>
      tpu.vector_store %arg2[%c0_12, %c0_13], %15 {strides = array<i32>} : memref<1x128xf32, #tpu.memory_space<vmem>>, vector<1x128xf32>,
      %cst_14 = arith.constant 0.000000e+00 : f32
      %17 = vector.broadcast %cst_14 : f32 to vector<1x128xf32>
      %c0_15 = arith.constant 0 : index
      %c0_16 = arith.constant 0 : index
      %18 = vector.load %arg3[%c0_15, %c0_16] : memref<1x128xf32, #tpu.memory_space<vmem>>, vector<1x128xf32>
      tpu.vector_store %arg3[%c0_15, %c0_16], %17 {strides = array<i32>} : memref<1x128xf32, #tpu.memory_space<vmem>>, vector<1x128xf32>,
    } else {
    }
    %c0 = arith.constant 0 : index
    %c0_1 = arith.constant 0 : index
    %3 = vector.load %arg1[%c0, %c0_1] : memref<8x128xf32, #tpu.memory_space<vmem>>, vector<8x128xf32>
    %c0_2 = arith.constant 0 : index
    %c0_3 = arith.constant 0 : index
    %4 = vector.load %arg2[%c0_2, %c0_3] : memref<1x128xf32, #tpu.memory_space<vmem>>, vector<1x128xf32>
    %cst = arith.constant dense<0.000000e+00> : vector<128xf32>
    %5 = vector.multi_reduction <add>, %3, %cst [0] : vector<8x128xf32> to vector<128xf32>
    %6 = vector.shape_cast %5 : vector<128xf32> to vector<1x128xf32>
    %7 = arith.addf %4, %6 : vector<1x128xf32>
    %c0_4 = arith.constant 0 : index
    %c0_5 = arith.constant 0 : index
    %8 = vector.load %arg2[%c0_4, %c0_5] : memref<1x128xf32, #tpu.memory_space<vmem>>, vector<1x128xf32>
    tpu.vector_store %arg2[%c0_4, %c0_5], %7 {strides = array<i32>} : memref<1x128xf32, #tpu.memory_space<vmem>>, vector<1x128xf32>,
    %c0_6 = arith.constant 0 : index
    %c0_7 = arith.constant 0 : index
    %9 = vector.load %arg3[%c0_6, %c0_7] : memref<1x128xf32, #tpu.memory_space<vmem>>, vector<1x128xf32>
    %10 = arith.mulf %3, %3 : vector<8x128xf32>
    %cst_8 = arith.constant dense<0.000000e+00> : vector<128xf32>
    %11 = vector.multi_reduction <add>, %10, %cst_8 [0] : vector<8x128xf32> to vector<128xf32>
    %12 = vector.shape_cast %11 : vector<128xf32> to vector<1x128xf32>
    %13 = arith.addf %9, %12 : vector<1x128xf32>
    %c0_9 = arith.constant 0 : index
    %c0_10 = arith.constant 0 : index
    %14 = vector.load %arg3[%c0_9, %c0_10] : memref<1x128xf32, #tpu.memory_space<vmem>>, vector<1x128xf32>
    tpu.vector_store %arg3[%c0_9, %c0_10], %13 {strides = array<i32>} : memref<1x128xf32, #tpu.memory_space<vmem>>, vector<1x128xf32>,
    return
  }
  func.func @transform_0(%arg0: i32) -> (i32, i32) {
    %c0_i32 = arith.constant 0 : i32
    %c0_i32_0 = arith.constant 0 : i32
    return %arg0, %c0_i32 : i32, i32
  }
  func.func @transform_1(%arg0: i32) -> (i32, i32) {
    %c0_i32 = arith.constant 0 : i32
    %c0_i32_0 = arith.constant 0 : i32
    %c0_i32_1 = arith.constant 0 : i32
    return %c0_i32, %c0_i32_0 : i32, i32
  }
  func.func @transform_2(%arg0: i32) -> (i32, i32) {
    %c0_i32 = arith.constant 0 : i32
    %c0_i32_0 = arith.constant 0 : i32
    %c0_i32_1 = arith.constant 0 : i32
    return %c0_i32, %c0_i32_0 : i32, i32
  }
}

module attributes {stable_mosaic.version = 11 : i64} {
  func.func @_scale_shift_relu_kernel(%arg0: i32, %arg1: memref<8x128xf32, #tpu.memory_space<vmem>>, %arg2: memref<1x128xf32, #tpu.memory_space<vmem>>, %arg3: memref<1x128xf32, #tpu.memory_space<vmem>>, %arg4: memref<8x128xf32, #tpu.memory_space<vmem>>) attributes {dimension_semantics = [#tpu.dimension_semantics<parallel>], iteration_bounds = array<i64: 1>, scalar_prefetch = 0 : i64, scratch_operands = 0 : i64, tpu.core_type = #tpu.core_type<tc>, window_params = [{transform_indices = @transform_0, window_bounds = array<i64: 8, 128>}, {pipeline_mode = #tpu.pipeline_mode<synchronous>, transform_indices = @transform_1, window_bounds = array<i64: 1, 128>}, {pipeline_mode = #tpu.pipeline_mode<synchronous>, transform_indices = @transform_2, window_bounds = array<i64: 1, 128>}, {transform_indices = @transform_3, window_bounds = array<i64: 8, 128>}]} {
    %c0 = arith.constant 0 : index
    %c0_0 = arith.constant 0 : index
    %0 = vector.load %arg1[%c0, %c0_0] : memref<8x128xf32, #tpu.memory_space<vmem>>, vector<8x128xf32>
    %c0_1 = arith.constant 0 : index
    %c0_2 = arith.constant 0 : index
    %1 = vector.load %arg2[%c0_1, %c0_2] : memref<1x128xf32, #tpu.memory_space<vmem>>, vector<1x128xf32>
    %2 = vector.broadcast %1 : vector<1x128xf32> to vector<8x128xf32>
    %3 = arith.mulf %0, %2 : vector<8x128xf32>
    %c0_3 = arith.constant 0 : index
    %c0_4 = arith.constant 0 : index
    %4 = vector.load %arg3[%c0_3, %c0_4] : memref<1x128xf32, #tpu.memory_space<vmem>>, vector<1x128xf32>
    %5 = vector.broadcast %4 : vector<1x128xf32> to vector<8x128xf32>
    %6 = arith.addf %3, %5 : vector<8x128xf32>
    %cst = arith.constant 0.000000e+00 : f32
    %7 = vector.broadcast %cst : f32 to vector<8x128xf32>
    %8 = arith.maximumf %6, %7 : vector<8x128xf32>
    %c0_5 = arith.constant 0 : index
    %c0_6 = arith.constant 0 : index
    %9 = vector.load %arg4[%c0_5, %c0_6] : memref<8x128xf32, #tpu.memory_space<vmem>>, vector<8x128xf32>
    tpu.vector_store %arg4[%c0_5, %c0_6], %8 {strides = array<i32>} : memref<8x128xf32, #tpu.memory_space<vmem>>, vector<8x128xf32>,
    return
  }
  func.func @transform_0(%arg0: i32) -> (i32, i32) {
    %c0_i32 = arith.constant 0 : i32
    %c0_i32_0 = arith.constant 0 : i32
    return %arg0, %c0_i32 : i32, i32
  }
  func.func @transform_1(%arg0: i32) -> (i32, i32) {
    %c0_i32 = arith.constant 0 : i32
    %c0_i32_0 = arith.constant 0 : i32
    %c0_i32_1 = arith.constant 0 : i32
    return %c0_i32, %c0_i32_0 : i32, i32
  }
  func.func @transform_2(%arg0: i32) -> (i32, i32) {
    %c0_i32 = arith.constant 0 : i32
    %c0_i32_0 = arith.constant 0 : i32
    %c0_i32_1 = arith.constant 0 : i32
    return %c0_i32, %c0_i32_0 : i32, i32
  }
  func.func @transform_3(%arg0: i32) -> (i32, i32) {
    %c0_i32 = arith.constant 0 : i32
    %c0_i32_0 = arith.constant 0 : i32
    return %arg0, %c0_i32 : i32, i32
  }
}

module attributes {stable_mosaic.version = 11 : i64} {
  func.func @_matmul_kernel(%arg0: i32, %arg1: i32, %arg2: memref<8x128xbf16, #tpu.memory_space<vmem>>, %arg3: memref<128x128xbf16, #tpu.memory_space<vmem>>, %arg4: memref<8x128xf32, #tpu.memory_space<vmem>>) attributes {dimension_semantics = [#tpu.dimension_semantics<parallel>, #tpu.dimension_semantics<parallel>], iteration_bounds = array<i64: 1, 1>, scalar_prefetch = 0 : i64, scratch_operands = 0 : i64, tpu.core_type = #tpu.core_type<tc>, window_params = [{transform_indices = @transform_0, window_bounds = array<i64: 8, 128>}, {transform_indices = @transform_1, window_bounds = array<i64: 128, 128>}, {transform_indices = @transform_2, window_bounds = array<i64: 8, 128>}]} {
    %c0 = arith.constant 0 : index
    %c0_0 = arith.constant 0 : index
    %0 = vector.load %arg2[%c0, %c0_0] : memref<8x128xbf16, #tpu.memory_space<vmem>>, vector<8x128xbf16>
    %c0_1 = arith.constant 0 : index
    %c0_2 = arith.constant 0 : index
    %1 = vector.load %arg3[%c0_1, %c0_2] : memref<128x128xbf16, #tpu.memory_space<vmem>>, vector<128x128xbf16>
    %cst = arith.constant dense<0.000000e+00> : vector<8x128xf32>
    %2 = tpu.matmul %0, %1, %cst {dimension_numbers = #tpu.dot_dimension_numbers<[1], [0], [0], [1], [0, 0, 1, 1], [], []>} : vector<8x128xbf16>, vector<128x128xbf16>, vector<8x128xf32> -> vector<8x128xf32>
    %c0_3 = arith.constant 0 : index
    %c0_4 = arith.constant 0 : index
    %3 = vector.load %arg4[%c0_3, %c0_4] : memref<8x128xf32, #tpu.memory_space<vmem>>, vector<8x128xf32>
    tpu.vector_store %arg4[%c0_3, %c0_4], %2 {strides = array<i32>} : memref<8x128xf32, #tpu.memory_space<vmem>>, vector<8x128xf32>,
    return
  }
  func.func @transform_0(%arg0: i32, %arg1: i32) -> (i32, i32) {
    %c0_i32 = arith.constant 0 : i32
    %c0_i32_0 = arith.constant 0 : i32
    return %arg0, %c0_i32 : i32, i32
  }
  func.func @transform_1(%arg0: i32, %arg1: i32) -> (i32, i32) {
    %c0_i32 = arith.constant 0 : i32
    %c0_i32_0 = arith.constant 0 : i32
    return %c0_i32, %arg1 : i32, i32
  }
  func.func @transform_2(%arg0: i32, %arg1: i32) -> (i32, i32) {
    %c0_i32 = arith.constant 0 : i32
    return %arg0, %arg1 : i32, i32
  }
}

module attributes {stable_mosaic.version = 11 : i64} {
  func.func @_avgpool_kernel(%arg0: memref<4x256xf32, #tpu.memory_space<vmem>>, %arg1: memref<1x256xf32, #tpu.memory_space<vmem>>) attributes {dimension_semantics = [], scalar_prefetch = 0 : i64, scratch_operands = 0 : i64, tpu.core_type = #tpu.core_type<tc>} {
    %c0 = arith.constant 0 : index
    %c0_0 = arith.constant 0 : index
    %0 = vector.load %arg0[%c0, %c0_0] : memref<4x256xf32, #tpu.memory_space<vmem>>, vector<4x256xf32>
    %cst = arith.constant dense<0.000000e+00> : vector<256xf32>
    %1 = vector.multi_reduction <add>, %0, %cst [0] : vector<4x256xf32> to vector<256xf32>
    %2 = vector.shape_cast %1 : vector<256xf32> to vector<1x256xf32>
    %cst_1 = arith.constant 4.000000e+00 : f32
    %3 = vector.broadcast %cst_1 : f32 to vector<1x256xf32>
    %4 = arith.divf %2, %3 : vector<1x256xf32>
    %c0_2 = arith.constant 0 : index
    %c0_3 = arith.constant 0 : index
    %5 = vector.load %arg1[%c0_2, %c0_3] : memref<1x256xf32, #tpu.memory_space<vmem>>, vector<1x256xf32>
    tpu.vector_store %arg1[%c0_2, %c0_3], %4 {strides = array<i32>} : memref<1x256xf32, #tpu.memory_space<vmem>>, vector<1x256xf32>,
    return
  }
}

module attributes {stable_mosaic.version = 11 : i64} {
  func.func @_softmax_xent_kernel(%arg0: memref<2x10xf32, #tpu.memory_space<vmem>>, %arg1: memref<2x1xi32, #tpu.memory_space<vmem>>, %arg2: memref<1x1xf32, #tpu.memory_space<vmem>>) attributes {dimension_semantics = [], scalar_prefetch = 0 : i64, scratch_operands = 0 : i64, tpu.core_type = #tpu.core_type<tc>} {
    %c0 = arith.constant 0 : index
    %c0_0 = arith.constant 0 : index
    %0 = vector.load %arg0[%c0, %c0_0] : memref<2x10xf32, #tpu.memory_space<vmem>>, vector<2x10xf32>
    %c0_1 = arith.constant 0 : index
    %c0_2 = arith.constant 0 : index
    %1 = vector.load %arg1[%c0_1, %c0_2] : memref<2x1xi32, #tpu.memory_space<vmem>>, vector<2x1xi32>
    %cst = arith.constant dense<0xFF800000> : vector<2xf32>
    %2 = vector.multi_reduction <maximumf>, %0, %cst [1] : vector<2x10xf32> to vector<2xf32>
    %3 = vector.shape_cast %2 : vector<2xf32> to vector<2x1xf32>
    %4 = vector.broadcast %3 : vector<2x1xf32> to vector<2x10xf32>
    %5 = arith.subf %0, %4 : vector<2x10xf32>
    %6 = math.exp %5 : vector<2x10xf32>
    %cst_3 = arith.constant dense<0.000000e+00> : vector<2xf32>
    %7 = vector.multi_reduction <add>, %6, %cst_3 [1] : vector<2x10xf32> to vector<2xf32>
    %8 = vector.shape_cast %7 : vector<2xf32> to vector<2x1xf32>
    %9 = math.log %8 : vector<2x1xf32>
    %10 = arith.addf %9, %3 : vector<2x1xf32>
    %11 = tpu.iota {dimensions = array<i32: 1>} : vector<2x10xi32>
    %12 = vector.broadcast %1 : vector<2x1xi32> to vector<2x10xi32>
    %13 = arith.cmpi eq, %11, %12 : vector<2x10xi32>
    %cst_4 = arith.constant 0.000000e+00 : f32
    %14 = vector.broadcast %cst_4 : f32 to vector<2x10xf32>
    %15 = arith.select %13, %0, %14 : vector<2x10xi1>, vector<2x10xf32>
    %cst_5 = arith.constant dense<0.000000e+00> : vector<2xf32>
    %16 = vector.multi_reduction <add>, %15, %cst_5 [1] : vector<2x10xf32> to vector<2xf32>
    %17 = vector.shape_cast %16 : vector<2xf32> to vector<2x1xf32>
    %18 = arith.subf %10, %17 : vector<2x1xf32>
    %19 = vector.shape_cast %18 : vector<2x1xf32> to vector<1x2x1xf32>
    %cst_6 = arith.constant dense<0.000000e+00> : vector<1xf32>
    %20 = vector.multi_reduction <add>, %19, %cst_6 [1, 2] : vector<1x2x1xf32> to vector<1xf32>
    %21 = vector.shape_cast %20 : vector<1xf32> to vector<1x1x1xf32>
    %22 = vector.extract %21[0, 0, 0] : f32 from vector<1x1x1xf32>
    %23 = vector.broadcast %22 : f32 to vector<1x1xf32>
    %cst_7 = arith.constant 2.000000e+00 : f32
    %24 = vector.broadcast %cst_7 : f32 to vector<1x1xf32>
    %25 = arith.divf %23, %24 : vector<1x1xf32>
    %c0_8 = arith.constant 0 : index
    %c0_9 = arith.constant 0 : index
    %26 = vector.load %arg2[%c0_8, %c0_9] : memref<1x1xf32, #tpu.memory_space<vmem>>, vector<1x1xf32>
    tpu.vector_store %arg2[%c0_8, %c0_9], %25 {strides = array<i32>} : memref<1x1xf32, #tpu.memory_space<vmem>>, vector<1x1xf32>,
    return
  }
}

</mosaic_0001>

<llo_original>
// kernel: _lambda_.34
$region0: #{_lambda_.34}
  #allocation0 [shape = 'u32[]', space=smem, size = 0x4, offset = 0x4, fixed_abs, tag = 'smem constant byte address 0x4 - core index']
  #allocation1 [shape = 'u32[72,128]{1,0:T(1,128)}', space=vmem, size = 0x9000, scoped, tag = 'internal scratch']
  %s0 = inlined_call_operand.vmem [shape: f32[512,128], index: 0, kind: input, shape index: {}]
  %s1 = inlined_call_operand.vmem [shape: f32[1,128], index: 1, kind: output, shape index: {0}]
  %s2 = inlined_call_operand.vmem [shape: f32[1,128], index: 2, kind: output, shape index: {1}]
  %3 = xla_tuple %s1, %s2
  %s4 = sld [smem:[#allocation0]]
  $region26: #{_lambda_.34} parent=0
    _
  %s6 = ssub.s32 1, %s4
  %s7 = scalar_select 0, %s6, %s4
  // Predicated region
  $region2: #{_lambda_.34} parent=0 // pred_check
    _
  $region3: #{_lambda_.34} parent=0 // pred_check_branch
    %9 = sbr.rel (0) target = $region5
  $region4: #{_lambda_.34} parent=0 // pred_region
    _
  $region5: #{_lambda_.34} parent=0 // pred_fallthru
    _
  %p10 = scmp.eq.s32.totalorder 0, 0
  // Predicated region
  $region6: #{_lambda_.34} parent=0 // pred_check
    %p11 = pneg %p10
  $region7: #{_lambda_.34} parent=0 // pred_check_branch
    %13 = sbr.rel (%p11) target = $region9
  $region8: #{_lambda_.34} parent=0 // pred_region
    %14 = vst [vmem:[%s1] sm:$0x1] 0.0
    %15 = vst [vmem:[%s2] sm:$0x1] 0.0
  $region9: #{_lambda_.34} parent=0 // pred_fallthru
    _
  %v16 = vld [vmem:[%s0] sm:$0xff]
  %v17 = vld [vmem:[%s0 + $0x8] sm:$0xff]
  %v18 = vld [vmem:[%s0 + $0x10] sm:$0xff]
  %v19 = vld [vmem:[%s0 + $0x18] sm:$0xff]
  %v20 = vld [vmem:[%s0 + $0x20] sm:$0xff]
  %v21 = vld [vmem:[%s0 + $0x28] sm:$0xff]
  %v22 = vld [vmem:[%s0 + $0x30] sm:$0xff]
  %v23 = vld [vmem:[%s0 + $0x38] sm:$0xff]
  %v24 = vld [vmem:[%s0 + $0x40] sm:$0xff]
  %v25 = vld [vmem:[%s0 + $0x48] sm:$0xff]
  %v26 = vld [vmem:[%s0 + $0x50] sm:$0xff]
  %v27 = vld [vmem:[%s0 + $0x58] sm:$0xff]
  %v28 = vld [vmem:[%s0 + $0x60] sm:$0xff]
  %v29 = vld [vmem:[%s0 + $0x68] sm:$0xff]
  %v30 = vld [vmem:[%s0 + $0x70] sm:$0xff]
  %v31 = vld [vmem:[%s0 + $0x78] sm:$0xff]
  %v32 = vld [vmem:[%s0 + $0x80] sm:$0xff]
  %v33 = vld [vmem:[%s0 + $0x88] sm:$0xff]
  %v34 = vld [vmem:[%s0 + $0x90] sm:$0xff]
  %v35 = vld [vmem:[%s0 + $0x98] sm:$0xff]
  %v36 = vld [vmem:[%s0 + $0xa0] sm:$0xff]
  %v37 = vld [vmem:[%s0 + $0xa8] sm:$0xff]
  %v38 = vld [vmem:[%s0 + $0xb0] sm:$0xff]
  %v39 = vld [vmem:[%s0 + $0xb8] sm:$0xff]
  %v40 = vld [vmem:[%s0 + $0xc0] sm:$0xff]
  %v41 = vld [vmem:[%s0 + $0xc8] sm:$0xff]
  %v42 = vld [vmem:[%s0 + $0xd0] sm:$0xff]
  %v43 = vld [vmem:[%s0 + $0xd8] sm:$0xff]
  %v44 = vld [vmem:[%s0 + $0xe0] sm:$0xff]
  %v45 = vld [vmem:[%s0 + $0xe8] sm:$0xff]
  %v46 = vld [vmem:[%s0 + $0xf0] sm:$0xff]
  %v47 = vld [vmem:[%s0 + $0xf8] sm:$0xff]
  %v48 = vld [vmem:[%s0 + $0x100] sm:$0xff]
  %v49 = vld [vmem:[%s0 + $0x108] sm:$0xff]
  %v50 = vld [vmem:[%s0 + $0x110] sm:$0xff]
  %v51 = vld [vmem:[%s0 + $0x118] sm:$0xff]
  %v52 = vld [vmem:[%s0 + $0x120] sm:$0xff]
  %v53 = vld [vmem:[%s0 + $0x128] sm:$0xff]
  %v54 = vld [vmem:[%s0 + $0x130] sm:$0xff]
  %v55 = vld [vmem:[%s0 + $0x138] sm:$0xff]
  %v56 = vld [vmem:[%s0 + $0x140] sm:$0xff]
  %v57 = vld [vmem:[%s0 + $0x148] sm:$0xff]
  %v58 = vld [vmem:[%s0 + $0x150] sm:$0xff]
  %v59 = vld [vmem:[%s0 + $0x158] sm:$0xff]
  %v60 = vld [vmem:[%s0 + $0x160] sm:$0xff]
  %v61 = vld [vmem:[%s0 + $0x168] sm:$0xff]
  %v62 = vld [vmem:[%s0 + $0x170] sm:$0xff]
  %v63 = vld [vmem:[%s0 + $0x178] sm:$0xff]
  %v64 = vld [vmem:[%s0 + $0x180] sm:$0xff]
  %v65 = vld [vmem:[%s0 + $0x188] sm:$0xff]
  %v66 = vld [vmem:[%s0 + $0x190] sm:$0xff]
  %v67 = vld [vmem:[%s0 + $0x198] sm:$0xff]
  %v68 = vld [vmem:[%s0 + $0x1a0] sm:$0xff]
  %v69 = vld [vmem:[%s0 + $0x1a8] sm:$0xff]
  %v70 = vld [vmem:[%s0 + $0x1b0] sm:$0xff]
  %v71 = vld [vmem:[%s0 + $0x1b8] sm:$0xff]
  %v72 = vld [vmem:[%s0 + $0x1c0] sm:$0xff]
  %v73 = vld [vmem:[%s0 + $0x1c8] sm:$0xff]
  %v74 = vld [vmem:[%s0 + $0x1d0] sm:$0xff]
  %v75 = vld [vmem:[%s0 + $0x1d8] sm:$0xff]
  %v76 = vld [vmem:[%s0 + $0x1e0] sm:$0xff]
  %v77 = vld [vmem:[%s0 + $0x1e8] sm:$0xff]
  %v78 = vld [vmem:[%s0 + $0x1f0] sm:$0xff]
  %v79 = vld [vmem:[%s0 + $0x1f8] sm:$0xff]
  %v80 = vld [vmem:[%s1] sm:$0x1]
  %v81 = vadd.f32 %v16, %v17
  %v82 = vadd.f32 %v81, %v18
  %v83 = vadd.f32 %v82, %v19
  %v84 = vadd.f32 %v83, %v20
  %v85 = vadd.f32 %v84, %v21
  %v86 = vadd.f32 %v85, %v22
  %v87 = vadd.f32 %v86, %v23
  %v88 = vadd.f32 %v87, %v24
  %v89 = vadd.f32 %v88, %v25
  %v90 = vadd.f32 %v89, %v26
  %v91 = vadd.f32 %v90, %v27
  %v92 = vadd.f32 %v91, %v28
  %v93 = vadd.f32 %v92, %v29
  %v94 = vadd.f32 %v93, %v30
  %v95 = vadd.f32 %v94, %v31
  %v96 = vadd.f32 %v95, %v32
  %v97 = vadd.f32 %v96, %v33
  %v98 = vadd.f32 %v97, %v34
  %v99 = vadd.f32 %v98, %v35
  %v100 = vadd.f32 %v99, %v36
  %v101 = vadd.f32 %v100, %v37
  %v102 = vadd.f32 %v101, %v38
  %v103 = vadd.f32 %v102, %v39
  %v104 = vadd.f32 %v103, %v40
  %v105 = vadd.f32 %v104, %v41
  %v106 = vadd.f32 %v105, %v42
  %v107 = vadd.f32 %v106, %v43
  %v108 = vadd.f32 %v107, %v44
  %v109 = vadd.f32 %v108, %v45
  %v110 = vadd.f32 %v109, %v46
  %v111 = vadd.f32 %v110, %v47
  %v112 = vadd.f32 %v111, %v48
  %v113 = vadd.f32 %v112, %v49
  %v114 = vadd.f32 %v113, %v50
  %v115 = vadd.f32 %v114, %v51
  %v116 = vadd.f32 %v115, %v52
  %v117 = vadd.f32 %v116, %v53
  %v118 = vadd.f32 %v117, %v54
  %v119 = vadd.f32 %v118, %v55
  %v120 = vadd.f32 %v119, %v56
  %v121 = vadd.f32 %v120, %v57
  %v122 = vadd.f32 %v121, %v58
  %v123 = vadd.f32 %v122, %v59
  %v124 = vadd.f32 %v123, %v60
  %v125 = vadd.f32 %v124, %v61
  %v126 = vadd.f32 %v125, %v62
  %v127 = vadd.f32 %v126, %v63
  %v128 = vadd.f32 %v127, %v64
  %v129 = vadd.f32 %v128, %v65
  %v130 = vadd.f32 %v129, %v66
  %v131 = vadd.f32 %v130, %v67
  %v132 = vadd.f32 %v131, %v68
  %v133 = vadd.f32 %v132, %v69
  %v134 = vadd.f32 %v133, %v70
  %v135 = vadd.f32 %v134, %v71
  %v136 = vadd.f32 %v135, %v72
  %v137 = vadd.f32 %v136, %v73
  %v138 = vadd.f32 %v137, %v74
  %v139 = vadd.f32 %v138, %v75
  %v140 = vadd.f32 %v139, %v76
  %v141 = vadd.f32 %v140, %v77
  %v142 = vadd.f32 %v141, %v78
  %v143 = vadd.f32 %v142, %v79
  %v144 = vrot.slane %v143, 4
  %v145 = vadd.f32 %v143, %v144
  %v146 = vrot.slane %v145, 2
  %v147 = vadd.f32 %v145, %v146
  %v148 = vrot.slane %v147, 1
  %v149 = vadd.f32 %v147, %v148
  %v150 = vadd.f32 %v80, %v149
  %151 = vst [vmem:[%s1] sm:$0x1] %v150
  %v152 = vld [vmem:[%s2] sm:$0x1]
  %v153 = vmul.f32 %v16, %v16
  %v154 = vmul.f32 %v17, %v17
  %v155 = vmul.f32 %v18, %v18
  %v156 = vmul.f32 %v19, %v19
  %v157 = vmul.f32 %v20, %v20
  %v158 = vmul.f32 %v21, %v21
  %v159 = vmul.f32 %v22, %v22
  %v160 = vmul.f32 %v23, %v23
  %v161 = vmul.f32 %v24, %v24
  %v162 = vmul.f32 %v25, %v25
  %v163 = vmul.f32 %v26, %v26
  %v164 = vmul.f32 %v27, %v27
  %v165 = vmul.f32 %v28, %v28
  %v166 = vmul.f32 %v29, %v29
  %v167 = vmul.f32 %v30, %v30
  %v168 = vmul.f32 %v31, %v31
  %v169 = vmul.f32 %v32, %v32
  %v170 = vmul.f32 %v33, %v33
  %v171 = vmul.f32 %v34, %v34
  %v172 = vmul.f32 %v35, %v35
  %v173 = vmul.f32 %v36, %v36
  %v174 = vmul.f32 %v37, %v37
  %v175 = vmul.f32 %v38, %v38
  %v176 = vmul.f32 %v39, %v39
  %v177 = vmul.f32 %v40, %v40
  %v178 = vmul.f32 %v41, %v41
  %v179 = vmul.f32 %v42, %v42
  %v180 = vmul.f32 %v43, %v43
  %v181 = vmul.f32 %v44, %v44
  %v182 = vmul.f32 %v45, %v45
  %v183 = vmul.f32 %v46, %v46
  %v184 = vmul.f32 %v47, %v47
  %v185 = vmul.f32 %v48, %v48
  %v186 = vmul.f32 %v49, %v49
  %v187 = vmul.f32 %v50, %v50
  %v188 = vmul.f32 %v51, %v51
  %v189 = vmul.f32 %v52, %v52
  %v190 = vmul.f32 %v53, %v53
  %v191 = vmul.f32 %v54, %v54
  %v192 = vmul.f32 %v55, %v55
  %v193 = vmul.f32 %v56, %v56
  %v194 = vmul.f32 %v57, %v57
  %v195 = vmul.f32 %v58, %v58
  %v196 = vmul.f32 %v59, %v59
  %v197 = vmul.f32 %v60, %v60
  %v198 = vmul.f32 %v61, %v61
  %v199 = vmul.f32 %v62, %v62
  %v200 = vmul.f32 %v63, %v63
  %v201 = vmul.f32 %v64, %v64
  %v202 = vmul.f32 %v65, %v65
  %v203 = vmul.f32 %v66, %v66
  %v204 = vmul.f32 %v67, %v67
  %v205 = vmul.f32 %v68, %v68
  %v206 = vmul.f32 %v69, %v69
  %v207 = vmul.f32 %v70, %v70
  %v208 = vmul.f32 %v71, %v71
  %v209 = vmul.f32 %v72, %v72
  %v210 = vmul.f32 %v73, %v73
  %v211 = vmul.f32 %v74, %v74
  %v212 = vmul.f32 %v75, %v75
  %v213 = vmul.f32 %v76, %v76
  %v214 = vmul.f32 %v77, %v77
  %v215 = vmul.f32 %v78, %v78
  %v216 = vmul.f32 %v79, %v79
  %v217 = vadd.f32 %v153, %v154
  %v218 = vadd.f32 %v217, %v155
  %v219 = vadd.f32 %v218, %v156
  %v220 = vadd.f32 %v219, %v157
  %v221 = vadd.f32 %v220, %v158
  %v222 = vadd.f32 %v221, %v159
  %v223 = vadd.f32 %v222, %v160
  %v224 = vadd.f32 %v223, %v161
  %v225 = vadd.f32 %v224, %v162
  %v226 = vadd.f32 %v225, %v163
  %v227 = vadd.f32 %v226, %v164
  %v228 = vadd.f32 %v227, %v165
  %v229 = vadd.f32 %v228, %v166
  %v230 = vadd.f32 %v229, %v167
  %v231 = vadd.f32 %v230, %v168
  %v232 = vadd.f32 %v231, %v169
  %v233 = vadd.f32 %v232, %v170
  %v234 = vadd.f32 %v233, %v171
  %v235 = vadd.f32 %v234, %v172
  %v236 = vadd.f32 %v235, %v173
  %v237 = vadd.f32 %v236, %v174
  %v238 = vadd.f32 %v237, %v175
  %v239 = vadd.f32 %v238, %v176
  %v240 = vadd.f32 %v239, %v177
  %v241 = vadd.f32 %v240, %v178
  %v242 = vadd.f32 %v241, %v179
  %v243 = vadd.f32 %v242, %v180
  %v244 = vadd.f32 %v243, %v181
  %v245 = vadd.f32 %v244, %v182
  %v246 = vadd.f32 %v245, %v183
  %v247 = vadd.f32 %v246, %v184
  %v248 = vadd.f32 %v247, %v185
  %v249 = vadd.f32 %v248, %v186
  %v250 = vadd.f32 %v249, %v187
  %v251 = vadd.f32 %v250, %v188
  %v252 = vadd.f32 %v251, %v189
  %v253 = vadd.f32 %v252, %v190
  %v254 = vadd.f32 %v253, %v191
  %v255 = vadd.f32 %v254, %v192
  %v256 = vadd.f32 %v255, %v193
  %v257 = vadd.f32 %v256, %v194
  %v258 = vadd.f32 %v257, %v195
  %v259 = vadd.f32 %v258, %v196
  %v260 = vadd.f32 %v259, %v197
  %v261 = vadd.f32 %v260, %v198
  %v262 = vadd.f32 %v261, %v199
  %v263 = vadd.f32 %v262, %v200
  %v264 = vadd.f32 %v263, %v201
  %v265 = vadd.f32 %v264, %v202
  %v266 = vadd.f32 %v265, %v203
  %v267 = vadd.f32 %v266, %v204
  %v268 = vadd.f32 %v267, %v205
  %v269 = vadd.f32 %v268, %v206
  %v270 = vadd.f32 %v269, %v207
  %v271 = vadd.f32 %v270, %v208
  %v272 = vadd.f32 %v271, %v209
  %v273 = vadd.f32 %v272, %v210
  %v274 = vadd.f32 %v273, %v211
  %v275 = vadd.f32 %v274, %v212
  %v276 = vadd.f32 %v275, %v213
  %v277 = vadd.f32 %v276, %v214
  %v278 = vadd.f32 %v277, %v215
  %v279 = vadd.f32 %v278, %v216
  %v280 = vrot.slane %v279, 4
  %v281 = vadd.f32 %v279, %v280
  %v282 = vrot.slane %v281, 2
  %v283 = vadd.f32 %v281, %v282
  %v284 = vrot.slane %v283, 1
  %v285 = vadd.f32 %v283, %v284
  %v286 = vadd.f32 %v152, %v285
  %287 = vst [vmem:[%s2] sm:$0x1] %v286
  // Predicated region
  $region10: #{_lambda_.34} parent=0 // pred_check
    _
  $region11: #{_lambda_.34} parent=0 // pred_check_branch
    %289 = sbr.rel (0) target = $region13
  $region12: #{_lambda_.34} parent=0 // pred_region
    _
  $region13: #{_lambda_.34} parent=0 // pred_fallthru
    _
  // Predicated region
  $region14: #{_lambda_.34} parent=0 // pred_check
    _
  $region15: #{_lambda_.34} parent=0 // pred_check_branch
    %291 = sbr.rel (0) target = $region17
  $region16: #{_lambda_.34} parent=0 // pred_region
    _
  $region17: #{_lambda_.34} parent=0 // pred_fallthru
    _
  // Predicated region
  $region18: #{_lambda_.34} parent=0 // pred_check
    _
  $region19: #{_lambda_.34} parent=0 // pred_check_branch
    %293 = sbr.rel (0) target = $region21
  $region20: #{_lambda_.34} parent=0 // pred_region
    _
  $region21: #{_lambda_.34} parent=0 // pred_fallthru
    _
  // Predicated region
  $region22: #{_lambda_.34} parent=0 // pred_check
    _
  $region23: #{_lambda_.34} parent=0 // pred_check_branch
    %295 = sbr.rel (0) target = $region25
  $region24: #{_lambda_.34} parent=0 // pred_region
    _
  $region25: #{_lambda_.34} parent=0 // pred_fallthru
    _

// kernel: _lambda_.33
$region0: #{_lambda_.33}
  #allocation0 [shape = 'u32[]', space=smem, size = 0x4, offset = 0x4, fixed_abs, tag = 'smem constant byte address 0x4 - core index']
  #allocation1 [shape = 'u32[72,128]{1,0:T(1,128)}', space=vmem, size = 0x9000, scoped, tag = 'internal scratch']
  %s0 = inlined_call_operand.vmem [shape: bf16[512,72], index: 0, kind: input, shape index: {}]
  %s1 = inlined_call_operand.vmem [shape: bf16[72,128], index: 1, kind: input, shape index: {}]
  %s2 = inlined_call_operand.vmem [shape: f32[512,128], index: 2, kind: output, shape index: {}]
  %s3 = sld [smem:[#allocation0]]
  $region18: #{_lambda_.33} parent=0
    _
  %s5 = ssub.s32 1, %s3
  %s6 = scalar_select 0, %s5, %s3
  // Predicated region
  $region2: #{_lambda_.33} parent=0 // pred_check
    _
  $region3: #{_lambda_.33} parent=0 // pred_check_branch
    %8 = sbr.rel (0) target = $region5
  $region4: #{_lambda_.33} parent=0 // pred_region
    _
  $region5: #{_lambda_.33} parent=0 // pred_fallthru
    _
  // Predicated region
  $region6: #{_lambda_.33} parent=0 // pred_check
    _
  $region7: #{_lambda_.33} parent=0 // pred_check_branch
    %10 = sbr.rel (0) target = $region9
  $region8: #{_lambda_.33} parent=0 // pred_region
    _
  $region9: #{_lambda_.33} parent=0 // pred_fallthru
    _
  %v12 = vld [vmem:[%s0] sm:$0xf]
  %v13 = vld [vmem:[%s0 + $0x4] sm:$0xf]
  %v14 = vld [vmem:[%s0 + $0x8] sm:$0xf]
  %v15 = vld [vmem:[%s0 + $0xc] sm:$0xf]
  %v16 = vld [vmem:[%s0 + $0x10] sm:$0xf]
  %v17 = vld [vmem:[%s0 + $0x14] sm:$0xf]
  %v18 = vld [vmem:[%s0 + $0x18] sm:$0xf]
  %v19 = vld [vmem:[%s0 + $0x1c] sm:$0xf]
  %v20 = vld [vmem:[%s0 + $0x20] sm:$0xf]
  %v21 = vld [vmem:[%s0 + $0x24] sm:$0xf]
  %v22 = vld [vmem:[%s0 + $0x28] sm:$0xf]
  %v23 = vld [vmem:[%s0 + $0x2c] sm:$0xf]
  %v24 = vld [vmem:[%s0 + $0x30] sm:$0xf]
  %v25 = vld [vmem:[%s0 + $0x34] sm:$0xf]
  %v26 = vld [vmem:[%s0 + $0x38] sm:$0xf]
  %v27 = vld [vmem:[%s0 + $0x3c] sm:$0xf]
  %v28 = vld [vmem:[%s0 + $0x40] sm:$0xf]
  %v29 = vld [vmem:[%s0 + $0x44] sm:$0xf]
  %v30 = vld [vmem:[%s0 + $0x48] sm:$0xf]
  %v31 = vld [vmem:[%s0 + $0x4c] sm:$0xf]
  %v32 = vld [vmem:[%s0 + $0x50] sm:$0xf]
  %v33 = vld [vmem:[%s0 + $0x54] sm:$0xf]
  %v34 = vld [vmem:[%s0 + $0x58] sm:$0xf]
  %v35 = vld [vmem:[%s0 + $0x5c] sm:$0xf]
  %v36 = vld [vmem:[%s0 + $0x60] sm:$0xf]
  %v37 = vld [vmem:[%s0 + $0x64] sm:$0xf]
  %v38 = vld [vmem:[%s0 + $0x68] sm:$0xf]
  %v39 = vld [vmem:[%s0 + $0x6c] sm:$0xf]
  %v40 = vld [vmem:[%s0 + $0x70] sm:$0xf]
  %v41 = vld [vmem:[%s0 + $0x74] sm:$0xf]
  %v42 = vld [vmem:[%s0 + $0x78] sm:$0xf]
  %v43 = vld [vmem:[%s0 + $0x7c] sm:$0xf]
  %v44 = vld [vmem:[%s0 + $0x80] sm:$0xf]
  %v45 = vld [vmem:[%s0 + $0x84] sm:$0xf]
  %v46 = vld [vmem:[%s0 + $0x88] sm:$0xf]
  %v47 = vld [vmem:[%s0 + $0x8c] sm:$0xf]
  %v48 = vld [vmem:[%s0 + $0x90] sm:$0xf]
  %v49 = vld [vmem:[%s0 + $0x94] sm:$0xf]
  %v50 = vld [vmem:[%s0 + $0x98] sm:$0xf]
  %v51 = vld [vmem:[%s0 + $0x9c] sm:$0xf]
  %v52 = vld [vmem:[%s0 + $0xa0] sm:$0xf]
  %v53 = vld [vmem:[%s0 + $0xa4] sm:$0xf]
  %v54 = vld [vmem:[%s0 + $0xa8] sm:$0xf]
  %v55 = vld [vmem:[%s0 + $0xac] sm:$0xf]
  %v56 = vld [vmem:[%s0 + $0xb0] sm:$0xf]
  %v57 = vld [vmem:[%s0 + $0xb4] sm:$0xf]
  %v58 = vld [vmem:[%s0 + $0xb8] sm:$0xf]
  %v59 = vld [vmem:[%s0 + $0xbc] sm:$0xf]
  %v60 = vld [vmem:[%s0 + $0xc0] sm:$0xf]
  %v61 = vld [vmem:[%s0 + $0xc4] sm:$0xf]
  %v62 = vld [vmem:[%s0 + $0xc8] sm:$0xf]
  %v63 = vld [vmem:[%s0 + $0xcc] sm:$0xf]
  %v64 = vld [vmem:[%s0 + $0xd0] sm:$0xf]
  %v65 = vld [vmem:[%s0 + $0xd4] sm:$0xf]
  %v66 = vld [vmem:[%s0 + $0xd8] sm:$0xf]
  %v67 = vld [vmem:[%s0 + $0xdc] sm:$0xf]
  %v68 = vld [vmem:[%s0 + $0xe0] sm:$0xf]
  %v69 = vld [vmem:[%s0 + $0xe4] sm:$0xf]
  %v70 = vld [vmem:[%s0 + $0xe8] sm:$0xf]
  %v71 = vld [vmem:[%s0 + $0xec] sm:$0xf]
  %v72 = vld [vmem:[%s0 + $0xf0] sm:$0xf]
  %v73 = vld [vmem:[%s0 + $0xf4] sm:$0xf]
  %v74 = vld [vmem:[%s0 + $0xf8] sm:$0xf]
  %v75 = vld [vmem:[%s0 + $0xfc] sm:$0xf]
  %v76 = vld [vmem:[%s1] sm:$0xf]
  %v77 = vld [vmem:[%s1 + $0x4] sm:$0xf]
  %v78 = vld [vmem:[%s1 + $0x8] sm:$0xf]
  %v79 = vld [vmem:[%s1 + $0xc] sm:$0xf]
  %v80 = vld [vmem:[%s1 + $0x10] sm:$0xf]
  %v81 = vld [vmem:[%s1 + $0x14] sm:$0xf]
  %v82 = vld [vmem:[%s1 + $0x18] sm:$0xf]
  %v83 = vld [vmem:[%s1 + $0x1c] sm:$0xf]
  %v84 = vld [vmem:[%s1 + $0x20] sm:$0xf]
  %v149 = vunpack.c.l.b16 %v12
  %v150 = vunpack.c.l.b16 %v13
  %v151 = vunpack.c.l.b16 %v14
  %v152 = vunpack.c.l.b16 %v15
  %v153 = vunpack.c.l.b16 %v16
  %v154 = vunpack.c.l.b16 %v17
  %v155 = vunpack.c.l.b16 %v18
  %v156 = vunpack.c.l.b16 %v19
  %v157 = vunpack.c.l.b16 %v20
  %v158 = vunpack.c.l.b16 %v21
  %v159 = vunpack.c.l.b16 %v22
  %v160 = vunpack.c.l.b16 %v23
  %v161 = vunpack.c.l.b16 %v24
  %v162 = vunpack.c.l.b16 %v25
  %v163 = vunpack.c.l.b16 %v26
  %v164 = vunpack.c.l.b16 %v27
  %v165 = vunpack.c.l.b16 %v28
  %v166 = vunpack.c.l.b16 %v29
  %v167 = vunpack.c.l.b16 %v30
  %v168 = vunpack.c.l.b16 %v31
  %v169 = vunpack.c.l.b16 %v32
  %v170 = vunpack.c.l.b16 %v33
  %v171 = vunpack.c.l.b16 %v34
  %v172 = vunpack.c.l.b16 %v35
  %v173 = vunpack.c.l.b16 %v36
  %v174 = vunpack.c.l.b16 %v37
  %v175 = vunpack.c.l.b16 %v38
  %v176 = vunpack.c.l.b16 %v39
  %v177 = vunpack.c.l.b16 %v40
  %v178 = vunpack.c.l.b16 %v41
  %v179 = vunpack.c.l.b16 %v42
  %v180 = vunpack.c.l.b16 %v43
  %v181 = vunpack.c.l.b16 %v44
  %v182 = vunpack.c.l.b16 %v45
  %v183 = vunpack.c.l.b16 %v46
  %v184 = vunpack.c.l.b16 %v47
  %v185 = vunpack.c.l.b16 %v48
  %v186 = vunpack.c.l.b16 %v49
  %v187 = vunpack.c.l.b16 %v50
  %v188 = vunpack.c.l.b16 %v51
  %v189 = vunpack.c.l.b16 %v52
  %v190 = vunpack.c.l.b16 %v53
  %v191 = vunpack.c.l.b16 %v54
  %v192 = vunpack.c.l.b16 %v55
  %v193 = vunpack.c.l.b16 %v56
  %v194 = vunpack.c.l.b16 %v57
  %v195 = vunpack.c.l.b16 %v58
  %v196 = vunpack.c.l.b16 %v59
  %v197 = vunpack.c.l.b16 %v60
  %v198 = vunpack.c.l.b16 %v61
  %v199 = vunpack.c.l.b16 %v62
  %v200 = vunpack.c.l.b16 %v63
  %v201 = vunpack.c.l.b16 %v64
  %v202 = vunpack.c.l.b16 %v65
  %v203 = vunpack.c.l.b16 %v66
  %v204 = vunpack.c.l.b16 %v67
  %v205 = vunpack.c.l.b16 %v68
  %v206 = vunpack.c.l.b16 %v69
  %v207 = vunpack.c.l.b16 %v70
  %v208 = vunpack.c.l.b16 %v71
  %v209 = vunpack.c.l.b16 %v72
  %v210 = vunpack.c.l.b16 %v73
  %v211 = vunpack.c.l.b16 %v74
  %v212 = vunpack.c.l.b16 %v75
  %v213 = vpack.c.b16 %v150, %v149
  %v214 = vpack.c.b16 %v152, %v151
  %v215 = vpack.c.b16 %v154, %v153
  %v216 = vpack.c.b16 %v156, %v155
  %v217 = vpack.c.b16 %v158, %v157
  %v218 = vpack.c.b16 %v160, %v159
  %v219 = vpack.c.b16 %v162, %v161
  %v220 = vpack.c.b16 %v164, %v163
  %v221 = vpack.c.b16 %v166, %v165
  %v222 = vpack.c.b16 %v168, %v167
  %v223 = vpack.c.b16 %v170, %v169
  %v224 = vpack.c.b16 %v172, %v171
  %v225 = vpack.c.b16 %v174, %v173
  %v226 = vpack.c.b16 %v176, %v175
  %v227 = vpack.c.b16 %v178, %v177
  %v228 = vpack.c.b16 %v180, %v179
  %v229 = vpack.c.b16 %v182, %v181
  %v230 = vpack.c.b16 %v184, %v183
  %v231 = vpack.c.b16 %v186, %v185
  %v232 = vpack.c.b16 %v188, %v187
  %v233 = vpack.c.b16 %v190, %v189
  %v234 = vpack.c.b16 %v192, %v191
  %v235 = vpack.c.b16 %v194, %v193
  %v236 = vpack.c.b16 %v196, %v195
  %v237 = vpack.c.b16 %v198, %v197
  %v238 = vpack.c.b16 %v200, %v199
  %v239 = vpack.c.b16 %v202, %v201
  %v240 = vpack.c.b16 %v204, %v203
  %v241 = vpack.c.b16 %v206, %v205
  %v242 = vpack.c.b16 %v208, %v207
  %v243 = vpack.c.b16 %v210, %v209
  %v244 = vpack.c.b16 %v212, %v211
  %v254 = vunpack.c.l.b16 %v76
  %v255 = vunpack.c.l.b16 %v77
  %v256 = vunpack.c.l.b16 %v78
  %v257 = vunpack.c.l.b16 %v79
  %v258 = vunpack.c.l.b16 %v80
  %v259 = vunpack.c.l.b16 %v81
  %v260 = vunpack.c.l.b16 %v82
  %v261 = vunpack.c.l.b16 %v83
  %v262 = vunpack.c.l.b16 %v84
  %v263 = vpack.c.b16 %v255, %v254
  %v264 = vpack.c.b16 %v257, %v256
  %v265 = vpack.c.b16 %v259, %v258
  %v266 = vpack.c.b16 %v261, %v260
  %v267 = vpack.c.b16 %v262, %v262
  %vm272 = vcmask 588800
  %v274 = vsel %vm272, %v213, 0
  %v277 = vsel %vm272, %v214, 0
  %v280 = vsel %vm272, %v215, 0
  %v283 = vsel %vm272, %v216, 0
  %v286 = vsel %vm272, %v217, 0
  %v289 = vsel %vm272, %v218, 0
  %v292 = vsel %vm272, %v219, 0
  %v295 = vsel %vm272, %v220, 0
  %v298 = vsel %vm272, %v221, 0
  %v301 = vsel %vm272, %v222, 0
  %v304 = vsel %vm272, %v223, 0
  %v307 = vsel %vm272, %v224, 0
  %v310 = vsel %vm272, %v225, 0
  %v313 = vsel %vm272, %v226, 0
  %v316 = vsel %vm272, %v227, 0
  %v319 = vsel %vm272, %v228, 0
  %v322 = vsel %vm272, %v229, 0
  %v325 = vsel %vm272, %v230, 0
  %v328 = vsel %vm272, %v231, 0
  %v331 = vsel %vm272, %v232, 0
  %v334 = vsel %vm272, %v233, 0
  %v337 = vsel %vm272, %v234, 0
  %v340 = vsel %vm272, %v235, 0
  %v343 = vsel %vm272, %v236, 0
  %v346 = vsel %vm272, %v237, 0
  %v349 = vsel %vm272, %v238, 0
  %v352 = vsel %vm272, %v239, 0
  %v355 = vsel %vm272, %v240, 0
  %v358 = vsel %vm272, %v241, 0
  %v361 = vsel %vm272, %v242, 0
  %v364 = vsel %vm272, %v243, 0
  %v367 = vsel %vm272, %v244, 0
  %vm369 = vcmask 1043456
  %v371 = vsel %vm369, %v267, 0
  %373 = vmatpush.bf16.msra.mxu0 0
  %374 = vmatpush.bf16.msra.mxu0 0
  %375 = vmatpush.bf16.msra.mxu0 0
  %376 = vmatpush.bf16.msra.mxu0 %v371
  %377 = vmatpush.bf16.msra.mxu0 %v266
  %378 = vmatpush.bf16.msra.mxu0 %v265
  %379 = vmatpush.bf16.msra.mxu0 %v264
  %380 = vmatpush.bf16.msra.mxu0 %v263
  %381 = vmatmul.bf16.gmra.mxu0 %v274
  %v382 = vpop.f32.mrf.mxu0
  %v383 = vadd.f32 0.0, %v382
  %v384 = vpop.f32.mrf.mxu0
  %v385 = vadd.f32 0.0, %v384
  %386 = vmatmul.bf16.gmra.mxu0 %v277
  %v387 = vpop.f32.mrf.mxu0
  %v388 = vadd.f32 0.0, %v387
  %v389 = vpop.f32.mrf.mxu0
  %v390 = vadd.f32 0.0, %v389
  %391 = vmatmul.bf16.gmra.mxu0 %v280
  %v392 = vpop.f32.mrf.mxu0
  %v393 = vadd.f32 0.0, %v392
  %v394 = vpop.f32.mrf.mxu0
  %v395 = vadd.f32 0.0, %v394
  %396 = vmatmul.bf16.gmra.mxu0 %v283
  %v397 = vpop.f32.mrf.mxu0
  %v398 = vadd.f32 0.0, %v397
  %v399 = vpop.f32.mrf.mxu0
  %v400 = vadd.f32 0.0, %v399
  %401 = vmatmul.bf16.gmra.mxu0 %v286
  %v402 = vpop.f32.mrf.mxu0
  %v403 = vadd.f32 0.0, %v402
  %v404 = vpop.f32.mrf.mxu0
  %v405 = vadd.f32 0.0, %v404
  %406 = vmatmul.bf16.gmra.mxu0 %v289
  %v407 = vpop.f32.mrf.mxu0
  %v408 = vadd.f32 0.0, %v407
  %v409 = vpop.f32.mrf.mxu0
  %v410 = vadd.f32 0.0, %v409
  %411 = vmatmul.bf16.gmra.mxu0 %v292
  %v412 = vpop.f32.mrf.mxu0
  %v413 = vadd.f32 0.0, %v412
  %v414 = vpop.f32.mrf.mxu0
  %v415 = vadd.f32 0.0, %v414
  %416 = vmatmul.bf16.gmra.mxu0 %v295
  %v417 = vpop.f32.mrf.mxu0
  %v418 = vadd.f32 0.0, %v417
  %v419 = vpop.f32.mrf.mxu0
  %v420 = vadd.f32 0.0, %v419
  %421 = vmatmul.bf16.gmra.mxu0 %v298
  %v422 = vpop.f32.mrf.mxu0
  %v423 = vadd.f32 0.0, %v422
  %v424 = vpop.f32.mrf.mxu0
  %v425 = vadd.f32 0.0, %v424
  %426 = vmatmul.bf16.gmra.mxu0 %v301
  %v427 = vpop.f32.mrf.mxu0
  %v428 = vadd.f32 0.0, %v427
  %v429 = vpop.f32.mrf.mxu0
  %v430 = vadd.f32 0.0, %v429
  %431 = vmatmul.bf16.gmra.mxu0 %v304
  %v432 = vpop.f32.mrf.mxu0
  %v433 = vadd.f32 0.0, %v432
  %v434 = vpop.f32.mrf.mxu0
  %v435 = vadd.f32 0.0, %v434
  %436 = vmatmul.bf16.gmra.mxu0 %v307
  %v437 = vpop.f32.mrf.mxu0
  %v438 = vadd.f32 0.0, %v437
  %v439 = vpop.f32.mrf.mxu0
  %v440 = vadd.f32 0.0, %v439
  %441 = vmatmul.bf16.gmra.mxu0 %v310
  %v442 = vpop.f32.mrf.mxu0
  %v443 = vadd.f32 0.0, %v442
  %v444 = vpop.f32.mrf.mxu0
  %v445 = vadd.f32 0.0, %v444
  %446 = vmatmul.bf16.gmra.mxu0 %v313
  %v447 = vpop.f32.mrf.mxu0
  %v448 = vadd.f32 0.0, %v447
  %v449 = vpop.f32.mrf.mxu0
  %v450 = vadd.f32 0.0, %v449
  %451 = vmatmul.bf16.gmra.mxu0 %v316
  %v452 = vpop.f32.mrf.mxu0
  %v453 = vadd.f32 0.0, %v452
  %v454 = vpop.f32.mrf.mxu0
  %v455 = vadd.f32 0.0, %v454
  %456 = vmatmul.bf16.gmra.mxu0 %v319
  %v457 = vpop.f32.mrf.mxu0
  %v458 = vadd.f32 0.0, %v457
  %v459 = vpop.f32.mrf.mxu0
  %v460 = vadd.f32 0.0, %v459
  %461 = vmatmul.bf16.gmra.mxu0 %v322
  %v462 = vpop.f32.mrf.mxu0
  %v463 = vadd.f32 0.0, %v462
  %v464 = vpop.f32.mrf.mxu0
  %v465 = vadd.f32 0.0, %v464
  %466 = vmatmul.bf16.gmra.mxu0 %v325
  %v467 = vpop.f32.mrf.mxu0
  %v468 = vadd.f32 0.0, %v467
  %v469 = vpop.f32.mrf.mxu0
  %v470 = vadd.f32 0.0, %v469
  %471 = vmatmul.bf16.gmra.mxu0 %v328
  %v472 = vpop.f32.mrf.mxu0
  %v473 = vadd.f32 0.0, %v472
  %v474 = vpop.f32.mrf.mxu0
  %v475 = vadd.f32 0.0, %v474
  %476 = vmatmul.bf16.gmra.mxu0 %v331
  %v477 = vpop.f32.mrf.mxu0
  %v478 = vadd.f32 0.0, %v477
  %v479 = vpop.f32.mrf.mxu0
  %v480 = vadd.f32 0.0, %v479
  %481 = vmatmul.bf16.gmra.mxu0 %v334
  %v482 = vpop.f32.mrf.mxu0
  %v483 = vadd.f32 0.0, %v482
  %v484 = vpop.f32.mrf.mxu0
  %v485 = vadd.f32 0.0, %v484
  %486 = vmatmul.bf16.gmra.mxu0 %v337
  %v487 = vpop.f32.mrf.mxu0
  %v488 = vadd.f32 0.0, %v487
  %v489 = vpop.f32.mrf.mxu0
  %v490 = vadd.f32 0.0, %v489
  %491 = vmatmul.bf16.gmra.mxu0 %v340
  %v492 = vpop.f32.mrf.mxu0
  %v493 = vadd.f32 0.0, %v492
  %v494 = vpop.f32.mrf.mxu0
  %v495 = vadd.f32 0.0, %v494
  %496 = vmatmul.bf16.gmra.mxu0 %v343
  %v497 = vpop.f32.mrf.mxu0
  %v498 = vadd.f32 0.0, %v497
  %v499 = vpop.f32.mrf.mxu0
  %v500 = vadd.f32 0.0, %v499
  %501 = vmatmul.bf16.gmra.mxu0 %v346
  %v502 = vpop.f32.mrf.mxu0
  %v503 = vadd.f32 0.0, %v502
  %v504 = vpop.f32.mrf.mxu0
  %v505 = vadd.f32 0.0, %v504
  %506 = vmatmul.bf16.gmra.mxu0 %v349
  %v507 = vpop.f32.mrf.mxu0
  %v508 = vadd.f32 0.0, %v507
  %v509 = vpop.f32.mrf.mxu0
  %v510 = vadd.f32 0.0, %v509
  %511 = vmatmul.bf16.gmra.mxu0 %v352
  %v512 = vpop.f32.mrf.mxu0
  %v513 = vadd.f32 0.0, %v512
  %v514 = vpop.f32.mrf.mxu0
  %v515 = vadd.f32 0.0, %v514
  %516 = vmatmul.bf16.gmra.mxu0 %v355
  %v517 = vpop.f32.mrf.mxu0
  %v518 = vadd.f32 0.0, %v517
  %v519 = vpop.f32.mrf.mxu0
  %v520 = vadd.f32 0.0, %v519
  %521 = vmatmul.bf16.gmra.mxu0 %v358
  %v522 = vpop.f32.mrf.mxu0
  %v523 = vadd.f32 0.0, %v522
  %v524 = vpop.f32.mrf.mxu0
  %v525 = vadd.f32 0.0, %v524
  %526 = vmatmul.bf16.gmra.mxu0 %v361
  %v527 = vpop.f32.mrf.mxu0
  %v528 = vadd.f32 0.0, %v527
  %v529 = vpop.f32.mrf.mxu0
  %v530 = vadd.f32 0.0, %v529
  %531 = vmatmul.bf16.gmra.mxu0 %v364
  %v532 = vpop.f32.mrf.mxu0
  %v533 = vadd.f32 0.0, %v532
  %v534 = vpop.f32.mrf.mxu0
  %v535 = vadd.f32 0.0, %v534
  %536 = vmatmul.bf16.gmra.mxu0 %v367
  %v537 = vpop.f32.mrf.mxu0
  %v538 = vadd.f32 0.0, %v537
  %v539 = vpop.f32.mrf.mxu0
  %v540 = vadd.f32 0.0, %v539
  %541 = vdwg.mxu0
  %542 = vst [vmem:[%s2] sm:$0xff] %v383
  %543 = vst [vmem:[%s2 + $0x8] sm:$0xff] %v385
  %544 = vst [vmem:[%s2 + $0x10] sm:$0xff] %v388
  %545 = vst [vmem:[%s2 + $0x18] sm:$0xff] %v390
  %546 = vst [vmem:[%s2 + $0x20] sm:$0xff] %v393
  %547 = vst [vmem:[%s2 + $0x28] sm:$0xff] %v395
  %548 = vst [vmem:[%s2 + $0x30] sm:$0xff] %v398
  %549 = vst [vmem:[%s2 + $0x38] sm:$0xff] %v400
  %550 = vst [vmem:[%s2 + $0x40] sm:$0xff] %v403
  %551 = vst [vmem:[%s2 + $0x48] sm:$0xff] %v405
  %552 = vst [vmem:[%s2 + $0x50] sm:$0xff] %v408
  %553 = vst [vmem:[%s2 + $0x58] sm:$0xff] %v410
  %554 = vst [vmem:[%s2 + $0x60] sm:$0xff] %v413
  %555 = vst [vmem:[%s2 + $0x68] sm:$0xff] %v415
  %556 = vst [vmem:[%s2 + $0x70] sm:$0xff] %v418
  %557 = vst [vmem:[%s2 + $0x78] sm:$0xff] %v420
  %558 = vst [vmem:[%s2 + $0x80] sm:$0xff] %v423
  %559 = vst [vmem:[%s2 + $0x88] sm:$0xff] %v425
  %560 = vst [vmem:[%s2 + $0x90] sm:$0xff] %v428
  %561 = vst [vmem:[%s2 + $0x98] sm:$0xff] %v430
  %562 = vst [vmem:[%s2 + $0xa0] sm:$0xff] %v433
  %563 = vst [vmem:[%s2 + $0xa8] sm:$0xff] %v435
  %564 = vst [vmem:[%s2 + $0xb0] sm:$0xff] %v438
  %565 = vst [vmem:[%s2 + $0xb8] sm:$0xff] %v440
  %566 = vst [vmem:[%s2 + $0xc0] sm:$0xff] %v443
  %567 = vst [vmem:[%s2 + $0xc8] sm:$0xff] %v445
  %568 = vst [vmem:[%s2 + $0xd0] sm:$0xff] %v448
  %569 = vst [vmem:[%s2 + $0xd8] sm:$0xff] %v450
  %570 = vst [vmem:[%s2 + $0xe0] sm:$0xff] %v453
  %571 = vst [vmem:[%s2 + $0xe8] sm:$0xff] %v455
  %572 = vst [vmem:[%s2 + $0xf0] sm:$0xff] %v458
  %573 = vst [vmem:[%s2 + $0xf8] sm:$0xff] %v460
  %574 = vst [vmem:[%s2 + $0x100] sm:$0xff] %v463
  %575 = vst [vmem:[%s2 + $0x108] sm:$0xff] %v465
  %576 = vst [vmem:[%s2 + $0x110] sm:$0xff] %v468
  %577 = vst [vmem:[%s2 + $0x118] sm:$0xff] %v470
  %578 = vst [vmem:[%s2 + $0x120] sm:$0xff] %v473
  %579 = vst [vmem:[%s2 + $0x128] sm:$0xff] %v475
  %580 = vst [vmem:[%s2 + $0x130] sm:$0xff] %v478
  %581 = vst [vmem:[%s2 + $0x138] sm:$0xff] %v480
  %582 = vst [vmem:[%s2 + $0x140] sm:$0xff] %v483
  %583 = vst [vmem:[%s2 + $0x148] sm:$0xff] %v485
  %584 = vst [vmem:[%s2 + $0x150] sm:$0xff] %v488
  %585 = vst [vmem:[%s2 + $0x158] sm:$0xff] %v490
  %586 = vst [vmem:[%s2 + $0x160] sm:$0xff] %v493
  %587 = vst [vmem:[%s2 + $0x168] sm:$0xff] %v495
  %588 = vst [vmem:[%s2 + $0x170] sm:$0xff] %v498
  %589 = vst [vmem:[%s2 + $0x178] sm:$0xff] %v500
  %590 = vst [vmem:[%s2 + $0x180] sm:$0xff] %v503
  %591 = vst [vmem:[%s2 + $0x188] sm:$0xff] %v505
  %592 = vst [vmem:[%s2 + $0x190] sm:$0xff] %v508
  %593 = vst [vmem:[%s2 + $0x198] sm:$0xff] %v510
  %594 = vst [vmem:[%s2 + $0x1a0] sm:$0xff] %v513
  %595 = vst [vmem:[%s2 + $0x1a8] sm:$0xff] %v515
  %596 = vst [vmem:[%s2 + $0x1b0] sm:$0xff] %v518
  %597 = vst [vmem:[%s2 + $0x1b8] sm:$0xff] %v520
  %598 = vst [vmem:[%s2 + $0x1c0] sm:$0xff] %v523
  %599 = vst [vmem:[%s2 + $0x1c8] sm:$0xff] %v525
  %600 = vst [vmem:[%s2 + $0x1d0] sm:$0xff] %v528
  %601 = vst [vmem:[%s2 + $0x1d8] sm:$0xff] %v530
  %602 = vst [vmem:[%s2 + $0x1e0] sm:$0xff] %v533
  %603 = vst [vmem:[%s2 + $0x1e8] sm:$0xff] %v535
  %604 = vst [vmem:[%s2 + $0x1f0] sm:$0xff] %v538
  %605 = vst [vmem:[%s2 + $0x1f8] sm:$0xff] %v540
  // Predicated region
  $region10: #{_lambda_.33} parent=0 // pred_check
    _
  $region11: #{_lambda_.33} parent=0 // pred_check_branch
    %607 = sbr.rel (0) target = $region13
  $region12: #{_lambda_.33} parent=0 // pred_region
    _
  $region13: #{_lambda_.33} parent=0 // pred_fallthru
    _
  // Predicated region
  $region14: #{_lambda_.33} parent=0 // pred_check
    _
  $region15: #{_lambda_.33} parent=0 // pred_check_branch
    %609 = sbr.rel (0) target = $region17
  $region16: #{_lambda_.33} parent=0 // pred_region
    _
  $region17: #{_lambda_.33} parent=0 // pred_fallthru
    _

// kernel: _lambda_.35
$region0: #{_lambda_.35}
  #allocation0 [shape = 'u32[]', space=smem, size = 0x4, offset = 0x4, fixed_abs, tag = 'smem constant byte address 0x4 - core index']
  #allocation1 [shape = 'u32[72,128]{1,0:T(1,128)}', space=vmem, size = 0x9000, scoped, tag = 'internal scratch']
  %s0 = inlined_call_operand.vmem [shape: f32[512,128], index: 0, kind: input, shape index: {}]
  %s1 = inlined_call_operand.vmem [shape: f32[1,128], index: 1, kind: input, shape index: {}]
  %s2 = inlined_call_operand.vmem [shape: f32[1,128], index: 2, kind: input, shape index: {}]
  %s3 = inlined_call_operand.vmem [shape: f32[512,128], index: 3, kind: output, shape index: {}]
  %s4 = sld [smem:[#allocation0]]
  $region22: #{_lambda_.35} parent=0
    _
  %s6 = ssub.s32 1, %s4
  %s7 = scalar_select 0, %s6, %s4
  // Predicated region
  $region2: #{_lambda_.35} parent=0 // pred_check
    _
  $region3: #{_lambda_.35} parent=0 // pred_check_branch
    %9 = sbr.rel (0) target = $region5
  $region4: #{_lambda_.35} parent=0 // pred_region
    _
  $region5: #{_lambda_.35} parent=0 // pred_fallthru
    _
  // Predicated region
  $region6: #{_lambda_.35} parent=0 // pred_check
    _
  $region7: #{_lambda_.35} parent=0 // pred_check_branch
    %11 = sbr.rel (0) target = $region9
  $region8: #{_lambda_.35} parent=0 // pred_region
    _
  $region9: #{_lambda_.35} parent=0 // pred_fallthru
    _
  // Predicated region
  $region10: #{_lambda_.35} parent=0 // pred_check
    _
  $region11: #{_lambda_.35} parent=0 // pred_check_branch
    %13 = sbr.rel (0) target = $region13
  $region12: #{_lambda_.35} parent=0 // pred_region
    _
  $region13: #{_lambda_.35} parent=0 // pred_fallthru
    _
  %v14 = vld [vmem:[%s0] sm:$0xff]
  %v15 = vld [vmem:[%s0 + $0x8] sm:$0xff]
  %v16 = vld [vmem:[%s0 + $0x10] sm:$0xff]
  %v17 = vld [vmem:[%s0 + $0x18] sm:$0xff]
  %v18 = vld [vmem:[%s0 + $0x20] sm:$0xff]
  %v19 = vld [vmem:[%s0 + $0x28] sm:$0xff]
  %v20 = vld [vmem:[%s0 + $0x30] sm:$0xff]
  %v21 = vld [vmem:[%s0 + $0x38] sm:$0xff]
  %v22 = vld [vmem:[%s0 + $0x40] sm:$0xff]
  %v23 = vld [vmem:[%s0 + $0x48] sm:$0xff]
  %v24 = vld [vmem:[%s0 + $0x50] sm:$0xff]
  %v25 = vld [vmem:[%s0 + $0x58] sm:$0xff]
  %v26 = vld [vmem:[%s0 + $0x60] sm:$0xff]
  %v27 = vld [vmem:[%s0 + $0x68] sm:$0xff]
  %v28 = vld [vmem:[%s0 + $0x70] sm:$0xff]
  %v29 = vld [vmem:[%s0 + $0x78] sm:$0xff]
  %v30 = vld [vmem:[%s0 + $0x80] sm:$0xff]
  %v31 = vld [vmem:[%s0 + $0x88] sm:$0xff]
  %v32 = vld [vmem:[%s0 + $0x90] sm:$0xff]
  %v33 = vld [vmem:[%s0 + $0x98] sm:$0xff]
  %v34 = vld [vmem:[%s0 + $0xa0] sm:$0xff]
  %v35 = vld [vmem:[%s0 + $0xa8] sm:$0xff]
  %v36 = vld [vmem:[%s0 + $0xb0] sm:$0xff]
  %v37 = vld [vmem:[%s0 + $0xb8] sm:$0xff]
  %v38 = vld [vmem:[%s0 + $0xc0] sm:$0xff]
  %v39 = vld [vmem:[%s0 + $0xc8] sm:$0xff]
  %v40 = vld [vmem:[%s0 + $0xd0] sm:$0xff]
  %v41 = vld [vmem:[%s0 + $0xd8] sm:$0xff]
  %v42 = vld [vmem:[%s0 + $0xe0] sm:$0xff]
  %v43 = vld [vmem:[%s0 + $0xe8] sm:$0xff]
  %v44 = vld [vmem:[%s0 + $0xf0] sm:$0xff]
  %v45 = vld [vmem:[%s0 + $0xf8] sm:$0xff]
  %v46 = vld [vmem:[%s0 + $0x100] sm:$0xff]
  %v47 = vld [vmem:[%s0 + $0x108] sm:$0xff]
  %v48 = vld [vmem:[%s0 + $0x110] sm:$0xff]
  %v49 = vld [vmem:[%s0 + $0x118] sm:$0xff]
  %v50 = vld [vmem:[%s0 + $0x120] sm:$0xff]
  %v51 = vld [vmem:[%s0 + $0x128] sm:$0xff]
  %v52 = vld [vmem:[%s0 + $0x130] sm:$0xff]
  %v53 = vld [vmem:[%s0 + $0x138] sm:$0xff]
  %v54 = vld [vmem:[%s0 + $0x140] sm:$0xff]
  %v55 = vld [vmem:[%s0 + $0x148] sm:$0xff]
  %v56 = vld [vmem:[%s0 + $0x150] sm:$0xff]
  %v57 = vld [vmem:[%s0 + $0x158] sm:$0xff]
  %v58 = vld [vmem:[%s0 + $0x160] sm:$0xff]
  %v59 = vld [vmem:[%s0 + $0x168] sm:$0xff]
  %v60 = vld [vmem:[%s0 + $0x170] sm:$0xff]
  %v61 = vld [vmem:[%s0 + $0x178] sm:$0xff]
  %v62 = vld [vmem:[%s0 + $0x180] sm:$0xff]
  %v63 = vld [vmem:[%s0 + $0x188] sm:$0xff]
  %v64 = vld [vmem:[%s0 + $0x190] sm:$0xff]
  %v65 = vld [vmem:[%s0 + $0x198] sm:$0xff]
  %v66 = vld [vmem:[%s0 + $0x1a0] sm:$0xff]
  %v67 = vld [vmem:[%s0 + $0x1a8] sm:$0xff]
  %v68 = vld [vmem:[%s0 + $0x1b0] sm:$0xff]
  %v69 = vld [vmem:[%s0 + $0x1b8] sm:$0xff]
  %v70 = vld [vmem:[%s0 + $0x1c0] sm:$0xff]
  %v71 = vld [vmem:[%s0 + $0x1c8] sm:$0xff]
  %v72 = vld [vmem:[%s0 + $0x1d0] sm:$0xff]
  %v73 = vld [vmem:[%s0 + $0x1d8] sm:$0xff]
  %v74 = vld [vmem:[%s0 + $0x1e0] sm:$0xff]
  %v75 = vld [vmem:[%s0 + $0x1e8] sm:$0xff]
  %v76 = vld [vmem:[%s0 + $0x1f0] sm:$0xff]
  %v77 = vld [vmem:[%s0 + $0x1f8] sm:$0xff]
  %v78 = vld [vmem:[%s1] sm:$0x1]
  %v80 = vperm.slane %v78, 0
  %v82 = vmul.f32 %v14, %v80
  %v83 = vmul.f32 %v15, %v80
  %v84 = vmul.f32 %v16, %v80
  %v85 = vmul.f32 %v17, %v80
  %v86 = vmul.f32 %v18, %v80
  %v87 = vmul.f32 %v19, %v80
  %v88 = vmul.f32 %v20, %v80
  %v89 = vmul.f32 %v21, %v80
  %v90 = vmul.f32 %v22, %v80
  %v91 = vmul.f32 %v23, %v80
  %v92 = vmul.f32 %v24, %v80
  %v93 = vmul.f32 %v25, %v80
  %v94 = vmul.f32 %v26, %v80
  %v95 = vmul.f32 %v27, %v80
  %v96 = vmul.f32 %v28, %v80
  %v97 = vmul.f32 %v29, %v80
  %v98 = vmul.f32 %v30, %v80
  %v99 = vmul.f32 %v31, %v80
  %v100 = vmul.f32 %v32, %v80
  %v101 = vmul.f32 %v33, %v80
  %v102 = vmul.f32 %v34, %v80
  %v103 = vmul.f32 %v35, %v80
  %v104 = vmul.f32 %v36, %v80
  %v105 = vmul.f32 %v37, %v80
  %v106 = vmul.f32 %v38, %v80
  %v107 = vmul.f32 %v39, %v80
  %v108 = vmul.f32 %v40, %v80
  %v109 = vmul.f32 %v41, %v80
  %v110 = vmul.f32 %v42, %v80
  %v111 = vmul.f32 %v43, %v80
  %v112 = vmul.f32 %v44, %v80
  %v113 = vmul.f32 %v45, %v80
  %v114 = vmul.f32 %v46, %v80
  %v115 = vmul.f32 %v47, %v80
  %v116 = vmul.f32 %v48, %v80
  %v117 = vmul.f32 %v49, %v80
  %v118 = vmul.f32 %v50, %v80
  %v119 = vmul.f32 %v51, %v80
  %v120 = vmul.f32 %v52, %v80
  %v121 = vmul.f32 %v53, %v80
  %v122 = vmul.f32 %v54, %v80
  %v123 = vmul.f32 %v55, %v80
  %v124 = vmul.f32 %v56, %v80
  %v125 = vmul.f32 %v57, %v80
  %v126 = vmul.f32 %v58, %v80
  %v127 = vmul.f32 %v59, %v80
  %v128 = vmul.f32 %v60, %v80
  %v129 = vmul.f32 %v61, %v80
  %v130 = vmul.f32 %v62, %v80
  %v131 = vmul.f32 %v63, %v80
  %v132 = vmul.f32 %v64, %v80
  %v133 = vmul.f32 %v65, %v80
  %v134 = vmul.f32 %v66, %v80
  %v135 = vmul.f32 %v67, %v80
  %v136 = vmul.f32 %v68, %v80
  %v137 = vmul.f32 %v69, %v80
  %v138 = vmul.f32 %v70, %v80
  %v139 = vmul.f32 %v71, %v80
  %v140 = vmul.f32 %v72, %v80
  %v141 = vmul.f32 %v73, %v80
  %v142 = vmul.f32 %v74, %v80
  %v143 = vmul.f32 %v75, %v80
  %v144 = vmul.f32 %v76, %v80
  %v145 = vmul.f32 %v77, %v80
  %v146 = vld [vmem:[%s2] sm:$0x1]
  %v148 = vperm.slane %v146, 0
  %v150 = vadd.f32 %v82, %v148
  %v151 = vadd.f32 %v83, %v148
  %v152 = vadd.f32 %v84, %v148
  %v153 = vadd.f32 %v85, %v148
  %v154 = vadd.f32 %v86, %v148
  %v155 = vadd.f32 %v87, %v148
  %v156 = vadd.f32 %v88, %v148
  %v157 = vadd.f32 %v89, %v148
  %v158 = vadd.f32 %v90, %v148
  %v159 = vadd.f32 %v91, %v148
  %v160 = vadd.f32 %v92, %v148
  %v161 = vadd.f32 %v93, %v148
  %v162 = vadd.f32 %v94, %v148
  %v163 = vadd.f32 %v95, %v148
  %v164 = vadd.f32 %v96, %v148
  %v165 = vadd.f32 %v97, %v148
  %v166 = vadd.f32 %v98, %v148
  %v167 = vadd.f32 %v99, %v148
  %v168 = vadd.f32 %v100, %v148
  %v169 = vadd.f32 %v101, %v148
  %v170 = vadd.f32 %v102, %v148
  %v171 = vadd.f32 %v103, %v148
  %v172 = vadd.f32 %v104, %v148
  %v173 = vadd.f32 %v105, %v148
  %v174 = vadd.f32 %v106, %v148
  %v175 = vadd.f32 %v107, %v148
  %v176 = vadd.f32 %v108, %v148
  %v177 = vadd.f32 %v109, %v148
  %v178 = vadd.f32 %v110, %v148
  %v179 = vadd.f32 %v111, %v148
  %v180 = vadd.f32 %v112, %v148
  %v181 = vadd.f32 %v113, %v148
  %v182 = vadd.f32 %v114, %v148
  %v183 = vadd.f32 %v115, %v148
  %v184 = vadd.f32 %v116, %v148
  %v185 = vadd.f32 %v117, %v148
  %v186 = vadd.f32 %v118, %v148
  %v187 = vadd.f32 %v119, %v148
  %v188 = vadd.f32 %v120, %v148
  %v189 = vadd.f32 %v121, %v148
  %v190 = vadd.f32 %v122, %v148
  %v191 = vadd.f32 %v123, %v148
  %v192 = vadd.f32 %v124, %v148
  %v193 = vadd.f32 %v125, %v148
  %v194 = vadd.f32 %v126, %v148
  %v195 = vadd.f32 %v127, %v148
  %v196 = vadd.f32 %v128, %v148
  %v197 = vadd.f32 %v129, %v148
  %v198 = vadd.f32 %v130, %v148
  %v199 = vadd.f32 %v131, %v148
  %v200 = vadd.f32 %v132, %v148
  %v201 = vadd.f32 %v133, %v148
  %v202 = vadd.f32 %v134, %v148
  %v203 = vadd.f32 %v135, %v148
  %v204 = vadd.f32 %v136, %v148
  %v205 = vadd.f32 %v137, %v148
  %v206 = vadd.f32 %v138, %v148
  %v207 = vadd.f32 %v139, %v148
  %v208 = vadd.f32 %v140, %v148
  %v209 = vadd.f32 %v141, %v148
  %v210 = vadd.f32 %v142, %v148
  %v211 = vadd.f32 %v143, %v148
  %v212 = vadd.f32 %v144, %v148
  %v213 = vadd.f32 %v145, %v148
  %v214 = vmax.f32 %v150, 0.0
  %v215 = vmax.f32 %v151, 0.0
  %v216 = vmax.f32 %v152, 0.0
  %v217 = vmax.f32 %v153, 0.0
  %v218 = vmax.f32 %v154, 0.0
  %v219 = vmax.f32 %v155, 0.0
  %v220 = vmax.f32 %v156, 0.0
  %v221 = vmax.f32 %v157, 0.0
  %v222 = vmax.f32 %v158, 0.0
  %v223 = vmax.f32 %v159, 0.0
  %v224 = vmax.f32 %v160, 0.0
  %v225 = vmax.f32 %v161, 0.0
  %v226 = vmax.f32 %v162, 0.0
  %v227 = vmax.f32 %v163, 0.0
  %v228 = vmax.f32 %v164, 0.0
  %v229 = vmax.f32 %v165, 0.0
  %v230 = vmax.f32 %v166, 0.0
  %v231 = vmax.f32 %v167, 0.0
  %v232 = vmax.f32 %v168, 0.0
  %v233 = vmax.f32 %v169, 0.0
  %v234 = vmax.f32 %v170, 0.0
  %v235 = vmax.f32 %v171, 0.0
  %v236 = vmax.f32 %v172, 0.0
  %v237 = vmax.f32 %v173, 0.0
  %v238 = vmax.f32 %v174, 0.0
  %v239 = vmax.f32 %v175, 0.0
  %v240 = vmax.f32 %v176, 0.0
  %v241 = vmax.f32 %v177, 0.0
  %v242 = vmax.f32 %v178, 0.0
  %v243 = vmax.f32 %v179, 0.0
  %v244 = vmax.f32 %v180, 0.0
  %v245 = vmax.f32 %v181, 0.0
  %v246 = vmax.f32 %v182, 0.0
  %v247 = vmax.f32 %v183, 0.0
  %v248 = vmax.f32 %v184, 0.0
  %v249 = vmax.f32 %v185, 0.0
  %v250 = vmax.f32 %v186, 0.0
  %v251 = vmax.f32 %v187, 0.0
  %v252 = vmax.f32 %v188, 0.0
  %v253 = vmax.f32 %v189, 0.0
  %v254 = vmax.f32 %v190, 0.0
  %v255 = vmax.f32 %v191, 0.0
  %v256 = vmax.f32 %v192, 0.0
  %v257 = vmax.f32 %v193, 0.0
  %v258 = vmax.f32 %v194, 0.0
  %v259 = vmax.f32 %v195, 0.0
  %v260 = vmax.f32 %v196, 0.0
  %v261 = vmax.f32 %v197, 0.0
  %v262 = vmax.f32 %v198, 0.0
  %v263 = vmax.f32 %v199, 0.0
  %v264 = vmax.f32 %v200, 0.0
  %v265 = vmax.f32 %v201, 0.0
  %v266 = vmax.f32 %v202, 0.0
  %v267 = vmax.f32 %v203, 0.0
  %v268 = vmax.f32 %v204, 0.0
  %v269 = vmax.f32 %v205, 0.0
  %v270 = vmax.f32 %v206, 0.0
  %v271 = vmax.f32 %v207, 0.0
  %v272 = vmax.f32 %v208, 0.0
  %v273 = vmax.f32 %v209, 0.0
  %v274 = vmax.f32 %v210, 0.0
  %v275 = vmax.f32 %v211, 0.0
  %v276 = vmax.f32 %v212, 0.0
  %v277 = vmax.f32 %v213, 0.0
  %278 = vst [vmem:[%s3] sm:$0xff] %v214
  %279 = vst [vmem:[%s3 + $0x8] sm:$0xff] %v215
  %280 = vst [vmem:[%s3 + $0x10] sm:$0xff] %v216
  %281 = vst [vmem:[%s3 + $0x18] sm:$0xff] %v217
  %282 = vst [vmem:[%s3 + $0x20] sm:$0xff] %v218
  %283 = vst [vmem:[%s3 + $0x28] sm:$0xff] %v219
  %284 = vst [vmem:[%s3 + $0x30] sm:$0xff] %v220
  %285 = vst [vmem:[%s3 + $0x38] sm:$0xff] %v221
  %286 = vst [vmem:[%s3 + $0x40] sm:$0xff] %v222
  %287 = vst [vmem:[%s3 + $0x48] sm:$0xff] %v223
  %288 = vst [vmem:[%s3 + $0x50] sm:$0xff] %v224
  %289 = vst [vmem:[%s3 + $0x58] sm:$0xff] %v225
  %290 = vst [vmem:[%s3 + $0x60] sm:$0xff] %v226
  %291 = vst [vmem:[%s3 + $0x68] sm:$0xff] %v227
  %292 = vst [vmem:[%s3 + $0x70] sm:$0xff] %v228
  %293 = vst [vmem:[%s3 + $0x78] sm:$0xff] %v229
  %294 = vst [vmem:[%s3 + $0x80] sm:$0xff] %v230
  %295 = vst [vmem:[%s3 + $0x88] sm:$0xff] %v231
  %296 = vst [vmem:[%s3 + $0x90] sm:$0xff] %v232
  %297 = vst [vmem:[%s3 + $0x98] sm:$0xff] %v233
  %298 = vst [vmem:[%s3 + $0xa0] sm:$0xff] %v234
  %299 = vst [vmem:[%s3 + $0xa8] sm:$0xff] %v235
  %300 = vst [vmem:[%s3 + $0xb0] sm:$0xff] %v236
  %301 = vst [vmem:[%s3 + $0xb8] sm:$0xff] %v237
  %302 = vst [vmem:[%s3 + $0xc0] sm:$0xff] %v238
  %303 = vst [vmem:[%s3 + $0xc8] sm:$0xff] %v239
  %304 = vst [vmem:[%s3 + $0xd0] sm:$0xff] %v240
  %305 = vst [vmem:[%s3 + $0xd8] sm:$0xff] %v241
  %306 = vst [vmem:[%s3 + $0xe0] sm:$0xff] %v242
  %307 = vst [vmem:[%s3 + $0xe8] sm:$0xff] %v243
  %308 = vst [vmem:[%s3 + $0xf0] sm:$0xff] %v244
  %309 = vst [vmem:[%s3 + $0xf8] sm:$0xff] %v245
  %310 = vst [vmem:[%s3 + $0x100] sm:$0xff] %v246
  %311 = vst [vmem:[%s3 + $0x108] sm:$0xff] %v247
  %312 = vst [vmem:[%s3 + $0x110] sm:$0xff] %v248
  %313 = vst [vmem:[%s3 + $0x118] sm:$0xff] %v249
  %314 = vst [vmem:[%s3 + $0x120] sm:$0xff] %v250
  %315 = vst [vmem:[%s3 + $0x128] sm:$0xff] %v251
  %316 = vst [vmem:[%s3 + $0x130] sm:$0xff] %v252
  %317 = vst [vmem:[%s3 + $0x138] sm:$0xff] %v253
  %318 = vst [vmem:[%s3 + $0x140] sm:$0xff] %v254
  %319 = vst [vmem:[%s3 + $0x148] sm:$0xff] %v255
  %320 = vst [vmem:[%s3 + $0x150] sm:$0xff] %v256
  %321 = vst [vmem:[%s3 + $0x158] sm:$0xff] %v257
  %322 = vst [vmem:[%s3 + $0x160] sm:$0xff] %v258
  %323 = vst [vmem:[%s3 + $0x168] sm:$0xff] %v259
  %324 = vst [vmem:[%s3 + $0x170] sm:$0xff] %v260
  %325 = vst [vmem:[%s3 + $0x178] sm:$0xff] %v261
  %326 = vst [vmem:[%s3 + $0x180] sm:$0xff] %v262
  %327 = vst [vmem:[%s3 + $0x188] sm:$0xff] %v263
  %328 = vst [vmem:[%s3 + $0x190] sm:$0xff] %v264
  %329 = vst [vmem:[%s3 + $0x198] sm:$0xff] %v265
  %330 = vst [vmem:[%s3 + $0x1a0] sm:$0xff] %v266
  %331 = vst [vmem:[%s3 + $0x1a8] sm:$0xff] %v267
  %332 = vst [vmem:[%s3 + $0x1b0] sm:$0xff] %v268
  %333 = vst [vmem:[%s3 + $0x1b8] sm:$0xff] %v269
  %334 = vst [vmem:[%s3 + $0x1c0] sm:$0xff] %v270
  %335 = vst [vmem:[%s3 + $0x1c8] sm:$0xff] %v271
  %336 = vst [vmem:[%s3 + $0x1d0] sm:$0xff] %v272
  %337 = vst [vmem:[%s3 + $0x1d8] sm:$0xff] %v273
  %338 = vst [vmem:[%s3 + $0x1e0] sm:$0xff] %v274
  %339 = vst [vmem:[%s3 + $0x1e8] sm:$0xff] %v275
  %340 = vst [vmem:[%s3 + $0x1f0] sm:$0xff] %v276
  %341 = vst [vmem:[%s3 + $0x1f8] sm:$0xff] %v277
  // Predicated region
  $region14: #{_lambda_.35} parent=0 // pred_check
    _
  $region15: #{_lambda_.35} parent=0 // pred_check_branch
    %343 = sbr.rel (0) target = $region17
  $region16: #{_lambda_.35} parent=0 // pred_region
    _
  $region17: #{_lambda_.35} parent=0 // pred_fallthru
    _
  // Predicated region
  $region18: #{_lambda_.35} parent=0 // pred_check
    _
  $region19: #{_lambda_.35} parent=0 // pred_check_branch
    %345 = sbr.rel (0) target = $region21
  $region20: #{_lambda_.35} parent=0 // pred_region
    _
  $region21: #{_lambda_.35} parent=0 // pred_fallthru
    _

// kernel: _lambda_.45
$region0: #{_lambda_.45}
  #allocation0 [shape = 'u32[]', space=smem, size = 0x4, offset = 0x4, fixed_abs, tag = 'smem constant byte address 0x4 - core index']
  #allocation1 [shape = 'u32[72,128]{1,0:T(1,128)}', space=vmem, size = 0x9000, scoped, tag = 'internal scratch']
  %s0 = inlined_call_operand.vmem [shape: f32[128,128], index: 0, kind: input, shape index: {}]
  %s1 = inlined_call_operand.vmem [shape: f32[1,128], index: 1, kind: input, shape index: {}]
  %s2 = inlined_call_operand.vmem [shape: f32[1,128], index: 2, kind: input, shape index: {}]
  %s3 = inlined_call_operand.vmem [shape: f32[128,128], index: 3, kind: output, shape index: {}]
  %s4 = sld [smem:[#allocation0]]
  $region22: #{_lambda_.45} parent=0
    _
  %s6 = ssub.s32 1, %s4
  %s7 = scalar_select 0, %s6, %s4
  // Predicated region
  $region2: #{_lambda_.45} parent=0 // pred_check
    _
  $region3: #{_lambda_.45} parent=0 // pred_check_branch
    %9 = sbr.rel (0) target = $region5
  $region4: #{_lambda_.45} parent=0 // pred_region
    _
  $region5: #{_lambda_.45} parent=0 // pred_fallthru
    _
  // Predicated region
  $region6: #{_lambda_.45} parent=0 // pred_check
    _
  $region7: #{_lambda_.45} parent=0 // pred_check_branch
    %11 = sbr.rel (0) target = $region9
  $region8: #{_lambda_.45} parent=0 // pred_region
    _
  $region9: #{_lambda_.45} parent=0 // pred_fallthru
    _
  // Predicated region
  $region10: #{_lambda_.45} parent=0 // pred_check
    _
  $region11: #{_lambda_.45} parent=0 // pred_check_branch
    %13 = sbr.rel (0) target = $region13
  $region12: #{_lambda_.45} parent=0 // pred_region
    _
  $region13: #{_lambda_.45} parent=0 // pred_fallthru
    _
  %v14 = vld [vmem:[%s0] sm:$0xff]
  %v15 = vld [vmem:[%s0 + $0x8] sm:$0xff]
  %v16 = vld [vmem:[%s0 + $0x10] sm:$0xff]
  %v17 = vld [vmem:[%s0 + $0x18] sm:$0xff]
  %v18 = vld [vmem:[%s0 + $0x20] sm:$0xff]
  %v19 = vld [vmem:[%s0 + $0x28] sm:$0xff]
  %v20 = vld [vmem:[%s0 + $0x30] sm:$0xff]
  %v21 = vld [vmem:[%s0 + $0x38] sm:$0xff]
  %v22 = vld [vmem:[%s0 + $0x40] sm:$0xff]
  %v23 = vld [vmem:[%s0 + $0x48] sm:$0xff]
  %v24 = vld [vmem:[%s0 + $0x50] sm:$0xff]
  %v25 = vld [vmem:[%s0 + $0x58] sm:$0xff]
  %v26 = vld [vmem:[%s0 + $0x60] sm:$0xff]
  %v27 = vld [vmem:[%s0 + $0x68] sm:$0xff]
  %v28 = vld [vmem:[%s0 + $0x70] sm:$0xff]
  %v29 = vld [vmem:[%s0 + $0x78] sm:$0xff]
  %v30 = vld [vmem:[%s1] sm:$0x1]
  %v32 = vperm.slane %v30, 0
  %v34 = vmul.f32 %v14, %v32
  %v35 = vmul.f32 %v15, %v32
  %v36 = vmul.f32 %v16, %v32
  %v37 = vmul.f32 %v17, %v32
  %v38 = vmul.f32 %v18, %v32
  %v39 = vmul.f32 %v19, %v32
  %v40 = vmul.f32 %v20, %v32
  %v41 = vmul.f32 %v21, %v32
  %v42 = vmul.f32 %v22, %v32
  %v43 = vmul.f32 %v23, %v32
  %v44 = vmul.f32 %v24, %v32
  %v45 = vmul.f32 %v25, %v32
  %v46 = vmul.f32 %v26, %v32
  %v47 = vmul.f32 %v27, %v32
  %v48 = vmul.f32 %v28, %v32
  %v49 = vmul.f32 %v29, %v32
  %v50 = vld [vmem:[%s2] sm:$0x1]
  %v52 = vperm.slane %v50, 0
  %v54 = vadd.f32 %v34, %v52
  %v55 = vadd.f32 %v35, %v52
  %v56 = vadd.f32 %v36, %v52
  %v57 = vadd.f32 %v37, %v52
  %v58 = vadd.f32 %v38, %v52
  %v59 = vadd.f32 %v39, %v52
  %v60 = vadd.f32 %v40, %v52
  %v61 = vadd.f32 %v41, %v52
  %v62 = vadd.f32 %v42, %v52
  %v63 = vadd.f32 %v43, %v52
  %v64 = vadd.f32 %v44, %v52
  %v65 = vadd.f32 %v45, %v52
  %v66 = vadd.f32 %v46, %v52
  %v67 = vadd.f32 %v47, %v52
  %v68 = vadd.f32 %v48, %v52
  %v69 = vadd.f32 %v49, %v52
  %v70 = vmax.f32 %v54, 0.0
  %v71 = vmax.f32 %v55, 0.0
  %v72 = vmax.f32 %v56, 0.0
  %v73 = vmax.f32 %v57, 0.0
  %v74 = vmax.f32 %v58, 0.0
  %v75 = vmax.f32 %v59, 0.0
  %v76 = vmax.f32 %v60, 0.0
  %v77 = vmax.f32 %v61, 0.0
  %v78 = vmax.f32 %v62, 0.0
  %v79 = vmax.f32 %v63, 0.0
  %v80 = vmax.f32 %v64, 0.0
  %v81 = vmax.f32 %v65, 0.0
  %v82 = vmax.f32 %v66, 0.0
  %v83 = vmax.f32 %v67, 0.0
  %v84 = vmax.f32 %v68, 0.0
  %v85 = vmax.f32 %v69, 0.0
  %86 = vst [vmem:[%s3] sm:$0xff] %v70
  %87 = vst [vmem:[%s3 + $0x8] sm:$0xff] %v71
  %88 = vst [vmem:[%s3 + $0x10] sm:$0xff] %v72
  %89 = vst [vmem:[%s3 + $0x18] sm:$0xff] %v73
  %90 = vst [vmem:[%s3 + $0x20] sm:$0xff] %v74
  %91 = vst [vmem:[%s3 + $0x28] sm:$0xff] %v75
  %92 = vst [vmem:[%s3 + $0x30] sm:$0xff] %v76
  %93 = vst [vmem:[%s3 + $0x38] sm:$0xff] %v77
  %94 = vst [vmem:[%s3 + $0x40] sm:$0xff] %v78
  %95 = vst [vmem:[%s3 + $0x48] sm:$0xff] %v79
  %96 = vst [vmem:[%s3 + $0x50] sm:$0xff] %v80
  %97 = vst [vmem:[%s3 + $0x58] sm:$0xff] %v81
  %98 = vst [vmem:[%s3 + $0x60] sm:$0xff] %v82
  %99 = vst [vmem:[%s3 + $0x68] sm:$0xff] %v83
  %100 = vst [vmem:[%s3 + $0x70] sm:$0xff] %v84
  %101 = vst [vmem:[%s3 + $0x78] sm:$0xff] %v85
  // Predicated region
  $region14: #{_lambda_.45} parent=0 // pred_check
    _
  $region15: #{_lambda_.45} parent=0 // pred_check_branch
    %103 = sbr.rel (0) target = $region17
  $region16: #{_lambda_.45} parent=0 // pred_region
    _
  $region17: #{_lambda_.45} parent=0 // pred_fallthru
    _
  // Predicated region
  $region18: #{_lambda_.45} parent=0 // pred_check
    _
  $region19: #{_lambda_.45} parent=0 // pred_check_branch
    %105 = sbr.rel (0) target = $region21
  $region20: #{_lambda_.45} parent=0 // pred_region
    _
  $region21: #{_lambda_.45} parent=0 // pred_fallthru
    _

// kernel: _lambda_.44
$region0: #{_lambda_.44}
  #allocation0 [shape = 'u32[]', space=smem, size = 0x4, offset = 0x4, fixed_abs, tag = 'smem constant byte address 0x4 - core index']
  #allocation1 [shape = 'u32[72,128]{1,0:T(1,128)}', space=vmem, size = 0x9000, scoped, tag = 'internal scratch']
  %s0 = inlined_call_operand.vmem [shape: f32[128,128], index: 0, kind: input, shape index: {}]
  %s1 = inlined_call_operand.vmem [shape: f32[1,128], index: 1, kind: output, shape index: {0}]
  %s2 = inlined_call_operand.vmem [shape: f32[1,128], index: 2, kind: output, shape index: {1}]
  %3 = xla_tuple %s1, %s2
  %s4 = sld [smem:[#allocation0]]
  $region26: #{_lambda_.44} parent=0
    _
  %s6 = ssub.s32 1, %s4
  %s7 = scalar_select 0, %s6, %s4
  // Predicated region
  $region2: #{_lambda_.44} parent=0 // pred_check
    _
  $region3: #{_lambda_.44} parent=0 // pred_check_branch
    %9 = sbr.rel (0) target = $region5
  $region4: #{_lambda_.44} parent=0 // pred_region
    _
  $region5: #{_lambda_.44} parent=0 // pred_fallthru
    _
  %p10 = scmp.eq.s32.totalorder 0, 0
  // Predicated region
  $region6: #{_lambda_.44} parent=0 // pred_check
    %p11 = pneg %p10
  $region7: #{_lambda_.44} parent=0 // pred_check_branch
    %13 = sbr.rel (%p11) target = $region9
  $region8: #{_lambda_.44} parent=0 // pred_region
    %14 = vst [vmem:[%s1] sm:$0x1] 0.0
    %15 = vst [vmem:[%s2] sm:$0x1] 0.0
  $region9: #{_lambda_.44} parent=0 // pred_fallthru
    _
  %v16 = vld [vmem:[%s0] sm:$0xff]
  %v17 = vld [vmem:[%s0 + $0x8] sm:$0xff]
  %v18 = vld [vmem:[%s0 + $0x10] sm:$0xff]
  %v19 = vld [vmem:[%s0 + $0x18] sm:$0xff]
  %v20 = vld [vmem:[%s0 + $0x20] sm:$0xff]
  %v21 = vld [vmem:[%s0 + $0x28] sm:$0xff]
  %v22 = vld [vmem:[%s0 + $0x30] sm:$0xff]
  %v23 = vld [vmem:[%s0 + $0x38] sm:$0xff]
  %v24 = vld [vmem:[%s0 + $0x40] sm:$0xff]
  %v25 = vld [vmem:[%s0 + $0x48] sm:$0xff]
  %v26 = vld [vmem:[%s0 + $0x50] sm:$0xff]
  %v27 = vld [vmem:[%s0 + $0x58] sm:$0xff]
  %v28 = vld [vmem:[%s0 + $0x60] sm:$0xff]
  %v29 = vld [vmem:[%s0 + $0x68] sm:$0xff]
  %v30 = vld [vmem:[%s0 + $0x70] sm:$0xff]
  %v31 = vld [vmem:[%s0 + $0x78] sm:$0xff]
  %v32 = vld [vmem:[%s1] sm:$0x1]
  %v33 = vadd.f32 %v16, %v17
  %v34 = vadd.f32 %v33, %v18
  %v35 = vadd.f32 %v34, %v19
  %v36 = vadd.f32 %v35, %v20
  %v37 = vadd.f32 %v36, %v21
  %v38 = vadd.f32 %v37, %v22
  %v39 = vadd.f32 %v38, %v23
  %v40 = vadd.f32 %v39, %v24
  %v41 = vadd.f32 %v40, %v25
  %v42 = vadd.f32 %v41, %v26
  %v43 = vadd.f32 %v42, %v27
  %v44 = vadd.f32 %v43, %v28
  %v45 = vadd.f32 %v44, %v29
  %v46 = vadd.f32 %v45, %v30
  %v47 = vadd.f32 %v46, %v31
  %v48 = vrot.slane %v47, 4
  %v49 = vadd.f32 %v47, %v48
  %v50 = vrot.slane %v49, 2
  %v51 = vadd.f32 %v49, %v50
  %v52 = vrot.slane %v51, 1
  %v53 = vadd.f32 %v51, %v52
  %v54 = vadd.f32 %v32, %v53
  %55 = vst [vmem:[%s1] sm:$0x1] %v54
  %v56 = vld [vmem:[%s2] sm:$0x1]
  %v57 = vmul.f32 %v16, %v16
  %v58 = vmul.f32 %v17, %v17
  %v59 = vmul.f32 %v18, %v18
  %v60 = vmul.f32 %v19, %v19
  %v61 = vmul.f32 %v20, %v20
  %v62 = vmul.f32 %v21, %v21
  %v63 = vmul.f32 %v22, %v22
  %v64 = vmul.f32 %v23, %v23
  %v65 = vmul.f32 %v24, %v24
  %v66 = vmul.f32 %v25, %v25
  %v67 = vmul.f32 %v26, %v26
  %v68 = vmul.f32 %v27, %v27
  %v69 = vmul.f32 %v28, %v28
  %v70 = vmul.f32 %v29, %v29
  %v71 = vmul.f32 %v30, %v30
  %v72 = vmul.f32 %v31, %v31
  %v73 = vadd.f32 %v57, %v58
  %v74 = vadd.f32 %v73, %v59
  %v75 = vadd.f32 %v74, %v60
  %v76 = vadd.f32 %v75, %v61
  %v77 = vadd.f32 %v76, %v62
  %v78 = vadd.f32 %v77, %v63
  %v79 = vadd.f32 %v78, %v64
  %v80 = vadd.f32 %v79, %v65
  %v81 = vadd.f32 %v80, %v66
  %v82 = vadd.f32 %v81, %v67
  %v83 = vadd.f32 %v82, %v68
  %v84 = vadd.f32 %v83, %v69
  %v85 = vadd.f32 %v84, %v70
  %v86 = vadd.f32 %v85, %v71
  %v87 = vadd.f32 %v86, %v72
  %v88 = vrot.slane %v87, 4
  %v89 = vadd.f32 %v87, %v88
  %v90 = vrot.slane %v89, 2
  %v91 = vadd.f32 %v89, %v90
  %v92 = vrot.slane %v91, 1
  %v93 = vadd.f32 %v91, %v92
  %v94 = vadd.f32 %v56, %v93
  %95 = vst [vmem:[%s2] sm:$0x1] %v94
  // Predicated region
  $region10: #{_lambda_.44} parent=0 // pred_check
    _
  $region11: #{_lambda_.44} parent=0 // pred_check_branch
    %97 = sbr.rel (0) target = $region13
  $region12: #{_lambda_.44} parent=0 // pred_region
    _
  $region13: #{_lambda_.44} parent=0 // pred_fallthru
    _
  // Predicated region
  $region14: #{_lambda_.44} parent=0 // pred_check
    _
  $region15: #{_lambda_.44} parent=0 // pred_check_branch
    %99 = sbr.rel (0) target = $region17
  $region16: #{_lambda_.44} parent=0 // pred_region
    _
  $region17: #{_lambda_.44} parent=0 // pred_fallthru
    _
  // Predicated region
  $region18: #{_lambda_.44} parent=0 // pred_check
    _
  $region19: #{_lambda_.44} parent=0 // pred_check_branch
    %101 = sbr.rel (0) target = $region21
  $region20: #{_lambda_.44} parent=0 // pred_region
    _
  $region21: #{_lambda_.44} parent=0 // pred_fallthru
    _
  // Predicated region
  $region22: #{_lambda_.44} parent=0 // pred_check
    _
  $region23: #{_lambda_.44} parent=0 // pred_check_branch
    %103 = sbr.rel (0) target = $region25
  $region24: #{_lambda_.44} parent=0 // pred_region
    _
  $region25: #{_lambda_.44} parent=0 // pred_fallthru
    _

// kernel: _lambda_.43
$region0: #{_lambda_.43}
  #allocation0 [shape = 'u32[]', space=smem, size = 0x4, offset = 0x4, fixed_abs, tag = 'smem constant byte address 0x4 - core index']
  #allocation1 [shape = 'u32[72,128]{1,0:T(1,128)}', space=vmem, size = 0x9000, scoped, tag = 'internal scratch']
  %s0 = inlined_call_operand.vmem [shape: bf16[128,1152], index: 0, kind: input, shape index: {}]
  %s1 = inlined_call_operand.vmem [shape: bf16[1152,128], index: 1, kind: input, shape index: {}]
  %s2 = inlined_call_operand.vmem [shape: f32[128,128], index: 2, kind: output, shape index: {}]
  %s3 = sld [smem:[#allocation0]]
  $region18: #{_lambda_.43} parent=0
    _
  %s5 = ssub.s32 1, %s3
  %s6 = scalar_select 0, %s5, %s3
  // Predicated region
  $region2: #{_lambda_.43} parent=0 // pred_check
    _
  $region3: #{_lambda_.43} parent=0 // pred_check_branch
    %8 = sbr.rel (0) target = $region5
  $region4: #{_lambda_.43} parent=0 // pred_region
    _
  $region5: #{_lambda_.43} parent=0 // pred_fallthru
    _
  // Predicated region
  $region6: #{_lambda_.43} parent=0 // pred_check
    _
  $region7: #{_lambda_.43} parent=0 // pred_check_branch
    %10 = sbr.rel (0) target = $region9
  $region8: #{_lambda_.43} parent=0 // pred_region
    _
  $region9: #{_lambda_.43} parent=0 // pred_fallthru
    _
  %v11 = vld [vmem:[%s0] sm:$0xff]
  %v12 = vld [vmem:[%s0 + $0x8] sm:$0xff]
  %v13 = vld [vmem:[%s0 + $0x10] sm:$0xff]
  %v14 = vld [vmem:[%s0 + $0x18] sm:$0xff]
  %v15 = vld [vmem:[%s0 + $0x20] sm:$0xf]
  %v16 = vld [vmem:[%s0 + $0x24] sm:$0xff]
  %v17 = vld [vmem:[%s0 + $0x2c] sm:$0xff]
  %v18 = vld [vmem:[%s0 + $0x34] sm:$0xff]
  %v19 = vld [vmem:[%s0 + $0x3c] sm:$0xff]
  %v20 = vld [vmem:[%s0 + $0x44] sm:$0xf]
  %v21 = vld [vmem:[%s0 + $0x48] sm:$0xff]
  %v22 = vld [vmem:[%s0 + $0x50] sm:$0xff]
  %v23 = vld [vmem:[%s0 + $0x58] sm:$0xff]
  %v24 = vld [vmem:[%s0 + $0x60] sm:$0xff]
  %v25 = vld [vmem:[%s0 + $0x68] sm:$0xf]
  %v26 = vld [vmem:[%s0 + $0x6c] sm:$0xff]
  %v27 = vld [vmem:[%s0 + $0x74] sm:$0xff]
  %v28 = vld [vmem:[%s0 + $0x7c] sm:$0xff]
  %v29 = vld [vmem:[%s0 + $0x84] sm:$0xff]
  %v30 = vld [vmem:[%s0 + $0x8c] sm:$0xf]
  %v31 = vld [vmem:[%s0 + $0x90] sm:$0xff]
  %v32 = vld [vmem:[%s0 + $0x98] sm:$0xff]
  %v33 = vld [vmem:[%s0 + $0xa0] sm:$0xff]
  %v34 = vld [vmem:[%s0 + $0xa8] sm:$0xff]
  %v35 = vld [vmem:[%s0 + $0xb0] sm:$0xf]
  %v36 = vld [vmem:[%s0 + $0xb4] sm:$0xff]
  %v37 = vld [vmem:[%s0 + $0xbc] sm:$0xff]
  %v38 = vld [vmem:[%s0 + $0xc4] sm:$0xff]
  %v39 = vld [vmem:[%s0 + $0xcc] sm:$0xff]
  %v40 = vld [vmem:[%s0 + $0xd4] sm:$0xf]
  %v41 = vld [vmem:[%s0 + $0xd8] sm:$0xff]
  %v42 = vld [vmem:[%s0 + $0xe0] sm:$0xff]
  %v43 = vld [vmem:[%s0 + $0xe8] sm:$0xff]
  %v44 = vld [vmem:[%s0 + $0xf0] sm:$0xff]
  %v45 = vld [vmem:[%s0 + $0xf8] sm:$0xf]
  %v46 = vld [vmem:[%s0 + $0xfc] sm:$0xff]
  %v47 = vld [vmem:[%s0 + $0x104] sm:$0xff]
  %v48 = vld [vmem:[%s0 + $0x10c] sm:$0xff]
  %v49 = vld [vmem:[%s0 + $0x114] sm:$0xff]
  %v50 = vld [vmem:[%s0 + $0x11c] sm:$0xf]
  %v51 = vld [vmem:[%s0 + $0x120] sm:$0xff]
  %v52 = vld [vmem:[%s0 + $0x128] sm:$0xff]
  %v53 = vld [vmem:[%s0 + $0x130] sm:$0xff]
  %v54 = vld [vmem:[%s0 + $0x138] sm:$0xff]
  %v55 = vld [vmem:[%s0 + $0x140] sm:$0xf]
  %v56 = vld [vmem:[%s0 + $0x144] sm:$0xff]
  %v57 = vld [vmem:[%s0 + $0x14c] sm:$0xff]
  %v58 = vld [vmem:[%s0 + $0x154] sm:$0xff]
  %v59 = vld [vmem:[%s0 + $0x15c] sm:$0xff]
  %v60 = vld [vmem:[%s0 + $0x164] sm:$0xf]
  %v61 = vld [vmem:[%s0 + $0x168] sm:$0xff]
  %v62 = vld [vmem:[%s0 + $0x170] sm:$0xff]
  %v63 = vld [vmem:[%s0 + $0x178] sm:$0xff]
  %v64 = vld [vmem:[%s0 + $0x180] sm:$0xff]
  %v65 = vld [vmem:[%s0 + $0x188] sm:$0xf]
  %v66 = vld [vmem:[%s0 + $0x18c] sm:$0xff]
  %v67 = vld [vmem:[%s0 + $0x194] sm:$0xff]
  %v68 = vld [vmem:[%s0 + $0x19c] sm:$0xff]
  %v69 = vld [vmem:[%s0 + $0x1a4] sm:$0xff]
  %v70 = vld [vmem:[%s0 + $0x1ac] sm:$0xf]
  %v71 = vld [vmem:[%s0 + $0x1b0] sm:$0xff]
  %v72 = vld [vmem:[%s0 + $0x1b8] sm:$0xff]
  %v73 = vld [vmem:[%s0 + $0x1c0] sm:$0xff]
  %v74 = vld [vmem:[%s0 + $0x1c8] sm:$0xff]
  %v75 = vld [vmem:[%s0 + $0x1d0] sm:$0xf]
  %v76 = vld [vmem:[%s0 + $0x1d4] sm:$0xff]
  %v77 = vld [vmem:[%s0 + $0x1dc] sm:$0xff]
  %v78 = vld [vmem:[%s0 + $0x1e4] sm:$0xff]
  %v79 = vld [vmem:[%s0 + $0x1ec] sm:$0xff]
  %v80 = vld [vmem:[%s0 + $0x1f4] sm:$0xf]
  %v81 = vld [vmem:[%s0 + $0x1f8] sm:$0xff]
  %v82 = vld [vmem:[%s0 + $0x200] sm:$0xff]
  %v83 = vld [vmem:[%s0 + $0x208] sm:$0xff]
  %v84 = vld [vmem:[%s0 + $0x210] sm:$0xff]
  %v85 = vld [vmem:[%s0 + $0x218] sm:$0xf]
  %v86 = vld [vmem:[%s0 + $0x21c] sm:$0xff]
  %v87 = vld [vmem:[%s0 + $0x224] sm:$0xff]
  %v88 = vld [vmem:[%s0 + $0x22c] sm:$0xff]
  %v89 = vld [vmem:[%s0 + $0x234] sm:$0xff]
  %v90 = vld [vmem:[%s0 + $0x23c] sm:$0xf]
  %v91 = vld [vmem:[%s1] sm:$0xf]
  %v92 = vld [vmem:[%s1 + $0x4] sm:$0xf]
  %v93 = vld [vmem:[%s1 + $0x8] sm:$0xf]
  %v94 = vld [vmem:[%s1 + $0xc] sm:$0xf]
  %v95 = vld [vmem:[%s1 + $0x10] sm:$0xf]
  %v96 = vld [vmem:[%s1 + $0x14] sm:$0xf]
  %v97 = vld [vmem:[%s1 + $0x18] sm:$0xf]
  %v98 = vld [vmem:[%s1 + $0x1c] sm:$0xf]
  %v99 = vld [vmem:[%s1 + $0x20] sm:$0xf]
  %v100 = vld [vmem:[%s1 + $0x24] sm:$0xf]
  %v101 = vld [vmem:[%s1 + $0x28] sm:$0xf]
  %v102 = vld [vmem:[%s1 + $0x2c] sm:$0xf]
  %v103 = vld [vmem:[%s1 + $0x30] sm:$0xf]
  %v104 = vld [vmem:[%s1 + $0x34] sm:$0xf]
  %v105 = vld [vmem:[%s1 + $0x38] sm:$0xf]
  %v106 = vld [vmem:[%s1 + $0x3c] sm:$0xf]
  %v107 = vld [vmem:[%s1 + $0x40] sm:$0xf]
  %v108 = vld [vmem:[%s1 + $0x44] sm:$0xf]
  %v109 = vld [vmem:[%s1 + $0x48] sm:$0xf]
  %v110 = vld [vmem:[%s1 + $0x4c] sm:$0xf]
  %v111 = vld [vmem:[%s1 + $0x50] sm:$0xf]
  %v112 = vld [vmem:[%s1 + $0x54] sm:$0xf]
  %v113 = vld [vmem:[%s1 + $0x58] sm:$0xf]
  %v114 = vld [vmem:[%s1 + $0x5c] sm:$0xf]
  %v115 = vld [vmem:[%s1 + $0x60] sm:$0xf]
  %v116 = vld [vmem:[%s1 + $0x64] sm:$0xf]
  %v117 = vld [vmem:[%s1 + $0x68] sm:$0xf]
  %v118 = vld [vmem:[%s1 + $0x6c] sm:$0xf]
  %v119 = vld [vmem:[%s1 + $0x70] sm:$0xf]
  %v120 = vld [vmem:[%s1 + $0x74] sm:$0xf]
  %v121 = vld [vmem:[%s1 + $0x78] sm:$0xf]
  %v122 = vld [vmem:[%s1 + $0x7c] sm:$0xf]
  %v123 = vld [vmem:[%s1 + $0x80] sm:$0xf]
  %v124 = vld [vmem:[%s1 + $0x84] sm:$0xf]
  %v125 = vld [vmem:[%s1 + $0x88] sm:$0xf]
  %v126 = vld [vmem:[%s1 + $0x8c] sm:$0xf]
  %v127 = vld [vmem:[%s1 + $0x90] sm:$0xf]
  %v128 = vld [vmem:[%s1 + $0x94] sm:$0xf]
  %v129 = vld [vmem:[%s1 + $0x98] sm:$0xf]
  %v130 = vld [vmem:[%s1 + $0x9c] sm:$0xf]
  %v131 = vld [vmem:[%s1 + $0xa0] sm:$0xf]
  %v132 = vld [vmem:[%s1 + $0xa4] sm:$0xf]
  %v133 = vld [vmem:[%s1 + $0xa8] sm:$0xf]
  %v134 = vld [vmem:[%s1 + $0xac] sm:$0xf]
  %v135 = vld [vmem:[%s1 + $0xb0] sm:$0xf]
  %v136 = vld [vmem:[%s1 + $0xb4] sm:$0xf]
  %v137 = vld [vmem:[%s1 + $0xb8] sm:$0xf]
  %v138 = vld [vmem:[%s1 + $0xbc] sm:$0xf]
  %v139 = vld [vmem:[%s1 + $0xc0] sm:$0xf]
  %v140 = vld [vmem:[%s1 + $0xc4] sm:$0xf]
  %v141 = vld [vmem:[%s1 + $0xc8] sm:$0xf]
  %v142 = vld [vmem:[%s1 + $0xcc] sm:$0xf]
  %v143 = vld [vmem:[%s1 + $0xd0] sm:$0xf]
  %v144 = vld [vmem:[%s1 + $0xd4] sm:$0xf]
  %v145 = vld [vmem:[%s1 + $0xd8] sm:$0xf]
  %v146 = vld [vmem:[%s1 + $0xdc] sm:$0xf]
  %v147 = vld [vmem:[%s1 + $0xe0] sm:$0xf]
  %v148 = vld [vmem:[%s1 + $0xe4] sm:$0xf]
  %v149 = vld [vmem:[%s1 + $0xe8] sm:$0xf]
  %v150 = vld [vmem:[%s1 + $0xec] sm:$0xf]
  %v151 = vld [vmem:[%s1 + $0xf0] sm:$0xf]
  %v152 = vld [vmem:[%s1 + $0xf4] sm:$0xf]
  %v153 = vld [vmem:[%s1 + $0xf8] sm:$0xf]
  %v154 = vld [vmem:[%s1 + $0xfc] sm:$0xf]
  %v155 = vld [vmem:[%s1 + $0x100] sm:$0xf]
  %v156 = vld [vmem:[%s1 + $0x104] sm:$0xf]
  %v157 = vld [vmem:[%s1 + $0x108] sm:$0xf]
  %v158 = vld [vmem:[%s1 + $0x10c] sm:$0xf]
  %v159 = vld [vmem:[%s1 + $0x110] sm:$0xf]
  %v160 = vld [vmem:[%s1 + $0x114] sm:$0xf]
  %v161 = vld [vmem:[%s1 + $0x118] sm:$0xf]
  %v162 = vld [vmem:[%s1 + $0x11c] sm:$0xf]
  %v163 = vld [vmem:[%s1 + $0x120] sm:$0xf]
  %v164 = vld [vmem:[%s1 + $0x124] sm:$0xf]
  %v165 = vld [vmem:[%s1 + $0x128] sm:$0xf]
  %v166 = vld [vmem:[%s1 + $0x12c] sm:$0xf]
  %v167 = vld [vmem:[%s1 + $0x130] sm:$0xf]
  %v168 = vld [vmem:[%s1 + $0x134] sm:$0xf]
  %v169 = vld [vmem:[%s1 + $0x138] sm:$0xf]
  %v170 = vld [vmem:[%s1 + $0x13c] sm:$0xf]
  %v171 = vld [vmem:[%s1 + $0x140] sm:$0xf]
  %v172 = vld [vmem:[%s1 + $0x144] sm:$0xf]
  %v173 = vld [vmem:[%s1 + $0x148] sm:$0xf]
  %v174 = vld [vmem:[%s1 + $0x14c] sm:$0xf]
  %v175 = vld [vmem:[%s1 + $0x150] sm:$0xf]
  %v176 = vld [vmem:[%s1 + $0x154] sm:$0xf]
  %v177 = vld [vmem:[%s1 + $0x158] sm:$0xf]
  %v178 = vld [vmem:[%s1 + $0x15c] sm:$0xf]
  %v179 = vld [vmem:[%s1 + $0x160] sm:$0xf]
  %v180 = vld [vmem:[%s1 + $0x164] sm:$0xf]
  %v181 = vld [vmem:[%s1 + $0x168] sm:$0xf]
  %v182 = vld [vmem:[%s1 + $0x16c] sm:$0xf]
  %v183 = vld [vmem:[%s1 + $0x170] sm:$0xf]
  %v184 = vld [vmem:[%s1 + $0x174] sm:$0xf]
  %v185 = vld [vmem:[%s1 + $0x178] sm:$0xf]
  %v186 = vld [vmem:[%s1 + $0x17c] sm:$0xf]
  %v187 = vld [vmem:[%s1 + $0x180] sm:$0xf]
  %v188 = vld [vmem:[%s1 + $0x184] sm:$0xf]
  %v189 = vld [vmem:[%s1 + $0x188] sm:$0xf]
  %v190 = vld [vmem:[%s1 + $0x18c] sm:$0xf]
  %v191 = vld [vmem:[%s1 + $0x190] sm:$0xf]
  %v192 = vld [vmem:[%s1 + $0x194] sm:$0xf]
  %v193 = vld [vmem:[%s1 + $0x198] sm:$0xf]
  %v194 = vld [vmem:[%s1 + $0x19c] sm:$0xf]
  %v195 = vld [vmem:[%s1 + $0x1a0] sm:$0xf]
  %v196 = vld [vmem:[%s1 + $0x1a4] sm:$0xf]
  %v197 = vld [vmem:[%s1 + $0x1a8] sm:$0xf]
  %v198 = vld [vmem:[%s1 + $0x1ac] sm:$0xf]
  %v199 = vld [vmem:[%s1 + $0x1b0] sm:$0xf]
  %v200 = vld [vmem:[%s1 + $0x1b4] sm:$0xf]
  %v201 = vld [vmem:[%s1 + $0x1b8] sm:$0xf]
  %v202 = vld [vmem:[%s1 + $0x1bc] sm:$0xf]
  %v203 = vld [vmem:[%s1 + $0x1c0] sm:$0xf]
  %v204 = vld [vmem:[%s1 + $0x1c4] sm:$0xf]
  %v205 = vld [vmem:[%s1 + $0x1c8] sm:$0xf]
  %v206 = vld [vmem:[%s1 + $0x1cc] sm:$0xf]
  %v207 = vld [vmem:[%s1 + $0x1d0] sm:$0xf]
  %v208 = vld [vmem:[%s1 + $0x1d4] sm:$0xf]
  %v209 = vld [vmem:[%s1 + $0x1d8] sm:$0xf]
  %v210 = vld [vmem:[%s1 + $0x1dc] sm:$0xf]
  %v211 = vld [vmem:[%s1 + $0x1e0] sm:$0xf]
  %v212 = vld [vmem:[%s1 + $0x1e4] sm:$0xf]
  %v213 = vld [vmem:[%s1 + $0x1e8] sm:$0xf]
  %v214 = vld [vmem:[%s1 + $0x1ec] sm:$0xf]
  %v215 = vld [vmem:[%s1 + $0x1f0] sm:$0xf]
  %v216 = vld [vmem:[%s1 + $0x1f4] sm:$0xf]
  %v217 = vld [vmem:[%s1 + $0x1f8] sm:$0xf]
  %v218 = vld [vmem:[%s1 + $0x1fc] sm:$0xf]
  %v219 = vld [vmem:[%s1 + $0x200] sm:$0xf]
  %v220 = vld [vmem:[%s1 + $0x204] sm:$0xf]
  %v221 = vld [vmem:[%s1 + $0x208] sm:$0xf]
  %v222 = vld [vmem:[%s1 + $0x20c] sm:$0xf]
  %v223 = vld [vmem:[%s1 + $0x210] sm:$0xf]
  %v224 = vld [vmem:[%s1 + $0x214] sm:$0xf]
  %v225 = vld [vmem:[%s1 + $0x218] sm:$0xf]
  %v226 = vld [vmem:[%s1 + $0x21c] sm:$0xf]
  %v227 = vld [vmem:[%s1 + $0x220] sm:$0xf]
  %v228 = vld [vmem:[%s1 + $0x224] sm:$0xf]
  %v229 = vld [vmem:[%s1 + $0x228] sm:$0xf]
  %v230 = vld [vmem:[%s1 + $0x22c] sm:$0xf]
  %v231 = vld [vmem:[%s1 + $0x230] sm:$0xf]
  %v232 = vld [vmem:[%s1 + $0x234] sm:$0xf]
  %v233 = vld [vmem:[%s1 + $0x238] sm:$0xf]
  %v234 = vld [vmem:[%s1 + $0x23c] sm:$0xf]
  %v315 = vunpack.c.l.b16 %v11
  %v316 = vunpack.c.h.b16 %v11
  %v317 = vunpack.c.l.b16 %v12
  %v318 = vunpack.c.h.b16 %v12
  %v319 = vunpack.c.l.b16 %v13
  %v320 = vunpack.c.h.b16 %v13
  %v321 = vunpack.c.l.b16 %v14
  %v322 = vunpack.c.h.b16 %v14
  %v323 = vunpack.c.l.b16 %v15
  %v324 = vunpack.c.l.b16 %v16
  %v325 = vunpack.c.h.b16 %v16
  %v326 = vunpack.c.l.b16 %v17
  %v327 = vunpack.c.h.b16 %v17
  %v328 = vunpack.c.l.b16 %v18
  %v329 = vunpack.c.h.b16 %v18
  %v330 = vunpack.c.l.b16 %v19
  %v331 = vunpack.c.h.b16 %v19
  %v332 = vunpack.c.l.b16 %v20
  %v333 = vunpack.c.l.b16 %v21
  %v334 = vunpack.c.h.b16 %v21
  %v335 = vunpack.c.l.b16 %v22
  %v336 = vunpack.c.h.b16 %v22
  %v337 = vunpack.c.l.b16 %v23
  %v338 = vunpack.c.h.b16 %v23
  %v339 = vunpack.c.l.b16 %v24
  %v340 = vunpack.c.h.b16 %v24
  %v341 = vunpack.c.l.b16 %v25
  %v342 = vunpack.c.l.b16 %v26
  %v343 = vunpack.c.h.b16 %v26
  %v344 = vunpack.c.l.b16 %v27
  %v345 = vunpack.c.h.b16 %v27
  %v346 = vunpack.c.l.b16 %v28
  %v347 = vunpack.c.h.b16 %v28
  %v348 = vunpack.c.l.b16 %v29
  %v349 = vunpack.c.h.b16 %v29
  %v350 = vunpack.c.l.b16 %v30
  %v351 = vunpack.c.l.b16 %v31
  %v352 = vunpack.c.h.b16 %v31
  %v353 = vunpack.c.l.b16 %v32
  %v354 = vunpack.c.h.b16 %v32
  %v355 = vunpack.c.l.b16 %v33
  %v356 = vunpack.c.h.b16 %v33
  %v357 = vunpack.c.l.b16 %v34
  %v358 = vunpack.c.h.b16 %v34
  %v359 = vunpack.c.l.b16 %v35
  %v360 = vunpack.c.l.b16 %v36
  %v361 = vunpack.c.h.b16 %v36
  %v362 = vunpack.c.l.b16 %v37
  %v363 = vunpack.c.h.b16 %v37
  %v364 = vunpack.c.l.b16 %v38
  %v365 = vunpack.c.h.b16 %v38
  %v366 = vunpack.c.l.b16 %v39
  %v367 = vunpack.c.h.b16 %v39
  %v368 = vunpack.c.l.b16 %v40
  %v369 = vunpack.c.l.b16 %v41
  %v370 = vunpack.c.h.b16 %v41
  %v371 = vunpack.c.l.b16 %v42
  %v372 = vunpack.c.h.b16 %v42
  %v373 = vunpack.c.l.b16 %v43
  %v374 = vunpack.c.h.b16 %v43
  %v375 = vunpack.c.l.b16 %v44
  %v376 = vunpack.c.h.b16 %v44
  %v377 = vunpack.c.l.b16 %v45
  %v378 = vunpack.c.l.b16 %v46
  %v379 = vunpack.c.h.b16 %v46
  %v380 = vunpack.c.l.b16 %v47
  %v381 = vunpack.c.h.b16 %v47
  %v382 = vunpack.c.l.b16 %v48
  %v383 = vunpack.c.h.b16 %v48
  %v384 = vunpack.c.l.b16 %v49
  %v385 = vunpack.c.h.b16 %v49
  %v386 = vunpack.c.l.b16 %v50
  %v387 = vunpack.c.l.b16 %v51
  %v388 = vunpack.c.h.b16 %v51
  %v389 = vunpack.c.l.b16 %v52
  %v390 = vunpack.c.h.b16 %v52
  %v391 = vunpack.c.l.b16 %v53
  %v392 = vunpack.c.h.b16 %v53
  %v393 = vunpack.c.l.b16 %v54
  %v394 = vunpack.c.h.b16 %v54
  %v395 = vunpack.c.l.b16 %v55
  %v396 = vunpack.c.l.b16 %v56
  %v397 = vunpack.c.h.b16 %v56
  %v398 = vunpack.c.l.b16 %v57
  %v399 = vunpack.c.h.b16 %v57
  %v400 = vunpack.c.l.b16 %v58
  %v401 = vunpack.c.h.b16 %v58
  %v402 = vunpack.c.l.b16 %v59
  %v403 = vunpack.c.h.b16 %v59
  %v404 = vunpack.c.l.b16 %v60
  %v405 = vunpack.c.l.b16 %v61
  %v406 = vunpack.c.h.b16 %v61
  %v407 = vunpack.c.l.b16 %v62
  %v408 = vunpack.c.h.b16 %v62
  %v409 = vunpack.c.l.b16 %v63
  %v410 = vunpack.c.h.b16 %v63
  %v411 = vunpack.c.l.b16 %v64
  %v412 = vunpack.c.h.b16 %v64
  %v413 = vunpack.c.l.b16 %v65
  %v414 = vunpack.c.l.b16 %v66
  %v415 = vunpack.c.h.b16 %v66
  %v416 = vunpack.c.l.b16 %v67
  %v417 = vunpack.c.h.b16 %v67
  %v418 = vunpack.c.l.b16 %v68
  %v419 = vunpack.c.h.b16 %v68
  %v420 = vunpack.c.l.b16 %v69
  %v421 = vunpack.c.h.b16 %v69
  %v422 = vunpack.c.l.b16 %v70
  %v423 = vunpack.c.l.b16 %v71
  %v424 = vunpack.c.h.b16 %v71
  %v425 = vunpack.c.l.b16 %v72
  %v426 = vunpack.c.h.b16 %v72
  %v427 = vunpack.c.l.b16 %v73
  %v428 = vunpack.c.h.b16 %v73
  %v429 = vunpack.c.l.b16 %v74
  %v430 = vunpack.c.h.b16 %v74
  %v431 = vunpack.c.l.b16 %v75
  %v432 = vunpack.c.l.b16 %v76
  %v433 = vunpack.c.h.b16 %v76
  %v434 = vunpack.c.l.b16 %v77
  %v435 = vunpack.c.h.b16 %v77
  %v436 = vunpack.c.l.b16 %v78
  %v437 = vunpack.c.h.b16 %v78
  %v438 = vunpack.c.l.b16 %v79
  %v439 = vunpack.c.h.b16 %v79
  %v440 = vunpack.c.l.b16 %v80
  %v441 = vunpack.c.l.b16 %v81
  %v442 = vunpack.c.h.b16 %v81
  %v443 = vunpack.c.l.b16 %v82
  %v444 = vunpack.c.h.b16 %v82
  %v445 = vunpack.c.l.b16 %v83
  %v446 = vunpack.c.h.b16 %v83
  %v447 = vunpack.c.l.b16 %v84
  %v448 = vunpack.c.h.b16 %v84
  %v449 = vunpack.c.l.b16 %v85
  %v450 = vunpack.c.l.b16 %v86
  %v451 = vunpack.c.h.b16 %v86
  %v452 = vunpack.c.l.b16 %v87
  %v453 = vunpack.c.h.b16 %v87
  %v454 = vunpack.c.l.b16 %v88
  %v455 = vunpack.c.h.b16 %v88
  %v456 = vunpack.c.l.b16 %v89
  %v457 = vunpack.c.h.b16 %v89
  %v458 = vunpack.c.l.b16 %v90
  %v459 = vpack.c.b16 %v324, %v315
  %v460 = vpack.c.b16 %v325, %v316
  %v461 = vpack.c.b16 %v326, %v317
  %v462 = vpack.c.b16 %v327, %v318
  %v463 = vpack.c.b16 %v328, %v319
  %v464 = vpack.c.b16 %v329, %v320
  %v465 = vpack.c.b16 %v330, %v321
  %v466 = vpack.c.b16 %v331, %v322
  %v467 = vpack.c.b16 %v332, %v323
  %v468 = vpack.c.b16 %v342, %v333
  %v469 = vpack.c.b16 %v343, %v334
  %v470 = vpack.c.b16 %v344, %v335
  %v471 = vpack.c.b16 %v345, %v336
  %v472 = vpack.c.b16 %v346, %v337
  %v473 = vpack.c.b16 %v347, %v338
  %v474 = vpack.c.b16 %v348, %v339
  %v475 = vpack.c.b16 %v349, %v340
  %v476 = vpack.c.b16 %v350, %v341
  %v477 = vpack.c.b16 %v360, %v351
  %v478 = vpack.c.b16 %v361, %v352
  %v479 = vpack.c.b16 %v362, %v353
  %v480 = vpack.c.b16 %v363, %v354
  %v481 = vpack.c.b16 %v364, %v355
  %v482 = vpack.c.b16 %v365, %v356
  %v483 = vpack.c.b16 %v366, %v357
  %v484 = vpack.c.b16 %v367, %v358
  %v485 = vpack.c.b16 %v368, %v359
  %v486 = vpack.c.b16 %v378, %v369
  %v487 = vpack.c.b16 %v379, %v370
  %v488 = vpack.c.b16 %v380, %v371
  %v489 = vpack.c.b16 %v381, %v372
  %v490 = vpack.c.b16 %v382, %v373
  %v491 = vpack.c.b16 %v383, %v374
  %v492 = vpack.c.b16 %v384, %v375
  %v493 = vpack.c.b16 %v385, %v376
  %v494 = vpack.c.b16 %v386, %v377
  %v495 = vpack.c.b16 %v396, %v387
  %v496 = vpack.c.b16 %v397, %v388
  %v497 = vpack.c.b16 %v398, %v389
  %v498 = vpack.c.b16 %v399, %v390
  %v499 = vpack.c.b16 %v400, %v391
  %v500 = vpack.c.b16 %v401, %v392
  %v501 = vpack.c.b16 %v402, %v393
  %v502 = vpack.c.b16 %v403, %v394
  %v503 = vpack.c.b16 %v404, %v395
  %v504 = vpack.c.b16 %v414, %v405
  %v505 = vpack.c.b16 %v415, %v406
  %v506 = vpack.c.b16 %v416, %v407
  %v507 = vpack.c.b16 %v417, %v408
  %v508 = vpack.c.b16 %v418, %v409
  %v509 = vpack.c.b16 %v419, %v410
  %v510 = vpack.c.b16 %v420, %v411
  %v511 = vpack.c.b16 %v421, %v412
  %v512 = vpack.c.b16 %v422, %v413
  %v513 = vpack.c.b16 %v432, %v423
  %v514 = vpack.c.b16 %v433, %v424
  %v515 = vpack.c.b16 %v434, %v425
  %v516 = vpack.c.b16 %v435, %v426
  %v517 = vpack.c.b16 %v436, %v427
  %v518 = vpack.c.b16 %v437, %v428
  %v519 = vpack.c.b16 %v438, %v429
  %v520 = vpack.c.b16 %v439, %v430
  %v521 = vpack.c.b16 %v440, %v431
  %v522 = vpack.c.b16 %v450, %v441
  %v523 = vpack.c.b16 %v451, %v442
  %v524 = vpack.c.b16 %v452, %v443
  %v525 = vpack.c.b16 %v453, %v444
  %v526 = vpack.c.b16 %v454, %v445
  %v527 = vpack.c.b16 %v455, %v446
  %v528 = vpack.c.b16 %v456, %v447
  %v529 = vpack.c.b16 %v457, %v448
  %v530 = vpack.c.b16 %v458, %v449
  %v747 = vunpack.c.l.b16 %v91
  %v748 = vunpack.c.l.b16 %v92
  %v749 = vunpack.c.l.b16 %v93
  %v750 = vunpack.c.l.b16 %v94
  %v751 = vunpack.c.l.b16 %v95
  %v752 = vunpack.c.l.b16 %v96
  %v753 = vunpack.c.l.b16 %v97
  %v754 = vunpack.c.l.b16 %v98
  %v755 = vunpack.c.l.b16 %v99
  %v756 = vunpack.c.l.b16 %v100
  %v757 = vunpack.c.l.b16 %v101
  %v758 = vunpack.c.l.b16 %v102
  %v759 = vunpack.c.l.b16 %v103
  %v760 = vunpack.c.l.b16 %v104
  %v761 = vunpack.c.l.b16 %v105
  %v762 = vunpack.c.l.b16 %v106
  %v763 = vunpack.c.l.b16 %v107
  %v764 = vunpack.c.l.b16 %v108
  %v765 = vunpack.c.l.b16 %v109
  %v766 = vunpack.c.l.b16 %v110
  %v767 = vunpack.c.l.b16 %v111
  %v768 = vunpack.c.l.b16 %v112
  %v769 = vunpack.c.l.b16 %v113
  %v770 = vunpack.c.l.b16 %v114
  %v771 = vunpack.c.l.b16 %v115
  %v772 = vunpack.c.l.b16 %v116
  %v773 = vunpack.c.l.b16 %v117
  %v774 = vunpack.c.l.b16 %v118
  %v775 = vunpack.c.l.b16 %v119
  %v776 = vunpack.c.l.b16 %v120
  %v777 = vunpack.c.l.b16 %v121
  %v778 = vunpack.c.l.b16 %v122
  %v779 = vunpack.c.l.b16 %v123
  %v780 = vunpack.c.l.b16 %v124
  %v781 = vunpack.c.l.b16 %v125
  %v782 = vunpack.c.l.b16 %v126
  %v783 = vunpack.c.l.b16 %v127
  %v784 = vunpack.c.l.b16 %v128
  %v785 = vunpack.c.l.b16 %v129
  %v786 = vunpack.c.l.b16 %v130
  %v787 = vunpack.c.l.b16 %v131
  %v788 = vunpack.c.l.b16 %v132
  %v789 = vunpack.c.l.b16 %v133
  %v790 = vunpack.c.l.b16 %v134
  %v791 = vunpack.c.l.b16 %v135
  %v792 = vunpack.c.l.b16 %v136
  %v793 = vunpack.c.l.b16 %v137
  %v794 = vunpack.c.l.b16 %v138
  %v795 = vunpack.c.l.b16 %v139
  %v796 = vunpack.c.l.b16 %v140
  %v797 = vunpack.c.l.b16 %v141
  %v798 = vunpack.c.l.b16 %v142
  %v799 = vunpack.c.l.b16 %v143
  %v800 = vunpack.c.l.b16 %v144
  %v801 = vunpack.c.l.b16 %v145
  %v802 = vunpack.c.l.b16 %v146
  %v803 = vunpack.c.l.b16 %v147
  %v804 = vunpack.c.l.b16 %v148
  %v805 = vunpack.c.l.b16 %v149
  %v806 = vunpack.c.l.b16 %v150
  %v807 = vunpack.c.l.b16 %v151
  %v808 = vunpack.c.l.b16 %v152
  %v809 = vunpack.c.l.b16 %v153
  %v810 = vunpack.c.l.b16 %v154
  %v811 = vunpack.c.l.b16 %v155
  %v812 = vunpack.c.l.b16 %v156
  %v813 = vunpack.c.l.b16 %v157
  %v814 = vunpack.c.l.b16 %v158
  %v815 = vunpack.c.l.b16 %v159
  %v816 = vunpack.c.l.b16 %v160
  %v817 = vunpack.c.l.b16 %v161
  %v818 = vunpack.c.l.b16 %v162
  %v819 = vunpack.c.l.b16 %v163
  %v820 = vunpack.c.l.b16 %v164
  %v821 = vunpack.c.l.b16 %v165
  %v822 = vunpack.c.l.b16 %v166
  %v823 = vunpack.c.l.b16 %v167
  %v824 = vunpack.c.l.b16 %v168
  %v825 = vunpack.c.l.b16 %v169
  %v826 = vunpack.c.l.b16 %v170
  %v827 = vunpack.c.l.b16 %v171
  %v828 = vunpack.c.l.b16 %v172
  %v829 = vunpack.c.l.b16 %v173
  %v830 = vunpack.c.l.b16 %v174
  %v831 = vunpack.c.l.b16 %v175
  %v832 = vunpack.c.l.b16 %v176
  %v833 = vunpack.c.l.b16 %v177
  %v834 = vunpack.c.l.b16 %v178
  %v835 = vunpack.c.l.b16 %v179
  %v836 = vunpack.c.l.b16 %v180
  %v837 = vunpack.c.l.b16 %v181
  %v838 = vunpack.c.l.b16 %v182
  %v839 = vunpack.c.l.b16 %v183
  %v840 = vunpack.c.l.b16 %v184
  %v841 = vunpack.c.l.b16 %v185
  %v842 = vunpack.c.l.b16 %v186
  %v843 = vunpack.c.l.b16 %v187
  %v844 = vunpack.c.l.b16 %v188
  %v845 = vunpack.c.l.b16 %v189
  %v846 = vunpack.c.l.b16 %v190
  %v847 = vunpack.c.l.b16 %v191
  %v848 = vunpack.c.l.b16 %v192
  %v849 = vunpack.c.l.b16 %v193
  %v850 = vunpack.c.l.b16 %v194
  %v851 = vunpack.c.l.b16 %v195
  %v852 = vunpack.c.l.b16 %v196
  %v853 = vunpack.c.l.b16 %v197
  %v854 = vunpack.c.l.b16 %v198
  %v855 = vunpack.c.l.b16 %v199
  %v856 = vunpack.c.l.b16 %v200
  %v857 = vunpack.c.l.b16 %v201
  %v858 = vunpack.c.l.b16 %v202
  %v859 = vunpack.c.l.b16 %v203
  %v860 = vunpack.c.l.b16 %v204
  %v861 = vunpack.c.l.b16 %v205
  %v862 = vunpack.c.l.b16 %v206
  %v863 = vunpack.c.l.b16 %v207
  %v864 = vunpack.c.l.b16 %v208
  %v865 = vunpack.c.l.b16 %v209
  %v866 = vunpack.c.l.b16 %v210
  %v867 = vunpack.c.l.b16 %v211
  %v868 = vunpack.c.l.b16 %v212
  %v869 = vunpack.c.l.b16 %v213
  %v870 = vunpack.c.l.b16 %v214
  %v871 = vunpack.c.l.b16 %v215
  %v872 = vunpack.c.l.b16 %v216
  %v873 = vunpack.c.l.b16 %v217
  %v874 = vunpack.c.l.b16 %v218
  %v875 = vunpack.c.l.b16 %v219
  %v876 = vunpack.c.l.b16 %v220
  %v877 = vunpack.c.l.b16 %v221
  %v878 = vunpack.c.l.b16 %v222
  %v879 = vunpack.c.l.b16 %v223
  %v880 = vunpack.c.l.b16 %v224
  %v881 = vunpack.c.l.b16 %v225
  %v882 = vunpack.c.l.b16 %v226
  %v883 = vunpack.c.l.b16 %v227
  %v884 = vunpack.c.l.b16 %v228
  %v885 = vunpack.c.l.b16 %v229
  %v886 = vunpack.c.l.b16 %v230
  %v887 = vunpack.c.l.b16 %v231
  %v888 = vunpack.c.l.b16 %v232
  %v889 = vunpack.c.l.b16 %v233
  %v890 = vunpack.c.l.b16 %v234
  %v891 = vpack.c.b16 %v748, %v747
  %v892 = vpack.c.b16 %v750, %v749
  %v893 = vpack.c.b16 %v752, %v751
  %v894 = vpack.c.b16 %v754, %v753
  %v895 = vpack.c.b16 %v756, %v755
  %v896 = vpack.c.b16 %v758, %v757
  %v897 = vpack.c.b16 %v760, %v759
  %v898 = vpack.c.b16 %v762, %v761
  %v899 = vpack.c.b16 %v764, %v763
  %v900 = vpack.c.b16 %v766, %v765
  %v901 = vpack.c.b16 %v768, %v767
  %v902 = vpack.c.b16 %v770, %v769
  %v903 = vpack.c.b16 %v772, %v771
  %v904 = vpack.c.b16 %v774, %v773
  %v905 = vpack.c.b16 %v776, %v775
  %v906 = vpack.c.b16 %v778, %v777
  %v907 = vpack.c.b16 %v780, %v779
  %v908 = vpack.c.b16 %v782, %v781
  %v909 = vpack.c.b16 %v784, %v783
  %v910 = vpack.c.b16 %v786, %v785
  %v911 = vpack.c.b16 %v788, %v787
  %v912 = vpack.c.b16 %v790, %v789
  %v913 = vpack.c.b16 %v792, %v791
  %v914 = vpack.c.b16 %v794, %v793
  %v915 = vpack.c.b16 %v796, %v795
  %v916 = vpack.c.b16 %v798, %v797
  %v917 = vpack.c.b16 %v800, %v799
  %v918 = vpack.c.b16 %v802, %v801
  %v919 = vpack.c.b16 %v804, %v803
  %v920 = vpack.c.b16 %v806, %v805
  %v921 = vpack.c.b16 %v808, %v807
  %v922 = vpack.c.b16 %v810, %v809
  %v923 = vpack.c.b16 %v812, %v811
  %v924 = vpack.c.b16 %v814, %v813
  %v925 = vpack.c.b16 %v816, %v815
  %v926 = vpack.c.b16 %v818, %v817
  %v927 = vpack.c.b16 %v820, %v819
  %v928 = vpack.c.b16 %v822, %v821
  %v929 = vpack.c.b16 %v824, %v823
  %v930 = vpack.c.b16 %v826, %v825
  %v931 = vpack.c.b16 %v828, %v827
  %v932 = vpack.c.b16 %v830, %v829
  %v933 = vpack.c.b16 %v832, %v831
  %v934 = vpack.c.b16 %v834, %v833
  %v935 = vpack.c.b16 %v836, %v835
  %v936 = vpack.c.b16 %v838, %v837
  %v937 = vpack.c.b16 %v840, %v839
  %v938 = vpack.c.b16 %v842, %v841
  %v939 = vpack.c.b16 %v844, %v843
  %v940 = vpack.c.b16 %v846, %v845
  %v941 = vpack.c.b16 %v848, %v847
  %v942 = vpack.c.b16 %v850, %v849
  %v943 = vpack.c.b16 %v852, %v851
  %v944 = vpack.c.b16 %v854, %v853
  %v945 = vpack.c.b16 %v856, %v855
  %v946 = vpack.c.b16 %v858, %v857
  %v947 = vpack.c.b16 %v860, %v859
  %v948 = vpack.c.b16 %v862, %v861
  %v949 = vpack.c.b16 %v864, %v863
  %v950 = vpack.c.b16 %v866, %v865
  %v951 = vpack.c.b16 %v868, %v867
  %v952 = vpack.c.b16 %v870, %v869
  %v953 = vpack.c.b16 %v872, %v871
  %v954 = vpack.c.b16 %v874, %v873
  %v955 = vpack.c.b16 %v876, %v875
  %v956 = vpack.c.b16 %v878, %v877
  %v957 = vpack.c.b16 %v880, %v879
  %v958 = vpack.c.b16 %v882, %v881
  %v959 = vpack.c.b16 %v884, %v883
  %v960 = vpack.c.b16 %v886, %v885
  %v961 = vpack.c.b16 %v888, %v887
  %v962 = vpack.c.b16 %v890, %v889
  %1035 = vmatpush.bf16.msra.mxu0 %v898
  %1036 = vmatpush.bf16.msra.mxu0 %v897
  %1037 = vmatpush.bf16.msra.mxu0 %v896
  %1038 = vmatpush.bf16.msra.mxu0 %v895
  %1039 = vmatpush.bf16.msra.mxu0 %v894
  %1040 = vmatpush.bf16.msra.mxu0 %v893
  %1041 = vmatpush.bf16.msra.mxu0 %v892
  %1042 = vmatpush.bf16.msra.mxu0 %v891
  %1043 = vmatmul.bf16.gmra.mxu0 %v459
  %v1044 = vpop.f32.mrf.mxu0
  %v1045 = vadd.f32 0.0, %v1044
  %v1046 = vpop.f32.mrf.mxu0
  %v1047 = vadd.f32 0.0, %v1046
  %1048 = vmatmul.bf16.gmra.mxu0 %v468
  %v1049 = vpop.f32.mrf.mxu0
  %v1050 = vadd.f32 0.0, %v1049
  %v1051 = vpop.f32.mrf.mxu0
  %v1052 = vadd.f32 0.0, %v1051
  %1053 = vmatmul.bf16.gmra.mxu0 %v477
  %v1054 = vpop.f32.mrf.mxu0
  %v1055 = vadd.f32 0.0, %v1054
  %v1056 = vpop.f32.mrf.mxu0
  %v1057 = vadd.f32 0.0, %v1056
  %1058 = vmatmul.bf16.gmra.mxu0 %v486
  %v1059 = vpop.f32.mrf.mxu0
  %v1060 = vadd.f32 0.0, %v1059
  %v1061 = vpop.f32.mrf.mxu0
  %v1062 = vadd.f32 0.0, %v1061
  %1063 = vmatmul.bf16.gmra.mxu0 %v495
  %v1064 = vpop.f32.mrf.mxu0
  %v1065 = vadd.f32 0.0, %v1064
  %v1066 = vpop.f32.mrf.mxu0
  %v1067 = vadd.f32 0.0, %v1066
  %1068 = vmatmul.bf16.gmra.mxu0 %v504
  %v1069 = vpop.f32.mrf.mxu0
  %v1070 = vadd.f32 0.0, %v1069
  %v1071 = vpop.f32.mrf.mxu0
  %v1072 = vadd.f32 0.0, %v1071
  %1073 = vmatmul.bf16.gmra.mxu0 %v513
  %v1074 = vpop.f32.mrf.mxu0
  %v1075 = vadd.f32 0.0, %v1074
  %v1076 = vpop.f32.mrf.mxu0
  %v1077 = vadd.f32 0.0, %v1076
  %1078 = vmatmul.bf16.gmra.mxu0 %v522
  %v1079 = vpop.f32.mrf.mxu0
  %v1080 = vadd.f32 0.0, %v1079
  %v1081 = vpop.f32.mrf.mxu0
  %v1082 = vadd.f32 0.0, %v1081
  %1083 = vdwg.mxu0
  %1084 = vmatpush.bf16.msra.mxu0 %v906
  %1085 = vmatpush.bf16.msra.mxu0 %v905
  %1086 = vmatpush.bf16.msra.mxu0 %v904
  %1087 = vmatpush.bf16.msra.mxu0 %v903
  %1088 = vmatpush.bf16.msra.mxu0 %v902
  %1089 = vmatpush.bf16.msra.mxu0 %v901
  %1090 = vmatpush.bf16.msra.mxu0 %v900
  %1091 = vmatpush.bf16.msra.mxu0 %v899
  %1092 = vmatmul.bf16.gmra.mxu0 %v460
  %v1093 = vpop.f32.mrf.mxu0
  %v1094 = vadd.f32 %v1045, %v1093
  %v1095 = vpop.f32.mrf.mxu0
  %v1096 = vadd.f32 %v1047, %v1095
  %1097 = vmatmul.bf16.gmra.mxu0 %v469
  %v1098 = vpop.f32.mrf.mxu0
  %v1099 = vadd.f32 %v1050, %v1098
  %v1100 = vpop.f32.mrf.mxu0
  %v1101 = vadd.f32 %v1052, %v1100
  %1102 = vmatmul.bf16.gmra.mxu0 %v478
  %v1103 = vpop.f32.mrf.mxu0
  %v1104 = vadd.f32 %v1055, %v1103
  %v1105 = vpop.f32.mrf.mxu0
  %v1106 = vadd.f32 %v1057, %v1105
  %1107 = vmatmul.bf16.gmra.mxu0 %v487
  %v1108 = vpop.f32.mrf.mxu0
  %v1109 = vadd.f32 %v1060, %v1108
  %v1110 = vpop.f32.mrf.mxu0
  %v1111 = vadd.f32 %v1062, %v1110
  %1112 = vmatmul.bf16.gmra.mxu0 %v496
  %v1113 = vpop.f32.mrf.mxu0
  %v1114 = vadd.f32 %v1065, %v1113
  %v1115 = vpop.f32.mrf.mxu0
  %v1116 = vadd.f32 %v1067, %v1115
  %1117 = vmatmul.bf16.gmra.mxu0 %v505
  %v1118 = vpop.f32.mrf.mxu0
  %v1119 = vadd.f32 %v1070, %v1118
  %v1120 = vpop.f32.mrf.mxu0
  %v1121 = vadd.f32 %v1072, %v1120
  %1122 = vmatmul.bf16.gmra.mxu0 %v514
  %v1123 = vpop.f32.mrf.mxu0
  %v1124 = vadd.f32 %v1075, %v1123
  %v1125 = vpop.f32.mrf.mxu0
  %v1126 = vadd.f32 %v1077, %v1125
  %1127 = vmatmul.bf16.gmra.mxu0 %v523
  %v1128 = vpop.f32.mrf.mxu0
  %v1129 = vadd.f32 %v1080, %v1128
  %v1130 = vpop.f32.mrf.mxu0
  %v1131 = vadd.f32 %v1082, %v1130
  %1132 = vdwg.mxu0
  %1133 = vmatpush.bf16.msra.mxu0 %v914
  %1134 = vmatpush.bf16.msra.mxu0 %v913
  %1135 = vmatpush.bf16.msra.mxu0 %v912
  %1136 = vmatpush.bf16.msra.mxu0 %v911
  %1137 = vmatpush.bf16.msra.mxu0 %v910
  %1138 = vmatpush.bf16.msra.mxu0 %v909
  %1139 = vmatpush.bf16.msra.mxu0 %v908
  %1140 = vmatpush.bf16.msra.mxu0 %v907
  %1141 = vmatmul.bf16.gmra.mxu0 %v461
  %v1142 = vpop.f32.mrf.mxu0
  %v1143 = vadd.f32 %v1094, %v1142
  %v1144 = vpop.f32.mrf.mxu0
  %v1145 = vadd.f32 %v1096, %v1144
  %1146 = vmatmul.bf16.gmra.mxu0 %v470
  %v1147 = vpop.f32.mrf.mxu0
  %v1148 = vadd.f32 %v1099, %v1147
  %v1149 = vpop.f32.mrf.mxu0
  %v1150 = vadd.f32 %v1101, %v1149
  %1151 = vmatmul.bf16.gmra.mxu0 %v479
  %v1152 = vpop.f32.mrf.mxu0
  %v1153 = vadd.f32 %v1104, %v1152
  %v1154 = vpop.f32.mrf.mxu0
  %v1155 = vadd.f32 %v1106, %v1154
  %1156 = vmatmul.bf16.gmra.mxu0 %v488
  %v1157 = vpop.f32.mrf.mxu0
  %v1158 = vadd.f32 %v1109, %v1157
  %v1159 = vpop.f32.mrf.mxu0
  %v1160 = vadd.f32 %v1111, %v1159
  %1161 = vmatmul.bf16.gmra.mxu0 %v497
  %v1162 = vpop.f32.mrf.mxu0
  %v1163 = vadd.f32 %v1114, %v1162
  %v1164 = vpop.f32.mrf.mxu0
  %v1165 = vadd.f32 %v1116, %v1164
  %1166 = vmatmul.bf16.gmra.mxu0 %v506
  %v1167 = vpop.f32.mrf.mxu0
  %v1168 = vadd.f32 %v1119, %v1167
  %v1169 = vpop.f32.mrf.mxu0
  %v1170 = vadd.f32 %v1121, %v1169
  %1171 = vmatmul.bf16.gmra.mxu0 %v515
  %v1172 = vpop.f32.mrf.mxu0
  %v1173 = vadd.f32 %v1124, %v1172
  %v1174 = vpop.f32.mrf.mxu0
  %v1175 = vadd.f32 %v1126, %v1174
  %1176 = vmatmul.bf16.gmra.mxu0 %v524
  %v1177 = vpop.f32.mrf.mxu0
  %v1178 = vadd.f32 %v1129, %v1177
  %v1179 = vpop.f32.mrf.mxu0
  %v1180 = vadd.f32 %v1131, %v1179
  %1181 = vdwg.mxu0
  %1182 = vmatpush.bf16.msra.mxu0 %v922
  %1183 = vmatpush.bf16.msra.mxu0 %v921
  %1184 = vmatpush.bf16.msra.mxu0 %v920
  %1185 = vmatpush.bf16.msra.mxu0 %v919
  %1186 = vmatpush.bf16.msra.mxu0 %v918
  %1187 = vmatpush.bf16.msra.mxu0 %v917
  %1188 = vmatpush.bf16.msra.mxu0 %v916
  %1189 = vmatpush.bf16.msra.mxu0 %v915
  %1190 = vmatmul.bf16.gmra.mxu0 %v462
  %v1191 = vpop.f32.mrf.mxu0
  %v1192 = vadd.f32 %v1143, %v1191
  %v1193 = vpop.f32.mrf.mxu0
  %v1194 = vadd.f32 %v1145, %v1193
  %1195 = vmatmul.bf16.gmra.mxu0 %v471
  %v1196 = vpop.f32.mrf.mxu0
  %v1197 = vadd.f32 %v1148, %v1196
  %v1198 = vpop.f32.mrf.mxu0
  %v1199 = vadd.f32 %v1150, %v1198
  %1200 = vmatmul.bf16.gmra.mxu0 %v480
  %v1201 = vpop.f32.mrf.mxu0
  %v1202 = vadd.f32 %v1153, %v1201
  %v1203 = vpop.f32.mrf.mxu0
  %v1204 = vadd.f32 %v1155, %v1203
  %1205 = vmatmul.bf16.gmra.mxu0 %v489
  %v1206 = vpop.f32.mrf.mxu0
  %v1207 = vadd.f32 %v1158, %v1206
  %v1208 = vpop.f32.mrf.mxu0
  %v1209 = vadd.f32 %v1160, %v1208
  %1210 = vmatmul.bf16.gmra.mxu0 %v498
  %v1211 = vpop.f32.mrf.mxu0
  %v1212 = vadd.f32 %v1163, %v1211
  %v1213 = vpop.f32.mrf.mxu0
  %v1214 = vadd.f32 %v1165, %v1213
  %1215 = vmatmul.bf16.gmra.mxu0 %v507
  %v1216 = vpop.f32.mrf.mxu0
  %v1217 = vadd.f32 %v1168, %v1216
  %v1218 = vpop.f32.mrf.mxu0
  %v1219 = vadd.f32 %v1170, %v1218
  %1220 = vmatmul.bf16.gmra.mxu0 %v516
  %v1221 = vpop.f32.mrf.mxu0
  %v1222 = vadd.f32 %v1173, %v1221
  %v1223 = vpop.f32.mrf.mxu0
  %v1224 = vadd.f32 %v1175, %v1223
  %1225 = vmatmul.bf16.gmra.mxu0 %v525
  %v1226 = vpop.f32.mrf.mxu0
  %v1227 = vadd.f32 %v1178, %v1226
  %v1228 = vpop.f32.mrf.mxu0
  %v1229 = vadd.f32 %v1180, %v1228
  %1230 = vdwg.mxu0
  %1231 = vmatpush.bf16.msra.mxu0 %v930
  %1232 = vmatpush.bf16.msra.mxu0 %v929
  %1233 = vmatpush.bf16.msra.mxu0 %v928
  %1234 = vmatpush.bf16.msra.mxu0 %v927
  %1235 = vmatpush.bf16.msra.mxu0 %v926
  %1236 = vmatpush.bf16.msra.mxu0 %v925
  %1237 = vmatpush.bf16.msra.mxu0 %v924
  %1238 = vmatpush.bf16.msra.mxu0 %v923
  %1239 = vmatmul.bf16.gmra.mxu0 %v463
  %v1240 = vpop.f32.mrf.mxu0
  %v1241 = vadd.f32 %v1192, %v1240
  %v1242 = vpop.f32.mrf.mxu0
  %v1243 = vadd.f32 %v1194, %v1242
  %1244 = vmatmul.bf16.gmra.mxu0 %v472
  %v1245 = vpop.f32.mrf.mxu0
  %v1246 = vadd.f32 %v1197, %v1245
  %v1247 = vpop.f32.mrf.mxu0
  %v1248 = vadd.f32 %v1199, %v1247
  %1249 = vmatmul.bf16.gmra.mxu0 %v481
  %v1250 = vpop.f32.mrf.mxu0
  %v1251 = vadd.f32 %v1202, %v1250
  %v1252 = vpop.f32.mrf.mxu0
  %v1253 = vadd.f32 %v1204, %v1252
  %1254 = vmatmul.bf16.gmra.mxu0 %v490
  %v1255 = vpop.f32.mrf.mxu0
  %v1256 = vadd.f32 %v1207, %v1255
  %v1257 = vpop.f32.mrf.mxu0
  %v1258 = vadd.f32 %v1209, %v1257
  %1259 = vmatmul.bf16.gmra.mxu0 %v499
  %v1260 = vpop.f32.mrf.mxu0
  %v1261 = vadd.f32 %v1212, %v1260
  %v1262 = vpop.f32.mrf.mxu0
  %v1263 = vadd.f32 %v1214, %v1262
  %1264 = vmatmul.bf16.gmra.mxu0 %v508
  %v1265 = vpop.f32.mrf.mxu0
  %v1266 = vadd.f32 %v1217, %v1265
  %v1267 = vpop.f32.mrf.mxu0
  %v1268 = vadd.f32 %v1219, %v1267
  %1269 = vmatmul.bf16.gmra.mxu0 %v517
  %v1270 = vpop.f32.mrf.mxu0
  %v1271 = vadd.f32 %v1222, %v1270
  %v1272 = vpop.f32.mrf.mxu0
  %v1273 = vadd.f32 %v1224, %v1272
  %1274 = vmatmul.bf16.gmra.mxu0 %v526
  %v1275 = vpop.f32.mrf.mxu0
  %v1276 = vadd.f32 %v1227, %v1275
  %v1277 = vpop.f32.mrf.mxu0
  %v1278 = vadd.f32 %v1229, %v1277
  %1279 = vdwg.mxu0
  %1280 = vmatpush.bf16.msra.mxu0 %v938
  %1281 = vmatpush.bf16.msra.mxu0 %v937
  %1282 = vmatpush.bf16.msra.mxu0 %v936
  %1283 = vmatpush.bf16.msra.mxu0 %v935
  %1284 = vmatpush.bf16.msra.mxu0 %v934
  %1285 = vmatpush.bf16.msra.mxu0 %v933
  %1286 = vmatpush.bf16.msra.mxu0 %v932
  %1287 = vmatpush.bf16.msra.mxu0 %v931
  %1288 = vmatmul.bf16.gmra.mxu0 %v464
  %v1289 = vpop.f32.mrf.mxu0
  %v1290 = vadd.f32 %v1241, %v1289
  %v1291 = vpop.f32.mrf.mxu0
  %v1292 = vadd.f32 %v1243, %v1291
  %1293 = vmatmul.bf16.gmra.mxu0 %v473
  %v1294 = vpop.f32.mrf.mxu0
  %v1295 = vadd.f32 %v1246, %v1294
  %v1296 = vpop.f32.mrf.mxu0
  %v1297 = vadd.f32 %v1248, %v1296
  %1298 = vmatmul.bf16.gmra.mxu0 %v482
  %v1299 = vpop.f32.mrf.mxu0
  %v1300 = vadd.f32 %v1251, %v1299
  %v1301 = vpop.f32.mrf.mxu0
  %v1302 = vadd.f32 %v1253, %v1301
  %1303 = vmatmul.bf16.gmra.mxu0 %v491
  %v1304 = vpop.f32.mrf.mxu0
  %v1305 = vadd.f32 %v1256, %v1304
  %v1306 = vpop.f32.mrf.mxu0
  %v1307 = vadd.f32 %v1258, %v1306
  %1308 = vmatmul.bf16.gmra.mxu0 %v500
  %v1309 = vpop.f32.mrf.mxu0
  %v1310 = vadd.f32 %v1261, %v1309
  %v1311 = vpop.f32.mrf.mxu0
  %v1312 = vadd.f32 %v1263, %v1311
  %1313 = vmatmul.bf16.gmra.mxu0 %v509
  %v1314 = vpop.f32.mrf.mxu0
  %v1315 = vadd.f32 %v1266, %v1314
  %v1316 = vpop.f32.mrf.mxu0
  %v1317 = vadd.f32 %v1268, %v1316
  %1318 = vmatmul.bf16.gmra.mxu0 %v518
  %v1319 = vpop.f32.mrf.mxu0
  %v1320 = vadd.f32 %v1271, %v1319
  %v1321 = vpop.f32.mrf.mxu0
  %v1322 = vadd.f32 %v1273, %v1321
  %1323 = vmatmul.bf16.gmra.mxu0 %v527
  %v1324 = vpop.f32.mrf.mxu0
  %v1325 = vadd.f32 %v1276, %v1324
  %v1326 = vpop.f32.mrf.mxu0
  %v1327 = vadd.f32 %v1278, %v1326
  %1328 = vdwg.mxu0
  %1329 = vmatpush.bf16.msra.mxu0 %v946
  %1330 = vmatpush.bf16.msra.mxu0 %v945
  %1331 = vmatpush.bf16.msra.mxu0 %v944
  %1332 = vmatpush.bf16.msra.mxu0 %v943
  %1333 = vmatpush.bf16.msra.mxu0 %v942
  %1334 = vmatpush.bf16.msra.mxu0 %v941
  %1335 = vmatpush.bf16.msra.mxu0 %v940
  %1336 = vmatpush.bf16.msra.mxu0 %v939
  %1337 = vmatmul.bf16.gmra.mxu0 %v465
  %v1338 = vpop.f32.mrf.mxu0
  %v1339 = vadd.f32 %v1290, %v1338
  %v1340 = vpop.f32.mrf.mxu0
  %v1341 = vadd.f32 %v1292, %v1340
  %1342 = vmatmul.bf16.gmra.mxu0 %v474
  %v1343 = vpop.f32.mrf.mxu0
  %v1344 = vadd.f32 %v1295, %v1343
  %v1345 = vpop.f32.mrf.mxu0
  %v1346 = vadd.f32 %v1297, %v1345
  %1347 = vmatmul.bf16.gmra.mxu0 %v483
  %v1348 = vpop.f32.mrf.mxu0
  %v1349 = vadd.f32 %v1300, %v1348
  %v1350 = vpop.f32.mrf.mxu0
  %v1351 = vadd.f32 %v1302, %v1350
  %1352 = vmatmul.bf16.gmra.mxu0 %v492
  %v1353 = vpop.f32.mrf.mxu0
  %v1354 = vadd.f32 %v1305, %v1353
  %v1355 = vpop.f32.mrf.mxu0
  %v1356 = vadd.f32 %v1307, %v1355
  %1357 = vmatmul.bf16.gmra.mxu0 %v501
  %v1358 = vpop.f32.mrf.mxu0
  %v1359 = vadd.f32 %v1310, %v1358
  %v1360 = vpop.f32.mrf.mxu0
  %v1361 = vadd.f32 %v1312, %v1360
  %1362 = vmatmul.bf16.gmra.mxu0 %v510
  %v1363 = vpop.f32.mrf.mxu0
  %v1364 = vadd.f32 %v1315, %v1363
  %v1365 = vpop.f32.mrf.mxu0
  %v1366 = vadd.f32 %v1317, %v1365
  %1367 = vmatmul.bf16.gmra.mxu0 %v519
  %v1368 = vpop.f32.mrf.mxu0
  %v1369 = vadd.f32 %v1320, %v1368
  %v1370 = vpop.f32.mrf.mxu0
  %v1371 = vadd.f32 %v1322, %v1370
  %1372 = vmatmul.bf16.gmra.mxu0 %v528
  %v1373 = vpop.f32.mrf.mxu0
  %v1374 = vadd.f32 %v1325, %v1373
  %v1375 = vpop.f32.mrf.mxu0
  %v1376 = vadd.f32 %v1327, %v1375
  %1377 = vdwg.mxu0
  %1378 = vmatpush.bf16.msra.mxu0 %v954
  %1379 = vmatpush.bf16.msra.mxu0 %v953
  %1380 = vmatpush.bf16.msra.mxu0 %v952
  %1381 = vmatpush.bf16.msra.mxu0 %v951
  %1382 = vmatpush.bf16.msra.mxu0 %v950
  %1383 = vmatpush.bf16.msra.mxu0 %v949
  %1384 = vmatpush.bf16.msra.mxu0 %v948
  %1385 = vmatpush.bf16.msra.mxu0 %v947
  %1386 = vmatmul.bf16.gmra.mxu0 %v466
  %v1387 = vpop.f32.mrf.mxu0
  %v1388 = vadd.f32 %v1339, %v1387
  %v1389 = vpop.f32.mrf.mxu0
  %v1390 = vadd.f32 %v1341, %v1389
  %1391 = vmatmul.bf16.gmra.mxu0 %v475
  %v1392 = vpop.f32.mrf.mxu0
  %v1393 = vadd.f32 %v1344, %v1392
  %v1394 = vpop.f32.mrf.mxu0
  %v1395 = vadd.f32 %v1346, %v1394
  %1396 = vmatmul.bf16.gmra.mxu0 %v484
  %v1397 = vpop.f32.mrf.mxu0
  %v1398 = vadd.f32 %v1349, %v1397
  %v1399 = vpop.f32.mrf.mxu0
  %v1400 = vadd.f32 %v1351, %v1399
  %1401 = vmatmul.bf16.gmra.mxu0 %v493
  %v1402 = vpop.f32.mrf.mxu0
  %v1403 = vadd.f32 %v1354, %v1402
  %v1404 = vpop.f32.mrf.mxu0
  %v1405 = vadd.f32 %v1356, %v1404
  %1406 = vmatmul.bf16.gmra.mxu0 %v502
  %v1407 = vpop.f32.mrf.mxu0
  %v1408 = vadd.f32 %v1359, %v1407
  %v1409 = vpop.f32.mrf.mxu0
  %v1410 = vadd.f32 %v1361, %v1409
  %1411 = vmatmul.bf16.gmra.mxu0 %v511
  %v1412 = vpop.f32.mrf.mxu0
  %v1413 = vadd.f32 %v1364, %v1412
  %v1414 = vpop.f32.mrf.mxu0
  %v1415 = vadd.f32 %v1366, %v1414
  %1416 = vmatmul.bf16.gmra.mxu0 %v520
  %v1417 = vpop.f32.mrf.mxu0
  %v1418 = vadd.f32 %v1369, %v1417
  %v1419 = vpop.f32.mrf.mxu0
  %v1420 = vadd.f32 %v1371, %v1419
  %1421 = vmatmul.bf16.gmra.mxu0 %v529
  %v1422 = vpop.f32.mrf.mxu0
  %v1423 = vadd.f32 %v1374, %v1422
  %v1424 = vpop.f32.mrf.mxu0
  %v1425 = vadd.f32 %v1376, %v1424
  %1426 = vdwg.mxu0
  %1427 = vmatpush.bf16.msra.mxu0 %v962
  %1428 = vmatpush.bf16.msra.mxu0 %v961
  %1429 = vmatpush.bf16.msra.mxu0 %v960
  %1430 = vmatpush.bf16.msra.mxu0 %v959
  %1431 = vmatpush.bf16.msra.mxu0 %v958
  %1432 = vmatpush.bf16.msra.mxu0 %v957
  %1433 = vmatpush.bf16.msra.mxu0 %v956
  %1434 = vmatpush.bf16.msra.mxu0 %v955
  %1435 = vmatmul.bf16.gmra.mxu0 %v467
  %v1436 = vpop.f32.mrf.mxu0
  %v1437 = vadd.f32 %v1388, %v1436
  %v1438 = vpop.f32.mrf.mxu0
  %v1439 = vadd.f32 %v1390, %v1438
  %1440 = vmatmul.bf16.gmra.mxu0 %v476
  %v1441 = vpop.f32.mrf.mxu0
  %v1442 = vadd.f32 %v1393, %v1441
  %v1443 = vpop.f32.mrf.mxu0
  %v1444 = vadd.f32 %v1395, %v1443
  %1445 = vmatmul.bf16.gmra.mxu0 %v485
  %v1446 = vpop.f32.mrf.mxu0
  %v1447 = vadd.f32 %v1398, %v1446
  %v1448 = vpop.f32.mrf.mxu0
  %v1449 = vadd.f32 %v1400, %v1448
  %1450 = vmatmul.bf16.gmra.mxu0 %v494
  %v1451 = vpop.f32.mrf.mxu0
  %v1452 = vadd.f32 %v1403, %v1451
  %v1453 = vpop.f32.mrf.mxu0
  %v1454 = vadd.f32 %v1405, %v1453
  %1455 = vmatmul.bf16.gmra.mxu0 %v503
  %v1456 = vpop.f32.mrf.mxu0
  %v1457 = vadd.f32 %v1408, %v1456
  %v1458 = vpop.f32.mrf.mxu0
  %v1459 = vadd.f32 %v1410, %v1458
  %1460 = vmatmul.bf16.gmra.mxu0 %v512
  %v1461 = vpop.f32.mrf.mxu0
  %v1462 = vadd.f32 %v1413, %v1461
  %v1463 = vpop.f32.mrf.mxu0
  %v1464 = vadd.f32 %v1415, %v1463
  %1465 = vmatmul.bf16.gmra.mxu0 %v521
  %v1466 = vpop.f32.mrf.mxu0
  %v1467 = vadd.f32 %v1418, %v1466
  %v1468 = vpop.f32.mrf.mxu0
  %v1469 = vadd.f32 %v1420, %v1468
  %1470 = vmatmul.bf16.gmra.mxu0 %v530
  %v1471 = vpop.f32.mrf.mxu0
  %v1472 = vadd.f32 %v1423, %v1471
  %v1473 = vpop.f32.mrf.mxu0
  %v1474 = vadd.f32 %v1425, %v1473
  %1475 = vdwg.mxu0
  %1476 = vst [vmem:[%s2] sm:$0xff] %v1437
  %1477 = vst [vmem:[%s2 + $0x8] sm:$0xff] %v1439
  %1478 = vst [vmem:[%s2 + $0x10] sm:$0xff] %v1442
  %1479 = vst [vmem:[%s2 + $0x18] sm:$0xff] %v1444
  %1480 = vst [vmem:[%s2 + $0x20] sm:$0xff] %v1447
  %1481 = vst [vmem:[%s2 + $0x28] sm:$0xff] %v1449
  %1482 = vst [vmem:[%s2 + $0x30] sm:$0xff] %v1452
  %1483 = vst [vmem:[%s2 + $0x38] sm:$0xff] %v1454
  %1484 = vst [vmem:[%s2 + $0x40] sm:$0xff] %v1457
  %1485 = vst [vmem:[%s2 + $0x48] sm:$0xff] %v1459
  %1486 = vst [vmem:[%s2 + $0x50] sm:$0xff] %v1462
  %1487 = vst [vmem:[%s2 + $0x58] sm:$0xff] %v1464
  %1488 = vst [vmem:[%s2 + $0x60] sm:$0xff] %v1467
  %1489 = vst [vmem:[%s2 + $0x68] sm:$0xff] %v1469
  %1490 = vst [vmem:[%s2 + $0x70] sm:$0xff] %v1472
  %1491 = vst [vmem:[%s2 + $0x78] sm:$0xff] %v1474
  // Predicated region
  $region10: #{_lambda_.43} parent=0 // pred_check
    _
  $region11: #{_lambda_.43} parent=0 // pred_check_branch
    %1493 = sbr.rel (0) target = $region13
  $region12: #{_lambda_.43} parent=0 // pred_region
    _
  $region13: #{_lambda_.43} parent=0 // pred_fallthru
    _
  // Predicated region
  $region14: #{_lambda_.43} parent=0 // pred_check
    _
  $region15: #{_lambda_.43} parent=0 // pred_check_branch
    %1495 = sbr.rel (0) target = $region17
  $region16: #{_lambda_.43} parent=0 // pred_region
    _
  $region17: #{_lambda_.43} parent=0 // pred_fallthru
    _

// kernel: _lambda_.42
$region0: #{_lambda_.42}
  #allocation0 [shape = 'u32[]', space=smem, size = 0x4, offset = 0x4, fixed_abs, tag = 'smem constant byte address 0x4 - core index']
  #allocation1 [shape = 'u32[72,128]{1,0:T(1,128)}', space=vmem, size = 0x9000, scoped, tag = 'internal scratch']
  %s0 = inlined_call_operand.vmem [shape: bf16[128,128], index: 0, kind: input, shape index: {}]
  %s1 = inlined_call_operand.vmem [shape: bf16[128,128], index: 1, kind: input, shape index: {}]
  %s2 = inlined_call_operand.vmem [shape: f32[128,128], index: 2, kind: output, shape index: {}]
  %s3 = sld [smem:[#allocation0]]
  $region18: #{_lambda_.42} parent=0
    _
  %s5 = ssub.s32 1, %s3
  %s6 = scalar_select 0, %s5, %s3
  // Predicated region
  $region2: #{_lambda_.42} parent=0 // pred_check
    _
  $region3: #{_lambda_.42} parent=0 // pred_check_branch
    %8 = sbr.rel (0) target = $region5
  $region4: #{_lambda_.42} parent=0 // pred_region
    _
  $region5: #{_lambda_.42} parent=0 // pred_fallthru
    _
  // Predicated region
  $region6: #{_lambda_.42} parent=0 // pred_check
    _
  $region7: #{_lambda_.42} parent=0 // pred_check_branch
    %10 = sbr.rel (0) target = $region9
  $region8: #{_lambda_.42} parent=0 // pred_region
    _
  $region9: #{_lambda_.42} parent=0 // pred_fallthru
    _
  %v11 = vld [vmem:[%s0] sm:$0xf]
  %v12 = vld [vmem:[%s0 + $0x4] sm:$0xf]
  %v13 = vld [vmem:[%s0 + $0x8] sm:$0xf]
  %v14 = vld [vmem:[%s0 + $0xc] sm:$0xf]
  %v15 = vld [vmem:[%s0 + $0x10] sm:$0xf]
  %v16 = vld [vmem:[%s0 + $0x14] sm:$0xf]
  %v17 = vld [vmem:[%s0 + $0x18] sm:$0xf]
  %v18 = vld [vmem:[%s0 + $0x1c] sm:$0xf]
  %v19 = vld [vmem:[%s0 + $0x20] sm:$0xf]
  %v20 = vld [vmem:[%s0 + $0x24] sm:$0xf]
  %v21 = vld [vmem:[%s0 + $0x28] sm:$0xf]
  %v22 = vld [vmem:[%s0 + $0x2c] sm:$0xf]
  %v23 = vld [vmem:[%s0 + $0x30] sm:$0xf]
  %v24 = vld [vmem:[%s0 + $0x34] sm:$0xf]
  %v25 = vld [vmem:[%s0 + $0x38] sm:$0xf]
  %v26 = vld [vmem:[%s0 + $0x3c] sm:$0xf]
  %v27 = vld [vmem:[%s1] sm:$0xf]
  %v28 = vld [vmem:[%s1 + $0x4] sm:$0xf]
  %v29 = vld [vmem:[%s1 + $0x8] sm:$0xf]
  %v30 = vld [vmem:[%s1 + $0xc] sm:$0xf]
  %v31 = vld [vmem:[%s1 + $0x10] sm:$0xf]
  %v32 = vld [vmem:[%s1 + $0x14] sm:$0xf]
  %v33 = vld [vmem:[%s1 + $0x18] sm:$0xf]
  %v34 = vld [vmem:[%s1 + $0x1c] sm:$0xf]
  %v35 = vld [vmem:[%s1 + $0x20] sm:$0xf]
  %v36 = vld [vmem:[%s1 + $0x24] sm:$0xf]
  %v37 = vld [vmem:[%s1 + $0x28] sm:$0xf]
  %v38 = vld [vmem:[%s1 + $0x2c] sm:$0xf]
  %v39 = vld [vmem:[%s1 + $0x30] sm:$0xf]
  %v40 = vld [vmem:[%s1 + $0x34] sm:$0xf]
  %v41 = vld [vmem:[%s1 + $0x38] sm:$0xf]
  %v42 = vld [vmem:[%s1 + $0x3c] sm:$0xf]
  %v59 = vunpack.c.l.b16 %v11
  %v60 = vunpack.c.l.b16 %v12
  %v61 = vunpack.c.l.b16 %v13
  %v62 = vunpack.c.l.b16 %v14
  %v63 = vunpack.c.l.b16 %v15
  %v64 = vunpack.c.l.b16 %v16
  %v65 = vunpack.c.l.b16 %v17
  %v66 = vunpack.c.l.b16 %v18
  %v67 = vunpack.c.l.b16 %v19
  %v68 = vunpack.c.l.b16 %v20
  %v69 = vunpack.c.l.b16 %v21
  %v70 = vunpack.c.l.b16 %v22
  %v71 = vunpack.c.l.b16 %v23
  %v72 = vunpack.c.l.b16 %v24
  %v73 = vunpack.c.l.b16 %v25
  %v74 = vunpack.c.l.b16 %v26
  %v75 = vpack.c.b16 %v60, %v59
  %v76 = vpack.c.b16 %v62, %v61
  %v77 = vpack.c.b16 %v64, %v63
  %v78 = vpack.c.b16 %v66, %v65
  %v79 = vpack.c.b16 %v68, %v67
  %v80 = vpack.c.b16 %v70, %v69
  %v81 = vpack.c.b16 %v72, %v71
  %v82 = vpack.c.b16 %v74, %v73
  %v107 = vunpack.c.l.b16 %v27
  %v108 = vunpack.c.l.b16 %v28
  %v109 = vunpack.c.l.b16 %v29
  %v110 = vunpack.c.l.b16 %v30
  %v111 = vunpack.c.l.b16 %v31
  %v112 = vunpack.c.l.b16 %v32
  %v113 = vunpack.c.l.b16 %v33
  %v114 = vunpack.c.l.b16 %v34
  %v115 = vunpack.c.l.b16 %v35
  %v116 = vunpack.c.l.b16 %v36
  %v117 = vunpack.c.l.b16 %v37
  %v118 = vunpack.c.l.b16 %v38
  %v119 = vunpack.c.l.b16 %v39
  %v120 = vunpack.c.l.b16 %v40
  %v121 = vunpack.c.l.b16 %v41
  %v122 = vunpack.c.l.b16 %v42
  %v123 = vpack.c.b16 %v108, %v107
  %v124 = vpack.c.b16 %v110, %v109
  %v125 = vpack.c.b16 %v112, %v111
  %v126 = vpack.c.b16 %v114, %v113
  %v127 = vpack.c.b16 %v116, %v115
  %v128 = vpack.c.b16 %v118, %v117
  %v129 = vpack.c.b16 %v120, %v119
  %v130 = vpack.c.b16 %v122, %v121
  %139 = vmatpush.bf16.msra.mxu0 %v130
  %140 = vmatpush.bf16.msra.mxu0 %v129
  %141 = vmatpush.bf16.msra.mxu0 %v128
  %142 = vmatpush.bf16.msra.mxu0 %v127
  %143 = vmatpush.bf16.msra.mxu0 %v126
  %144 = vmatpush.bf16.msra.mxu0 %v125
  %145 = vmatpush.bf16.msra.mxu0 %v124
  %146 = vmatpush.bf16.msra.mxu0 %v123
  %147 = vmatmul.bf16.gmra.mxu0 %v75
  %v148 = vpop.f32.mrf.mxu0
  %v149 = vadd.f32 0.0, %v148
  %v150 = vpop.f32.mrf.mxu0
  %v151 = vadd.f32 0.0, %v150
  %152 = vmatmul.bf16.gmra.mxu0 %v76
  %v153 = vpop.f32.mrf.mxu0
  %v154 = vadd.f32 0.0, %v153
  %v155 = vpop.f32.mrf.mxu0
  %v156 = vadd.f32 0.0, %v155
  %157 = vmatmul.bf16.gmra.mxu0 %v77
  %v158 = vpop.f32.mrf.mxu0
  %v159 = vadd.f32 0.0, %v158
  %v160 = vpop.f32.mrf.mxu0
  %v161 = vadd.f32 0.0, %v160
  %162 = vmatmul.bf16.gmra.mxu0 %v78
  %v163 = vpop.f32.mrf.mxu0
  %v164 = vadd.f32 0.0, %v163
  %v165 = vpop.f32.mrf.mxu0
  %v166 = vadd.f32 0.0, %v165
  %167 = vmatmul.bf16.gmra.mxu0 %v79
  %v168 = vpop.f32.mrf.mxu0
  %v169 = vadd.f32 0.0, %v168
  %v170 = vpop.f32.mrf.mxu0
  %v171 = vadd.f32 0.0, %v170
  %172 = vmatmul.bf16.gmra.mxu0 %v80
  %v173 = vpop.f32.mrf.mxu0
  %v174 = vadd.f32 0.0, %v173
  %v175 = vpop.f32.mrf.mxu0
  %v176 = vadd.f32 0.0, %v175
  %177 = vmatmul.bf16.gmra.mxu0 %v81
  %v178 = vpop.f32.mrf.mxu0
  %v179 = vadd.f32 0.0, %v178
  %v180 = vpop.f32.mrf.mxu0
  %v181 = vadd.f32 0.0, %v180
  %182 = vmatmul.bf16.gmra.mxu0 %v82
  %v183 = vpop.f32.mrf.mxu0
  %v184 = vadd.f32 0.0, %v183
  %v185 = vpop.f32.mrf.mxu0
  %v186 = vadd.f32 0.0, %v185
  %187 = vdwg.mxu0
  %188 = vst [vmem:[%s2] sm:$0xff] %v149
  %189 = vst [vmem:[%s2 + $0x8] sm:$0xff] %v151
  %190 = vst [vmem:[%s2 + $0x10] sm:$0xff] %v154
  %191 = vst [vmem:[%s2 + $0x18] sm:$0xff] %v156
  %192 = vst [vmem:[%s2 + $0x20] sm:$0xff] %v159
  %193 = vst [vmem:[%s2 + $0x28] sm:$0xff] %v161
  %194 = vst [vmem:[%s2 + $0x30] sm:$0xff] %v164
  %195 = vst [vmem:[%s2 + $0x38] sm:$0xff] %v166
  %196 = vst [vmem:[%s2 + $0x40] sm:$0xff] %v169
  %197 = vst [vmem:[%s2 + $0x48] sm:$0xff] %v171
  %198 = vst [vmem:[%s2 + $0x50] sm:$0xff] %v174
  %199 = vst [vmem:[%s2 + $0x58] sm:$0xff] %v176
  %200 = vst [vmem:[%s2 + $0x60] sm:$0xff] %v179
  %201 = vst [vmem:[%s2 + $0x68] sm:$0xff] %v181
  %202 = vst [vmem:[%s2 + $0x70] sm:$0xff] %v184
  %203 = vst [vmem:[%s2 + $0x78] sm:$0xff] %v186
  // Predicated region
  $region10: #{_lambda_.42} parent=0 // pred_check
    _
  $region11: #{_lambda_.42} parent=0 // pred_check_branch
    %205 = sbr.rel (0) target = $region13
  $region12: #{_lambda_.42} parent=0 // pred_region
    _
  $region13: #{_lambda_.42} parent=0 // pred_fallthru
    _
  // Predicated region
  $region14: #{_lambda_.42} parent=0 // pred_check
    _
  $region15: #{_lambda_.42} parent=0 // pred_check_branch
    %207 = sbr.rel (0) target = $region17
  $region16: #{_lambda_.42} parent=0 // pred_region
    _
  $region17: #{_lambda_.42} parent=0 // pred_fallthru
    _

// kernel: _lambda_.36
$region0: #{_lambda_.36}
  #allocation0 [shape = 'u32[]', space=smem, size = 0x4, offset = 0x4, fixed_abs, tag = 'smem constant byte address 0x4 - core index']
  #allocation1 [shape = 'u32[72,128]{1,0:T(1,128)}', space=vmem, size = 0x9000, scoped, tag = 'internal scratch']
  %s0 = inlined_call_operand.vmem [shape: bf16[512,1152], index: 0, kind: input, shape index: {}]
  %s1 = inlined_call_operand.vmem [shape: bf16[1152,128], index: 1, kind: input, shape index: {}]
  %s2 = inlined_call_operand.vmem [shape: f32[512,128], index: 2, kind: output, shape index: {}]
  %s3 = sld [smem:[#allocation0]]
  $region18: #{_lambda_.36} parent=0
    _
  %s5 = ssub.s32 1, %s3
  %s6 = scalar_select 0, %s5, %s3
  // Predicated region
  $region2: #{_lambda_.36} parent=0 // pred_check
    _
  $region3: #{_lambda_.36} parent=0 // pred_check_branch
    %8 = sbr.rel (0) target = $region5
  $region4: #{_lambda_.36} parent=0 // pred_region
    _
  $region5: #{_lambda_.36} parent=0 // pred_fallthru
    _
  // Predicated region
  $region6: #{_lambda_.36} parent=0 // pred_check
    _
  $region7: #{_lambda_.36} parent=0 // pred_check_branch
    %10 = sbr.rel (0) target = $region9
  $region8: #{_lambda_.36} parent=0 // pred_region
    _
  $region9: #{_lambda_.36} parent=0 // pred_fallthru
    _
  %v11 = vld [vmem:[%s0] sm:$0xff]
  %v12 = vld [vmem:[%s0 + $0x8] sm:$0xff]
  %v13 = vld [vmem:[%s0 + $0x10] sm:$0xff]
  %v14 = vld [vmem:[%s0 + $0x18] sm:$0xff]
  %v15 = vld [vmem:[%s0 + $0x20] sm:$0xf]
  %v16 = vld [vmem:[%s0 + $0x24] sm:$0xff]
  %v17 = vld [vmem:[%s0 + $0x2c] sm:$0xff]
  %v18 = vld [vmem:[%s0 + $0x34] sm:$0xff]
  %v19 = vld [vmem:[%s0 + $0x3c] sm:$0xff]
  %v20 = vld [vmem:[%s0 + $0x44] sm:$0xf]
  %v21 = vld [vmem:[%s0 + $0x48] sm:$0xff]
  %v22 = vld [vmem:[%s0 + $0x50] sm:$0xff]
  %v23 = vld [vmem:[%s0 + $0x58] sm:$0xff]
  %v24 = vld [vmem:[%s0 + $0x60] sm:$0xff]
  %v25 = vld [vmem:[%s0 + $0x68] sm:$0xf]
  %v26 = vld [vmem:[%s0 + $0x6c] sm:$0xff]
  %v27 = vld [vmem:[%s0 + $0x74] sm:$0xff]
  %v28 = vld [vmem:[%s0 + $0x7c] sm:$0xff]
  %v29 = vld [vmem:[%s0 + $0x84] sm:$0xff]
  %v30 = vld [vmem:[%s0 + $0x8c] sm:$0xf]
  %v31 = vld [vmem:[%s0 + $0x90] sm:$0xff]
  %v32 = vld [vmem:[%s0 + $0x98] sm:$0xff]
  %v33 = vld [vmem:[%s0 + $0xa0] sm:$0xff]
  %v34 = vld [vmem:[%s0 + $0xa8] sm:$0xff]
  %v35 = vld [vmem:[%s0 + $0xb0] sm:$0xf]
  %v36 = vld [vmem:[%s0 + $0xb4] sm:$0xff]
  %v37 = vld [vmem:[%s0 + $0xbc] sm:$0xff]
  %v38 = vld [vmem:[%s0 + $0xc4] sm:$0xff]
  %v39 = vld [vmem:[%s0 + $0xcc] sm:$0xff]
  %v40 = vld [vmem:[%s0 + $0xd4] sm:$0xf]
  %v41 = vld [vmem:[%s0 + $0xd8] sm:$0xff]
  %v42 = vld [vmem:[%s0 + $0xe0] sm:$0xff]
  %v43 = vld [vmem:[%s0 + $0xe8] sm:$0xff]
  %v44 = vld [vmem:[%s0 + $0xf0] sm:$0xff]
  %v45 = vld [vmem:[%s0 + $0xf8] sm:$0xf]
  %v46 = vld [vmem:[%s0 + $0xfc] sm:$0xff]
  %v47 = vld [vmem:[%s0 + $0x104] sm:$0xff]
  %v48 = vld [vmem:[%s0 + $0x10c] sm:$0xff]
  %v49 = vld [vmem:[%s0 + $0x114] sm:$0xff]
  %v50 = vld [vmem:[%s0 + $0x11c] sm:$0xf]
  %v51 = vld [vmem:[%s0 + $0x120] sm:$0xff]
  %v52 = vld [vmem:[%s0 + $0x128] sm:$0xff]
  %v53 = vld [vmem:[%s0 + $0x130] sm:$0xff]
  %v54 = vld [vmem:[%s0 + $0x138] sm:$0xff]
  %v55 = vld [vmem:[%s0 + $0x140] sm:$0xf]
  %v56 = vld [vmem:[%s0 + $0x144] sm:$0xff]
  %v57 = vld [vmem:[%s0 + $0x14c] sm:$0xff]
  %v58 = vld [vmem:[%s0 + $0x154] sm:$0xff]
  %v59 = vld [vmem:[%s0 + $0x15c] sm:$0xff]
  %v60 = vld [vmem:[%s0 + $0x164] sm:$0xf]
  %v61 = vld [vmem:[%s0 + $0x168] sm:$0xff]
  %v62 = vld [vmem:[%s0 + $0x170] sm:$0xff]
  %v63 = vld [vmem:[%s0 + $0x178] sm:$0xff]
  %v64 = vld [vmem:[%s0 + $0x180] sm:$0xff]
  %v65 = vld [vmem:[%s0 + $0x188] sm:$0xf]
  %v66 = vld [vmem:[%s0 + $0x18c] sm:$0xff]
  %v67 = vld [vmem:[%s0 + $0x194] sm:$0xff]
  %v68 = vld [vmem:[%s0 + $0x19c] sm:$0xff]
  %v69 = vld [vmem:[%s0 + $0x1a4] sm:$0xff]
  %v70 = vld [vmem:[%s0 + $0x1ac] sm:$0xf]
  %v71 = vld [vmem:[%s0 + $0x1b0] sm:$0xff]
  %v72 = vld [vmem:[%s0 + $0x1b8] sm:$0xff]
  %v73 = vld [vmem:[%s0 + $0x1c0] sm:$0xff]
  %v74 = vld [vmem:[%s0 + $0x1c8] sm:$0xff]
  %v75 = vld [vmem:[%s0 + $0x1d0] sm:$0xf]
  %v76 = vld [vmem:[%s0 + $0x1d4] sm:$0xff]
  %v77 = vld [vmem:[%s0 + $0x1dc] sm:$0xff]
  %v78 = vld [vmem:[%s0 + $0x1e4] sm:$0xff]
  %v79 = vld [vmem:[%s0 + $0x1ec] sm:$0xff]
  %v80 = vld [vmem:[%s0 + $0x1f4] sm:$0xf]
  %v81 = vld [vmem:[%s0 + $0x1f8] sm:$0xff]
  %v82 = vld [vmem:[%s0 + $0x200] sm:$0xff]
  %v83 = vld [vmem:[%s0 + $0x208] sm:$0xff]
  %v84 = vld [vmem:[%s0 + $0x210] sm:$0xff]
  %v85 = vld [vmem:[%s0 + $0x218] sm:$0xf]
  %v86 = vld [vmem:[%s0 + $0x21c] sm:$0xff]
  %v87 = vld [vmem:[%s0 + $0x224] sm:$0xff]
  %v88 = vld [vmem:[%s0 + $0x22c] sm:$0xff]
  %v89 = vld [vmem:[%s0 + $0x234] sm:$0xff]
  %v90 = vld [vmem:[%s0 + $0x23c] sm:$0xf]
  %v91 = vld [vmem:[%s0 + $0x240] sm:$0xff]
  %v92 = vld [vmem:[%s0 + $0x248] sm:$0xff]
  %v93 = vld [vmem:[%s0 + $0x250] sm:$0xff]
  %v94 = vld [vmem:[%s0 + $0x258] sm:$0xff]
  %v95 = vld [vmem:[%s0 + $0x260] sm:$0xf]
  %v96 = vld [vmem:[%s0 + $0x264] sm:$0xff]
  %v97 = vld [vmem:[%s0 + $0x26c] sm:$0xff]
  %v98 = vld [vmem:[%s0 + $0x274] sm:$0xff]
  %v99 = vld [vmem:[%s0 + $0x27c] sm:$0xff]
  %v100 = vld [vmem:[%s0 + $0x284] sm:$0xf]
  %v101 = vld [vmem:[%s0 + $0x288] sm:$0xff]
  %v102 = vld [vmem:[%s0 + $0x290] sm:$0xff]
  %v103 = vld [vmem:[%s0 + $0x298] sm:$0xff]
  %v104 = vld [vmem:[%s0 + $0x2a0] sm:$0xff]
  %v105 = vld [vmem:[%s0 + $0x2a8] sm:$0xf]
  %v106 = vld [vmem:[%s0 + $0x2ac] sm:$0xff]
  %v107 = vld [vmem:[%s0 + $0x2b4] sm:$0xff]
  %v108 = vld [vmem:[%s0 + $0x2bc] sm:$0xff]
  %v109 = vld [vmem:[%s0 + $0x2c4] sm:$0xff]
  %v110 = vld [vmem:[%s0 + $0x2cc] sm:$0xf]
  %v111 = vld [vmem:[%s0 + $0x2d0] sm:$0xff]
  %v112 = vld [vmem:[%s0 + $0x2d8] sm:$0xff]
  %v113 = vld [vmem:[%s0 + $0x2e0] sm:$0xff]
  %v114 = vld [vmem:[%s0 + $0x2e8] sm:$0xff]
  %v115 = vld [vmem:[%s0 + $0x2f0] sm:$0xf]
  %v116 = vld [vmem:[%s0 + $0x2f4] sm:$0xff]
  %v117 = vld [vmem:[%s0 + $0x2fc] sm:$0xff]
  %v118 = vld [vmem:[%s0 + $0x304] sm:$0xff]
  %v119 = vld [vmem:[%s0 + $0x30c] sm:$0xff]
  %v120 = vld [vmem:[%s0 + $0x314] sm:$0xf]
  %v121 = vld [vmem:[%s0 + $0x318] sm:$0xff]
  %v122 = vld [vmem:[%s0 + $0x320] sm:$0xff]
  %v123 = vld [vmem:[%s0 + $0x328] sm:$0xff]
  %v124 = vld [vmem:[%s0 + $0x330] sm:$0xff]
  %v125 = vld [vmem:[%s0 + $0x338] sm:$0xf]
  %v126 = vld [vmem:[%s0 + $0x33c] sm:$0xff]
  %v127 = vld [vmem:[%s0 + $0x344] sm:$0xff]
  %v128 = vld [vmem:[%s0 + $0x34c] sm:$0xff]
  %v129 = vld [vmem:[%s0 + $0x354] sm:$0xff]
  %v130 = vld [vmem:[%s0 + $0x35c] sm:$0xf]
  %v131 = vld [vmem:[%s0 + $0x360] sm:$0xff]
  %v132 = vld [vmem:[%s0 + $0x368] sm:$0xff]
  %v133 = vld [vmem:[%s0 + $0x370] sm:$0xff]
  %v134 = vld [vmem:[%s0 + $0x378] sm:$0xff]
  %v135 = vld [vmem:[%s0 + $0x380] sm:$0xf]
  %v136 = vld [vmem:[%s0 + $0x384] sm:$0xff]
  %v137 = vld [vmem:[%s0 + $0x38c] sm:$0xff]
  %v138 = vld [vmem:[%s0 + $0x394] sm:$0xff]
  %v139 = vld [vmem:[%s0 + $0x39c] sm:$0xff]
  %v140 = vld [vmem:[%s0 + $0x3a4] sm:$0xf]
  %v141 = vld [vmem:[%s0 + $0x3a8] sm:$0xff]
  %v142 = vld [vmem:[%s0 + $0x3b0] sm:$0xff]
  %v143 = vld [vmem:[%s0 + $0x3b8] sm:$0xff]
  %v144 = vld [vmem:[%s0 + $0x3c0] sm:$0xff]
  %v145 = vld [vmem:[%s0 + $0x3c8] sm:$0xf]
  %v146 = vld [vmem:[%s0 + $0x3cc] sm:$0xff]
  %v147 = vld [vmem:[%s0 + $0x3d4] sm:$0xff]
  %v148 = vld [vmem:[%s0 + $0x3dc] sm:$0xff]
  %v149 = vld [vmem:[%s0 + $0x3e4] sm:$0xff]
  %v150 = vld [vmem:[%s0 + $0x3ec] sm:$0xf]
  %v151 = vld [vmem:[%s0 + $0x3f0] sm:$0xff]
  %v152 = vld [vmem:[%s0 + $0x3f8] sm:$0xff]
  %v153 = vld [vmem:[%s0 + $0x400] sm:$0xff]
  %v154 = vld [vmem:[%s0 + $0x408] sm:$0xff]
  %v155 = vld [vmem:[%s0 + $0x410] sm:$0xf]
  %v156 = vld [vmem:[%s0 + $0x414] sm:$0xff]
  %v157 = vld [vmem:[%s0 + $0x41c] sm:$0xff]
  %v158 = vld [vmem:[%s0 + $0x424] sm:$0xff]
  %v159 = vld [vmem:[%s0 + $0x42c] sm:$0xff]
  %v160 = vld [vmem:[%s0 + $0x434] sm:$0xf]
  %v161 = vld [vmem:[%s0 + $0x438] sm:$0xff]
  %v162 = vld [vmem:[%s0 + $0x440] sm:$0xff]
  %v163 = vld [vmem:[%s0 + $0x448] sm:$0xff]
  %v164 = vld [vmem:[%s0 + $0x450] sm:$0xff]
  %v165 = vld [vmem:[%s0 + $0x458] sm:$0xf]
  %v166 = vld [vmem:[%s0 + $0x45c] sm:$0xff]
  %v167 = vld [vmem:[%s0 + $0x464] sm:$0xff]
  %v168 = vld [vmem:[%s0 + $0x46c] sm:$0xff]
  %v169 = vld [vmem:[%s0 + $0x474] sm:$0xff]
  %v170 = vld [vmem:[%s0 + $0x47c] sm:$0xf]
  %v171 = vld [vmem:[%s0 + $0x480] sm:$0xff]
  %v172 = vld [vmem:[%s0 + $0x488] sm:$0xff]
  %v173 = vld [vmem:[%s0 + $0x490] sm:$0xff]
  %v174 = vld [vmem:[%s0 + $0x498] sm:$0xff]
  %v175 = vld [vmem:[%s0 + $0x4a0] sm:$0xf]
  %v176 = vld [vmem:[%s0 + $0x4a4] sm:$0xff]
  %v177 = vld [vmem:[%s0 + $0x4ac] sm:$0xff]
  %v178 = vld [vmem:[%s0 + $0x4b4] sm:$0xff]
  %v179 = vld [vmem:[%s0 + $0x4bc] sm:$0xff]
  %v180 = vld [vmem:[%s0 + $0x4c4] sm:$0xf]
  %v181 = vld [vmem:[%s0 + $0x4c8] sm:$0xff]
  %v182 = vld [vmem:[%s0 + $0x4d0] sm:$0xff]
  %v183 = vld [vmem:[%s0 + $0x4d8] sm:$0xff]
  %v184 = vld [vmem:[%s0 + $0x4e0] sm:$0xff]
  %v185 = vld [vmem:[%s0 + $0x4e8] sm:$0xf]
  %v186 = vld [vmem:[%s0 + $0x4ec] sm:$0xff]
  %v187 = vld [vmem:[%s0 + $0x4f4] sm:$0xff]
  %v188 = vld [vmem:[%s0 + $0x4fc] sm:$0xff]
  %v189 = vld [vmem:[%s0 + $0x504] sm:$0xff]
  %v190 = vld [vmem:[%s0 + $0x50c] sm:$0xf]
  %v191 = vld [vmem:[%s0 + $0x510] sm:$0xff]
  %v192 = vld [vmem:[%s0 + $0x518] sm:$0xff]
  %v193 = vld [vmem:[%s0 + $0x520] sm:$0xff]
  %v194 = vld [vmem:[%s0 + $0x528] sm:$0xff]
  %v195 = vld [vmem:[%s0 + $0x530] sm:$0xf]
  %v196 = vld [vmem:[%s0 + $0x534] sm:$0xff]
  %v197 = vld [vmem:[%s0 + $0x53c] sm:$0xff]
  %v198 = vld [vmem:[%s0 + $0x544] sm:$0xff]
  %v199 = vld [vmem:[%s0 + $0x54c] sm:$0xff]
  %v200 = vld [vmem:[%s0 + $0x554] sm:$0xf]
  %v201 = vld [vmem:[%s0 + $0x558] sm:$0xff]
  %v202 = vld [vmem:[%s0 + $0x560] sm:$0xff]
  %v203 = vld [vmem:[%s0 + $0x568] sm:$0xff]
  %v204 = vld [vmem:[%s0 + $0x570] sm:$0xff]
  %v205 = vld [vmem:[%s0 + $0x578] sm:$0xf]
  %v206 = vld [vmem:[%s0 + $0x57c] sm:$0xff]
  %v207 = vld [vmem:[%s0 + $0x584] sm:$0xff]
  %v208 = vld [vmem:[%s0 + $0x58c] sm:$0xff]
  %v209 = vld [vmem:[%s0 + $0x594] sm:$0xff]
  %v210 = vld [vmem:[%s0 + $0x59c] sm:$0xf]
  %v211 = vld [vmem:[%s0 + $0x5a0] sm:$0xff]
  %v212 = vld [vmem:[%s0 + $0x5a8] sm:$0xff]
  %v213 = vld [vmem:[%s0 + $0x5b0] sm:$0xff]
  %v214 = vld [vmem:[%s0 + $0x5b8] sm:$0xff]
  %v215 = vld [vmem:[%s0 + $0x5c0] sm:$0xf]
  %v216 = vld [vmem:[%s0 + $0x5c4] sm:$0xff]
  %v217 = vld [vmem:[%s0 + $0x5cc] sm:$0xff]
  %v218 = vld [vmem:[%s0 + $0x5d4] sm:$0xff]
  %v219 = vld [vmem:[%s0 + $0x5dc] sm:$0xff]
  %v220 = vld [vmem:[%s0 + $0x5e4] sm:$0xf]
  %v221 = vld [vmem:[%s0 + $0x5e8] sm:$0xff]
  %v222 = vld [vmem:[%s0 + $0x5f0] sm:$0xff]
  %v223 = vld [vmem:[%s0 + $0x5f8] sm:$0xff]
  %v224 = vld [vmem:[%s0 + $0x600] sm:$0xff]
  %v225 = vld [vmem:[%s0 + $0x608] sm:$0xf]
  %v226 = vld [vmem:[%s0 + $0x60c] sm:$0xff]
  %v227 = vld [vmem:[%s0 + $0x614] sm:$0xff]
  %v228 = vld [vmem:[%s0 + $0x61c] sm:$0xff]
  %v229 = vld [vmem:[%s0 + $0x624] sm:$0xff]
  %v230 = vld [vmem:[%s0 + $0x62c] sm:$0xf]
  %v231 = vld [vmem:[%s0 + $0x630] sm:$0xff]
  %v232 = vld [vmem:[%s0 + $0x638] sm:$0xff]
  %v233 = vld [vmem:[%s0 + $0x640] sm:$0xff]
  %v234 = vld [vmem:[%s0 + $0x648] sm:$0xff]
  %v235 = vld [vmem:[%s0 + $0x650] sm:$0xf]
  %v236 = vld [vmem:[%s0 + $0x654] sm:$0xff]
  %v237 = vld [vmem:[%s0 + $0x65c] sm:$0xff]
  %v238 = vld [vmem:[%s0 + $0x664] sm:$0xff]
  %v239 = vld [vmem:[%s0 + $0x66c] sm:$0xff]
  %v240 = vld [vmem:[%s0 + $0x674] sm:$0xf]
  %v241 = vld [vmem:[%s0 + $0x678] sm:$0xff]
  %v242 = vld [vmem:[%s0 + $0x680] sm:$0xff]
  %v243 = vld [vmem:[%s0 + $0x688] sm:$0xff]
  %v244 = vld [vmem:[%s0 + $0x690] sm:$0xff]
  %v245 = vld [vmem:[%s0 + $0x698] sm:$0xf]
  %v246 = vld [vmem:[%s0 + $0x69c] sm:$0xff]
  %v247 = vld [vmem:[%s0 + $0x6a4] sm:$0xff]
  %v248 = vld [vmem:[%s0 + $0x6ac] sm:$0xff]
  %v249 = vld [vmem:[%s0 + $0x6b4] sm:$0xff]
  %v250 = vld [vmem:[%s0 + $0x6bc] sm:$0xf]
  %v251 = vld [vmem:[%s0 + $0x6c0] sm:$0xff]
  %v252 = vld [vmem:[%s0 + $0x6c8] sm:$0xff]
  %v253 = vld [vmem:[%s0 + $0x6d0] sm:$0xff]
  %v254 = vld [vmem:[%s0 + $0x6d8] sm:$0xff]
  %v255 = vld [vmem:[%s0 + $0x6e0] sm:$0xf]
  %v256 = vld [vmem:[%s0 + $0x6e4] sm:$0xff]
  %v257 = vld [vmem:[%s0 + $0x6ec] sm:$0xff]
  %v258 = vld [vmem:[%s0 + $0x6f4] sm:$0xff]
  %v259 = vld [vmem:[%s0 + $0x6fc] sm:$0xff]
  %v260 = vld [vmem:[%s0 + $0x704] sm:$0xf]
  %v261 = vld [vmem:[%s0 + $0x708] sm:$0xff]
  %v262 = vld [vmem:[%s0 + $0x710] sm:$0xff]
  %v263 = vld [vmem:[%s0 + $0x718] sm:$0xff]
  %v264 = vld [vmem:[%s0 + $0x720] sm:$0xff]
  %v265 = vld [vmem:[%s0 + $0x728] sm:$0xf]
  %v266 = vld [vmem:[%s0 + $0x72c] sm:$0xff]
  %v267 = vld [vmem:[%s0 + $0x734] sm:$0xff]
  %v268 = vld [vmem:[%s0 + $0x73c] sm:$0xff]
  %v269 = vld [vmem:[%s0 + $0x744] sm:$0xff]
  %v270 = vld [vmem:[%s0 + $0x74c] sm:$0xf]
  %v271 = vld [vmem:[%s0 + $0x750] sm:$0xff]
  %v272 = vld [vmem:[%s0 + $0x758] sm:$0xff]
  %v273 = vld [vmem:[%s0 + $0x760] sm:$0xff]
  %v274 = vld [vmem:[%s0 + $0x768] sm:$0xff]
  %v275 = vld [vmem:[%s0 + $0x770] sm:$0xf]
  %v276 = vld [vmem:[%s0 + $0x774] sm:$0xff]
  %v277 = vld [vmem:[%s0 + $0x77c] sm:$0xff]
  %v278 = vld [vmem:[%s0 + $0x784] sm:$0xff]
  %v279 = vld [vmem:[%s0 + $0x78c] sm:$0xff]
  %v280 = vld [vmem:[%s0 + $0x794] sm:$0xf]
  %v281 = vld [vmem:[%s0 + $0x798] sm:$0xff]
  %v282 = vld [vmem:[%s0 + $0x7a0] sm:$0xff]
  %v283 = vld [vmem:[%s0 + $0x7a8] sm:$0xff]
  %v284 = vld [vmem:[%s0 + $0x7b0] sm:$0xff]
  %v285 = vld [vmem:[%s0 + $0x7b8] sm:$0xf]
  %v286 = vld [vmem:[%s0 + $0x7bc] sm:$0xff]
  %v287 = vld [vmem:[%s0 + $0x7c4] sm:$0xff]
  %v288 = vld [vmem:[%s0 + $0x7cc] sm:$0xff]
  %v289 = vld [vmem:[%s0 + $0x7d4] sm:$0xff]
  %v290 = vld [vmem:[%s0 + $0x7dc] sm:$0xf]
  %v291 = vld [vmem:[%s0 + $0x7e0] sm:$0xff]
  %v292 = vld [vmem:[%s0 + $0x7e8] sm:$0xff]
  %v293 = vld [vmem:[%s0 + $0x7f0] sm:$0xff]
  %v294 = vld [vmem:[%s0 + $0x7f8] sm:$0xff]
  %v295 = vld [vmem:[%s0 + $0x800] sm:$0xf]
  %v296 = vld [vmem:[%s0 + $0x804] sm:$0xff]
  %v297 = vld [vmem:[%s0 + $0x80c] sm:$0xff]
  %v298 = vld [vmem:[%s0 + $0x814] sm:$0xff]
  %v299 = vld [vmem:[%s0 + $0x81c] sm:$0xff]
  %v300 = vld [vmem:[%s0 + $0x824] sm:$0xf]
  %v301 = vld [vmem:[%s0 + $0x828] sm:$0xff]
  %v302 = vld [vmem:[%s0 + $0x830] sm:$0xff]
  %v303 = vld [vmem:[%s0 + $0x838] sm:$0xff]
  %v304 = vld [vmem:[%s0 + $0x840] sm:$0xff]
  %v305 = vld [vmem:[%s0 + $0x848] sm:$0xf]
  %v306 = vld [vmem:[%s0 + $0x84c] sm:$0xff]
  %v307 = vld [vmem:[%s0 + $0x854] sm:$0xff]
  %v308 = vld [vmem:[%s0 + $0x85c] sm:$0xff]
  %v309 = vld [vmem:[%s0 + $0x864] sm:$0xff]
  %v310 = vld [vmem:[%s0 + $0x86c] sm:$0xf]
  %v311 = vld [vmem:[%s0 + $0x870] sm:$0xff]
  %v312 = vld [vmem:[%s0 + $0x878] sm:$0xff]
  %v313 = vld [vmem:[%s0 + $0x880] sm:$0xff]
  %v314 = vld [vmem:[%s0 + $0x888] sm:$0xff]
  %v315 = vld [vmem:[%s0 + $0x890] sm:$0xf]
  %v316 = vld [vmem:[%s0 + $0x894] sm:$0xff]
  %v317 = vld [vmem:[%s0 + $0x89c] sm:$0xff]
  %v318 = vld [vmem:[%s0 + $0x8a4] sm:$0xff]
  %v319 = vld [vmem:[%s0 + $0x8ac] sm:$0xff]
  %v320 = vld [vmem:[%s0 + $0x8b4] sm:$0xf]
  %v321 = vld [vmem:[%s0 + $0x8b8] sm:$0xff]
  %v322 = vld [vmem:[%s0 + $0x8c0] sm:$0xff]
  %v323 = vld [vmem:[%s0 + $0x8c8] sm:$0xff]
  %v324 = vld [vmem:[%s0 + $0x8d0] sm:$0xff]
  %v325 = vld [vmem:[%s0 + $0x8d8] sm:$0xf]
  %v326 = vld [vmem:[%s0 + $0x8dc] sm:$0xff]
  %v327 = vld [vmem:[%s0 + $0x8e4] sm:$0xff]
  %v328 = vld [vmem:[%s0 + $0x8ec] sm:$0xff]
  %v329 = vld [vmem:[%s0 + $0x8f4] sm:$0xff]
  %v330 = vld [vmem:[%s0 + $0x8fc] sm:$0xf]
  %v331 = vld [vmem:[%s1] sm:$0xf]
  %v332 = vld [vmem:[%s1 + $0x4] sm:$0xf]
  %v333 = vld [vmem:[%s1 + $0x8] sm:$0xf]
  %v334 = vld [vmem:[%s1 + $0xc] sm:$0xf]
  %v335 = vld [vmem:[%s1 + $0x10] sm:$0xf]
  %v336 = vld [vmem:[%s1 + $0x14] sm:$0xf]
  %v337 = vld [vmem:[%s1 + $0x18] sm:$0xf]
  %v338 = vld [vmem:[%s1 + $0x1c] sm:$0xf]
  %v339 = vld [vmem:[%s1 + $0x20] sm:$0xf]
  %v340 = vld [vmem:[%s1 + $0x24] sm:$0xf]
  %v341 = vld [vmem:[%s1 + $0x28] sm:$0xf]
  %v342 = vld [vmem:[%s1 + $0x2c] sm:$0xf]
  %v343 = vld [vmem:[%s1 + $0x30] sm:$0xf]
  %v344 = vld [vmem:[%s1 + $0x34] sm:$0xf]
  %v345 = vld [vmem:[%s1 + $0x38] sm:$0xf]
  %v346 = vld [vmem:[%s1 + $0x3c] sm:$0xf]
  %v347 = vld [vmem:[%s1 + $0x40] sm:$0xf]
  %v348 = vld [vmem:[%s1 + $0x44] sm:$0xf]
  %v349 = vld [vmem:[%s1 + $0x48] sm:$0xf]
  %v350 = vld [vmem:[%s1 + $0x4c] sm:$0xf]
  %v351 = vld [vmem:[%s1 + $0x50] sm:$0xf]
  %v352 = vld [vmem:[%s1 + $0x54] sm:$0xf]
  %v353 = vld [vmem:[%s1 + $0x58] sm:$0xf]
  %v354 = vld [vmem:[%s1 + $0x5c] sm:$0xf]
  %v355 = vld [vmem:[%s1 + $0x60] sm:$0xf]
  %v356 = vld [vmem:[%s1 + $0x64] sm:$0xf]
  %v357 = vld [vmem:[%s1 + $0x68] sm:$0xf]
  %v358 = vld [vmem:[%s1 + $0x6c] sm:$0xf]
  %v359 = vld [vmem:[%s1 + $0x70] sm:$0xf]
  %v360 = vld [vmem:[%s1 + $0x74] sm:$0xf]
  %v361 = vld [vmem:[%s1 + $0x78] sm:$0xf]
  %v362 = vld [vmem:[%s1 + $0x7c] sm:$0xf]
  %v363 = vld [vmem:[%s1 + $0x80] sm:$0xf]
  %v364 = vld [vmem:[%s1 + $0x84] sm:$0xf]
  %v365 = vld [vmem:[%s1 + $0x88] sm:$0xf]
  %v366 = vld [vmem:[%s1 + $0x8c] sm:$0xf]
  %v367 = vld [vmem:[%s1 + $0x90] sm:$0xf]
  %v368 = vld [vmem:[%s1 + $0x94] sm:$0xf]
  %v369 = vld [vmem:[%s1 + $0x98] sm:$0xf]
  %v370 = vld [vmem:[%s1 + $0x9c] sm:$0xf]
  %v371 = vld [vmem:[%s1 + $0xa0] sm:$0xf]
  %v372 = vld [vmem:[%s1 + $0xa4] sm:$0xf]
  %v373 = vld [vmem:[%s1 + $0xa8] sm:$0xf]
  %v374 = vld [vmem:[%s1 + $0xac] sm:$0xf]
  %v375 = vld [vmem:[%s1 + $0xb0] sm:$0xf]
  %v376 = vld [vmem:[%s1 + $0xb4] sm:$0xf]
  %v377 = vld [vmem:[%s1 + $0xb8] sm:$0xf]
  %v378 = vld [vmem:[%s1 + $0xbc] sm:$0xf]
  %v379 = vld [vmem:[%s1 + $0xc0] sm:$0xf]
  %v380 = vld [vmem:[%s1 + $0xc4] sm:$0xf]
  %v381 = vld [vmem:[%s1 + $0xc8] sm:$0xf]
  %v382 = vld [vmem:[%s1 + $0xcc] sm:$0xf]
  %v383 = vld [vmem:[%s1 + $0xd0] sm:$0xf]
  %v384 = vld [vmem:[%s1 + $0xd4] sm:$0xf]
  %v385 = vld [vmem:[%s1 + $0xd8] sm:$0xf]
  %v386 = vld [vmem:[%s1 + $0xdc] sm:$0xf]
  %v387 = vld [vmem:[%s1 + $0xe0] sm:$0xf]
  %v388 = vld [vmem:[%s1 + $0xe4] sm:$0xf]
  %v389 = vld [vmem:[%s1 + $0xe8] sm:$0xf]
  %v390 = vld [vmem:[%s1 + $0xec] sm:$0xf]
  %v391 = vld [vmem:[%s1 + $0xf0] sm:$0xf]
  %v392 = vld [vmem:[%s1 + $0xf4] sm:$0xf]
  %v393 = vld [vmem:[%s1 + $0xf8] sm:$0xf]
  %v394 = vld [vmem:[%s1 + $0xfc] sm:$0xf]
  %v395 = vld [vmem:[%s1 + $0x100] sm:$0xf]
  %v396 = vld [vmem:[%s1 + $0x104] sm:$0xf]
  %v397 = vld [vmem:[%s1 + $0x108] sm:$0xf]
  %v398 = vld [vmem:[%s1 + $0x10c] sm:$0xf]
  %v399 = vld [vmem:[%s1 + $0x110] sm:$0xf]
  %v400 = vld [vmem:[%s1 + $0x114] sm:$0xf]
  %v401 = vld [vmem:[%s1 + $0x118] sm:$0xf]
  %v402 = vld [vmem:[%s1 + $0x11c] sm:$0xf]
  %v403 = vld [vmem:[%s1 + $0x120] sm:$0xf]
  %v404 = vld [vmem:[%s1 + $0x124] sm:$0xf]
  %v405 = vld [vmem:[%s1 + $0x128] sm:$0xf]
  %v406 = vld [vmem:[%s1 + $0x12c] sm:$0xf]
  %v407 = vld [vmem:[%s1 + $0x130] sm:$0xf]
  %v408 = vld [vmem:[%s1 + $0x134] sm:$0xf]
  %v409 = vld [vmem:[%s1 + $0x138] sm:$0xf]
  %v410 = vld [vmem:[%s1 + $0x13c] sm:$0xf]
  %v411 = vld [vmem:[%s1 + $0x140] sm:$0xf]
  %v412 = vld [vmem:[%s1 + $0x144] sm:$0xf]
  %v413 = vld [vmem:[%s1 + $0x148] sm:$0xf]
  %v414 = vld [vmem:[%s1 + $0x14c] sm:$0xf]
  %v415 = vld [vmem:[%s1 + $0x150] sm:$0xf]
  %v416 = vld [vmem:[%s1 + $0x154] sm:$0xf]
  %v417 = vld [vmem:[%s1 + $0x158] sm:$0xf]
  %v418 = vld [vmem:[%s1 + $0x15c] sm:$0xf]
  %v419 = vld [vmem:[%s1 + $0x160] sm:$0xf]
  %v420 = vld [vmem:[%s1 + $0x164] sm:$0xf]
  %v421 = vld [vmem:[%s1 + $0x168] sm:$0xf]
  %v422 = vld [vmem:[%s1 + $0x16c] sm:$0xf]
  %v423 = vld [vmem:[%s1 + $0x170] sm:$0xf]
  %v424 = vld [vmem:[%s1 + $0x174] sm:$0xf]
  %v425 = vld [vmem:[%s1 + $0x178] sm:$0xf]
  %v426 = vld [vmem:[%s1 + $0x17c] sm:$0xf]
  %v427 = vld [vmem:[%s1 + $0x180] sm:$0xf]
  %v428 = vld [vmem:[%s1 + $0x184] sm:$0xf]
  %v429 = vld [vmem:[%s1 + $0x188] sm:$0xf]
  %v430 = vld [vmem:[%s1 + $0x18c] sm:$0xf]
  %v431 = vld [vmem:[%s1 + $0x190] sm:$0xf]
  %v432 = vld [vmem:[%s1 + $0x194] sm:$0xf]
  %v433 = vld [vmem:[%s1 + $0x198] sm:$0xf]
  %v434 = vld [vmem:[%s1 + $0x19c] sm:$0xf]
  %v435 = vld [vmem:[%s1 + $0x1a0] sm:$0xf]
  %v436 = vld [vmem:[%s1 + $0x1a4] sm:$0xf]
  %v437 = vld [vmem:[%s1 + $0x1a8] sm:$0xf]
  %v438 = vld [vmem:[%s1 + $0x1ac] sm:$0xf]
  %v439 = vld [vmem:[%s1 + $0x1b0] sm:$0xf]
  %v440 = vld [vmem:[%s1 + $0x1b4] sm:$0xf]
  %v441 = vld [vmem:[%s1 + $0x1b8] sm:$0xf]
  %v442 = vld [vmem:[%s1 + $0x1bc] sm:$0xf]
  %v443 = vld [vmem:[%s1 + $0x1c0] sm:$0xf]
  %v444 = vld [vmem:[%s1 + $0x1c4] sm:$0xf]
  %v445 = vld [vmem:[%s1 + $0x1c8] sm:$0xf]
  %v446 = vld [vmem:[%s1 + $0x1cc] sm:$0xf]
  %v447 = vld [vmem:[%s1 + $0x1d0] sm:$0xf]
  %v448 = vld [vmem:[%s1 + $0x1d4] sm:$0xf]
  %v449 = vld [vmem:[%s1 + $0x1d8] sm:$0xf]
  %v450 = vld [vmem:[%s1 + $0x1dc] sm:$0xf]
  %v451 = vld [vmem:[%s1 + $0x1e0] sm:$0xf]
  %v452 = vld [vmem:[%s1 + $0x1e4] sm:$0xf]
  %v453 = vld [vmem:[%s1 + $0x1e8] sm:$0xf]
  %v454 = vld [vmem:[%s1 + $0x1ec] sm:$0xf]
  %v455 = vld [vmem:[%s1 + $0x1f0] sm:$0xf]
  %v456 = vld [vmem:[%s1 + $0x1f4] sm:$0xf]
  %v457 = vld [vmem:[%s1 + $0x1f8] sm:$0xf]
  %v458 = vld [vmem:[%s1 + $0x1fc] sm:$0xf]
  %v459 = vld [vmem:[%s1 + $0x200] sm:$0xf]
  %v460 = vld [vmem:[%s1 + $0x204] sm:$0xf]
  %v461 = vld [vmem:[%s1 + $0x208] sm:$0xf]
  %v462 = vld [vmem:[%s1 + $0x20c] sm:$0xf]
  %v463 = vld [vmem:[%s1 + $0x210] sm:$0xf]
  %v464 = vld [vmem:[%s1 + $0x214] sm:$0xf]
  %v465 = vld [vmem:[%s1 + $0x218] sm:$0xf]
  %v466 = vld [vmem:[%s1 + $0x21c] sm:$0xf]
  %v467 = vld [vmem:[%s1 + $0x220] sm:$0xf]
  %v468 = vld [vmem:[%s1 + $0x224] sm:$0xf]
  %v469 = vld [vmem:[%s1 + $0x228] sm:$0xf]
  %v470 = vld [vmem:[%s1 + $0x22c] sm:$0xf]
  %v471 = vld [vmem:[%s1 + $0x230] sm:$0xf]
  %v472 = vld [vmem:[%s1 + $0x234] sm:$0xf]
  %v473 = vld [vmem:[%s1 + $0x238] sm:$0xf]
  %v474 = vld [vmem:[%s1 + $0x23c] sm:$0xf]
  %v795 = vunpack.c.l.b16 %v11
  %v796 = vunpack.c.h.b16 %v11
  %v797 = vunpack.c.l.b16 %v12
  %v798 = vunpack.c.h.b16 %v12
  %v799 = vunpack.c.l.b16 %v13
  %v800 = vunpack.c.h.b16 %v13
  %v801 = vunpack.c.l.b16 %v14
  %v802 = vunpack.c.h.b16 %v14
  %v803 = vunpack.c.l.b16 %v15
  %v804 = vunpack.c.l.b16 %v16
  %v805 = vunpack.c.h.b16 %v16
  %v806 = vunpack.c.l.b16 %v17
  %v807 = vunpack.c.h.b16 %v17
  %v808 = vunpack.c.l.b16 %v18
  %v809 = vunpack.c.h.b16 %v18
  %v810 = vunpack.c.l.b16 %v19
  %v811 = vunpack.c.h.b16 %v19
  %v812 = vunpack.c.l.b16 %v20
  %v813 = vunpack.c.l.b16 %v21
  %v814 = vunpack.c.h.b16 %v21
  %v815 = vunpack.c.l.b16 %v22
  %v816 = vunpack.c.h.b16 %v22
  %v817 = vunpack.c.l.b16 %v23
  %v818 = vunpack.c.h.b16 %v23
  %v819 = vunpack.c.l.b16 %v24
  %v820 = vunpack.c.h.b16 %v24
  %v821 = vunpack.c.l.b16 %v25
  %v822 = vunpack.c.l.b16 %v26
  %v823 = vunpack.c.h.b16 %v26
  %v824 = vunpack.c.l.b16 %v27
  %v825 = vunpack.c.h.b16 %v27
  %v826 = vunpack.c.l.b16 %v28
  %v827 = vunpack.c.h.b16 %v28
  %v828 = vunpack.c.l.b16 %v29
  %v829 = vunpack.c.h.b16 %v29
  %v830 = vunpack.c.l.b16 %v30
  %v831 = vunpack.c.l.b16 %v31
  %v832 = vunpack.c.h.b16 %v31
  %v833 = vunpack.c.l.b16 %v32
  %v834 = vunpack.c.h.b16 %v32
  %v835 = vunpack.c.l.b16 %v33
  %v836 = vunpack.c.h.b16 %v33
  %v837 = vunpack.c.l.b16 %v34
  %v838 = vunpack.c.h.b16 %v34
  %v839 = vunpack.c.l.b16 %v35
  %v840 = vunpack.c.l.b16 %v36
  %v841 = vunpack.c.h.b16 %v36
  %v842 = vunpack.c.l.b16 %v37
  %v843 = vunpack.c.h.b16 %v37
  %v844 = vunpack.c.l.b16 %v38
  %v845 = vunpack.c.h.b16 %v38
  %v846 = vunpack.c.l.b16 %v39
  %v847 = vunpack.c.h.b16 %v39
  %v848 = vunpack.c.l.b16 %v40
  %v849 = vunpack.c.l.b16 %v41
  %v850 = vunpack.c.h.b16 %v41
  %v851 = vunpack.c.l.b16 %v42
  %v852 = vunpack.c.h.b16 %v42
  %v853 = vunpack.c.l.b16 %v43
  %v854 = vunpack.c.h.b16 %v43
  %v855 = vunpack.c.l.b16 %v44
  %v856 = vunpack.c.h.b16 %v44
  %v857 = vunpack.c.l.b16 %v45
  %v858 = vunpack.c.l.b16 %v46
  %v859 = vunpack.c.h.b16 %v46
  %v860 = vunpack.c.l.b16 %v47
  %v861 = vunpack.c.h.b16 %v47
  %v862 = vunpack.c.l.b16 %v48
  %v863 = vunpack.c.h.b16 %v48
  %v864 = vunpack.c.l.b16 %v49
  %v865 = vunpack.c.h.b16 %v49
  %v866 = vunpack.c.l.b16 %v50
  %v867 = vunpack.c.l.b16 %v51
  %v868 = vunpack.c.h.b16 %v51
  %v869 = vunpack.c.l.b16 %v52
  %v870 = vunpack.c.h.b16 %v52
  %v871 = vunpack.c.l.b16 %v53
  %v872 = vunpack.c.h.b16 %v53
  %v873 = vunpack.c.l.b16 %v54
  %v874 = vunpack.c.h.b16 %v54
  %v875 = vunpack.c.l.b16 %v55
  %v876 = vunpack.c.l.b16 %v56
  %v877 = vunpack.c.h.b16 %v56
  %v878 = vunpack.c.l.b16 %v57
  %v879 = vunpack.c.h.b16 %v57
  %v880 = vunpack.c.l.b16 %v58
  %v881 = vunpack.c.h.b16 %v58
  %v882 = vunpack.c.l.b16 %v59
  %v883 = vunpack.c.h.b16 %v59
  %v884 = vunpack.c.l.b16 %v60
  %v885 = vunpack.c.l.b16 %v61
  %v886 = vunpack.c.h.b16 %v61
  %v887 = vunpack.c.l.b16 %v62
  %v888 = vunpack.c.h.b16 %v62
  %v889 = vunpack.c.l.b16 %v63
  %v890 = vunpack.c.h.b16 %v63
  %v891 = vunpack.c.l.b16 %v64
  %v892 = vunpack.c.h.b16 %v64
  %v893 = vunpack.c.l.b16 %v65
  %v894 = vunpack.c.l.b16 %v66
  %v895 = vunpack.c.h.b16 %v66
  %v896 = vunpack.c.l.b16 %v67
  %v897 = vunpack.c.h.b16 %v67
  %v898 = vunpack.c.l.b16 %v68
  %v899 = vunpack.c.h.b16 %v68
  %v900 = vunpack.c.l.b16 %v69
  %v901 = vunpack.c.h.b16 %v69
  %v902 = vunpack.c.l.b16 %v70
  %v903 = vunpack.c.l.b16 %v71
  %v904 = vunpack.c.h.b16 %v71
  %v905 = vunpack.c.l.b16 %v72
  %v906 = vunpack.c.h.b16 %v72
  %v907 = vunpack.c.l.b16 %v73
  %v908 = vunpack.c.h.b16 %v73
  %v909 = vunpack.c.l.b16 %v74
  %v910 = vunpack.c.h.b16 %v74
  %v911 = vunpack.c.l.b16 %v75
  %v912 = vunpack.c.l.b16 %v76
  %v913 = vunpack.c.h.b16 %v76
  %v914 = vunpack.c.l.b16 %v77
  %v915 = vunpack.c.h.b16 %v77
  %v916 = vunpack.c.l.b16 %v78
  %v917 = vunpack.c.h.b16 %v78
  %v918 = vunpack.c.l.b16 %v79
  %v919 = vunpack.c.h.b16 %v79
  %v920 = vunpack.c.l.b16 %v80
  %v921 = vunpack.c.l.b16 %v81
  %v922 = vunpack.c.h.b16 %v81
  %v923 = vunpack.c.l.b16 %v82
  %v924 = vunpack.c.h.b16 %v82
  %v925 = vunpack.c.l.b16 %v83
  %v926 = vunpack.c.h.b16 %v83
  %v927 = vunpack.c.l.b16 %v84
  %v928 = vunpack.c.h.b16 %v84
  %v929 = vunpack.c.l.b16 %v85
  %v930 = vunpack.c.l.b16 %v86
  %v931 = vunpack.c.h.b16 %v86
  %v932 = vunpack.c.l.b16 %v87
  %v933 = vunpack.c.h.b16 %v87
  %v934 = vunpack.c.l.b16 %v88
  %v935 = vunpack.c.h.b16 %v88
  %v936 = vunpack.c.l.b16 %v89
  %v937 = vunpack.c.h.b16 %v89
  %v938 = vunpack.c.l.b16 %v90
  %v939 = vunpack.c.l.b16 %v91
  %v940 = vunpack.c.h.b16 %v91
  %v941 = vunpack.c.l.b16 %v92
  %v942 = vunpack.c.h.b16 %v92
  %v943 = vunpack.c.l.b16 %v93
  %v944 = vunpack.c.h.b16 %v93
  %v945 = vunpack.c.l.b16 %v94
  %v946 = vunpack.c.h.b16 %v94
  %v947 = vunpack.c.l.b16 %v95
  %v948 = vunpack.c.l.b16 %v96
  %v949 = vunpack.c.h.b16 %v96
  %v950 = vunpack.c.l.b16 %v97
  %v951 = vunpack.c.h.b16 %v97
  %v952 = vunpack.c.l.b16 %v98
  %v953 = vunpack.c.h.b16 %v98
  %v954 = vunpack.c.l.b16 %v99
  %v955 = vunpack.c.h.b16 %v99
  %v956 = vunpack.c.l.b16 %v100
  %v957 = vunpack.c.l.b16 %v101
  %v958 = vunpack.c.h.b16 %v101
  %v959 = vunpack.c.l.b16 %v102
  %v960 = vunpack.c.h.b16 %v102
  %v961 = vunpack.c.l.b16 %v103
  %v962 = vunpack.c.h.b16 %v103
  %v963 = vunpack.c.l.b16 %v104
  %v964 = vunpack.c.h.b16 %v104
  %v965 = vunpack.c.l.b16 %v105
  %v966 = vunpack.c.l.b16 %v106
  %v967 = vunpack.c.h.b16 %v106
  %v968 = vunpack.c.l.b16 %v107
  %v969 = vunpack.c.h.b16 %v107
  %v970 = vunpack.c.l.b16 %v108
  %v971 = vunpack.c.h.b16 %v108
  %v972 = vunpack.c.l.b16 %v109
  %v973 = vunpack.c.h.b16 %v109
  %v974 = vunpack.c.l.b16 %v110
  %v975 = vunpack.c.l.b16 %v111
  %v976 = vunpack.c.h.b16 %v111
  %v977 = vunpack.c.l.b16 %v112
  %v978 = vunpack.c.h.b16 %v112
  %v979 = vunpack.c.l.b16 %v113
  %v980 = vunpack.c.h.b16 %v113
  %v981 = vunpack.c.l.b16 %v114
  %v982 = vunpack.c.h.b16 %v114
  %v983 = vunpack.c.l.b16 %v115
  %v984 = vunpack.c.l.b16 %v116
  %v985 = vunpack.c.h.b16 %v116
  %v986 = vunpack.c.l.b16 %v117
  %v987 = vunpack.c.h.b16 %v117
  %v988 = vunpack.c.l.b16 %v118
  %v989 = vunpack.c.h.b16 %v118
  %v990 = vunpack.c.l.b16 %v119
  %v991 = vunpack.c.h.b16 %v119
  %v992 = vunpack.c.l.b16 %v120
  %v993 = vunpack.c.l.b16 %v121
  %v994 = vunpack.c.h.b16 %v121
  %v995 = vunpack.c.l.b16 %v122
  %v996 = vunpack.c.h.b16 %v122
  %v997 = vunpack.c.l.b16 %v123
  %v998 = vunpack.c.h.b16 %v123
  %v999 = vunpack.c.l.b16 %v124
  %v1000 = vunpack.c.h.b16 %v124
  %v1001 = vunpack.c.l.b16 %v125
  %v1002 = vunpack.c.l.b16 %v126
  %v1003 = vunpack.c.h.b16 %v126
  %v1004 = vunpack.c.l.b16 %v127
  %v1005 = vunpack.c.h.b16 %v127
  %v1006 = vunpack.c.l.b16 %v128
  %v1007 = vunpack.c.h.b16 %v128
  %v1008 = vunpack.c.l.b16 %v129
  %v1009 = vunpack.c.h.b16 %v129
  %v1010 = vunpack.c.l.b16 %v130
  %v1011 = vunpack.c.l.b16 %v131
  %v1012 = vunpack.c.h.b16 %v131
  %v1013 = vunpack.c.l.b16 %v132
  %v1014 = vunpack.c.h.b16 %v132
  %v1015 = vunpack.c.l.b16 %v133
  %v1016 = vunpack.c.h.b16 %v133
  %v1017 = vunpack.c.l.b16 %v134
  %v1018 = vunpack.c.h.b16 %v134
  %v1019 = vunpack.c.l.b16 %v135
  %v1020 = vunpack.c.l.b16 %v136
  %v1021 = vunpack.c.h.b16 %v136
  %v1022 = vunpack.c.l.b16 %v137
  %v1023 = vunpack.c.h.b16 %v137
  %v1024 = vunpack.c.l.b16 %v138
  %v1025 = vunpack.c.h.b16 %v138
  %v1026 = vunpack.c.l.b16 %v139
  %v1027 = vunpack.c.h.b16 %v139
  %v1028 = vunpack.c.l.b16 %v140
  %v1029 = vunpack.c.l.b16 %v141
  %v1030 = vunpack.c.h.b16 %v141
  %v1031 = vunpack.c.l.b16 %v142
  %v1032 = vunpack.c.h.b16 %v142
  %v1033 = vunpack.c.l.b16 %v143
  %v1034 = vunpack.c.h.b16 %v143
  %v1035 = vunpack.c.l.b16 %v144
  %v1036 = vunpack.c.h.b16 %v144
  %v1037 = vunpack.c.l.b16 %v145
  %v1038 = vunpack.c.l.b16 %v146
  %v1039 = vunpack.c.h.b16 %v146
  %v1040 = vunpack.c.l.b16 %v147
  %v1041 = vunpack.c.h.b16 %v147
  %v1042 = vunpack.c.l.b16 %v148
  %v1043 = vunpack.c.h.b16 %v148
  %v1044 = vunpack.c.l.b16 %v149
  %v1045 = vunpack.c.h.b16 %v149
  %v1046 = vunpack.c.l.b16 %v150
  %v1047 = vunpack.c.l.b16 %v151
  %v1048 = vunpack.c.h.b16 %v151
  %v1049 = vunpack.c.l.b16 %v152
  %v1050 = vunpack.c.h.b16 %v152
  %v1051 = vunpack.c.l.b16 %v153
  %v1052 = vunpack.c.h.b16 %v153
  %v1053 = vunpack.c.l.b16 %v154
  %v1054 = vunpack.c.h.b16 %v154
  %v1055 = vunpack.c.l.b16 %v155
  %v1056 = vunpack.c.l.b16 %v156
  %v1057 = vunpack.c.h.b16 %v156
  %v1058 = vunpack.c.l.b16 %v157
  %v1059 = vunpack.c.h.b16 %v157
  %v1060 = vunpack.c.l.b16 %v158
  %v1061 = vunpack.c.h.b16 %v158
  %v1062 = vunpack.c.l.b16 %v159
  %v1063 = vunpack.c.h.b16 %v159
  %v1064 = vunpack.c.l.b16 %v160
  %v1065 = vunpack.c.l.b16 %v161
  %v1066 = vunpack.c.h.b16 %v161
  %v1067 = vunpack.c.l.b16 %v162
  %v1068 = vunpack.c.h.b16 %v162
  %v1069 = vunpack.c.l.b16 %v163
  %v1070 = vunpack.c.h.b16 %v163
  %v1071 = vunpack.c.l.b16 %v164
  %v1072 = vunpack.c.h.b16 %v164
  %v1073 = vunpack.c.l.b16 %v165
  %v1074 = vunpack.c.l.b16 %v166
  %v1075 = vunpack.c.h.b16 %v166
  %v1076 = vunpack.c.l.b16 %v167
  %v1077 = vunpack.c.h.b16 %v167
  %v1078 = vunpack.c.l.b16 %v168
  %v1079 = vunpack.c.h.b16 %v168
  %v1080 = vunpack.c.l.b16 %v169
  %v1081 = vunpack.c.h.b16 %v169
  %v1082 = vunpack.c.l.b16 %v170
  %v1083 = vunpack.c.l.b16 %v171
  %v1084 = vunpack.c.h.b16 %v171
  %v1085 = vunpack.c.l.b16 %v172
  %v1086 = vunpack.c.h.b16 %v172
  %v1087 = vunpack.c.l.b16 %v173
  %v1088 = vunpack.c.h.b16 %v173
  %v1089 = vunpack.c.l.b16 %v174
  %v1090 = vunpack.c.h.b16 %v174
  %v1091 = vunpack.c.l.b16 %v175
  %v1092 = vunpack.c.l.b16 %v176
  %v1093 = vunpack.c.h.b16 %v176
  %v1094 = vunpack.c.l.b16 %v177
  %v1095 = vunpack.c.h.b16 %v177
  %v1096 = vunpack.c.l.b16 %v178
  %v1097 = vunpack.c.h.b16 %v178
  %v1098 = vunpack.c.l.b16 %v179
  %v1099 = vunpack.c.h.b16 %v179
  %v1100 = vunpack.c.l.b16 %v180
  %v1101 = vunpack.c.l.b16 %v181
  %v1102 = vunpack.c.h.b16 %v181
  %v1103 = vunpack.c.l.b16 %v182
  %v1104 = vunpack.c.h.b16 %v182
  %v1105 = vunpack.c.l.b16 %v183
  %v1106 = vunpack.c.h.b16 %v183
  %v1107 = vunpack.c.l.b16 %v184
  %v1108 = vunpack.c.h.b16 %v184
  %v1109 = vunpack.c.l.b16 %v185
  %v1110 = vunpack.c.l.b16 %v186
  %v1111 = vunpack.c.h.b16 %v186
  %v1112 = vunpack.c.l.b16 %v187
  %v1113 = vunpack.c.h.b16 %v187
  %v1114 = vunpack.c.l.b16 %v188
  %v1115 = vunpack.c.h.b16 %v188
  %v1116 = vunpack.c.l.b16 %v189
  %v1117 = vunpack.c.h.b16 %v189
  %v1118 = vunpack.c.l.b16 %v190
  %v1119 = vunpack.c.l.b16 %v191
  %v1120 = vunpack.c.h.b16 %v191
  %v1121 = vunpack.c.l.b16 %v192
  %v1122 = vunpack.c.h.b16 %v192
  %v1123 = vunpack.c.l.b16 %v193
  %v1124 = vunpack.c.h.b16 %v193
  %v1125 = vunpack.c.l.b16 %v194
  %v1126 = vunpack.c.h.b16 %v194
  %v1127 = vunpack.c.l.b16 %v195
  %v1128 = vunpack.c.l.b16 %v196
  %v1129 = vunpack.c.h.b16 %v196
  %v1130 = vunpack.c.l.b16 %v197
  %v1131 = vunpack.c.h.b16 %v197
  %v1132 = vunpack.c.l.b16 %v198
  %v1133 = vunpack.c.h.b16 %v198
  %v1134 = vunpack.c.l.b16 %v199
  %v1135 = vunpack.c.h.b16 %v199
  %v1136 = vunpack.c.l.b16 %v200
  %v1137 = vunpack.c.l.b16 %v201
  %v1138 = vunpack.c.h.b16 %v201
  %v1139 = vunpack.c.l.b16 %v202
  %v1140 = vunpack.c.h.b16 %v202
  %v1141 = vunpack.c.l.b16 %v203
  %v1142 = vunpack.c.h.b16 %v203
  %v1143 = vunpack.c.l.b16 %v204
  %v1144 = vunpack.c.h.b16 %v204
  %v1145 = vunpack.c.l.b16 %v205
  %v1146 = vunpack.c.l.b16 %v206
  %v1147 = vunpack.c.h.b16 %v206
  %v1148 = vunpack.c.l.b16 %v207
  %v1149 = vunpack.c.h.b16 %v207
  %v1150 = vunpack.c.l.b16 %v208
  %v1151 = vunpack.c.h.b16 %v208
  %v1152 = vunpack.c.l.b16 %v209
  %v1153 = vunpack.c.h.b16 %v209
  %v1154 = vunpack.c.l.b16 %v210
  %v1155 = vunpack.c.l.b16 %v211
  %v1156 = vunpack.c.h.b16 %v211
  %v1157 = vunpack.c.l.b16 %v212
  %v1158 = vunpack.c.h.b16 %v212
  %v1159 = vunpack.c.l.b16 %v213
  %v1160 = vunpack.c.h.b16 %v213
  %v1161 = vunpack.c.l.b16 %v214
  %v1162 = vunpack.c.h.b16 %v214
  %v1163 = vunpack.c.l.b16 %v215
  %v1164 = vunpack.c.l.b16 %v216
  %v1165 = vunpack.c.h.b16 %v216
  %v1166 = vunpack.c.l.b16 %v217
  %v1167 = vunpack.c.h.b16 %v217
  %v1168 = vunpack.c.l.b16 %v218
  %v1169 = vunpack.c.h.b16 %v218
  %v1170 = vunpack.c.l.b16 %v219
  %v1171 = vunpack.c.h.b16 %v219
  %v1172 = vunpack.c.l.b16 %v220
  %v1173 = vunpack.c.l.b16 %v221
  %v1174 = vunpack.c.h.b16 %v221
  %v1175 = vunpack.c.l.b16 %v222
  %v1176 = vunpack.c.h.b16 %v222
  %v1177 = vunpack.c.l.b16 %v223
  %v1178 = vunpack.c.h.b16 %v223
  %v1179 = vunpack.c.l.b16 %v224
  %v1180 = vunpack.c.h.b16 %v224
  %v1181 = vunpack.c.l.b16 %v225
  %v1182 = vunpack.c.l.b16 %v226
  %v1183 = vunpack.c.h.b16 %v226
  %v1184 = vunpack.c.l.b16 %v227
  %v1185 = vunpack.c.h.b16 %v227
  %v1186 = vunpack.c.l.b16 %v228
  %v1187 = vunpack.c.h.b16 %v228
  %v1188 = vunpack.c.l.b16 %v229
  %v1189 = vunpack.c.h.b16 %v229
  %v1190 = vunpack.c.l.b16 %v230
  %v1191 = vunpack.c.l.b16 %v231
  %v1192 = vunpack.c.h.b16 %v231
  %v1193 = vunpack.c.l.b16 %v232
  %v1194 = vunpack.c.h.b16 %v232
  %v1195 = vunpack.c.l.b16 %v233
  %v1196 = vunpack.c.h.b16 %v233
  %v1197 = vunpack.c.l.b16 %v234
  %v1198 = vunpack.c.h.b16 %v234
  %v1199 = vunpack.c.l.b16 %v235
  %v1200 = vunpack.c.l.b16 %v236
  %v1201 = vunpack.c.h.b16 %v236
  %v1202 = vunpack.c.l.b16 %v237
  %v1203 = vunpack.c.h.b16 %v237
  %v1204 = vunpack.c.l.b16 %v238
  %v1205 = vunpack.c.h.b16 %v238
  %v1206 = vunpack.c.l.b16 %v239
  %v1207 = vunpack.c.h.b16 %v239
  %v1208 = vunpack.c.l.b16 %v240
  %v1209 = vunpack.c.l.b16 %v241
  %v1210 = vunpack.c.h.b16 %v241
  %v1211 = vunpack.c.l.b16 %v242
  %v1212 = vunpack.c.h.b16 %v242
  %v1213 = vunpack.c.l.b16 %v243
  %v1214 = vunpack.c.h.b16 %v243
  %v1215 = vunpack.c.l.b16 %v244
  %v1216 = vunpack.c.h.b16 %v244
  %v1217 = vunpack.c.l.b16 %v245
  %v1218 = vunpack.c.l.b16 %v246
  %v1219 = vunpack.c.h.b16 %v246
  %v1220 = vunpack.c.l.b16 %v247
  %v1221 = vunpack.c.h.b16 %v247
  %v1222 = vunpack.c.l.b16 %v248
  %v1223 = vunpack.c.h.b16 %v248
  %v1224 = vunpack.c.l.b16 %v249
  %v1225 = vunpack.c.h.b16 %v249
  %v1226 = vunpack.c.l.b16 %v250
  %v1227 = vunpack.c.l.b16 %v251
  %v1228 = vunpack.c.h.b16 %v251
  %v1229 = vunpack.c.l.b16 %v252
  %v1230 = vunpack.c.h.b16 %v252
  %v1231 = vunpack.c.l.b16 %v253
  %v1232 = vunpack.c.h.b16 %v253
  %v1233 = vunpack.c.l.b16 %v254
  %v1234 = vunpack.c.h.b16 %v254
  %v1235 = vunpack.c.l.b16 %v255
  %v1236 = vunpack.c.l.b16 %v256
  %v1237 = vunpack.c.h.b16 %v256
  %v1238 = vunpack.c.l.b16 %v257
  %v1239 = vunpack.c.h.b16 %v257
  %v1240 = vunpack.c.l.b16 %v258
  %v1241 = vunpack.c.h.b16 %v258
  %v1242 = vunpack.c.l.b16 %v259
  %v1243 = vunpack.c.h.b16 %v259
  %v1244 = vunpack.c.l.b16 %v260
  %v1245 = vunpack.c.l.b16 %v261
  %v1246 = vunpack.c.h.b16 %v261
  %v1247 = vunpack.c.l.b16 %v262
  %v1248 = vunpack.c.h.b16 %v262
  %v1249 = vunpack.c.l.b16 %v263
  %v1250 = vunpack.c.h.b16 %v263
  %v1251 = vunpack.c.l.b16 %v264
  %v1252 = vunpack.c.h.b16 %v264
  %v1253 = vunpack.c.l.b16 %v265
  %v1254 = vunpack.c.l.b16 %v266
  %v1255 = vunpack.c.h.b16 %v266
  %v1256 = vunpack.c.l.b16 %v267
  %v1257 = vunpack.c.h.b16 %v267
  %v1258 = vunpack.c.l.b16 %v268
  %v1259 = vunpack.c.h.b16 %v268
  %v1260 = vunpack.c.l.b16 %v269
  %v1261 = vunpack.c.h.b16 %v269
  %v1262 = vunpack.c.l.b16 %v270
  %v1263 = vunpack.c.l.b16 %v271
  %v1264 = vunpack.c.h.b16 %v271
  %v1265 = vunpack.c.l.b16 %v272
  %v1266 = vunpack.c.h.b16 %v272
  %v1267 = vunpack.c.l.b16 %v273
  %v1268 = vunpack.c.h.b16 %v273
  %v1269 = vunpack.c.l.b16 %v274
  %v1270 = vunpack.c.h.b16 %v274
  %v1271 = vunpack.c.l.b16 %v275
  %v1272 = vunpack.c.l.b16 %v276
  %v1273 = vunpack.c.h.b16 %v276
  %v1274 = vunpack.c.l.b16 %v277
  %v1275 = vunpack.c.h.b16 %v277
  %v1276 = vunpack.c.l.b16 %v278
  %v1277 = vunpack.c.h.b16 %v278
  %v1278 = vunpack.c.l.b16 %v279
  %v1279 = vunpack.c.h.b16 %v279
  %v1280 = vunpack.c.l.b16 %v280
  %v1281 = vunpack.c.l.b16 %v281
  %v1282 = vunpack.c.h.b16 %v281
  %v1283 = vunpack.c.l.b16 %v282
  %v1284 = vunpack.c.h.b16 %v282
  %v1285 = vunpack.c.l.b16 %v283
  %v1286 = vunpack.c.h.b16 %v283
  %v1287 = vunpack.c.l.b16 %v284
  %v1288 = vunpack.c.h.b16 %v284
  %v1289 = vunpack.c.l.b16 %v285
  %v1290 = vunpack.c.l.b16 %v286
  %v1291 = vunpack.c.h.b16 %v286
  %v1292 = vunpack.c.l.b16 %v287
  %v1293 = vunpack.c.h.b16 %v287
  %v1294 = vunpack.c.l.b16 %v288
  %v1295 = vunpack.c.h.b16 %v288
  %v1296 = vunpack.c.l.b16 %v289
  %v1297 = vunpack.c.h.b16 %v289
  %v1298 = vunpack.c.l.b16 %v290
  %v1299 = vunpack.c.l.b16 %v291
  %v1300 = vunpack.c.h.b16 %v291
  %v1301 = vunpack.c.l.b16 %v292
  %v1302 = vunpack.c.h.b16 %v292
  %v1303 = vunpack.c.l.b16 %v293
  %v1304 = vunpack.c.h.b16 %v293
  %v1305 = vunpack.c.l.b16 %v294
  %v1306 = vunpack.c.h.b16 %v294
  %v1307 = vunpack.c.l.b16 %v295
  %v1308 = vunpack.c.l.b16 %v296
  %v1309 = vunpack.c.h.b16 %v296
  %v1310 = vunpack.c.l.b16 %v297
  %v1311 = vunpack.c.h.b16 %v297
  %v1312 = vunpack.c.l.b16 %v298
  %v1313 = vunpack.c.h.b16 %v298
  %v1314 = vunpack.c.l.b16 %v299
  %v1315 = vunpack.c.h.b16 %v299
  %v1316 = vunpack.c.l.b16 %v300
  %v1317 = vunpack.c.l.b16 %v301
  %v1318 = vunpack.c.h.b16 %v301
  %v1319 = vunpack.c.l.b16 %v302
  %v1320 = vunpack.c.h.b16 %v302
  %v1321 = vunpack.c.l.b16 %v303
  %v1322 = vunpack.c.h.b16 %v303
  %v1323 = vunpack.c.l.b16 %v304
  %v1324 = vunpack.c.h.b16 %v304
  %v1325 = vunpack.c.l.b16 %v305
  %v1326 = vunpack.c.l.b16 %v306
  %v1327 = vunpack.c.h.b16 %v306
  %v1328 = vunpack.c.l.b16 %v307
  %v1329 = vunpack.c.h.b16 %v307
  %v1330 = vunpack.c.l.b16 %v308
  %v1331 = vunpack.c.h.b16 %v308
  %v1332 = vunpack.c.l.b16 %v309
  %v1333 = vunpack.c.h.b16 %v309
  %v1334 = vunpack.c.l.b16 %v310
  %v1335 = vunpack.c.l.b16 %v311
  %v1336 = vunpack.c.h.b16 %v311
  %v1337 = vunpack.c.l.b16 %v312
  %v1338 = vunpack.c.h.b16 %v312
  %v1339 = vunpack.c.l.b16 %v313
  %v1340 = vunpack.c.h.b16 %v313
  %v1341 = vunpack.c.l.b16 %v314
  %v1342 = vunpack.c.h.b16 %v314
  %v1343 = vunpack.c.l.b16 %v315
  %v1344 = vunpack.c.l.b16 %v316
  %v1345 = vunpack.c.h.b16 %v316
  %v1346 = vunpack.c.l.b16 %v317
  %v1347 = vunpack.c.h.b16 %v317
  %v1348 = vunpack.c.l.b16 %v318
  %v1349 = vunpack.c.h.b16 %v318
  %v1350 = vunpack.c.l.b16 %v319
  %v1351 = vunpack.c.h.b16 %v319
  %v1352 = vunpack.c.l.b16 %v320
  %v1353 = vunpack.c.l.b16 %v321
  %v1354 = vunpack.c.h.b16 %v321
  %v1355 = vunpack.c.l.b16 %v322
  %v1356 = vunpack.c.h.b16 %v322
  %v1357 = vunpack.c.l.b16 %v323
  %v1358 = vunpack.c.h.b16 %v323
  %v1359 = vunpack.c.l.b16 %v324
  %v1360 = vunpack.c.h.b16 %v324
  %v1361 = vunpack.c.l.b16 %v325
  %v1362 = vunpack.c.l.b16 %v326
  %v1363 = vunpack.c.h.b16 %v326
  %v1364 = vunpack.c.l.b16 %v327
  %v1365 = vunpack.c.h.b16 %v327
  %v1366 = vunpack.c.l.b16 %v328
  %v1367 = vunpack.c.h.b16 %v328
  %v1368 = vunpack.c.l.b16 %v329
  %v1369 = vunpack.c.h.b16 %v329
  %v1370 = vunpack.c.l.b16 %v330
  %v1371 = vpack.c.b16 %v804, %v795
  %v1372 = vpack.c.b16 %v805, %v796
  %v1373 = vpack.c.b16 %v806, %v797
  %v1374 = vpack.c.b16 %v807, %v798
  %v1375 = vpack.c.b16 %v808, %v799
  %v1376 = vpack.c.b16 %v809, %v800
  %v1377 = vpack.c.b16 %v810, %v801
  %v1378 = vpack.c.b16 %v811, %v802
  %v1379 = vpack.c.b16 %v812, %v803
  %v1380 = vpack.c.b16 %v822, %v813
  %v1381 = vpack.c.b16 %v823, %v814
  %v1382 = vpack.c.b16 %v824, %v815
  %v1383 = vpack.c.b16 %v825, %v816
  %v1384 = vpack.c.b16 %v826, %v817
  %v1385 = vpack.c.b16 %v827, %v818
  %v1386 = vpack.c.b16 %v828, %v819
  %v1387 = vpack.c.b16 %v829, %v820
  %v1388 = vpack.c.b16 %v830, %v821
  %v1389 = vpack.c.b16 %v840, %v831
  %v1390 = vpack.c.b16 %v841, %v832
  %v1391 = vpack.c.b16 %v842, %v833
  %v1392 = vpack.c.b16 %v843, %v834
  %v1393 = vpack.c.b16 %v844, %v835
  %v1394 = vpack.c.b16 %v845, %v836
  %v1395 = vpack.c.b16 %v846, %v837
  %v1396 = vpack.c.b16 %v847, %v838
  %v1397 = vpack.c.b16 %v848, %v839
  %v1398 = vpack.c.b16 %v858, %v849
  %v1399 = vpack.c.b16 %v859, %v850
  %v1400 = vpack.c.b16 %v860, %v851
  %v1401 = vpack.c.b16 %v861, %v852
  %v1402 = vpack.c.b16 %v862, %v853
  %v1403 = vpack.c.b16 %v863, %v854
  %v1404 = vpack.c.b16 %v864, %v855
  %v1405 = vpack.c.b16 %v865, %v856
  %v1406 = vpack.c.b16 %v866, %v857
  %v1407 = vpack.c.b16 %v876, %v867
  %v1408 = vpack.c.b16 %v877, %v868
  %v1409 = vpack.c.b16 %v878, %v869
  %v1410 = vpack.c.b16 %v879, %v870
  %v1411 = vpack.c.b16 %v880, %v871
  %v1412 = vpack.c.b16 %v881, %v872
  %v1413 = vpack.c.b16 %v882, %v873
  %v1414 = vpack.c.b16 %v883, %v874
  %v1415 = vpack.c.b16 %v884, %v875
  %v1416 = vpack.c.b16 %v894, %v885
  %v1417 = vpack.c.b16 %v895, %v886
  %v1418 = vpack.c.b16 %v896, %v887
  %v1419 = vpack.c.b16 %v897, %v888
  %v1420 = vpack.c.b16 %v898, %v889
  %v1421 = vpack.c.b16 %v899, %v890
  %v1422 = vpack.c.b16 %v900, %v891
  %v1423 = vpack.c.b16 %v901, %v892
  %v1424 = vpack.c.b16 %v902, %v893
  %v1425 = vpack.c.b16 %v912, %v903
  %v1426 = vpack.c.b16 %v913, %v904
  %v1427 = vpack.c.b16 %v914, %v905
  %v1428 = vpack.c.b16 %v915, %v906
  %v1429 = vpack.c.b16 %v916, %v907
  %v1430 = vpack.c.b16 %v917, %v908
  %v1431 = vpack.c.b16 %v918, %v909
  %v1432 = vpack.c.b16 %v919, %v910
  %v1433 = vpack.c.b16 %v920, %v911
  %v1434 = vpack.c.b16 %v930, %v921
  %v1435 = vpack.c.b16 %v931, %v922
  %v1436 = vpack.c.b16 %v932, %v923
  %v1437 = vpack.c.b16 %v933, %v924
  %v1438 = vpack.c.b16 %v934, %v925
  %v1439 = vpack.c.b16 %v935, %v926
  %v1440 = vpack.c.b16 %v936, %v927
  %v1441 = vpack.c.b16 %v937, %v928
  %v1442 = vpack.c.b16 %v938, %v929
  %v1443 = vpack.c.b16 %v948, %v939
  %v1444 = vpack.c.b16 %v949, %v940
  %v1445 = vpack.c.b16 %v950, %v941
  %v1446 = vpack.c.b16 %v951, %v942
  %v1447 = vpack.c.b16 %v952, %v943
  %v1448 = vpack.c.b16 %v953, %v944
  %v1449 = vpack.c.b16 %v954, %v945
  %v1450 = vpack.c.b16 %v955, %v946
  %v1451 = vpack.c.b16 %v956, %v947
  %v1452 = vpack.c.b16 %v966, %v957
  %v1453 = vpack.c.b16 %v967, %v958
  %v1454 = vpack.c.b16 %v968, %v959
  %v1455 = vpack.c.b16 %v969, %v960
  %v1456 = vpack.c.b16 %v970, %v961
  %v1457 = vpack.c.b16 %v971, %v962
  %v1458 = vpack.c.b16 %v972, %v963
  %v1459 = vpack.c.b16 %v973, %v964
  %v1460 = vpack.c.b16 %v974, %v965
  %v1461 = vpack.c.b16 %v984, %v975
  %v1462 = vpack.c.b16 %v985, %v976
  %v1463 = vpack.c.b16 %v986, %v977
  %v1464 = vpack.c.b16 %v987, %v978
  %v1465 = vpack.c.b16 %v988, %v979
  %v1466 = vpack.c.b16 %v989, %v980
  %v1467 = vpack.c.b16 %v990, %v981
  %v1468 = vpack.c.b16 %v991, %v982
  %v1469 = vpack.c.b16 %v992, %v983
  %v1470 = vpack.c.b16 %v1002, %v993
  %v1471 = vpack.c.b16 %v1003, %v994
  %v1472 = vpack.c.b16 %v1004, %v995
  %v1473 = vpack.c.b16 %v1005, %v996
  %v1474 = vpack.c.b16 %v1006, %v997
  %v1475 = vpack.c.b16 %v1007, %v998
  %v1476 = vpack.c.b16 %v1008, %v999
  %v1477 = vpack.c.b16 %v1009, %v1000
  %v1478 = vpack.c.b16 %v1010, %v1001
  %v1479 = vpack.c.b16 %v1020, %v1011
  %v1480 = vpack.c.b16 %v1021, %v1012
  %v1481 = vpack.c.b16 %v1022, %v1013
  %v1482 = vpack.c.b16 %v1023, %v1014
  %v1483 = vpack.c.b16 %v1024, %v1015
  %v1484 = vpack.c.b16 %v1025, %v1016
  %v1485 = vpack.c.b16 %v1026, %v1017
  %v1486 = vpack.c.b16 %v1027, %v1018
  %v1487 = vpack.c.b16 %v1028, %v1019
  %v1488 = vpack.c.b16 %v1038, %v1029
  %v1489 = vpack.c.b16 %v1039, %v1030
  %v1490 = vpack.c.b16 %v1040, %v1031
  %v1491 = vpack.c.b16 %v1041, %v1032
  %v1492 = vpack.c.b16 %v1042, %v1033
  %v1493 = vpack.c.b16 %v1043, %v1034
  %v1494 = vpack.c.b16 %v1044, %v1035
  %v1495 = vpack.c.b16 %v1045, %v1036
  %v1496 = vpack.c.b16 %v1046, %v1037
  %v1497 = vpack.c.b16 %v1056, %v1047
  %v1498 = vpack.c.b16 %v1057, %v1048
  %v1499 = vpack.c.b16 %v1058, %v1049
  %v1500 = vpack.c.b16 %v1059, %v1050
  %v1501 = vpack.c.b16 %v1060, %v1051
  %v1502 = vpack.c.b16 %v1061, %v1052
  %v1503 = vpack.c.b16 %v1062, %v1053
  %v1504 = vpack.c.b16 %v1063, %v1054
  %v1505 = vpack.c.b16 %v1064, %v1055
  %v1506 = vpack.c.b16 %v1074, %v1065
  %v1507 = vpack.c.b16 %v1075, %v1066
  %v1508 = vpack.c.b16 %v1076, %v1067
  %v1509 = vpack.c.b16 %v1077, %v1068
  %v1510 = vpack.c.b16 %v1078, %v1069
  %v1511 = vpack.c.b16 %v1079, %v1070
  %v1512 = vpack.c.b16 %v1080, %v1071
  %v1513 = vpack.c.b16 %v1081, %v1072
  %v1514 = vpack.c.b16 %v1082, %v1073
  %v1515 = vpack.c.b16 %v1092, %v1083
  %v1516 = vpack.c.b16 %v1093, %v1084
  %v1517 = vpack.c.b16 %v1094, %v1085
  %v1518 = vpack.c.b16 %v1095, %v1086
  %v1519 = vpack.c.b16 %v1096, %v1087
  %v1520 = vpack.c.b16 %v1097, %v1088
  %v1521 = vpack.c.b16 %v1098, %v1089
  %v1522 = vpack.c.b16 %v1099, %v1090
  %v1523 = vpack.c.b16 %v1100, %v1091
  %v1524 = vpack.c.b16 %v1110, %v1101
  %v1525 = vpack.c.b16 %v1111, %v1102
  %v1526 = vpack.c.b16 %v1112, %v1103
  %v1527 = vpack.c.b16 %v1113, %v1104
  %v1528 = vpack.c.b16 %v1114, %v1105
  %v1529 = vpack.c.b16 %v1115, %v1106
  %v1530 = vpack.c.b16 %v1116, %v1107
  %v1531 = vpack.c.b16 %v1117, %v1108
  %v1532 = vpack.c.b16 %v1118, %v1109
  %v1533 = vpack.c.b16 %v1128, %v1119
  %v1534 = vpack.c.b16 %v1129, %v1120
  %v1535 = vpack.c.b16 %v1130, %v1121
  %v1536 = vpack.c.b16 %v1131, %v1122
  %v1537 = vpack.c.b16 %v1132, %v1123
  %v1538 = vpack.c.b16 %v1133, %v1124
  %v1539 = vpack.c.b16 %v1134, %v1125
  %v1540 = vpack.c.b16 %v1135, %v1126
  %v1541 = vpack.c.b16 %v1136, %v1127
  %v1542 = vpack.c.b16 %v1146, %v1137
  %v1543 = vpack.c.b16 %v1147, %v1138
  %v1544 = vpack.c.b16 %v1148, %v1139
  %v1545 = vpack.c.b16 %v1149, %v1140
  %v1546 = vpack.c.b16 %v1150, %v1141
  %v1547 = vpack.c.b16 %v1151, %v1142
  %v1548 = vpack.c.b16 %v1152, %v1143
  %v1549 = vpack.c.b16 %v1153, %v1144
  %v1550 = vpack.c.b16 %v1154, %v1145
  %v1551 = vpack.c.b16 %v1164, %v1155
  %v1552 = vpack.c.b16 %v1165, %v1156
  %v1553 = vpack.c.b16 %v1166, %v1157
  %v1554 = vpack.c.b16 %v1167, %v1158
  %v1555 = vpack.c.b16 %v1168, %v1159
  %v1556 = vpack.c.b16 %v1169, %v1160
  %v1557 = vpack.c.b16 %v1170, %v1161
  %v1558 = vpack.c.b16 %v1171, %v1162
  %v1559 = vpack.c.b16 %v1172, %v1163
  %v1560 = vpack.c.b16 %v1182, %v1173
  %v1561 = vpack.c.b16 %v1183, %v1174
  %v1562 = vpack.c.b16 %v1184, %v1175
  %v1563 = vpack.c.b16 %v1185, %v1176
  %v1564 = vpack.c.b16 %v1186, %v1177
  %v1565 = vpack.c.b16 %v1187, %v1178
  %v1566 = vpack.c.b16 %v1188, %v1179
  %v1567 = vpack.c.b16 %v1189, %v1180
  %v1568 = vpack.c.b16 %v1190, %v1181
  %v1569 = vpack.c.b16 %v1200, %v1191
  %v1570 = vpack.c.b16 %v1201, %v1192
  %v1571 = vpack.c.b16 %v1202, %v1193
  %v1572 = vpack.c.b16 %v1203, %v1194
  %v1573 = vpack.c.b16 %v1204, %v1195
  %v1574 = vpack.c.b16 %v1205, %v1196
  %v1575 = vpack.c.b16 %v1206, %v1197
  %v1576 = vpack.c.b16 %v1207, %v1198
  %v1577 = vpack.c.b16 %v1208, %v1199
  %v1578 = vpack.c.b16 %v1218, %v1209
  %v1579 = vpack.c.b16 %v1219, %v1210
  %v1580 = vpack.c.b16 %v1220, %v1211
  %v1581 = vpack.c.b16 %v1221, %v1212
  %v1582 = vpack.c.b16 %v1222, %v1213
  %v1583 = vpack.c.b16 %v1223, %v1214
  %v1584 = vpack.c.b16 %v1224, %v1215
  %v1585 = vpack.c.b16 %v1225, %v1216
  %v1586 = vpack.c.b16 %v1226, %v1217
  %v1587 = vpack.c.b16 %v1236, %v1227
  %v1588 = vpack.c.b16 %v1237, %v1228
  %v1589 = vpack.c.b16 %v1238, %v1229
  %v1590 = vpack.c.b16 %v1239, %v1230
  %v1591 = vpack.c.b16 %v1240, %v1231
  %v1592 = vpack.c.b16 %v1241, %v1232
  %v1593 = vpack.c.b16 %v1242, %v1233
  %v1594 = vpack.c.b16 %v1243, %v1234
  %v1595 = vpack.c.b16 %v1244, %v1235
  %v1596 = vpack.c.b16 %v1254, %v1245
  %v1597 = vpack.c.b16 %v1255, %v1246
  %v1598 = vpack.c.b16 %v1256, %v1247
  %v1599 = vpack.c.b16 %v1257, %v1248
  %v1600 = vpack.c.b16 %v1258, %v1249
  %v1601 = vpack.c.b16 %v1259, %v1250
  %v1602 = vpack.c.b16 %v1260, %v1251
  %v1603 = vpack.c.b16 %v1261, %v1252
  %v1604 = vpack.c.b16 %v1262, %v1253
  %v1605 = vpack.c.b16 %v1272, %v1263
  %v1606 = vpack.c.b16 %v1273, %v1264
  %v1607 = vpack.c.b16 %v1274, %v1265
  %v1608 = vpack.c.b16 %v1275, %v1266
  %v1609 = vpack.c.b16 %v1276, %v1267
  %v1610 = vpack.c.b16 %v1277, %v1268
  %v1611 = vpack.c.b16 %v1278, %v1269
  %v1612 = vpack.c.b16 %v1279, %v1270
  %v1613 = vpack.c.b16 %v1280, %v1271
  %v1614 = vpack.c.b16 %v1290, %v1281
  %v1615 = vpack.c.b16 %v1291, %v1282
  %v1616 = vpack.c.b16 %v1292, %v1283
  %v1617 = vpack.c.b16 %v1293, %v1284
  %v1618 = vpack.c.b16 %v1294, %v1285
  %v1619 = vpack.c.b16 %v1295, %v1286
  %v1620 = vpack.c.b16 %v1296, %v1287
  %v1621 = vpack.c.b16 %v1297, %v1288
  %v1622 = vpack.c.b16 %v1298, %v1289
  %v1623 = vpack.c.b16 %v1308, %v1299
  %v1624 = vpack.c.b16 %v1309, %v1300
  %v1625 = vpack.c.b16 %v1310, %v1301
  %v1626 = vpack.c.b16 %v1311, %v1302
  %v1627 = vpack.c.b16 %v1312, %v1303
  %v1628 = vpack.c.b16 %v1313, %v1304
  %v1629 = vpack.c.b16 %v1314, %v1305
  %v1630 = vpack.c.b16 %v1315, %v1306
  %v1631 = vpack.c.b16 %v1316, %v1307
  %v1632 = vpack.c.b16 %v1326, %v1317
  %v1633 = vpack.c.b16 %v1327, %v1318
  %v1634 = vpack.c.b16 %v1328, %v1319
  %v1635 = vpack.c.b16 %v1329, %v1320
  %v1636 = vpack.c.b16 %v1330, %v1321
  %v1637 = vpack.c.b16 %v1331, %v1322
  %v1638 = vpack.c.b16 %v1332, %v1323
  %v1639 = vpack.c.b16 %v1333, %v1324
  %v1640 = vpack.c.b16 %v1334, %v1325
  %v1641 = vpack.c.b16 %v1344, %v1335
  %v1642 = vpack.c.b16 %v1345, %v1336
  %v1643 = vpack.c.b16 %v1346, %v1337
  %v1644 = vpack.c.b16 %v1347, %v1338
  %v1645 = vpack.c.b16 %v1348, %v1339
  %v1646 = vpack.c.b16 %v1349, %v1340
  %v1647 = vpack.c.b16 %v1350, %v1341
  %v1648 = vpack.c.b16 %v1351, %v1342
  %v1649 = vpack.c.b16 %v1352, %v1343
  %v1650 = vpack.c.b16 %v1362, %v1353
  %v1651 = vpack.c.b16 %v1363, %v1354
  %v1652 = vpack.c.b16 %v1364, %v1355
  %v1653 = vpack.c.b16 %v1365, %v1356
  %v1654 = vpack.c.b16 %v1366, %v1357
  %v1655 = vpack.c.b16 %v1367, %v1358
  %v1656 = vpack.c.b16 %v1368, %v1359
  %v1657 = vpack.c.b16 %v1369, %v1360
  %v1658 = vpack.c.b16 %v1370, %v1361
  %v2091 = vunpack.c.l.b16 %v331
  %v2092 = vunpack.c.l.b16 %v332
  %v2093 = vunpack.c.l.b16 %v333
  %v2094 = vunpack.c.l.b16 %v334
  %v2095 = vunpack.c.l.b16 %v335
  %v2096 = vunpack.c.l.b16 %v336
  %v2097 = vunpack.c.l.b16 %v337
  %v2098 = vunpack.c.l.b16 %v338
  %v2099 = vunpack.c.l.b16 %v339
  %v2100 = vunpack.c.l.b16 %v340
  %v2101 = vunpack.c.l.b16 %v341
  %v2102 = vunpack.c.l.b16 %v342
  %v2103 = vunpack.c.l.b16 %v343
  %v2104 = vunpack.c.l.b16 %v344
  %v2105 = vunpack.c.l.b16 %v345
  %v2106 = vunpack.c.l.b16 %v346
  %v2107 = vunpack.c.l.b16 %v347
  %v2108 = vunpack.c.l.b16 %v348
  %v2109 = vunpack.c.l.b16 %v349
  %v2110 = vunpack.c.l.b16 %v350
  %v2111 = vunpack.c.l.b16 %v351
  %v2112 = vunpack.c.l.b16 %v352
  %v2113 = vunpack.c.l.b16 %v353
  %v2114 = vunpack.c.l.b16 %v354
  %v2115 = vunpack.c.l.b16 %v355
  %v2116 = vunpack.c.l.b16 %v356
  %v2117 = vunpack.c.l.b16 %v357
  %v2118 = vunpack.c.l.b16 %v358
  %v2119 = vunpack.c.l.b16 %v359
  %v2120 = vunpack.c.l.b16 %v360
  %v2121 = vunpack.c.l.b16 %v361
  %v2122 = vunpack.c.l.b16 %v362
  %v2123 = vunpack.c.l.b16 %v363
  %v2124 = vunpack.c.l.b16 %v364
  %v2125 = vunpack.c.l.b16 %v365
  %v2126 = vunpack.c.l.b16 %v366
  %v2127 = vunpack.c.l.b16 %v367
  %v2128 = vunpack.c.l.b16 %v368
  %v2129 = vunpack.c.l.b16 %v369
  %v2130 = vunpack.c.l.b16 %v370
  %v2131 = vunpack.c.l.b16 %v371
  %v2132 = vunpack.c.l.b16 %v372
  %v2133 = vunpack.c.l.b16 %v373
  %v2134 = vunpack.c.l.b16 %v374
  %v2135 = vunpack.c.l.b16 %v375
  %v2136 = vunpack.c.l.b16 %v376
  %v2137 = vunpack.c.l.b16 %v377
  %v2138 = vunpack.c.l.b16 %v378
  %v2139 = vunpack.c.l.b16 %v379
  %v2140 = vunpack.c.l.b16 %v380
  %v2141 = vunpack.c.l.b16 %v381
  %v2142 = vunpack.c.l.b16 %v382
  %v2143 = vunpack.c.l.b16 %v383
  %v2144 = vunpack.c.l.b16 %v384
  %v2145 = vunpack.c.l.b16 %v385
  %v2146 = vunpack.c.l.b16 %v386
  %v2147 = vunpack.c.l.b16 %v387
  %v2148 = vunpack.c.l.b16 %v388
  %v2149 = vunpack.c.l.b16 %v389
  %v2150 = vunpack.c.l.b16 %v390
  %v2151 = vunpack.c.l.b16 %v391
  %v2152 = vunpack.c.l.b16 %v392
  %v2153 = vunpack.c.l.b16 %v393
  %v2154 = vunpack.c.l.b16 %v394
  %v2155 = vunpack.c.l.b16 %v395
  %v2156 = vunpack.c.l.b16 %v396
  %v2157 = vunpack.c.l.b16 %v397
  %v2158 = vunpack.c.l.b16 %v398
  %v2159 = vunpack.c.l.b16 %v399
  %v2160 = vunpack.c.l.b16 %v400
  %v2161 = vunpack.c.l.b16 %v401
  %v2162 = vunpack.c.l.b16 %v402
  %v2163 = vunpack.c.l.b16 %v403
  %v2164 = vunpack.c.l.b16 %v404
  %v2165 = vunpack.c.l.b16 %v405
  %v2166 = vunpack.c.l.b16 %v406
  %v2167 = vunpack.c.l.b16 %v407
  %v2168 = vunpack.c.l.b16 %v408
  %v2169 = vunpack.c.l.b16 %v409
  %v2170 = vunpack.c.l.b16 %v410
  %v2171 = vunpack.c.l.b16 %v411
  %v2172 = vunpack.c.l.b16 %v412
  %v2173 = vunpack.c.l.b16 %v413
  %v2174 = vunpack.c.l.b16 %v414
  %v2175 = vunpack.c.l.b16 %v415
  %v2176 = vunpack.c.l.b16 %v416
  %v2177 = vunpack.c.l.b16 %v417
  %v2178 = vunpack.c.l.b16 %v418
  %v2179 = vunpack.c.l.b16 %v419
  %v2180 = vunpack.c.l.b16 %v420
  %v2181 = vunpack.c.l.b16 %v421
  %v2182 = vunpack.c.l.b16 %v422
  %v2183 = vunpack.c.l.b16 %v423
  %v2184 = vunpack.c.l.b16 %v424
  %v2185 = vunpack.c.l.b16 %v425
  %v2186 = vunpack.c.l.b16 %v426
  %v2187 = vunpack.c.l.b16 %v427
  %v2188 = vunpack.c.l.b16 %v428
  %v2189 = vunpack.c.l.b16 %v429
  %v2190 = vunpack.c.l.b16 %v430
  %v2191 = vunpack.c.l.b16 %v431
  %v2192 = vunpack.c.l.b16 %v432
  %v2193 = vunpack.c.l.b16 %v433
  %v2194 = vunpack.c.l.b16 %v434
  %v2195 = vunpack.c.l.b16 %v435
  %v2196 = vunpack.c.l.b16 %v436
  %v2197 = vunpack.c.l.b16 %v437
  %v2198 = vunpack.c.l.b16 %v438
  %v2199 = vunpack.c.l.b16 %v439
  %v2200 = vunpack.c.l.b16 %v440
  %v2201 = vunpack.c.l.b16 %v441
  %v2202 = vunpack.c.l.b16 %v442
  %v2203 = vunpack.c.l.b16 %v443
  %v2204 = vunpack.c.l.b16 %v444
  %v2205 = vunpack.c.l.b16 %v445
  %v2206 = vunpack.c.l.b16 %v446
  %v2207 = vunpack.c.l.b16 %v447
  %v2208 = vunpack.c.l.b16 %v448
  %v2209 = vunpack.c.l.b16 %v449
  %v2210 = vunpack.c.l.b16 %v450
  %v2211 = vunpack.c.l.b16 %v451
  %v2212 = vunpack.c.l.b16 %v452
  %v2213 = vunpack.c.l.b16 %v453
  %v2214 = vunpack.c.l.b16 %v454
  %v2215 = vunpack.c.l.b16 %v455
  %v2216 = vunpack.c.l.b16 %v456
  %v2217 = vunpack.c.l.b16 %v457
  %v2218 = vunpack.c.l.b16 %v458
  %v2219 = vunpack.c.l.b16 %v459
  %v2220 = vunpack.c.l.b16 %v460
  %v2221 = vunpack.c.l.b16 %v461
  %v2222 = vunpack.c.l.b16 %v462
  %v2223 = vunpack.c.l.b16 %v463
  %v2224 = vunpack.c.l.b16 %v464
  %v2225 = vunpack.c.l.b16 %v465
  %v2226 = vunpack.c.l.b16 %v466
  %v2227 = vunpack.c.l.b16 %v467
  %v2228 = vunpack.c.l.b16 %v468
  %v2229 = vunpack.c.l.b16 %v469
  %v2230 = vunpack.c.l.b16 %v470
  %v2231 = vunpack.c.l.b16 %v471
  %v2232 = vunpack.c.l.b16 %v472
  %v2233 = vunpack.c.l.b16 %v473
  %v2234 = vunpack.c.l.b16 %v474
  %v2235 = vpack.c.b16 %v2092, %v2091
  %v2236 = vpack.c.b16 %v2094, %v2093
  %v2237 = vpack.c.b16 %v2096, %v2095
  %v2238 = vpack.c.b16 %v2098, %v2097
  %v2239 = vpack.c.b16 %v2100, %v2099
  %v2240 = vpack.c.b16 %v2102, %v2101
  %v2241 = vpack.c.b16 %v2104, %v2103
  %v2242 = vpack.c.b16 %v2106, %v2105
  %v2243 = vpack.c.b16 %v2108, %v2107
  %v2244 = vpack.c.b16 %v2110, %v2109
  %v2245 = vpack.c.b16 %v2112, %v2111
  %v2246 = vpack.c.b16 %v2114, %v2113
  %v2247 = vpack.c.b16 %v2116, %v2115
  %v2248 = vpack.c.b16 %v2118, %v2117
  %v2249 = vpack.c.b16 %v2120, %v2119
  %v2250 = vpack.c.b16 %v2122, %v2121
  %v2251 = vpack.c.b16 %v2124, %v2123
  %v2252 = vpack.c.b16 %v2126, %v2125
  %v2253 = vpack.c.b16 %v2128, %v2127
  %v2254 = vpack.c.b16 %v2130, %v2129
  %v2255 = vpack.c.b16 %v2132, %v2131
  %v2256 = vpack.c.b16 %v2134, %v2133
  %v2257 = vpack.c.b16 %v2136, %v2135
  %v2258 = vpack.c.b16 %v2138, %v2137
  %v2259 = vpack.c.b16 %v2140, %v2139
  %v2260 = vpack.c.b16 %v2142, %v2141
  %v2261 = vpack.c.b16 %v2144, %v2143
  %v2262 = vpack.c.b16 %v2146, %v2145
  %v2263 = vpack.c.b16 %v2148, %v2147
  %v2264 = vpack.c.b16 %v2150, %v2149
  %v2265 = vpack.c.b16 %v2152, %v2151
  %v2266 = vpack.c.b16 %v2154, %v2153
  %v2267 = vpack.c.b16 %v2156, %v2155
  %v2268 = vpack.c.b16 %v2158, %v2157
  %v2269 = vpack.c.b16 %v2160, %v2159
  %v2270 = vpack.c.b16 %v2162, %v2161
  %v2271 = vpack.c.b16 %v2164, %v2163
  %v2272 = vpack.c.b16 %v2166, %v2165
  %v2273 = vpack.c.b16 %v2168, %v2167
  %v2274 = vpack.c.b16 %v2170, %v2169
  %v2275 = vpack.c.b16 %v2172, %v2171
  %v2276 = vpack.c.b16 %v2174, %v2173
  %v2277 = vpack.c.b16 %v2176, %v2175
  %v2278 = vpack.c.b16 %v2178, %v2177
  %v2279 = vpack.c.b16 %v2180, %v2179
  %v2280 = vpack.c.b16 %v2182, %v2181
  %v2281 = vpack.c.b16 %v2184, %v2183
  %v2282 = vpack.c.b16 %v2186, %v2185
  %v2283 = vpack.c.b16 %v2188, %v2187
  %v2284 = vpack.c.b16 %v2190, %v2189
  %v2285 = vpack.c.b16 %v2192, %v2191
  %v2286 = vpack.c.b16 %v2194, %v2193
  %v2287 = vpack.c.b16 %v2196, %v2195
  %v2288 = vpack.c.b16 %v2198, %v2197
  %v2289 = vpack.c.b16 %v2200, %v2199
  %v2290 = vpack.c.b16 %v2202, %v2201
  %v2291 = vpack.c.b16 %v2204, %v2203
  %v2292 = vpack.c.b16 %v2206, %v2205
  %v2293 = vpack.c.b16 %v2208, %v2207
  %v2294 = vpack.c.b16 %v2210, %v2209
  %v2295 = vpack.c.b16 %v2212, %v2211
  %v2296 = vpack.c.b16 %v2214, %v2213
  %v2297 = vpack.c.b16 %v2216, %v2215
  %v2298 = vpack.c.b16 %v2218, %v2217
  %v2299 = vpack.c.b16 %v2220, %v2219
  %v2300 = vpack.c.b16 %v2222, %v2221
  %v2301 = vpack.c.b16 %v2224, %v2223
  %v2302 = vpack.c.b16 %v2226, %v2225
  %v2303 = vpack.c.b16 %v2228, %v2227
  %v2304 = vpack.c.b16 %v2230, %v2229
  %v2305 = vpack.c.b16 %v2232, %v2231
  %v2306 = vpack.c.b16 %v2234, %v2233
  %2379 = vmatpush.bf16.msra.mxu0 %v2242
  %2380 = vmatpush.bf16.msra.mxu0 %v2241
  %2381 = vmatpush.bf16.msra.mxu0 %v2240
  %2382 = vmatpush.bf16.msra.mxu0 %v2239
  %2383 = vmatpush.bf16.msra.mxu0 %v2238
  %2384 = vmatpush.bf16.msra.mxu0 %v2237
  %2385 = vmatpush.bf16.msra.mxu0 %v2236
  %2386 = vmatpush.bf16.msra.mxu0 %v2235
  %2387 = vmatmul.bf16.gmra.mxu0 %v1371
  %v2388 = vpop.f32.mrf.mxu0
  %v2389 = vadd.f32 0.0, %v2388
  %v2390 = vpop.f32.mrf.mxu0
  %v2391 = vadd.f32 0.0, %v2390
  %2392 = vmatmul.bf16.gmra.mxu0 %v1380
  %v2393 = vpop.f32.mrf.mxu0
  %v2394 = vadd.f32 0.0, %v2393
  %v2395 = vpop.f32.mrf.mxu0
  %v2396 = vadd.f32 0.0, %v2395
  %2397 = vmatmul.bf16.gmra.mxu0 %v1389
  %v2398 = vpop.f32.mrf.mxu0
  %v2399 = vadd.f32 0.0, %v2398
  %v2400 = vpop.f32.mrf.mxu0
  %v2401 = vadd.f32 0.0, %v2400
  %2402 = vmatmul.bf16.gmra.mxu0 %v1398
  %v2403 = vpop.f32.mrf.mxu0
  %v2404 = vadd.f32 0.0, %v2403
  %v2405 = vpop.f32.mrf.mxu0
  %v2406 = vadd.f32 0.0, %v2405
  %2407 = vmatmul.bf16.gmra.mxu0 %v1407
  %v2408 = vpop.f32.mrf.mxu0
  %v2409 = vadd.f32 0.0, %v2408
  %v2410 = vpop.f32.mrf.mxu0
  %v2411 = vadd.f32 0.0, %v2410
  %2412 = vmatmul.bf16.gmra.mxu0 %v1416
  %v2413 = vpop.f32.mrf.mxu0
  %v2414 = vadd.f32 0.0, %v2413
  %v2415 = vpop.f32.mrf.mxu0
  %v2416 = vadd.f32 0.0, %v2415
  %2417 = vmatmul.bf16.gmra.mxu0 %v1425
  %v2418 = vpop.f32.mrf.mxu0
  %v2419 = vadd.f32 0.0, %v2418
  %v2420 = vpop.f32.mrf.mxu0
  %v2421 = vadd.f32 0.0, %v2420
  %2422 = vmatmul.bf16.gmra.mxu0 %v1434
  %v2423 = vpop.f32.mrf.mxu0
  %v2424 = vadd.f32 0.0, %v2423
  %v2425 = vpop.f32.mrf.mxu0
  %v2426 = vadd.f32 0.0, %v2425
  %2427 = vmatmul.bf16.gmra.mxu0 %v1443
  %v2428 = vpop.f32.mrf.mxu0
  %v2429 = vadd.f32 0.0, %v2428
  %v2430 = vpop.f32.mrf.mxu0
  %v2431 = vadd.f32 0.0, %v2430
  %2432 = vmatmul.bf16.gmra.mxu0 %v1452
  %v2433 = vpop.f32.mrf.mxu0
  %v2434 = vadd.f32 0.0, %v2433
  %v2435 = vpop.f32.mrf.mxu0
  %v2436 = vadd.f32 0.0, %v2435
  %2437 = vmatmul.bf16.gmra.mxu0 %v1461
  %v2438 = vpop.f32.mrf.mxu0
  %v2439 = vadd.f32 0.0, %v2438
  %v2440 = vpop.f32.mrf.mxu0
  %v2441 = vadd.f32 0.0, %v2440
  %2442 = vmatmul.bf16.gmra.mxu0 %v1470
  %v2443 = vpop.f32.mrf.mxu0
  %v2444 = vadd.f32 0.0, %v2443
  %v2445 = vpop.f32.mrf.mxu0
  %v2446 = vadd.f32 0.0, %v2445
  %2447 = vmatmul.bf16.gmra.mxu0 %v1479
  %v2448 = vpop.f32.mrf.mxu0
  %v2449 = vadd.f32 0.0, %v2448
  %v2450 = vpop.f32.mrf.mxu0
  %v2451 = vadd.f32 0.0, %v2450
  %2452 = vmatmul.bf16.gmra.mxu0 %v1488
  %v2453 = vpop.f32.mrf.mxu0
  %v2454 = vadd.f32 0.0, %v2453
  %v2455 = vpop.f32.mrf.mxu0
  %v2456 = vadd.f32 0.0, %v2455
  %2457 = vmatmul.bf16.gmra.mxu0 %v1497
  %v2458 = vpop.f32.mrf.mxu0
  %v2459 = vadd.f32 0.0, %v2458
  %v2460 = vpop.f32.mrf.mxu0
  %v2461 = vadd.f32 0.0, %v2460
  %2462 = vmatmul.bf16.gmra.mxu0 %v1506
  %v2463 = vpop.f32.mrf.mxu0
  %v2464 = vadd.f32 0.0, %v2463
  %v2465 = vpop.f32.mrf.mxu0
  %v2466 = vadd.f32 0.0, %v2465
  %2467 = vmatmul.bf16.gmra.mxu0 %v1515
  %v2468 = vpop.f32.mrf.mxu0
  %v2469 = vadd.f32 0.0, %v2468
  %v2470 = vpop.f32.mrf.mxu0
  %v2471 = vadd.f32 0.0, %v2470
  %2472 = vmatmul.bf16.gmra.mxu0 %v1524
  %v2473 = vpop.f32.mrf.mxu0
  %v2474 = vadd.f32 0.0, %v2473
  %v2475 = vpop.f32.mrf.mxu0
  %v2476 = vadd.f32 0.0, %v2475
  %2477 = vmatmul.bf16.gmra.mxu0 %v1533
  %v2478 = vpop.f32.mrf.mxu0
  %v2479 = vadd.f32 0.0, %v2478
  %v2480 = vpop.f32.mrf.mxu0
  %v2481 = vadd.f32 0.0, %v2480
  %2482 = vmatmul.bf16.gmra.mxu0 %v1542
  %v2483 = vpop.f32.mrf.mxu0
  %v2484 = vadd.f32 0.0, %v2483
  %v2485 = vpop.f32.mrf.mxu0
  %v2486 = vadd.f32 0.0, %v2485
  %2487 = vmatmul.bf16.gmra.mxu0 %v1551
  %v2488 = vpop.f32.mrf.mxu0
  %v2489 = vadd.f32 0.0, %v2488
  %v2490 = vpop.f32.mrf.mxu0
  %v2491 = vadd.f32 0.0, %v2490
  %2492 = vmatmul.bf16.gmra.mxu0 %v1560
  %v2493 = vpop.f32.mrf.mxu0
  %v2494 = vadd.f32 0.0, %v2493
  %v2495 = vpop.f32.mrf.mxu0
  %v2496 = vadd.f32 0.0, %v2495
  %2497 = vmatmul.bf16.gmra.mxu0 %v1569
  %v2498 = vpop.f32.mrf.mxu0
  %v2499 = vadd.f32 0.0, %v2498
  %v2500 = vpop.f32.mrf.mxu0
  %v2501 = vadd.f32 0.0, %v2500
  %2502 = vmatmul.bf16.gmra.mxu0 %v1578
  %v2503 = vpop.f32.mrf.mxu0
  %v2504 = vadd.f32 0.0, %v2503
  %v2505 = vpop.f32.mrf.mxu0
  %v2506 = vadd.f32 0.0, %v2505
  %2507 = vmatmul.bf16.gmra.mxu0 %v1587
  %v2508 = vpop.f32.mrf.mxu0
  %v2509 = vadd.f32 0.0, %v2508
  %v2510 = vpop.f32.mrf.mxu0
  %v2511 = vadd.f32 0.0, %v2510
  %2512 = vmatmul.bf16.gmra.mxu0 %v1596
  %v2513 = vpop.f32.mrf.mxu0
  %v2514 = vadd.f32 0.0, %v2513
  %v2515 = vpop.f32.mrf.mxu0
  %v2516 = vadd.f32 0.0, %v2515
  %2517 = vmatmul.bf16.gmra.mxu0 %v1605
  %v2518 = vpop.f32.mrf.mxu0
  %v2519 = vadd.f32 0.0, %v2518
  %v2520 = vpop.f32.mrf.mxu0
  %v2521 = vadd.f32 0.0, %v2520
  %2522 = vmatmul.bf16.gmra.mxu0 %v1614
  %v2523 = vpop.f32.mrf.mxu0
  %v2524 = vadd.f32 0.0, %v2523
  %v2525 = vpop.f32.mrf.mxu0
  %v2526 = vadd.f32 0.0, %v2525
  %2527 = vmatmul.bf16.gmra.mxu0 %v1623
  %v2528 = vpop.f32.mrf.mxu0
  %v2529 = vadd.f32 0.0, %v2528
  %v2530 = vpop.f32.mrf.mxu0
  %v2531 = vadd.f32 0.0, %v2530
  %2532 = vmatmul.bf16.gmra.mxu0 %v1632
  %v2533 = vpop.f32.mrf.mxu0
  %v2534 = vadd.f32 0.0, %v2533
  %v2535 = vpop.f32.mrf.mxu0
  %v2536 = vadd.f32 0.0, %v2535
  %2537 = vmatmul.bf16.gmra.mxu0 %v1641
  %v2538 = vpop.f32.mrf.mxu0
  %v2539 = vadd.f32 0.0, %v2538
  %v2540 = vpop.f32.mrf.mxu0
  %v2541 = vadd.f32 0.0, %v2540
  %2542 = vmatmul.bf16.gmra.mxu0 %v1650
  %v2543 = vpop.f32.mrf.mxu0
  %v2544 = vadd.f32 0.0, %v2543
  %v2545 = vpop.f32.mrf.mxu0
  %v2546 = vadd.f32 0.0, %v2545
  %2547 = vdwg.mxu0
  %2548 = vmatpush.bf16.msra.mxu0 %v2250
  %2549 = vmatpush.bf16.msra.mxu0 %v2249
  %2550 = vmatpush.bf16.msra.mxu0 %v2248
  %2551 = vmatpush.bf16.msra.mxu0 %v2247
  %2552 = vmatpush.bf16.msra.mxu0 %v2246
  %2553 = vmatpush.bf16.msra.mxu0 %v2245
  %2554 = vmatpush.bf16.msra.mxu0 %v2244
  %2555 = vmatpush.bf16.msra.mxu0 %v2243
  %2556 = vmatmul.bf16.gmra.mxu0 %v1372
  %v2557 = vpop.f32.mrf.mxu0
  %v2558 = vadd.f32 %v2389, %v2557
  %v2559 = vpop.f32.mrf.mxu0
  %v2560 = vadd.f32 %v2391, %v2559
  %2561 = vmatmul.bf16.gmra.mxu0 %v1381
  %v2562 = vpop.f32.mrf.mxu0
  %v2563 = vadd.f32 %v2394, %v2562
  %v2564 = vpop.f32.mrf.mxu0
  %v2565 = vadd.f32 %v2396, %v2564
  %2566 = vmatmul.bf16.gmra.mxu0 %v1390
  %v2567 = vpop.f32.mrf.mxu0
  %v2568 = vadd.f32 %v2399, %v2567
  %v2569 = vpop.f32.mrf.mxu0
  %v2570 = vadd.f32 %v2401, %v2569
  %2571 = vmatmul.bf16.gmra.mxu0 %v1399
  %v2572 = vpop.f32.mrf.mxu0
  %v2573 = vadd.f32 %v2404, %v2572
  %v2574 = vpop.f32.mrf.mxu0
  %v2575 = vadd.f32 %v2406, %v2574
  %2576 = vmatmul.bf16.gmra.mxu0 %v1408
  %v2577 = vpop.f32.mrf.mxu0
  %v2578 = vadd.f32 %v2409, %v2577
  %v2579 = vpop.f32.mrf.mxu0
  %v2580 = vadd.f32 %v2411, %v2579
  %2581 = vmatmul.bf16.gmra.mxu0 %v1417
  %v2582 = vpop.f32.mrf.mxu0
  %v2583 = vadd.f32 %v2414, %v2582
  %v2584 = vpop.f32.mrf.mxu0
  %v2585 = vadd.f32 %v2416, %v2584
  %2586 = vmatmul.bf16.gmra.mxu0 %v1426
  %v2587 = vpop.f32.mrf.mxu0
  %v2588 = vadd.f32 %v2419, %v2587
  %v2589 = vpop.f32.mrf.mxu0
  %v2590 = vadd.f32 %v2421, %v2589
  %2591 = vmatmul.bf16.gmra.mxu0 %v1435
  %v2592 = vpop.f32.mrf.mxu0
  %v2593 = vadd.f32 %v2424, %v2592
  %v2594 = vpop.f32.mrf.mxu0
  %v2595 = vadd.f32 %v2426, %v2594
  %2596 = vmatmul.bf16.gmra.mxu0 %v1444
  %v2597 = vpop.f32.mrf.mxu0
  %v2598 = vadd.f32 %v2429, %v2597
  %v2599 = vpop.f32.mrf.mxu0
  %v2600 = vadd.f32 %v2431, %v2599
  %2601 = vmatmul.bf16.gmra.mxu0 %v1453
  %v2602 = vpop.f32.mrf.mxu0
  %v2603 = vadd.f32 %v2434, %v2602
  %v2604 = vpop.f32.mrf.mxu0
  %v2605 = vadd.f32 %v2436, %v2604
  %2606 = vmatmul.bf16.gmra.mxu0 %v1462
  %v2607 = vpop.f32.mrf.mxu0
  %v2608 = vadd.f32 %v2439, %v2607
  %v2609 = vpop.f32.mrf.mxu0
  %v2610 = vadd.f32 %v2441, %v2609
  %2611 = vmatmul.bf16.gmra.mxu0 %v1471
  %v2612 = vpop.f32.mrf.mxu0
  %v2613 = vadd.f32 %v2444, %v2612
  %v2614 = vpop.f32.mrf.mxu0
  %v2615 = vadd.f32 %v2446, %v2614
  %2616 = vmatmul.bf16.gmra.mxu0 %v1480
  %v2617 = vpop.f32.mrf.mxu0
  %v2618 = vadd.f32 %v2449, %v2617
  %v2619 = vpop.f32.mrf.mxu0
  %v2620 = vadd.f32 %v2451, %v2619
  %2621 = vmatmul.bf16.gmra.mxu0 %v1489
  %v2622 = vpop.f32.mrf.mxu0
  %v2623 = vadd.f32 %v2454, %v2622
  %v2624 = vpop.f32.mrf.mxu0
  %v2625 = vadd.f32 %v2456, %v2624
  %2626 = vmatmul.bf16.gmra.mxu0 %v1498
  %v2627 = vpop.f32.mrf.mxu0
  %v2628 = vadd.f32 %v2459, %v2627
  %v2629 = vpop.f32.mrf.mxu0
  %v2630 = vadd.f32 %v2461, %v2629
  %2631 = vmatmul.bf16.gmra.mxu0 %v1507
  %v2632 = vpop.f32.mrf.mxu0
  %v2633 = vadd.f32 %v2464, %v2632
  %v2634 = vpop.f32.mrf.mxu0
  %v2635 = vadd.f32 %v2466, %v2634
  %2636 = vmatmul.bf16.gmra.mxu0 %v1516
  %v2637 = vpop.f32.mrf.mxu0
  %v2638 = vadd.f32 %v2469, %v2637
  %v2639 = vpop.f32.mrf.mxu0
  %v2640 = vadd.f32 %v2471, %v2639
  %2641 = vmatmul.bf16.gmra.mxu0 %v1525
  %v2642 = vpop.f32.mrf.mxu0
  %v2643 = vadd.f32 %v2474, %v2642
  %v2644 = vpop.f32.mrf.mxu0
  %v2645 = vadd.f32 %v2476, %v2644
  %2646 = vmatmul.bf16.gmra.mxu0 %v1534
  %v2647 = vpop.f32.mrf.mxu0
  %v2648 = vadd.f32 %v2479, %v2647
  %v2649 = vpop.f32.mrf.mxu0
  %v2650 = vadd.f32 %v2481, %v2649
  %2651 = vmatmul.bf16.gmra.mxu0 %v1543
  %v2652 = vpop.f32.mrf.mxu0
  %v2653 = vadd.f32 %v2484, %v2652
  %v2654 = vpop.f32.mrf.mxu0
  %v2655 = vadd.f32 %v2486, %v2654
  %2656 = vmatmul.bf16.gmra.mxu0 %v1552
  %v2657 = vpop.f32.mrf.mxu0
  %v2658 = vadd.f32 %v2489, %v2657
  %v2659 = vpop.f32.mrf.mxu0
  %v2660 = vadd.f32 %v2491, %v2659
  %2661 = vmatmul.bf16.gmra.mxu0 %v1561
  %v2662 = vpop.f32.mrf.mxu0
  %v2663 = vadd.f32 %v2494, %v2662
  %v2664 = vpop.f32.mrf.mxu0
  %v2665 = vadd.f32 %v2496, %v2664
  %2666 = vmatmul.bf16.gmra.mxu0 %v1570
  %v2667 = vpop.f32.mrf.mxu0
  %v2668 = vadd.f32 %v2499, %v2667
  %v2669 = vpop.f32.mrf.mxu0
  %v2670 = vadd.f32 %v2501, %v2669
  %2671 = vmatmul.bf16.gmra.mxu0 %v1579
  %v2672 = vpop.f32.mrf.mxu0
  %v2673 = vadd.f32 %v2504, %v2672
  %v2674 = vpop.f32.mrf.mxu0
  %v2675 = vadd.f32 %v2506, %v2674
  %2676 = vmatmul.bf16.gmra.mxu0 %v1588
  %v2677 = vpop.f32.mrf.mxu0
  %v2678 = vadd.f32 %v2509, %v2677
  %v2679 = vpop.f32.mrf.mxu0
  %v2680 = vadd.f32 %v2511, %v2679
  %2681 = vmatmul.bf16.gmra.mxu0 %v1597
  %v2682 = vpop.f32.mrf.mxu0
  %v2683 = vadd.f32 %v2514, %v2682
  %v2684 = vpop.f32.mrf.mxu0
  %v2685 = vadd.f32 %v2516, %v2684
  %2686 = vmatmul.bf16.gmra.mxu0 %v1606
  %v2687 = vpop.f32.mrf.mxu0
  %v2688 = vadd.f32 %v2519, %v2687
  %v2689 = vpop.f32.mrf.mxu0
  %v2690 = vadd.f32 %v2521, %v2689
  %2691 = vmatmul.bf16.gmra.mxu0 %v1615
  %v2692 = vpop.f32.mrf.mxu0
  %v2693 = vadd.f32 %v2524, %v2692
  %v2694 = vpop.f32.mrf.mxu0
  %v2695 = vadd.f32 %v2526, %v2694
  %2696 = vmatmul.bf16.gmra.mxu0 %v1624
  %v2697 = vpop.f32.mrf.mxu0
  %v2698 = vadd.f32 %v2529, %v2697
  %v2699 = vpop.f32.mrf.mxu0
  %v2700 = vadd.f32 %v2531, %v2699
  %2701 = vmatmul.bf16.gmra.mxu0 %v1633
  %v2702 = vpop.f32.mrf.mxu0
  %v2703 = vadd.f32 %v2534, %v2702
  %v2704 = vpop.f32.mrf.mxu0
  %v2705 = vadd.f32 %v2536, %v2704
  %2706 = vmatmul.bf16.gmra.mxu0 %v1642
  %v2707 = vpop.f32.mrf.mxu0
  %v2708 = vadd.f32 %v2539, %v2707
  %v2709 = vpop.f32.mrf.mxu0
  %v2710 = vadd.f32 %v2541, %v2709
  %2711 = vmatmul.bf16.gmra.mxu0 %v1651
  %v2712 = vpop.f32.mrf.mxu0
  %v2713 = vadd.f32 %v2544, %v2712
  %v2714 = vpop.f32.mrf.mxu0
  %v2715 = vadd.f32 %v2546, %v2714
  %2716 = vdwg.mxu0
  %2717 = vmatpush.bf16.msra.mxu0 %v2258
  %2718 = vmatpush.bf16.msra.mxu0 %v2257
  %2719 = vmatpush.bf16.msra.mxu0 %v2256
  %2720 = vmatpush.bf16.msra.mxu0 %v2255
  %2721 = vmatpush.bf16.msra.mxu0 %v2254
  %2722 = vmatpush.bf16.msra.mxu0 %v2253
  %2723 = vmatpush.bf16.msra.mxu0 %v2252
  %2724 = vmatpush.bf16.msra.mxu0 %v2251
  %2725 = vmatmul.bf16.gmra.mxu0 %v1373
  %v2726 = vpop.f32.mrf.mxu0
  %v2727 = vadd.f32 %v2558, %v2726
  %v2728 = vpop.f32.mrf.mxu0
  %v2729 = vadd.f32 %v2560, %v2728
  %2730 = vmatmul.bf16.gmra.mxu0 %v1382
  %v2731 = vpop.f32.mrf.mxu0
  %v2732 = vadd.f32 %v2563, %v2731
  %v2733 = vpop.f32.mrf.mxu0
  %v2734 = vadd.f32 %v2565, %v2733
  %2735 = vmatmul.bf16.gmra.mxu0 %v1391
  %v2736 = vpop.f32.mrf.mxu0
  %v2737 = vadd.f32 %v2568, %v2736
  %v2738 = vpop.f32.mrf.mxu0
  %v2739 = vadd.f32 %v2570, %v2738
  %2740 = vmatmul.bf16.gmra.mxu0 %v1400
  %v2741 = vpop.f32.mrf.mxu0
  %v2742 = vadd.f32 %v2573, %v2741
  %v2743 = vpop.f32.mrf.mxu0
  %v2744 = vadd.f32 %v2575, %v2743
  %2745 = vmatmul.bf16.gmra.mxu0 %v1409
  %v2746 = vpop.f32.mrf.mxu0
  %v2747 = vadd.f32 %v2578, %v2746
  %v2748 = vpop.f32.mrf.mxu0
  %v2749 = vadd.f32 %v2580, %v2748
  %2750 = vmatmul.bf16.gmra.mxu0 %v1418
  %v2751 = vpop.f32.mrf.mxu0
  %v2752 = vadd.f32 %v2583, %v2751
  %v2753 = vpop.f32.mrf.mxu0
  %v2754 = vadd.f32 %v2585, %v2753
  %2755 = vmatmul.bf16.gmra.mxu0 %v1427
  %v2756 = vpop.f32.mrf.mxu0
  %v2757 = vadd.f32 %v2588, %v2756
  %v2758 = vpop.f32.mrf.mxu0
  %v2759 = vadd.f32 %v2590, %v2758
  %2760 = vmatmul.bf16.gmra.mxu0 %v1436
  %v2761 = vpop.f32.mrf.mxu0
  %v2762 = vadd.f32 %v2593, %v2761
  %v2763 = vpop.f32.mrf.mxu0
  %v2764 = vadd.f32 %v2595, %v2763
  %2765 = vmatmul.bf16.gmra.mxu0 %v1445
  %v2766 = vpop.f32.mrf.mxu0
  %v2767 = vadd.f32 %v2598, %v2766
  %v2768 = vpop.f32.mrf.mxu0
  %v2769 = vadd.f32 %v2600, %v2768
  %2770 = vmatmul.bf16.gmra.mxu0 %v1454
  %v2771 = vpop.f32.mrf.mxu0
  %v2772 = vadd.f32 %v2603, %v2771
  %v2773 = vpop.f32.mrf.mxu0
  %v2774 = vadd.f32 %v2605, %v2773
  %2775 = vmatmul.bf16.gmra.mxu0 %v1463
  %v2776 = vpop.f32.mrf.mxu0
  %v2777 = vadd.f32 %v2608, %v2776
  %v2778 = vpop.f32.mrf.mxu0
  %v2779 = vadd.f32 %v2610, %v2778
  %2780 = vmatmul.bf16.gmra.mxu0 %v1472
  %v2781 = vpop.f32.mrf.mxu0
  %v2782 = vadd.f32 %v2613, %v2781
  %v2783 = vpop.f32.mrf.mxu0
  %v2784 = vadd.f32 %v2615, %v2783
  %2785 = vmatmul.bf16.gmra.mxu0 %v1481
  %v2786 = vpop.f32.mrf.mxu0
  %v2787 = vadd.f32 %v2618, %v2786
  %v2788 = vpop.f32.mrf.mxu0
  %v2789 = vadd.f32 %v2620, %v2788
  %2790 = vmatmul.bf16.gmra.mxu0 %v1490
  %v2791 = vpop.f32.mrf.mxu0
  %v2792 = vadd.f32 %v2623, %v2791
  %v2793 = vpop.f32.mrf.mxu0
  %v2794 = vadd.f32 %v2625, %v2793
  %2795 = vmatmul.bf16.gmra.mxu0 %v1499
  %v2796 = vpop.f32.mrf.mxu0
  %v2797 = vadd.f32 %v2628, %v2796
  %v2798 = vpop.f32.mrf.mxu0
  %v2799 = vadd.f32 %v2630, %v2798
  %2800 = vmatmul.bf16.gmra.mxu0 %v1508
  %v2801 = vpop.f32.mrf.mxu0
  %v2802 = vadd.f32 %v2633, %v2801
  %v2803 = vpop.f32.mrf.mxu0
  %v2804 = vadd.f32 %v2635, %v2803
  %2805 = vmatmul.bf16.gmra.mxu0 %v1517
  %v2806 = vpop.f32.mrf.mxu0
  %v2807 = vadd.f32 %v2638, %v2806
  %v2808 = vpop.f32.mrf.mxu0
  %v2809 = vadd.f32 %v2640, %v2808
  %2810 = vmatmul.bf16.gmra.mxu0 %v1526
  %v2811 = vpop.f32.mrf.mxu0
  %v2812 = vadd.f32 %v2643, %v2811
  %v2813 = vpop.f32.mrf.mxu0
  %v2814 = vadd.f32 %v2645, %v2813
  %2815 = vmatmul.bf16.gmra.mxu0 %v1535
  %v2816 = vpop.f32.mrf.mxu0
  %v2817 = vadd.f32 %v2648, %v2816
  %v2818 = vpop.f32.mrf.mxu0
  %v2819 = vadd.f32 %v2650, %v2818
  %2820 = vmatmul.bf16.gmra.mxu0 %v1544
  %v2821 = vpop.f32.mrf.mxu0
  %v2822 = vadd.f32 %v2653, %v2821
  %v2823 = vpop.f32.mrf.mxu0
  %v2824 = vadd.f32 %v2655, %v2823
  %2825 = vmatmul.bf16.gmra.mxu0 %v1553
  %v2826 = vpop.f32.mrf.mxu0
  %v2827 = vadd.f32 %v2658, %v2826
  %v2828 = vpop.f32.mrf.mxu0
  %v2829 = vadd.f32 %v2660, %v2828
  %2830 = vmatmul.bf16.gmra.mxu0 %v1562
  %v2831 = vpop.f32.mrf.mxu0
  %v2832 = vadd.f32 %v2663, %v2831
  %v2833 = vpop.f32.mrf.mxu0
  %v2834 = vadd.f32 %v2665, %v2833
  %2835 = vmatmul.bf16.gmra.mxu0 %v1571
  %v2836 = vpop.f32.mrf.mxu0
  %v2837 = vadd.f32 %v2668, %v2836
  %v2838 = vpop.f32.mrf.mxu0
  %v2839 = vadd.f32 %v2670, %v2838
  %2840 = vmatmul.bf16.gmra.mxu0 %v1580
  %v2841 = vpop.f32.mrf.mxu0
  %v2842 = vadd.f32 %v2673, %v2841
  %v2843 = vpop.f32.mrf.mxu0
  %v2844 = vadd.f32 %v2675, %v2843
  %2845 = vmatmul.bf16.gmra.mxu0 %v1589
  %v2846 = vpop.f32.mrf.mxu0
  %v2847 = vadd.f32 %v2678, %v2846
  %v2848 = vpop.f32.mrf.mxu0
  %v2849 = vadd.f32 %v2680, %v2848
  %2850 = vmatmul.bf16.gmra.mxu0 %v1598
  %v2851 = vpop.f32.mrf.mxu0
  %v2852 = vadd.f32 %v2683, %v2851
  %v2853 = vpop.f32.mrf.mxu0
  %v2854 = vadd.f32 %v2685, %v2853
  %2855 = vmatmul.bf16.gmra.mxu0 %v1607
  %v2856 = vpop.f32.mrf.mxu0
  %v2857 = vadd.f32 %v2688, %v2856
  %v2858 = vpop.f32.mrf.mxu0
  %v2859 = vadd.f32 %v2690, %v2858
  %2860 = vmatmul.bf16.gmra.mxu0 %v1616
  %v2861 = vpop.f32.mrf.mxu0
  %v2862 = vadd.f32 %v2693, %v2861
  %v2863 = vpop.f32.mrf.mxu0
  %v2864 = vadd.f32 %v2695, %v2863
  %2865 = vmatmul.bf16.gmra.mxu0 %v1625
  %v2866 = vpop.f32.mrf.mxu0
  %v2867 = vadd.f32 %v2698, %v2866
  %v2868 = vpop.f32.mrf.mxu0
  %v2869 = vadd.f32 %v2700, %v2868
  %2870 = vmatmul.bf16.gmra.mxu0 %v1634
  %v2871 = vpop.f32.mrf.mxu0
  %v2872 = vadd.f32 %v2703, %v2871
  %v2873 = vpop.f32.mrf.mxu0
  %v2874 = vadd.f32 %v2705, %v2873
  %2875 = vmatmul.bf16.gmra.mxu0 %v1643
  %v2876 = vpop.f32.mrf.mxu0
  %v2877 = vadd.f32 %v2708, %v2876
  %v2878 = vpop.f32.mrf.mxu0
  %v2879 = vadd.f32 %v2710, %v2878
  %2880 = vmatmul.bf16.gmra.mxu0 %v1652
  %v2881 = vpop.f32.mrf.mxu0
  %v2882 = vadd.f32 %v2713, %v2881
  %v2883 = vpop.f32.mrf.mxu0
  %v2884 = vadd.f32 %v2715, %v2883
  %2885 = vdwg.mxu0
  %2886 = vmatpush.bf16.msra.mxu0 %v2266
  %2887 = vmatpush.bf16.msra.mxu0 %v2265
  %2888 = vmatpush.bf16.msra.mxu0 %v2264
  %2889 = vmatpush.bf16.msra.mxu0 %v2263
  %2890 = vmatpush.bf16.msra.mxu0 %v2262
  %2891 = vmatpush.bf16.msra.mxu0 %v2261
  %2892 = vmatpush.bf16.msra.mxu0 %v2260
  %2893 = vmatpush.bf16.msra.mxu0 %v2259
  %2894 = vmatmul.bf16.gmra.mxu0 %v1374
  %v2895 = vpop.f32.mrf.mxu0
  %v2896 = vadd.f32 %v2727, %v2895
  %v2897 = vpop.f32.mrf.mxu0
  %v2898 = vadd.f32 %v2729, %v2897
  %2899 = vmatmul.bf16.gmra.mxu0 %v1383
  %v2900 = vpop.f32.mrf.mxu0
  %v2901 = vadd.f32 %v2732, %v2900
  %v2902 = vpop.f32.mrf.mxu0
  %v2903 = vadd.f32 %v2734, %v2902
  %2904 = vmatmul.bf16.gmra.mxu0 %v1392
  %v2905 = vpop.f32.mrf.mxu0
  %v2906 = vadd.f32 %v2737, %v2905
  %v2907 = vpop.f32.mrf.mxu0
  %v2908 = vadd.f32 %v2739, %v2907
  %2909 = vmatmul.bf16.gmra.mxu0 %v1401
  %v2910 = vpop.f32.mrf.mxu0
  %v2911 = vadd.f32 %v2742, %v2910
  %v2912 = vpop.f32.mrf.mxu0
  %v2913 = vadd.f32 %v2744, %v2912
  %2914 = vmatmul.bf16.gmra.mxu0 %v1410
  %v2915 = vpop.f32.mrf.mxu0
  %v2916 = vadd.f32 %v2747, %v2915
  %v2917 = vpop.f32.mrf.mxu0
  %v2918 = vadd.f32 %v2749, %v2917
  %2919 = vmatmul.bf16.gmra.mxu0 %v1419
  %v2920 = vpop.f32.mrf.mxu0
  %v2921 = vadd.f32 %v2752, %v2920
  %v2922 = vpop.f32.mrf.mxu0
  %v2923 = vadd.f32 %v2754, %v2922
  %2924 = vmatmul.bf16.gmra.mxu0 %v1428
  %v2925 = vpop.f32.mrf.mxu0
  %v2926 = vadd.f32 %v2757, %v2925
  %v2927 = vpop.f32.mrf.mxu0
  %v2928 = vadd.f32 %v2759, %v2927
  %2929 = vmatmul.bf16.gmra.mxu0 %v1437
  %v2930 = vpop.f32.mrf.mxu0
  %v2931 = vadd.f32 %v2762, %v2930
  %v2932 = vpop.f32.mrf.mxu0
  %v2933 = vadd.f32 %v2764, %v2932
  %2934 = vmatmul.bf16.gmra.mxu0 %v1446
  %v2935 = vpop.f32.mrf.mxu0
  %v2936 = vadd.f32 %v2767, %v2935
  %v2937 = vpop.f32.mrf.mxu0
  %v2938 = vadd.f32 %v2769, %v2937
  %2939 = vmatmul.bf16.gmra.mxu0 %v1455
  %v2940 = vpop.f32.mrf.mxu0
  %v2941 = vadd.f32 %v2772, %v2940
  %v2942 = vpop.f32.mrf.mxu0
  %v2943 = vadd.f32 %v2774, %v2942
  %2944 = vmatmul.bf16.gmra.mxu0 %v1464
  %v2945 = vpop.f32.mrf.mxu0
  %v2946 = vadd.f32 %v2777, %v2945
  %v2947 = vpop.f32.mrf.mxu0
  %v2948 = vadd.f32 %v2779, %v2947
  %2949 = vmatmul.bf16.gmra.mxu0 %v1473
  %v2950 = vpop.f32.mrf.mxu0
  %v2951 = vadd.f32 %v2782, %v2950
  %v2952 = vpop.f32.mrf.mxu0
  %v2953 = vadd.f32 %v2784, %v2952
  %2954 = vmatmul.bf16.gmra.mxu0 %v1482
  %v2955 = vpop.f32.mrf.mxu0
  %v2956 = vadd.f32 %v2787, %v2955
  %v2957 = vpop.f32.mrf.mxu0
  %v2958 = vadd.f32 %v2789, %v2957
  %2959 = vmatmul.bf16.gmra.mxu0 %v1491
  %v2960 = vpop.f32.mrf.mxu0
  %v2961 = vadd.f32 %v2792, %v2960
  %v2962 = vpop.f32.mrf.mxu0
  %v2963 = vadd.f32 %v2794, %v2962
  %2964 = vmatmul.bf16.gmra.mxu0 %v1500
  %v2965 = vpop.f32.mrf.mxu0
  %v2966 = vadd.f32 %v2797, %v2965
  %v2967 = vpop.f32.mrf.mxu0
  %v2968 = vadd.f32 %v2799, %v2967
  %2969 = vmatmul.bf16.gmra.mxu0 %v1509
  %v2970 = vpop.f32.mrf.mxu0
  %v2971 = vadd.f32 %v2802, %v2970
  %v2972 = vpop.f32.mrf.mxu0
  %v2973 = vadd.f32 %v2804, %v2972
  %2974 = vmatmul.bf16.gmra.mxu0 %v1518
  %v2975 = vpop.f32.mrf.mxu0
  %v2976 = vadd.f32 %v2807, %v2975
  %v2977 = vpop.f32.mrf.mxu0
  %v2978 = vadd.f32 %v2809, %v2977
  %2979 = vmatmul.bf16.gmra.mxu0 %v1527
  %v2980 = vpop.f32.mrf.mxu0
  %v2981 = vadd.f32 %v2812, %v2980
  %v2982 = vpop.f32.mrf.mxu0
  %v2983 = vadd.f32 %v2814, %v2982
  %2984 = vmatmul.bf16.gmra.mxu0 %v1536
  %v2985 = vpop.f32.mrf.mxu0
  %v2986 = vadd.f32 %v2817, %v2985
  %v2987 = vpop.f32.mrf.mxu0
  %v2988 = vadd.f32 %v2819, %v2987
  %2989 = vmatmul.bf16.gmra.mxu0 %v1545
  %v2990 = vpop.f32.mrf.mxu0
  %v2991 = vadd.f32 %v2822, %v2990
  %v2992 = vpop.f32.mrf.mxu0
  %v2993 = vadd.f32 %v2824, %v2992
  %2994 = vmatmul.bf16.gmra.mxu0 %v1554
  %v2995 = vpop.f32.mrf.mxu0
  %v2996 = vadd.f32 %v2827, %v2995
  %v2997 = vpop.f32.mrf.mxu0
  %v2998 = vadd.f32 %v2829, %v2997
  %2999 = vmatmul.bf16.gmra.mxu0 %v1563
  %v3000 = vpop.f32.mrf.mxu0
  %v3001 = vadd.f32 %v2832, %v3000
  %v3002 = vpop.f32.mrf.mxu0
  %v3003 = vadd.f32 %v2834, %v3002
  %3004 = vmatmul.bf16.gmra.mxu0 %v1572
  %v3005 = vpop.f32.mrf.mxu0
  %v3006 = vadd.f32 %v2837, %v3005
  %v3007 = vpop.f32.mrf.mxu0
  %v3008 = vadd.f32 %v2839, %v3007
  %3009 = vmatmul.bf16.gmra.mxu0 %v1581
  %v3010 = vpop.f32.mrf.mxu0
  %v3011 = vadd.f32 %v2842, %v3010
  %v3012 = vpop.f32.mrf.mxu0
  %v3013 = vadd.f32 %v2844, %v3012
  %3014 = vmatmul.bf16.gmra.mxu0 %v1590
  %v3015 = vpop.f32.mrf.mxu0
  %v3016 = vadd.f32 %v2847, %v3015
  %v3017 = vpop.f32.mrf.mxu0
  %v3018 = vadd.f32 %v2849, %v3017
  %3019 = vmatmul.bf16.gmra.mxu0 %v1599
  %v3020 = vpop.f32.mrf.mxu0
  %v3021 = vadd.f32 %v2852, %v3020
  %v3022 = vpop.f32.mrf.mxu0
  %v3023 = vadd.f32 %v2854, %v3022
  %3024 = vmatmul.bf16.gmra.mxu0 %v1608
  %v3025 = vpop.f32.mrf.mxu0
  %v3026 = vadd.f32 %v2857, %v3025
  %v3027 = vpop.f32.mrf.mxu0
  %v3028 = vadd.f32 %v2859, %v3027
  %3029 = vmatmul.bf16.gmra.mxu0 %v1617
  %v3030 = vpop.f32.mrf.mxu0
  %v3031 = vadd.f32 %v2862, %v3030
  %v3032 = vpop.f32.mrf.mxu0
  %v3033 = vadd.f32 %v2864, %v3032
  %3034 = vmatmul.bf16.gmra.mxu0 %v1626
  %v3035 = vpop.f32.mrf.mxu0
  %v3036 = vadd.f32 %v2867, %v3035
  %v3037 = vpop.f32.mrf.mxu0
  %v3038 = vadd.f32 %v2869, %v3037
  %3039 = vmatmul.bf16.gmra.mxu0 %v1635
  %v3040 = vpop.f32.mrf.mxu0
  %v3041 = vadd.f32 %v2872, %v3040
  %v3042 = vpop.f32.mrf.mxu0
  %v3043 = vadd.f32 %v2874, %v3042
  %3044 = vmatmul.bf16.gmra.mxu0 %v1644
  %v3045 = vpop.f32.mrf.mxu0
  %v3046 = vadd.f32 %v2877, %v3045
  %v3047 = vpop.f32.mrf.mxu0
  %v3048 = vadd.f32 %v2879, %v3047
  %3049 = vmatmul.bf16.gmra.mxu0 %v1653
  %v3050 = vpop.f32.mrf.mxu0
  %v3051 = vadd.f32 %v2882, %v3050
  %v3052 = vpop.f32.mrf.mxu0
  %v3053 = vadd.f32 %v2884, %v3052
  %3054 = vdwg.mxu0
  %3055 = vmatpush.bf16.msra.mxu0 %v2274
  %3056 = vmatpush.bf16.msra.mxu0 %v2273
  %3057 = vmatpush.bf16.msra.mxu0 %v2272
  %3058 = vmatpush.bf16.msra.mxu0 %v2271
  %3059 = vmatpush.bf16.msra.mxu0 %v2270
  %3060 = vmatpush.bf16.msra.mxu0 %v2269
  %3061 = vmatpush.bf16.msra.mxu0 %v2268
  %3062 = vmatpush.bf16.msra.mxu0 %v2267
  %3063 = vmatmul.bf16.gmra.mxu0 %v1375
  %v3064 = vpop.f32.mrf.mxu0
  %v3065 = vadd.f32 %v2896, %v3064
  %v3066 = vpop.f32.mrf.mxu0
  %v3067 = vadd.f32 %v2898, %v3066
  %3068 = vmatmul.bf16.gmra.mxu0 %v1384
  %v3069 = vpop.f32.mrf.mxu0
  %v3070 = vadd.f32 %v2901, %v3069
  %v3071 = vpop.f32.mrf.mxu0
  %v3072 = vadd.f32 %v2903, %v3071
  %3073 = vmatmul.bf16.gmra.mxu0 %v1393
  %v3074 = vpop.f32.mrf.mxu0
  %v3075 = vadd.f32 %v2906, %v3074
  %v3076 = vpop.f32.mrf.mxu0
  %v3077 = vadd.f32 %v2908, %v3076
  %3078 = vmatmul.bf16.gmra.mxu0 %v1402
  %v3079 = vpop.f32.mrf.mxu0
  %v3080 = vadd.f32 %v2911, %v3079
  %v3081 = vpop.f32.mrf.mxu0
  %v3082 = vadd.f32 %v2913, %v3081
  %3083 = vmatmul.bf16.gmra.mxu0 %v1411
  %v3084 = vpop.f32.mrf.mxu0
  %v3085 = vadd.f32 %v2916, %v3084
  %v3086 = vpop.f32.mrf.mxu0
  %v3087 = vadd.f32 %v2918, %v3086
  %3088 = vmatmul.bf16.gmra.mxu0 %v1420
  %v3089 = vpop.f32.mrf.mxu0
  %v3090 = vadd.f32 %v2921, %v3089
  %v3091 = vpop.f32.mrf.mxu0
  %v3092 = vadd.f32 %v2923, %v3091
  %3093 = vmatmul.bf16.gmra.mxu0 %v1429
  %v3094 = vpop.f32.mrf.mxu0
  %v3095 = vadd.f32 %v2926, %v3094
  %v3096 = vpop.f32.mrf.mxu0
  %v3097 = vadd.f32 %v2928, %v3096
  %3098 = vmatmul.bf16.gmra.mxu0 %v1438
  %v3099 = vpop.f32.mrf.mxu0
  %v3100 = vadd.f32 %v2931, %v3099
  %v3101 = vpop.f32.mrf.mxu0
  %v3102 = vadd.f32 %v2933, %v3101
  %3103 = vmatmul.bf16.gmra.mxu0 %v1447
  %v3104 = vpop.f32.mrf.mxu0
  %v3105 = vadd.f32 %v2936, %v3104
  %v3106 = vpop.f32.mrf.mxu0
  %v3107 = vadd.f32 %v2938, %v3106
  %3108 = vmatmul.bf16.gmra.mxu0 %v1456
  %v3109 = vpop.f32.mrf.mxu0
  %v3110 = vadd.f32 %v2941, %v3109
  %v3111 = vpop.f32.mrf.mxu0
  %v3112 = vadd.f32 %v2943, %v3111
  %3113 = vmatmul.bf16.gmra.mxu0 %v1465
  %v3114 = vpop.f32.mrf.mxu0
  %v3115 = vadd.f32 %v2946, %v3114
  %v3116 = vpop.f32.mrf.mxu0
  %v3117 = vadd.f32 %v2948, %v3116
  %3118 = vmatmul.bf16.gmra.mxu0 %v1474
  %v3119 = vpop.f32.mrf.mxu0
  %v3120 = vadd.f32 %v2951, %v3119
  %v3121 = vpop.f32.mrf.mxu0
  %v3122 = vadd.f32 %v2953, %v3121
  %3123 = vmatmul.bf16.gmra.mxu0 %v1483
  %v3124 = vpop.f32.mrf.mxu0
  %v3125 = vadd.f32 %v2956, %v3124
  %v3126 = vpop.f32.mrf.mxu0
  %v3127 = vadd.f32 %v2958, %v3126
  %3128 = vmatmul.bf16.gmra.mxu0 %v1492
  %v3129 = vpop.f32.mrf.mxu0
  %v3130 = vadd.f32 %v2961, %v3129
  %v3131 = vpop.f32.mrf.mxu0
  %v3132 = vadd.f32 %v2963, %v3131
  %3133 = vmatmul.bf16.gmra.mxu0 %v1501
  %v3134 = vpop.f32.mrf.mxu0
  %v3135 = vadd.f32 %v2966, %v3134
  %v3136 = vpop.f32.mrf.mxu0
  %v3137 = vadd.f32 %v2968, %v3136
  %3138 = vmatmul.bf16.gmra.mxu0 %v1510
  %v3139 = vpop.f32.mrf.mxu0
  %v3140 = vadd.f32 %v2971, %v3139
  %v3141 = vpop.f32.mrf.mxu0
  %v3142 = vadd.f32 %v2973, %v3141
  %3143 = vmatmul.bf16.gmra.mxu0 %v1519
  %v3144 = vpop.f32.mrf.mxu0
  %v3145 = vadd.f32 %v2976, %v3144
  %v3146 = vpop.f32.mrf.mxu0
  %v3147 = vadd.f32 %v2978, %v3146
  %3148 = vmatmul.bf16.gmra.mxu0 %v1528
  %v3149 = vpop.f32.mrf.mxu0
  %v3150 = vadd.f32 %v2981, %v3149
  %v3151 = vpop.f32.mrf.mxu0
  %v3152 = vadd.f32 %v2983, %v3151
  %3153 = vmatmul.bf16.gmra.mxu0 %v1537
  %v3154 = vpop.f32.mrf.mxu0
  %v3155 = vadd.f32 %v2986, %v3154
  %v3156 = vpop.f32.mrf.mxu0
  %v3157 = vadd.f32 %v2988, %v3156
  %3158 = vmatmul.bf16.gmra.mxu0 %v1546
  %v3159 = vpop.f32.mrf.mxu0
  %v3160 = vadd.f32 %v2991, %v3159
  %v3161 = vpop.f32.mrf.mxu0
  %v3162 = vadd.f32 %v2993, %v3161
  %3163 = vmatmul.bf16.gmra.mxu0 %v1555
  %v3164 = vpop.f32.mrf.mxu0
  %v3165 = vadd.f32 %v2996, %v3164
  %v3166 = vpop.f32.mrf.mxu0
  %v3167 = vadd.f32 %v2998, %v3166
  %3168 = vmatmul.bf16.gmra.mxu0 %v1564
  %v3169 = vpop.f32.mrf.mxu0
  %v3170 = vadd.f32 %v3001, %v3169
  %v3171 = vpop.f32.mrf.mxu0
  %v3172 = vadd.f32 %v3003, %v3171
  %3173 = vmatmul.bf16.gmra.mxu0 %v1573
  %v3174 = vpop.f32.mrf.mxu0
  %v3175 = vadd.f32 %v3006, %v3174
  %v3176 = vpop.f32.mrf.mxu0
  %v3177 = vadd.f32 %v3008, %v3176
  %3178 = vmatmul.bf16.gmra.mxu0 %v1582
  %v3179 = vpop.f32.mrf.mxu0
  %v3180 = vadd.f32 %v3011, %v3179
  %v3181 = vpop.f32.mrf.mxu0
  %v3182 = vadd.f32 %v3013, %v3181
  %3183 = vmatmul.bf16.gmra.mxu0 %v1591
  %v3184 = vpop.f32.mrf.mxu0
  %v3185 = vadd.f32 %v3016, %v3184
  %v3186 = vpop.f32.mrf.mxu0
  %v3187 = vadd.f32 %v3018, %v3186
  %3188 = vmatmul.bf16.gmra.mxu0 %v1600
  %v3189 = vpop.f32.mrf.mxu0
  %v3190 = vadd.f32 %v3021, %v3189
  %v3191 = vpop.f32.mrf.mxu0
  %v3192 = vadd.f32 %v3023, %v3191
  %3193 = vmatmul.bf16.gmra.mxu0 %v1609
  %v3194 = vpop.f32.mrf.mxu0
  %v3195 = vadd.f32 %v3026, %v3194
  %v3196 = vpop.f32.mrf.mxu0
  %v3197 = vadd.f32 %v3028, %v3196
  %3198 = vmatmul.bf16.gmra.mxu0 %v1618
  %v3199 = vpop.f32.mrf.mxu0
  %v3200 = vadd.f32 %v3031, %v3199
  %v3201 = vpop.f32.mrf.mxu0
  %v3202 = vadd.f32 %v3033, %v3201
  %3203 = vmatmul.bf16.gmra.mxu0 %v1627
  %v3204 = vpop.f32.mrf.mxu0
  %v3205 = vadd.f32 %v3036, %v3204
  %v3206 = vpop.f32.mrf.mxu0
  %v3207 = vadd.f32 %v3038, %v3206
  %3208 = vmatmul.bf16.gmra.mxu0 %v1636
  %v3209 = vpop.f32.mrf.mxu0
  %v3210 = vadd.f32 %v3041, %v3209
  %v3211 = vpop.f32.mrf.mxu0
  %v3212 = vadd.f32 %v3043, %v3211
  %3213 = vmatmul.bf16.gmra.mxu0 %v1645
  %v3214 = vpop.f32.mrf.mxu0
  %v3215 = vadd.f32 %v3046, %v3214
  %v3216 = vpop.f32.mrf.mxu0
  %v3217 = vadd.f32 %v3048, %v3216
  %3218 = vmatmul.bf16.gmra.mxu0 %v1654
  %v3219 = vpop.f32.mrf.mxu0
  %v3220 = vadd.f32 %v3051, %v3219
  %v3221 = vpop.f32.mrf.mxu0
  %v3222 = vadd.f32 %v3053, %v3221
  %3223 = vdwg.mxu0
  %3224 = vmatpush.bf16.msra.mxu0 %v2282
  %3225 = vmatpush.bf16.msra.mxu0 %v2281
  %3226 = vmatpush.bf16.msra.mxu0 %v2280
  %3227 = vmatpush.bf16.msra.mxu0 %v2279
  %3228 = vmatpush.bf16.msra.mxu0 %v2278
  %3229 = vmatpush.bf16.msra.mxu0 %v2277
  %3230 = vmatpush.bf16.msra.mxu0 %v2276
  %3231 = vmatpush.bf16.msra.mxu0 %v2275
  %3232 = vmatmul.bf16.gmra.mxu0 %v1376
  %v3233 = vpop.f32.mrf.mxu0
  %v3234 = vadd.f32 %v3065, %v3233
  %v3235 = vpop.f32.mrf.mxu0
  %v3236 = vadd.f32 %v3067, %v3235
  %3237 = vmatmul.bf16.gmra.mxu0 %v1385
  %v3238 = vpop.f32.mrf.mxu0
  %v3239 = vadd.f32 %v3070, %v3238
  %v3240 = vpop.f32.mrf.mxu0
  %v3241 = vadd.f32 %v3072, %v3240
  %3242 = vmatmul.bf16.gmra.mxu0 %v1394
  %v3243 = vpop.f32.mrf.mxu0
  %v3244 = vadd.f32 %v3075, %v3243
  %v3245 = vpop.f32.mrf.mxu0
  %v3246 = vadd.f32 %v3077, %v3245
  %3247 = vmatmul.bf16.gmra.mxu0 %v1403
  %v3248 = vpop.f32.mrf.mxu0
  %v3249 = vadd.f32 %v3080, %v3248
  %v3250 = vpop.f32.mrf.mxu0
  %v3251 = vadd.f32 %v3082, %v3250
  %3252 = vmatmul.bf16.gmra.mxu0 %v1412
  %v3253 = vpop.f32.mrf.mxu0
  %v3254 = vadd.f32 %v3085, %v3253
  %v3255 = vpop.f32.mrf.mxu0
  %v3256 = vadd.f32 %v3087, %v3255
  %3257 = vmatmul.bf16.gmra.mxu0 %v1421
  %v3258 = vpop.f32.mrf.mxu0
  %v3259 = vadd.f32 %v3090, %v3258
  %v3260 = vpop.f32.mrf.mxu0
  %v3261 = vadd.f32 %v3092, %v3260
  %3262 = vmatmul.bf16.gmra.mxu0 %v1430
  %v3263 = vpop.f32.mrf.mxu0
  %v3264 = vadd.f32 %v3095, %v3263
  %v3265 = vpop.f32.mrf.mxu0
  %v3266 = vadd.f32 %v3097, %v3265
  %3267 = vmatmul.bf16.gmra.mxu0 %v1439
  %v3268 = vpop.f32.mrf.mxu0
  %v3269 = vadd.f32 %v3100, %v3268
  %v3270 = vpop.f32.mrf.mxu0
  %v3271 = vadd.f32 %v3102, %v3270
  %3272 = vmatmul.bf16.gmra.mxu0 %v1448
  %v3273 = vpop.f32.mrf.mxu0
  %v3274 = vadd.f32 %v3105, %v3273
  %v3275 = vpop.f32.mrf.mxu0
  %v3276 = vadd.f32 %v3107, %v3275
  %3277 = vmatmul.bf16.gmra.mxu0 %v1457
  %v3278 = vpop.f32.mrf.mxu0
  %v3279 = vadd.f32 %v3110, %v3278
  %v3280 = vpop.f32.mrf.mxu0
  %v3281 = vadd.f32 %v3112, %v3280
  %3282 = vmatmul.bf16.gmra.mxu0 %v1466
  %v3283 = vpop.f32.mrf.mxu0
  %v3284 = vadd.f32 %v3115, %v3283
  %v3285 = vpop.f32.mrf.mxu0
  %v3286 = vadd.f32 %v3117, %v3285
  %3287 = vmatmul.bf16.gmra.mxu0 %v1475
  %v3288 = vpop.f32.mrf.mxu0
  %v3289 = vadd.f32 %v3120, %v3288
  %v3290 = vpop.f32.mrf.mxu0
  %v3291 = vadd.f32 %v3122, %v3290
  %3292 = vmatmul.bf16.gmra.mxu0 %v1484
  %v3293 = vpop.f32.mrf.mxu0
  %v3294 = vadd.f32 %v3125, %v3293
  %v3295 = vpop.f32.mrf.mxu0
  %v3296 = vadd.f32 %v3127, %v3295
  %3297 = vmatmul.bf16.gmra.mxu0 %v1493
  %v3298 = vpop.f32.mrf.mxu0
  %v3299 = vadd.f32 %v3130, %v3298
  %v3300 = vpop.f32.mrf.mxu0
  %v3301 = vadd.f32 %v3132, %v3300
  %3302 = vmatmul.bf16.gmra.mxu0 %v1502
  %v3303 = vpop.f32.mrf.mxu0
  %v3304 = vadd.f32 %v3135, %v3303
  %v3305 = vpop.f32.mrf.mxu0
  %v3306 = vadd.f32 %v3137, %v3305
  %3307 = vmatmul.bf16.gmra.mxu0 %v1511
  %v3308 = vpop.f32.mrf.mxu0
  %v3309 = vadd.f32 %v3140, %v3308
  %v3310 = vpop.f32.mrf.mxu0
  %v3311 = vadd.f32 %v3142, %v3310
  %3312 = vmatmul.bf16.gmra.mxu0 %v1520
  %v3313 = vpop.f32.mrf.mxu0
  %v3314 = vadd.f32 %v3145, %v3313
  %v3315 = vpop.f32.mrf.mxu0
  %v3316 = vadd.f32 %v3147, %v3315
  %3317 = vmatmul.bf16.gmra.mxu0 %v1529
  %v3318 = vpop.f32.mrf.mxu0
  %v3319 = vadd.f32 %v3150, %v3318
  %v3320 = vpop.f32.mrf.mxu0
  %v3321 = vadd.f32 %v3152, %v3320
  %3322 = vmatmul.bf16.gmra.mxu0 %v1538
  %v3323 = vpop.f32.mrf.mxu0
  %v3324 = vadd.f32 %v3155, %v3323
  %v3325 = vpop.f32.mrf.mxu0
  %v3326 = vadd.f32 %v3157, %v3325
  %3327 = vmatmul.bf16.gmra.mxu0 %v1547
  %v3328 = vpop.f32.mrf.mxu0
  %v3329 = vadd.f32 %v3160, %v3328
  %v3330 = vpop.f32.mrf.mxu0
  %v3331 = vadd.f32 %v3162, %v3330
  %3332 = vmatmul.bf16.gmra.mxu0 %v1556
  %v3333 = vpop.f32.mrf.mxu0
  %v3334 = vadd.f32 %v3165, %v3333
  %v3335 = vpop.f32.mrf.mxu0
  %v3336 = vadd.f32 %v3167, %v3335
  %3337 = vmatmul.bf16.gmra.mxu0 %v1565
  %v3338 = vpop.f32.mrf.mxu0
  %v3339 = vadd.f32 %v3170, %v3338
  %v3340 = vpop.f32.mrf.mxu0
  %v3341 = vadd.f32 %v3172, %v3340
  %3342 = vmatmul.bf16.gmra.mxu0 %v1574
  %v3343 = vpop.f32.mrf.mxu0
  %v3344 = vadd.f32 %v3175, %v3343
  %v3345 = vpop.f32.mrf.mxu0
  %v3346 = vadd.f32 %v3177, %v3345
  %3347 = vmatmul.bf16.gmra.mxu0 %v1583
  %v3348 = vpop.f32.mrf.mxu0
  %v3349 = vadd.f32 %v3180, %v3348
  %v3350 = vpop.f32.mrf.mxu0
  %v3351 = vadd.f32 %v3182, %v3350
  %3352 = vmatmul.bf16.gmra.mxu0 %v1592
  %v3353 = vpop.f32.mrf.mxu0
  %v3354 = vadd.f32 %v3185, %v3353
  %v3355 = vpop.f32.mrf.mxu0
  %v3356 = vadd.f32 %v3187, %v3355
  %3357 = vmatmul.bf16.gmra.mxu0 %v1601
  %v3358 = vpop.f32.mrf.mxu0
  %v3359 = vadd.f32 %v3190, %v3358
  %v3360 = vpop.f32.mrf.mxu0
  %v3361 = vadd.f32 %v3192, %v3360
  %3362 = vmatmul.bf16.gmra.mxu0 %v1610
  %v3363 = vpop.f32.mrf.mxu0
  %v3364 = vadd.f32 %v3195, %v3363
  %v3365 = vpop.f32.mrf.mxu0
  %v3366 = vadd.f32 %v3197, %v3365
  %3367 = vmatmul.bf16.gmra.mxu0 %v1619
  %v3368 = vpop.f32.mrf.mxu0
  %v3369 = vadd.f32 %v3200, %v3368
  %v3370 = vpop.f32.mrf.mxu0
  %v3371 = vadd.f32 %v3202, %v3370
  %3372 = vmatmul.bf16.gmra.mxu0 %v1628
  %v3373 = vpop.f32.mrf.mxu0
  %v3374 = vadd.f32 %v3205, %v3373
  %v3375 = vpop.f32.mrf.mxu0
  %v3376 = vadd.f32 %v3207, %v3375
  %3377 = vmatmul.bf16.gmra.mxu0 %v1637
  %v3378 = vpop.f32.mrf.mxu0
  %v3379 = vadd.f32 %v3210, %v3378
  %v3380 = vpop.f32.mrf.mxu0
  %v3381 = vadd.f32 %v3212, %v3380
  %3382 = vmatmul.bf16.gmra.mxu0 %v1646
  %v3383 = vpop.f32.mrf.mxu0
  %v3384 = vadd.f32 %v3215, %v3383
  %v3385 = vpop.f32.mrf.mxu0
  %v3386 = vadd.f32 %v3217, %v3385
  %3387 = vmatmul.bf16.gmra.mxu0 %v1655
  %v3388 = vpop.f32.mrf.mxu0
  %v3389 = vadd.f32 %v3220, %v3388
  %v3390 = vpop.f32.mrf.mxu0
  %v3391 = vadd.f32 %v3222, %v3390
  %3392 = vdwg.mxu0
  %3393 = vmatpush.bf16.msra.mxu0 %v2290
  %3394 = vmatpush.bf16.msra.mxu0 %v2289
  %3395 = vmatpush.bf16.msra.mxu0 %v2288
  %3396 = vmatpush.bf16.msra.mxu0 %v2287
  %3397 = vmatpush.bf16.msra.mxu0 %v2286
  %3398 = vmatpush.bf16.msra.mxu0 %v2285
  %3399 = vmatpush.bf16.msra.mxu0 %v2284
  %3400 = vmatpush.bf16.msra.mxu0 %v2283
  %3401 = vmatmul.bf16.gmra.mxu0 %v1377
  %v3402 = vpop.f32.mrf.mxu0
  %v3403 = vadd.f32 %v3234, %v3402
  %v3404 = vpop.f32.mrf.mxu0
  %v3405 = vadd.f32 %v3236, %v3404
  %3406 = vmatmul.bf16.gmra.mxu0 %v1386
  %v3407 = vpop.f32.mrf.mxu0
  %v3408 = vadd.f32 %v3239, %v3407
  %v3409 = vpop.f32.mrf.mxu0
  %v3410 = vadd.f32 %v3241, %v3409
  %3411 = vmatmul.bf16.gmra.mxu0 %v1395
  %v3412 = vpop.f32.mrf.mxu0
  %v3413 = vadd.f32 %v3244, %v3412
  %v3414 = vpop.f32.mrf.mxu0
  %v3415 = vadd.f32 %v3246, %v3414
  %3416 = vmatmul.bf16.gmra.mxu0 %v1404
  %v3417 = vpop.f32.mrf.mxu0
  %v3418 = vadd.f32 %v3249, %v3417
  %v3419 = vpop.f32.mrf.mxu0
  %v3420 = vadd.f32 %v3251, %v3419
  %3421 = vmatmul.bf16.gmra.mxu0 %v1413
  %v3422 = vpop.f32.mrf.mxu0
  %v3423 = vadd.f32 %v3254, %v3422
  %v3424 = vpop.f32.mrf.mxu0
  %v3425 = vadd.f32 %v3256, %v3424
  %3426 = vmatmul.bf16.gmra.mxu0 %v1422
  %v3427 = vpop.f32.mrf.mxu0
  %v3428 = vadd.f32 %v3259, %v3427
  %v3429 = vpop.f32.mrf.mxu0
  %v3430 = vadd.f32 %v3261, %v3429
  %3431 = vmatmul.bf16.gmra.mxu0 %v1431
  %v3432 = vpop.f32.mrf.mxu0
  %v3433 = vadd.f32 %v3264, %v3432
  %v3434 = vpop.f32.mrf.mxu0
  %v3435 = vadd.f32 %v3266, %v3434
  %3436 = vmatmul.bf16.gmra.mxu0 %v1440
  %v3437 = vpop.f32.mrf.mxu0
  %v3438 = vadd.f32 %v3269, %v3437
  %v3439 = vpop.f32.mrf.mxu0
  %v3440 = vadd.f32 %v3271, %v3439
  %3441 = vmatmul.bf16.gmra.mxu0 %v1449
  %v3442 = vpop.f32.mrf.mxu0
  %v3443 = vadd.f32 %v3274, %v3442
  %v3444 = vpop.f32.mrf.mxu0
  %v3445 = vadd.f32 %v3276, %v3444
  %3446 = vmatmul.bf16.gmra.mxu0 %v1458
  %v3447 = vpop.f32.mrf.mxu0
  %v3448 = vadd.f32 %v3279, %v3447
  %v3449 = vpop.f32.mrf.mxu0
  %v3450 = vadd.f32 %v3281, %v3449
  %3451 = vmatmul.bf16.gmra.mxu0 %v1467
  %v3452 = vpop.f32.mrf.mxu0
  %v3453 = vadd.f32 %v3284, %v3452
  %v3454 = vpop.f32.mrf.mxu0
  %v3455 = vadd.f32 %v3286, %v3454
  %3456 = vmatmul.bf16.gmra.mxu0 %v1476
  %v3457 = vpop.f32.mrf.mxu0
  %v3458 = vadd.f32 %v3289, %v3457
  %v3459 = vpop.f32.mrf.mxu0
  %v3460 = vadd.f32 %v3291, %v3459
  %3461 = vmatmul.bf16.gmra.mxu0 %v1485
  %v3462 = vpop.f32.mrf.mxu0
  %v3463 = vadd.f32 %v3294, %v3462
  %v3464 = vpop.f32.mrf.mxu0
  %v3465 = vadd.f32 %v3296, %v3464
  %3466 = vmatmul.bf16.gmra.mxu0 %v1494
  %v3467 = vpop.f32.mrf.mxu0
  %v3468 = vadd.f32 %v3299, %v3467
  %v3469 = vpop.f32.mrf.mxu0
  %v3470 = vadd.f32 %v3301, %v3469
  %3471 = vmatmul.bf16.gmra.mxu0 %v1503
  %v3472 = vpop.f32.mrf.mxu0
  %v3473 = vadd.f32 %v3304, %v3472
  %v3474 = vpop.f32.mrf.mxu0
  %v3475 = vadd.f32 %v3306, %v3474
  %3476 = vmatmul.bf16.gmra.mxu0 %v1512
  %v3477 = vpop.f32.mrf.mxu0
  %v3478 = vadd.f32 %v3309, %v3477
  %v3479 = vpop.f32.mrf.mxu0
  %v3480 = vadd.f32 %v3311, %v3479
  %3481 = vmatmul.bf16.gmra.mxu0 %v1521
  %v3482 = vpop.f32.mrf.mxu0
  %v3483 = vadd.f32 %v3314, %v3482
  %v3484 = vpop.f32.mrf.mxu0
  %v3485 = vadd.f32 %v3316, %v3484
  %3486 = vmatmul.bf16.gmra.mxu0 %v1530
  %v3487 = vpop.f32.mrf.mxu0
  %v3488 = vadd.f32 %v3319, %v3487
  %v3489 = vpop.f32.mrf.mxu0
  %v3490 = vadd.f32 %v3321, %v3489
  %3491 = vmatmul.bf16.gmra.mxu0 %v1539
  %v3492 = vpop.f32.mrf.mxu0
  %v3493 = vadd.f32 %v3324, %v3492
  %v3494 = vpop.f32.mrf.mxu0
  %v3495 = vadd.f32 %v3326, %v3494
  %3496 = vmatmul.bf16.gmra.mxu0 %v1548
  %v3497 = vpop.f32.mrf.mxu0
  %v3498 = vadd.f32 %v3329, %v3497
  %v3499 = vpop.f32.mrf.mxu0
  %v3500 = vadd.f32 %v3331, %v3499
  %3501 = vmatmul.bf16.gmra.mxu0 %v1557
  %v3502 = vpop.f32.mrf.mxu0
  %v3503 = vadd.f32 %v3334, %v3502
  %v3504 = vpop.f32.mrf.mxu0
  %v3505 = vadd.f32 %v3336, %v3504
  %3506 = vmatmul.bf16.gmra.mxu0 %v1566
  %v3507 = vpop.f32.mrf.mxu0
  %v3508 = vadd.f32 %v3339, %v3507
  %v3509 = vpop.f32.mrf.mxu0
  %v3510 = vadd.f32 %v3341, %v3509
  %3511 = vmatmul.bf16.gmra.mxu0 %v1575
  %v3512 = vpop.f32.mrf.mxu0
  %v3513 = vadd.f32 %v3344, %v3512
  %v3514 = vpop.f32.mrf.mxu0
  %v3515 = vadd.f32 %v3346, %v3514
  %3516 = vmatmul.bf16.gmra.mxu0 %v1584
  %v3517 = vpop.f32.mrf.mxu0
  %v3518 = vadd.f32 %v3349, %v3517
  %v3519 = vpop.f32.mrf.mxu0
  %v3520 = vadd.f32 %v3351, %v3519
  %3521 = vmatmul.bf16.gmra.mxu0 %v1593
  %v3522 = vpop.f32.mrf.mxu0
  %v3523 = vadd.f32 %v3354, %v3522
  %v3524 = vpop.f32.mrf.mxu0
  %v3525 = vadd.f32 %v3356, %v3524
  %3526 = vmatmul.bf16.gmra.mxu0 %v1602
  %v3527 = vpop.f32.mrf.mxu0
  %v3528 = vadd.f32 %v3359, %v3527
  %v3529 = vpop.f32.mrf.mxu0
  %v3530 = vadd.f32 %v3361, %v3529
  %3531 = vmatmul.bf16.gmra.mxu0 %v1611
  %v3532 = vpop.f32.mrf.mxu0
  %v3533 = vadd.f32 %v3364, %v3532
  %v3534 = vpop.f32.mrf.mxu0
  %v3535 = vadd.f32 %v3366, %v3534
  %3536 = vmatmul.bf16.gmra.mxu0 %v1620
  %v3537 = vpop.f32.mrf.mxu0
  %v3538 = vadd.f32 %v3369, %v3537
  %v3539 = vpop.f32.mrf.mxu0
  %v3540 = vadd.f32 %v3371, %v3539
  %3541 = vmatmul.bf16.gmra.mxu0 %v1629
  %v3542 = vpop.f32.mrf.mxu0
  %v3543 = vadd.f32 %v3374, %v3542
  %v3544 = vpop.f32.mrf.mxu0
  %v3545 = vadd.f32 %v3376, %v3544
  %3546 = vmatmul.bf16.gmra.mxu0 %v1638
  %v3547 = vpop.f32.mrf.mxu0
  %v3548 = vadd.f32 %v3379, %v3547
  %v3549 = vpop.f32.mrf.mxu0
  %v3550 = vadd.f32 %v3381, %v3549
  %3551 = vmatmul.bf16.gmra.mxu0 %v1647
  %v3552 = vpop.f32.mrf.mxu0
  %v3553 = vadd.f32 %v3384, %v3552
  %v3554 = vpop.f32.mrf.mxu0
  %v3555 = vadd.f32 %v3386, %v3554
  %3556 = vmatmul.bf16.gmra.mxu0 %v1656
  %v3557 = vpop.f32.mrf.mxu0
  %v3558 = vadd.f32 %v3389, %v3557
  %v3559 = vpop.f32.mrf.mxu0
  %v3560 = vadd.f32 %v3391, %v3559
  %3561 = vdwg.mxu0
  %3562 = vmatpush.bf16.msra.mxu0 %v2298
  %3563 = vmatpush.bf16.msra.mxu0 %v2297
  %3564 = vmatpush.bf16.msra.mxu0 %v2296
  %3565 = vmatpush.bf16.msra.mxu0 %v2295
  %3566 = vmatpush.bf16.msra.mxu0 %v2294
  %3567 = vmatpush.bf16.msra.mxu0 %v2293
  %3568 = vmatpush.bf16.msra.mxu0 %v2292
  %3569 = vmatpush.bf16.msra.mxu0 %v2291
  %3570 = vmatmul.bf16.gmra.mxu0 %v1378
  %v3571 = vpop.f32.mrf.mxu0
  %v3572 = vadd.f32 %v3403, %v3571
  %v3573 = vpop.f32.mrf.mxu0
  %v3574 = vadd.f32 %v3405, %v3573
  %3575 = vmatmul.bf16.gmra.mxu0 %v1387
  %v3576 = vpop.f32.mrf.mxu0
  %v3577 = vadd.f32 %v3408, %v3576
  %v3578 = vpop.f32.mrf.mxu0
  %v3579 = vadd.f32 %v3410, %v3578
  %3580 = vmatmul.bf16.gmra.mxu0 %v1396
  %v3581 = vpop.f32.mrf.mxu0
  %v3582 = vadd.f32 %v3413, %v3581
  %v3583 = vpop.f32.mrf.mxu0
  %v3584 = vadd.f32 %v3415, %v3583
  %3585 = vmatmul.bf16.gmra.mxu0 %v1405
  %v3586 = vpop.f32.mrf.mxu0
  %v3587 = vadd.f32 %v3418, %v3586
  %v3588 = vpop.f32.mrf.mxu0
  %v3589 = vadd.f32 %v3420, %v3588
  %3590 = vmatmul.bf16.gmra.mxu0 %v1414
  %v3591 = vpop.f32.mrf.mxu0
  %v3592 = vadd.f32 %v3423, %v3591
  %v3593 = vpop.f32.mrf.mxu0
  %v3594 = vadd.f32 %v3425, %v3593
  %3595 = vmatmul.bf16.gmra.mxu0 %v1423
  %v3596 = vpop.f32.mrf.mxu0
  %v3597 = vadd.f32 %v3428, %v3596
  %v3598 = vpop.f32.mrf.mxu0
  %v3599 = vadd.f32 %v3430, %v3598
  %3600 = vmatmul.bf16.gmra.mxu0 %v1432
  %v3601 = vpop.f32.mrf.mxu0
  %v3602 = vadd.f32 %v3433, %v3601
  %v3603 = vpop.f32.mrf.mxu0
  %v3604 = vadd.f32 %v3435, %v3603
  %3605 = vmatmul.bf16.gmra.mxu0 %v1441
  %v3606 = vpop.f32.mrf.mxu0
  %v3607 = vadd.f32 %v3438, %v3606
  %v3608 = vpop.f32.mrf.mxu0
  %v3609 = vadd.f32 %v3440, %v3608
  %3610 = vmatmul.bf16.gmra.mxu0 %v1450
  %v3611 = vpop.f32.mrf.mxu0
  %v3612 = vadd.f32 %v3443, %v3611
  %v3613 = vpop.f32.mrf.mxu0
  %v3614 = vadd.f32 %v3445, %v3613
  %3615 = vmatmul.bf16.gmra.mxu0 %v1459
  %v3616 = vpop.f32.mrf.mxu0
  %v3617 = vadd.f32 %v3448, %v3616
  %v3618 = vpop.f32.mrf.mxu0
  %v3619 = vadd.f32 %v3450, %v3618
  %3620 = vmatmul.bf16.gmra.mxu0 %v1468
  %v3621 = vpop.f32.mrf.mxu0
  %v3622 = vadd.f32 %v3453, %v3621
  %v3623 = vpop.f32.mrf.mxu0
  %v3624 = vadd.f32 %v3455, %v3623
  %3625 = vmatmul.bf16.gmra.mxu0 %v1477
  %v3626 = vpop.f32.mrf.mxu0
  %v3627 = vadd.f32 %v3458, %v3626
  %v3628 = vpop.f32.mrf.mxu0
  %v3629 = vadd.f32 %v3460, %v3628
  %3630 = vmatmul.bf16.gmra.mxu0 %v1486
  %v3631 = vpop.f32.mrf.mxu0
  %v3632 = vadd.f32 %v3463, %v3631
  %v3633 = vpop.f32.mrf.mxu0
  %v3634 = vadd.f32 %v3465, %v3633
  %3635 = vmatmul.bf16.gmra.mxu0 %v1495
  %v3636 = vpop.f32.mrf.mxu0
  %v3637 = vadd.f32 %v3468, %v3636
  %v3638 = vpop.f32.mrf.mxu0
  %v3639 = vadd.f32 %v3470, %v3638
  %3640 = vmatmul.bf16.gmra.mxu0 %v1504
  %v3641 = vpop.f32.mrf.mxu0
  %v3642 = vadd.f32 %v3473, %v3641
  %v3643 = vpop.f32.mrf.mxu0
  %v3644 = vadd.f32 %v3475, %v3643
  %3645 = vmatmul.bf16.gmra.mxu0 %v1513
  %v3646 = vpop.f32.mrf.mxu0
  %v3647 = vadd.f32 %v3478, %v3646
  %v3648 = vpop.f32.mrf.mxu0
  %v3649 = vadd.f32 %v3480, %v3648
  %3650 = vmatmul.bf16.gmra.mxu0 %v1522
  %v3651 = vpop.f32.mrf.mxu0
  %v3652 = vadd.f32 %v3483, %v3651
  %v3653 = vpop.f32.mrf.mxu0
  %v3654 = vadd.f32 %v3485, %v3653
  %3655 = vmatmul.bf16.gmra.mxu0 %v1531
  %v3656 = vpop.f32.mrf.mxu0
  %v3657 = vadd.f32 %v3488, %v3656
  %v3658 = vpop.f32.mrf.mxu0
  %v3659 = vadd.f32 %v3490, %v3658
  %3660 = vmatmul.bf16.gmra.mxu0 %v1540
  %v3661 = vpop.f32.mrf.mxu0
  %v3662 = vadd.f32 %v3493, %v3661
  %v3663 = vpop.f32.mrf.mxu0
  %v3664 = vadd.f32 %v3495, %v3663
  %3665 = vmatmul.bf16.gmra.mxu0 %v1549
  %v3666 = vpop.f32.mrf.mxu0
  %v3667 = vadd.f32 %v3498, %v3666
  %v3668 = vpop.f32.mrf.mxu0
  %v3669 = vadd.f32 %v3500, %v3668
  %3670 = vmatmul.bf16.gmra.mxu0 %v1558
  %v3671 = vpop.f32.mrf.mxu0
  %v3672 = vadd.f32 %v3503, %v3671
  %v3673 = vpop.f32.mrf.mxu0
  %v3674 = vadd.f32 %v3505, %v3673
  %3675 = vmatmul.bf16.gmra.mxu0 %v1567
  %v3676 = vpop.f32.mrf.mxu0
  %v3677 = vadd.f32 %v3508, %v3676
  %v3678 = vpop.f32.mrf.mxu0
  %v3679 = vadd.f32 %v3510, %v3678
  %3680 = vmatmul.bf16.gmra.mxu0 %v1576
  %v3681 = vpop.f32.mrf.mxu0
  %v3682 = vadd.f32 %v3513, %v3681
  %v3683 = vpop.f32.mrf.mxu0
  %v3684 = vadd.f32 %v3515, %v3683
  %3685 = vmatmul.bf16.gmra.mxu0 %v1585
  %v3686 = vpop.f32.mrf.mxu0
  %v3687 = vadd.f32 %v3518, %v3686
  %v3688 = vpop.f32.mrf.mxu0
  %v3689 = vadd.f32 %v3520, %v3688
  %3690 = vmatmul.bf16.gmra.mxu0 %v1594
  %v3691 = vpop.f32.mrf.mxu0
  %v3692 = vadd.f32 %v3523, %v3691
  %v3693 = vpop.f32.mrf.mxu0
  %v3694 = vadd.f32 %v3525, %v3693
  %3695 = vmatmul.bf16.gmra.mxu0 %v1603
  %v3696 = vpop.f32.mrf.mxu0
  %v3697 = vadd.f32 %v3528, %v3696
  %v3698 = vpop.f32.mrf.mxu0
  %v3699 = vadd.f32 %v3530, %v3698
  %3700 = vmatmul.bf16.gmra.mxu0 %v1612
  %v3701 = vpop.f32.mrf.mxu0
  %v3702 = vadd.f32 %v3533, %v3701
  %v3703 = vpop.f32.mrf.mxu0
  %v3704 = vadd.f32 %v3535, %v3703
  %3705 = vmatmul.bf16.gmra.mxu0 %v1621
  %v3706 = vpop.f32.mrf.mxu0
  %v3707 = vadd.f32 %v3538, %v3706
  %v3708 = vpop.f32.mrf.mxu0
  %v3709 = vadd.f32 %v3540, %v3708
  %3710 = vmatmul.bf16.gmra.mxu0 %v1630
  %v3711 = vpop.f32.mrf.mxu0
  %v3712 = vadd.f32 %v3543, %v3711
  %v3713 = vpop.f32.mrf.mxu0
  %v3714 = vadd.f32 %v3545, %v3713
  %3715 = vmatmul.bf16.gmra.mxu0 %v1639
  %v3716 = vpop.f32.mrf.mxu0
  %v3717 = vadd.f32 %v3548, %v3716
  %v3718 = vpop.f32.mrf.mxu0
  %v3719 = vadd.f32 %v3550, %v3718
  %3720 = vmatmul.bf16.gmra.mxu0 %v1648
  %v3721 = vpop.f32.mrf.mxu0
  %v3722 = vadd.f32 %v3553, %v3721
  %v3723 = vpop.f32.mrf.mxu0
  %v3724 = vadd.f32 %v3555, %v3723
  %3725 = vmatmul.bf16.gmra.mxu0 %v1657
  %v3726 = vpop.f32.mrf.mxu0
  %v3727 = vadd.f32 %v3558, %v3726
  %v3728 = vpop.f32.mrf.mxu0
  %v3729 = vadd.f32 %v3560, %v3728
  %3730 = vdwg.mxu0
  %3731 = vmatpush.bf16.msra.mxu0 %v2306
  %3732 = vmatpush.bf16.msra.mxu0 %v2305
  %3733 = vmatpush.bf16.msra.mxu0 %v2304
  %3734 = vmatpush.bf16.msra.mxu0 %v2303
  %3735 = vmatpush.bf16.msra.mxu0 %v2302
  %3736 = vmatpush.bf16.msra.mxu0 %v2301
  %3737 = vmatpush.bf16.msra.mxu0 %v2300
  %3738 = vmatpush.bf16.msra.mxu0 %v2299
  %3739 = vmatmul.bf16.gmra.mxu0 %v1379
  %v3740 = vpop.f32.mrf.mxu0
  %v3741 = vadd.f32 %v3572, %v3740
  %v3742 = vpop.f32.mrf.mxu0
  %v3743 = vadd.f32 %v3574, %v3742
  %3744 = vmatmul.bf16.gmra.mxu0 %v1388
  %v3745 = vpop.f32.mrf.mxu0
  %v3746 = vadd.f32 %v3577, %v3745
  %v3747 = vpop.f32.mrf.mxu0
  %v3748 = vadd.f32 %v3579, %v3747
  %3749 = vmatmul.bf16.gmra.mxu0 %v1397
  %v3750 = vpop.f32.mrf.mxu0
  %v3751 = vadd.f32 %v3582, %v3750
  %v3752 = vpop.f32.mrf.mxu0
  %v3753 = vadd.f32 %v3584, %v3752
  %3754 = vmatmul.bf16.gmra.mxu0 %v1406
  %v3755 = vpop.f32.mrf.mxu0
  %v3756 = vadd.f32 %v3587, %v3755
  %v3757 = vpop.f32.mrf.mxu0
  %v3758 = vadd.f32 %v3589, %v3757
  %3759 = vmatmul.bf16.gmra.mxu0 %v1415
  %v3760 = vpop.f32.mrf.mxu0
  %v3761 = vadd.f32 %v3592, %v3760
  %v3762 = vpop.f32.mrf.mxu0
  %v3763 = vadd.f32 %v3594, %v3762
  %3764 = vmatmul.bf16.gmra.mxu0 %v1424
  %v3765 = vpop.f32.mrf.mxu0
  %v3766 = vadd.f32 %v3597, %v3765
  %v3767 = vpop.f32.mrf.mxu0
  %v3768 = vadd.f32 %v3599, %v3767
  %3769 = vmatmul.bf16.gmra.mxu0 %v1433
  %v3770 = vpop.f32.mrf.mxu0
  %v3771 = vadd.f32 %v3602, %v3770
  %v3772 = vpop.f32.mrf.mxu0
  %v3773 = vadd.f32 %v3604, %v3772
  %3774 = vmatmul.bf16.gmra.mxu0 %v1442
  %v3775 = vpop.f32.mrf.mxu0
  %v3776 = vadd.f32 %v3607, %v3775
  %v3777 = vpop.f32.mrf.mxu0
  %v3778 = vadd.f32 %v3609, %v3777
  %3779 = vmatmul.bf16.gmra.mxu0 %v1451
  %v3780 = vpop.f32.mrf.mxu0
  %v3781 = vadd.f32 %v3612, %v3780
  %v3782 = vpop.f32.mrf.mxu0
  %v3783 = vadd.f32 %v3614, %v3782
  %3784 = vmatmul.bf16.gmra.mxu0 %v1460
  %v3785 = vpop.f32.mrf.mxu0
  %v3786 = vadd.f32 %v3617, %v3785
  %v3787 = vpop.f32.mrf.mxu0
  %v3788 = vadd.f32 %v3619, %v3787
  %3789 = vmatmul.bf16.gmra.mxu0 %v1469
  %v3790 = vpop.f32.mrf.mxu0
  %v3791 = vadd.f32 %v3622, %v3790
  %v3792 = vpop.f32.mrf.mxu0
  %v3793 = vadd.f32 %v3624, %v3792
  %3794 = vmatmul.bf16.gmra.mxu0 %v1478
  %v3795 = vpop.f32.mrf.mxu0
  %v3796 = vadd.f32 %v3627, %v3795
  %v3797 = vpop.f32.mrf.mxu0
  %v3798 = vadd.f32 %v3629, %v3797
  %3799 = vmatmul.bf16.gmra.mxu0 %v1487
  %v3800 = vpop.f32.mrf.mxu0
  %v3801 = vadd.f32 %v3632, %v3800
  %v3802 = vpop.f32.mrf.mxu0
  %v3803 = vadd.f32 %v3634, %v3802
  %3804 = vmatmul.bf16.gmra.mxu0 %v1496
  %v3805 = vpop.f32.mrf.mxu0
  %v3806 = vadd.f32 %v3637, %v3805
  %v3807 = vpop.f32.mrf.mxu0
  %v3808 = vadd.f32 %v3639, %v3807
  %3809 = vmatmul.bf16.gmra.mxu0 %v1505
  %v3810 = vpop.f32.mrf.mxu0
  %v3811 = vadd.f32 %v3642, %v3810
  %v3812 = vpop.f32.mrf.mxu0
  %v3813 = vadd.f32 %v3644, %v3812
  %3814 = vmatmul.bf16.gmra.mxu0 %v1514
  %v3815 = vpop.f32.mrf.mxu0
  %v3816 = vadd.f32 %v3647, %v3815
  %v3817 = vpop.f32.mrf.mxu0
  %v3818 = vadd.f32 %v3649, %v3817
  %3819 = vmatmul.bf16.gmra.mxu0 %v1523
  %v3820 = vpop.f32.mrf.mxu0
  %v3821 = vadd.f32 %v3652, %v3820
  %v3822 = vpop.f32.mrf.mxu0
  %v3823 = vadd.f32 %v3654, %v3822
  %3824 = vmatmul.bf16.gmra.mxu0 %v1532
  %v3825 = vpop.f32.mrf.mxu0
  %v3826 = vadd.f32 %v3657, %v3825
  %v3827 = vpop.f32.mrf.mxu0
  %v3828 = vadd.f32 %v3659, %v3827
  %3829 = vmatmul.bf16.gmra.mxu0 %v1541
  %v3830 = vpop.f32.mrf.mxu0
  %v3831 = vadd.f32 %v3662, %v3830
  %v3832 = vpop.f32.mrf.mxu0
  %v3833 = vadd.f32 %v3664, %v3832
  %3834 = vmatmul.bf16.gmra.mxu0 %v1550
  %v3835 = vpop.f32.mrf.mxu0
  %v3836 = vadd.f32 %v3667, %v3835
  %v3837 = vpop.f32.mrf.mxu0
  %v3838 = vadd.f32 %v3669, %v3837
  %3839 = vmatmul.bf16.gmra.mxu0 %v1559
  %v3840 = vpop.f32.mrf.mxu0
  %v3841 = vadd.f32 %v3672, %v3840
  %v3842 = vpop.f32.mrf.mxu0
  %v3843 = vadd.f32 %v3674, %v3842
  %3844 = vmatmul.bf16.gmra.mxu0 %v1568
  %v3845 = vpop.f32.mrf.mxu0
  %v3846 = vadd.f32 %v3677, %v3845
  %v3847 = vpop.f32.mrf.mxu0
  %v3848 = vadd.f32 %v3679, %v3847
  %3849 = vmatmul.bf16.gmra.mxu0 %v1577
  %v3850 = vpop.f32.mrf.mxu0
  %v3851 = vadd.f32 %v3682, %v3850
  %v3852 = vpop.f32.mrf.mxu0
  %v3853 = vadd.f32 %v3684, %v3852
  %3854 = vmatmul.bf16.gmra.mxu0 %v1586
  %v3855 = vpop.f32.mrf.mxu0
  %v3856 = vadd.f32 %v3687, %v3855
  %v3857 = vpop.f32.mrf.mxu0
  %v3858 = vadd.f32 %v3689, %v3857
  %3859 = vmatmul.bf16.gmra.mxu0 %v1595
  %v3860 = vpop.f32.mrf.mxu0
  %v3861 = vadd.f32 %v3692, %v3860
  %v3862 = vpop.f32.mrf.mxu0
  %v3863 = vadd.f32 %v3694, %v3862
  %3864 = vmatmul.bf16.gmra.mxu0 %v1604
  %v3865 = vpop.f32.mrf.mxu0
  %v3866 = vadd.f32 %v3697, %v3865
  %v3867 = vpop.f32.mrf.mxu0
  %v3868 = vadd.f32 %v3699, %v3867
  %3869 = vmatmul.bf16.gmra.mxu0 %v1613
  %v3870 = vpop.f32.mrf.mxu0
  %v3871 = vadd.f32 %v3702, %v3870
  %v3872 = vpop.f32.mrf.mxu0
  %v3873 = vadd.f32 %v3704, %v3872
  %3874 = vmatmul.bf16.gmra.mxu0 %v1622
  %v3875 = vpop.f32.mrf.mxu0
  %v3876 = vadd.f32 %v3707, %v3875
  %v3877 = vpop.f32.mrf.mxu0
  %v3878 = vadd.f32 %v3709, %v3877
  %3879 = vmatmul.bf16.gmra.mxu0 %v1631
  %v3880 = vpop.f32.mrf.mxu0
  %v3881 = vadd.f32 %v3712, %v3880
  %v3882 = vpop.f32.mrf.mxu0
  %v3883 = vadd.f32 %v3714, %v3882
  %3884 = vmatmul.bf16.gmra.mxu0 %v1640
  %v3885 = vpop.f32.mrf.mxu0
  %v3886 = vadd.f32 %v3717, %v3885
  %v3887 = vpop.f32.mrf.mxu0
  %v3888 = vadd.f32 %v3719, %v3887
  %3889 = vmatmul.bf16.gmra.mxu0 %v1649
  %v3890 = vpop.f32.mrf.mxu0
  %v3891 = vadd.f32 %v3722, %v3890
  %v3892 = vpop.f32.mrf.mxu0
  %v3893 = vadd.f32 %v3724, %v3892
  %3894 = vmatmul.bf16.gmra.mxu0 %v1658
  %v3895 = vpop.f32.mrf.mxu0
  %v3896 = vadd.f32 %v3727, %v3895
  %v3897 = vpop.f32.mrf.mxu0
  %v3898 = vadd.f32 %v3729, %v3897
  %3899 = vdwg.mxu0
  %3900 = vst [vmem:[%s2] sm:$0xff] %v3741
  %3901 = vst [vmem:[%s2 + $0x8] sm:$0xff] %v3743
  %3902 = vst [vmem:[%s2 + $0x10] sm:$0xff] %v3746
  %3903 = vst [vmem:[%s2 + $0x18] sm:$0xff] %v3748
  %3904 = vst [vmem:[%s2 + $0x20] sm:$0xff] %v3751
  %3905 = vst [vmem:[%s2 + $0x28] sm:$0xff] %v3753
  %3906 = vst [vmem:[%s2 + $0x30] sm:$0xff] %v3756
  %3907 = vst [vmem:[%s2 + $0x38] sm:$0xff] %v3758
  %3908 = vst [vmem:[%s2 + $0x40] sm:$0xff] %v3761
  %3909 = vst [vmem:[%s2 + $0x48] sm:$0xff] %v3763
  %3910 = vst [vmem:[%s2 + $0x50] sm:$0xff] %v3766
  %3911 = vst [vmem:[%s2 + $0x58] sm:$0xff] %v3768
  %3912 = vst [vmem:[%s2 + $0x60] sm:$0xff] %v3771
  %3913 = vst [vmem:[%s2 + $0x68] sm:$0xff] %v3773
  %3914 = vst [vmem:[%s2 + $0x70] sm:$0xff] %v3776
  %3915 = vst [vmem:[%s2 + $0x78] sm:$0xff] %v3778
  %3916 = vst [vmem:[%s2 + $0x80] sm:$0xff] %v3781
  %3917 = vst [vmem:[%s2 + $0x88] sm:$0xff] %v3783
  %3918 = vst [vmem:[%s2 + $0x90] sm:$0xff] %v3786
  %3919 = vst [vmem:[%s2 + $0x98] sm:$0xff] %v3788
  %3920 = vst [vmem:[%s2 + $0xa0] sm:$0xff] %v3791
  %3921 = vst [vmem:[%s2 + $0xa8] sm:$0xff] %v3793
  %3922 = vst [vmem:[%s2 + $0xb0] sm:$0xff] %v3796
  %3923 = vst [vmem:[%s2 + $0xb8] sm:$0xff] %v3798
  %3924 = vst [vmem:[%s2 + $0xc0] sm:$0xff] %v3801
  %3925 = vst [vmem:[%s2 + $0xc8] sm:$0xff] %v3803
  %3926 = vst [vmem:[%s2 + $0xd0] sm:$0xff] %v3806
  %3927 = vst [vmem:[%s2 + $0xd8] sm:$0xff] %v3808
  %3928 = vst [vmem:[%s2 + $0xe0] sm:$0xff] %v3811
  %3929 = vst [vmem:[%s2 + $0xe8] sm:$0xff] %v3813
  %3930 = vst [vmem:[%s2 + $0xf0] sm:$0xff] %v3816
  %3931 = vst [vmem:[%s2 + $0xf8] sm:$0xff] %v3818
  %3932 = vst [vmem:[%s2 + $0x100] sm:$0xff] %v3821
  %3933 = vst [vmem:[%s2 + $0x108] sm:$0xff] %v3823
  %3934 = vst [vmem:[%s2 + $0x110] sm:$0xff] %v3826
  %3935 = vst [vmem:[%s2 + $0x118] sm:$0xff] %v3828
  %3936 = vst [vmem:[%s2 + $0x120] sm:$0xff] %v3831
  %3937 = vst [vmem:[%s2 + $0x128] sm:$0xff] %v3833
  %3938 = vst [vmem:[%s2 + $0x130] sm:$0xff] %v3836
  %3939 = vst [vmem:[%s2 + $0x138] sm:$0xff] %v3838
  %3940 = vst [vmem:[%s2 + $0x140] sm:$0xff] %v3841
  %3941 = vst [vmem:[%s2 + $0x148] sm:$0xff] %v3843
  %3942 = vst [vmem:[%s2 + $0x150] sm:$0xff] %v3846
  %3943 = vst [vmem:[%s2 + $0x158] sm:$0xff] %v3848
  %3944 = vst [vmem:[%s2 + $0x160] sm:$0xff] %v3851
  %3945 = vst [vmem:[%s2 + $0x168] sm:$0xff] %v3853
  %3946 = vst [vmem:[%s2 + $0x170] sm:$0xff] %v3856
  %3947 = vst [vmem:[%s2 + $0x178] sm:$0xff] %v3858
  %3948 = vst [vmem:[%s2 + $0x180] sm:$0xff] %v3861
  %3949 = vst [vmem:[%s2 + $0x188] sm:$0xff] %v3863
  %3950 = vst [vmem:[%s2 + $0x190] sm:$0xff] %v3866
  %3951 = vst [vmem:[%s2 + $0x198] sm:$0xff] %v3868
  %3952 = vst [vmem:[%s2 + $0x1a0] sm:$0xff] %v3871
  %3953 = vst [vmem:[%s2 + $0x1a8] sm:$0xff] %v3873
  %3954 = vst [vmem:[%s2 + $0x1b0] sm:$0xff] %v3876
  %3955 = vst [vmem:[%s2 + $0x1b8] sm:$0xff] %v3878
  %3956 = vst [vmem:[%s2 + $0x1c0] sm:$0xff] %v3881
  %3957 = vst [vmem:[%s2 + $0x1c8] sm:$0xff] %v3883
  %3958 = vst [vmem:[%s2 + $0x1d0] sm:$0xff] %v3886
  %3959 = vst [vmem:[%s2 + $0x1d8] sm:$0xff] %v3888
  %3960 = vst [vmem:[%s2 + $0x1e0] sm:$0xff] %v3891
  %3961 = vst [vmem:[%s2 + $0x1e8] sm:$0xff] %v3893
  %3962 = vst [vmem:[%s2 + $0x1f0] sm:$0xff] %v3896
  %3963 = vst [vmem:[%s2 + $0x1f8] sm:$0xff] %v3898
  // Predicated region
  $region10: #{_lambda_.36} parent=0 // pred_check
    _
  $region11: #{_lambda_.36} parent=0 // pred_check_branch
    %3965 = sbr.rel (0) target = $region13
  $region12: #{_lambda_.36} parent=0 // pred_region
    _
  $region13: #{_lambda_.36} parent=0 // pred_fallthru
    _
  // Predicated region
  $region14: #{_lambda_.36} parent=0 // pred_check
    _
  $region15: #{_lambda_.36} parent=0 // pred_check_branch
    %3967 = sbr.rel (0) target = $region17
  $region16: #{_lambda_.36} parent=0 // pred_region
    _
  $region17: #{_lambda_.36} parent=0 // pred_fallthru
    _

// kernel: _lambda_.51
$region0: #{_lambda_.51}
  #allocation0 [shape = 'u32[]', space=smem, size = 0x4, offset = 0x4, fixed_abs, tag = 'smem constant byte address 0x4 - core index']
  #allocation1 [shape = 'u32[72,128]{1,0:T(1,128)}', space=vmem, size = 0x9000, scoped, tag = 'internal scratch']
  %s0 = inlined_call_operand.vmem [shape: f32[32,128], index: 0, kind: input, shape index: {}]
  %s1 = inlined_call_operand.vmem [shape: f32[1,128], index: 1, kind: output, shape index: {0}]
  %s2 = inlined_call_operand.vmem [shape: f32[1,128], index: 2, kind: output, shape index: {1}]
  %3 = xla_tuple %s1, %s2
  %s4 = sld [smem:[#allocation0]]
  $region26: #{_lambda_.51} parent=0
    _
  %s6 = ssub.s32 1, %s4
  %s7 = scalar_select 0, %s6, %s4
  // Predicated region
  $region2: #{_lambda_.51} parent=0 // pred_check
    _
  $region3: #{_lambda_.51} parent=0 // pred_check_branch
    %9 = sbr.rel (0) target = $region5
  $region4: #{_lambda_.51} parent=0 // pred_region
    _
  $region5: #{_lambda_.51} parent=0 // pred_fallthru
    _
  %p10 = scmp.eq.s32.totalorder 0, 0
  // Predicated region
  $region6: #{_lambda_.51} parent=0 // pred_check
    %p11 = pneg %p10
  $region7: #{_lambda_.51} parent=0 // pred_check_branch
    %13 = sbr.rel (%p11) target = $region9
  $region8: #{_lambda_.51} parent=0 // pred_region
    %14 = vst [vmem:[%s1] sm:$0x1] 0.0
    %15 = vst [vmem:[%s2] sm:$0x1] 0.0
  $region9: #{_lambda_.51} parent=0 // pred_fallthru
    _
  %v16 = vld [vmem:[%s0] sm:$0xff]
  %v17 = vld [vmem:[%s0 + $0x8] sm:$0xff]
  %v18 = vld [vmem:[%s0 + $0x10] sm:$0xff]
  %v19 = vld [vmem:[%s0 + $0x18] sm:$0xff]
  %v20 = vld [vmem:[%s1] sm:$0x1]
  %v21 = vadd.f32 %v16, %v17
  %v22 = vadd.f32 %v21, %v18
  %v23 = vadd.f32 %v22, %v19
  %v24 = vrot.slane %v23, 4
  %v25 = vadd.f32 %v23, %v24
  %v26 = vrot.slane %v25, 2
  %v27 = vadd.f32 %v25, %v26
  %v28 = vrot.slane %v27, 1
  %v29 = vadd.f32 %v27, %v28
  %v30 = vadd.f32 %v20, %v29
  %31 = vst [vmem:[%s1] sm:$0x1] %v30
  %v32 = vld [vmem:[%s2] sm:$0x1]
  %v33 = vmul.f32 %v16, %v16
  %v34 = vmul.f32 %v17, %v17
  %v35 = vmul.f32 %v18, %v18
  %v36 = vmul.f32 %v19, %v19
  %v37 = vadd.f32 %v33, %v34
  %v38 = vadd.f32 %v37, %v35
  %v39 = vadd.f32 %v38, %v36
  %v40 = vrot.slane %v39, 4
  %v41 = vadd.f32 %v39, %v40
  %v42 = vrot.slane %v41, 2
  %v43 = vadd.f32 %v41, %v42
  %v44 = vrot.slane %v43, 1
  %v45 = vadd.f32 %v43, %v44
  %v46 = vadd.f32 %v32, %v45
  %47 = vst [vmem:[%s2] sm:$0x1] %v46
  // Predicated region
  $region10: #{_lambda_.51} parent=0 // pred_check
    _
  $region11: #{_lambda_.51} parent=0 // pred_check_branch
    %49 = sbr.rel (0) target = $region13
  $region12: #{_lambda_.51} parent=0 // pred_region
    _
  $region13: #{_lambda_.51} parent=0 // pred_fallthru
    _
  // Predicated region
  $region14: #{_lambda_.51} parent=0 // pred_check
    _
  $region15: #{_lambda_.51} parent=0 // pred_check_branch
    %51 = sbr.rel (0) target = $region17
  $region16: #{_lambda_.51} parent=0 // pred_region
    _
  $region17: #{_lambda_.51} parent=0 // pred_fallthru
    _
  // Predicated region
  $region18: #{_lambda_.51} parent=0 // pred_check
    _
  $region19: #{_lambda_.51} parent=0 // pred_check_branch
    %53 = sbr.rel (0) target = $region21
  $region20: #{_lambda_.51} parent=0 // pred_region
    _
  $region21: #{_lambda_.51} parent=0 // pred_fallthru
    _
  // Predicated region
  $region22: #{_lambda_.51} parent=0 // pred_check
    _
  $region23: #{_lambda_.51} parent=0 // pred_check_branch
    %55 = sbr.rel (0) target = $region25
  $region24: #{_lambda_.51} parent=0 // pred_region
    _
  $region25: #{_lambda_.51} parent=0 // pred_fallthru
    _

// kernel: _lambda_.52
$region0: #{_lambda_.52}
  #allocation0 [shape = 'u32[]', space=smem, size = 0x4, offset = 0x4, fixed_abs, tag = 'smem constant byte address 0x4 - core index']
  #allocation1 [shape = 'u32[72,128]{1,0:T(1,128)}', space=vmem, size = 0x9000, scoped, tag = 'internal scratch']
  %s0 = inlined_call_operand.vmem [shape: f32[32,128], index: 0, kind: input, shape index: {}]
  %s1 = inlined_call_operand.vmem [shape: f32[1,128], index: 1, kind: input, shape index: {}]
  %s2 = inlined_call_operand.vmem [shape: f32[1,128], index: 2, kind: input, shape index: {}]
  %s3 = inlined_call_operand.vmem [shape: f32[32,128], index: 3, kind: output, shape index: {}]
  %s4 = sld [smem:[#allocation0]]
  $region22: #{_lambda_.52} parent=0
    _
  %s6 = ssub.s32 1, %s4
  %s7 = scalar_select 0, %s6, %s4
  // Predicated region
  $region2: #{_lambda_.52} parent=0 // pred_check
    _
  $region3: #{_lambda_.52} parent=0 // pred_check_branch
    %9 = sbr.rel (0) target = $region5
  $region4: #{_lambda_.52} parent=0 // pred_region
    _
  $region5: #{_lambda_.52} parent=0 // pred_fallthru
    _
  // Predicated region
  $region6: #{_lambda_.52} parent=0 // pred_check
    _
  $region7: #{_lambda_.52} parent=0 // pred_check_branch
    %11 = sbr.rel (0) target = $region9
  $region8: #{_lambda_.52} parent=0 // pred_region
    _
  $region9: #{_lambda_.52} parent=0 // pred_fallthru
    _
  // Predicated region
  $region10: #{_lambda_.52} parent=0 // pred_check
    _
  $region11: #{_lambda_.52} parent=0 // pred_check_branch
    %13 = sbr.rel (0) target = $region13
  $region12: #{_lambda_.52} parent=0 // pred_region
    _
  $region13: #{_lambda_.52} parent=0 // pred_fallthru
    _
  %v14 = vld [vmem:[%s0] sm:$0xff]
  %v15 = vld [vmem:[%s0 + $0x8] sm:$0xff]
  %v16 = vld [vmem:[%s0 + $0x10] sm:$0xff]
  %v17 = vld [vmem:[%s0 + $0x18] sm:$0xff]
  %v18 = vld [vmem:[%s1] sm:$0x1]
  %v20 = vperm.slane %v18, 0
  %v22 = vmul.f32 %v14, %v20
  %v23 = vmul.f32 %v15, %v20
  %v24 = vmul.f32 %v16, %v20
  %v25 = vmul.f32 %v17, %v20
  %v26 = vld [vmem:[%s2] sm:$0x1]
  %v28 = vperm.slane %v26, 0
  %v30 = vadd.f32 %v22, %v28
  %v31 = vadd.f32 %v23, %v28
  %v32 = vadd.f32 %v24, %v28
  %v33 = vadd.f32 %v25, %v28
  %v34 = vmax.f32 %v30, 0.0
  %v35 = vmax.f32 %v31, 0.0
  %v36 = vmax.f32 %v32, 0.0
  %v37 = vmax.f32 %v33, 0.0
  %38 = vst [vmem:[%s3] sm:$0xff] %v34
  %39 = vst [vmem:[%s3 + $0x8] sm:$0xff] %v35
  %40 = vst [vmem:[%s3 + $0x10] sm:$0xff] %v36
  %41 = vst [vmem:[%s3 + $0x18] sm:$0xff] %v37
  // Predicated region
  $region14: #{_lambda_.52} parent=0 // pred_check
    _
  $region15: #{_lambda_.52} parent=0 // pred_check_branch
    %43 = sbr.rel (0) target = $region17
  $region16: #{_lambda_.52} parent=0 // pred_region
    _
  $region17: #{_lambda_.52} parent=0 // pred_fallthru
    _
  // Predicated region
  $region18: #{_lambda_.52} parent=0 // pred_check
    _
  $region19: #{_lambda_.52} parent=0 // pred_check_branch
    %45 = sbr.rel (0) target = $region21
  $region20: #{_lambda_.52} parent=0 // pred_region
    _
  $region21: #{_lambda_.52} parent=0 // pred_fallthru
    _

// kernel: _lambda_.50
$region0: #{_lambda_.50}
  #allocation0 [shape = 'u32[]', space=smem, size = 0x4, offset = 0x4, fixed_abs, tag = 'smem constant byte address 0x4 - core index']
  #allocation1 [shape = 'u32[72,128]{1,0:T(1,128)}', space=vmem, size = 0x9000, scoped, tag = 'internal scratch']
  %s0 = inlined_call_operand.vmem [shape: bf16[32,1152], index: 0, kind: input, shape index: {}]
  %s1 = inlined_call_operand.vmem [shape: bf16[1152,128], index: 1, kind: input, shape index: {}]
  %s2 = inlined_call_operand.vmem [shape: f32[32,128], index: 2, kind: output, shape index: {}]
  %s3 = sld [smem:[#allocation0]]
  $region18: #{_lambda_.50} parent=0
    _
  %s5 = ssub.s32 1, %s3
  %s6 = scalar_select 0, %s5, %s3
  // Predicated region
  $region2: #{_lambda_.50} parent=0 // pred_check
    _
  $region3: #{_lambda_.50} parent=0 // pred_check_branch
    %8 = sbr.rel (0) target = $region5
  $region4: #{_lambda_.50} parent=0 // pred_region
    _
  $region5: #{_lambda_.50} parent=0 // pred_fallthru
    _
  // Predicated region
  $region6: #{_lambda_.50} parent=0 // pred_check
    _
  $region7: #{_lambda_.50} parent=0 // pred_check_branch
    %10 = sbr.rel (0) target = $region9
  $region8: #{_lambda_.50} parent=0 // pred_region
    _
  $region9: #{_lambda_.50} parent=0 // pred_fallthru
    _
  %v11 = vld [vmem:[%s0] sm:$0xff]
  %v12 = vld [vmem:[%s0 + $0x8] sm:$0xff]
  %v13 = vld [vmem:[%s0 + $0x10] sm:$0xff]
  %v14 = vld [vmem:[%s0 + $0x18] sm:$0xff]
  %v15 = vld [vmem:[%s0 + $0x20] sm:$0xf]
  %v16 = vld [vmem:[%s0 + $0x24] sm:$0xff]
  %v17 = vld [vmem:[%s0 + $0x2c] sm:$0xff]
  %v18 = vld [vmem:[%s0 + $0x34] sm:$0xff]
  %v19 = vld [vmem:[%s0 + $0x3c] sm:$0xff]
  %v20 = vld [vmem:[%s0 + $0x44] sm:$0xf]
  %v21 = vld [vmem:[%s0 + $0x48] sm:$0xff]
  %v22 = vld [vmem:[%s0 + $0x50] sm:$0xff]
  %v23 = vld [vmem:[%s0 + $0x58] sm:$0xff]
  %v24 = vld [vmem:[%s0 + $0x60] sm:$0xff]
  %v25 = vld [vmem:[%s0 + $0x68] sm:$0xf]
  %v26 = vld [vmem:[%s0 + $0x6c] sm:$0xff]
  %v27 = vld [vmem:[%s0 + $0x74] sm:$0xff]
  %v28 = vld [vmem:[%s0 + $0x7c] sm:$0xff]
  %v29 = vld [vmem:[%s0 + $0x84] sm:$0xff]
  %v30 = vld [vmem:[%s0 + $0x8c] sm:$0xf]
  %v31 = vld [vmem:[%s1] sm:$0xf]
  %v32 = vld [vmem:[%s1 + $0x4] sm:$0xf]
  %v33 = vld [vmem:[%s1 + $0x8] sm:$0xf]
  %v34 = vld [vmem:[%s1 + $0xc] sm:$0xf]
  %v35 = vld [vmem:[%s1 + $0x10] sm:$0xf]
  %v36 = vld [vmem:[%s1 + $0x14] sm:$0xf]
  %v37 = vld [vmem:[%s1 + $0x18] sm:$0xf]
  %v38 = vld [vmem:[%s1 + $0x1c] sm:$0xf]
  %v39 = vld [vmem:[%s1 + $0x20] sm:$0xf]
  %v40 = vld [vmem:[%s1 + $0x24] sm:$0xf]
  %v41 = vld [vmem:[%s1 + $0x28] sm:$0xf]
  %v42 = vld [vmem:[%s1 + $0x2c] sm:$0xf]
  %v43 = vld [vmem:[%s1 + $0x30] sm:$0xf]
  %v44 = vld [vmem:[%s1 + $0x34] sm:$0xf]
  %v45 = vld [vmem:[%s1 + $0x38] sm:$0xf]
  %v46 = vld [vmem:[%s1 + $0x3c] sm:$0xf]
  %v47 = vld [vmem:[%s1 + $0x40] sm:$0xf]
  %v48 = vld [vmem:[%s1 + $0x44] sm:$0xf]
  %v49 = vld [vmem:[%s1 + $0x48] sm:$0xf]
  %v50 = vld [vmem:[%s1 + $0x4c] sm:$0xf]
  %v51 = vld [vmem:[%s1 + $0x50] sm:$0xf]
  %v52 = vld [vmem:[%s1 + $0x54] sm:$0xf]
  %v53 = vld [vmem:[%s1 + $0x58] sm:$0xf]
  %v54 = vld [vmem:[%s1 + $0x5c] sm:$0xf]
  %v55 = vld [vmem:[%s1 + $0x60] sm:$0xf]
  %v56 = vld [vmem:[%s1 + $0x64] sm:$0xf]
  %v57 = vld [vmem:[%s1 + $0x68] sm:$0xf]
  %v58 = vld [vmem:[%s1 + $0x6c] sm:$0xf]
  %v59 = vld [vmem:[%s1 + $0x70] sm:$0xf]
  %v60 = vld [vmem:[%s1 + $0x74] sm:$0xf]
  %v61 = vld [vmem:[%s1 + $0x78] sm:$0xf]
  %v62 = vld [vmem:[%s1 + $0x7c] sm:$0xf]
  %v63 = vld [vmem:[%s1 + $0x80] sm:$0xf]
  %v64 = vld [vmem:[%s1 + $0x84] sm:$0xf]
  %v65 = vld [vmem:[%s1 + $0x88] sm:$0xf]
  %v66 = vld [vmem:[%s1 + $0x8c] sm:$0xf]
  %v67 = vld [vmem:[%s1 + $0x90] sm:$0xf]
  %v68 = vld [vmem:[%s1 + $0x94] sm:$0xf]
  %v69 = vld [vmem:[%s1 + $0x98] sm:$0xf]
  %v70 = vld [vmem:[%s1 + $0x9c] sm:$0xf]
  %v71 = vld [vmem:[%s1 + $0xa0] sm:$0xf]
  %v72 = vld [vmem:[%s1 + $0xa4] sm:$0xf]
  %v73 = vld [vmem:[%s1 + $0xa8] sm:$0xf]
  %v74 = vld [vmem:[%s1 + $0xac] sm:$0xf]
  %v75 = vld [vmem:[%s1 + $0xb0] sm:$0xf]
  %v76 = vld [vmem:[%s1 + $0xb4] sm:$0xf]
  %v77 = vld [vmem:[%s1 + $0xb8] sm:$0xf]
  %v78 = vld [vmem:[%s1 + $0xbc] sm:$0xf]
  %v79 = vld [vmem:[%s1 + $0xc0] sm:$0xf]
  %v80 = vld [vmem:[%s1 + $0xc4] sm:$0xf]
  %v81 = vld [vmem:[%s1 + $0xc8] sm:$0xf]
  %v82 = vld [vmem:[%s1 + $0xcc] sm:$0xf]
  %v83 = vld [vmem:[%s1 + $0xd0] sm:$0xf]
  %v84 = vld [vmem:[%s1 + $0xd4] sm:$0xf]
  %v85 = vld [vmem:[%s1 + $0xd8] sm:$0xf]
  %v86 = vld [vmem:[%s1 + $0xdc] sm:$0xf]
  %v87 = vld [vmem:[%s1 + $0xe0] sm:$0xf]
  %v88 = vld [vmem:[%s1 + $0xe4] sm:$0xf]
  %v89 = vld [vmem:[%s1 + $0xe8] sm:$0xf]
  %v90 = vld [vmem:[%s1 + $0xec] sm:$0xf]
  %v91 = vld [vmem:[%s1 + $0xf0] sm:$0xf]
  %v92 = vld [vmem:[%s1 + $0xf4] sm:$0xf]
  %v93 = vld [vmem:[%s1 + $0xf8] sm:$0xf]
  %v94 = vld [vmem:[%s1 + $0xfc] sm:$0xf]
  %v95 = vld [vmem:[%s1 + $0x100] sm:$0xf]
  %v96 = vld [vmem:[%s1 + $0x104] sm:$0xf]
  %v97 = vld [vmem:[%s1 + $0x108] sm:$0xf]
  %v98 = vld [vmem:[%s1 + $0x10c] sm:$0xf]
  %v99 = vld [vmem:[%s1 + $0x110] sm:$0xf]
  %v100 = vld [vmem:[%s1 + $0x114] sm:$0xf]
  %v101 = vld [vmem:[%s1 + $0x118] sm:$0xf]
  %v102 = vld [vmem:[%s1 + $0x11c] sm:$0xf]
  %v103 = vld [vmem:[%s1 + $0x120] sm:$0xf]
  %v104 = vld [vmem:[%s1 + $0x124] sm:$0xf]
  %v105 = vld [vmem:[%s1 + $0x128] sm:$0xf]
  %v106 = vld [vmem:[%s1 + $0x12c] sm:$0xf]
  %v107 = vld [vmem:[%s1 + $0x130] sm:$0xf]
  %v108 = vld [vmem:[%s1 + $0x134] sm:$0xf]
  %v109 = vld [vmem:[%s1 + $0x138] sm:$0xf]
  %v110 = vld [vmem:[%s1 + $0x13c] sm:$0xf]
  %v111 = vld [vmem:[%s1 + $0x140] sm:$0xf]
  %v112 = vld [vmem:[%s1 + $0x144] sm:$0xf]
  %v113 = vld [vmem:[%s1 + $0x148] sm:$0xf]
  %v114 = vld [vmem:[%s1 + $0x14c] sm:$0xf]
  %v115 = vld [vmem:[%s1 + $0x150] sm:$0xf]
  %v116 = vld [vmem:[%s1 + $0x154] sm:$0xf]
  %v117 = vld [vmem:[%s1 + $0x158] sm:$0xf]
  %v118 = vld [vmem:[%s1 + $0x15c] sm:$0xf]
  %v119 = vld [vmem:[%s1 + $0x160] sm:$0xf]
  %v120 = vld [vmem:[%s1 + $0x164] sm:$0xf]
  %v121 = vld [vmem:[%s1 + $0x168] sm:$0xf]
  %v122 = vld [vmem:[%s1 + $0x16c] sm:$0xf]
  %v123 = vld [vmem:[%s1 + $0x170] sm:$0xf]
  %v124 = vld [vmem:[%s1 + $0x174] sm:$0xf]
  %v125 = vld [vmem:[%s1 + $0x178] sm:$0xf]
  %v126 = vld [vmem:[%s1 + $0x17c] sm:$0xf]
  %v127 = vld [vmem:[%s1 + $0x180] sm:$0xf]
  %v128 = vld [vmem:[%s1 + $0x184] sm:$0xf]
  %v129 = vld [vmem:[%s1 + $0x188] sm:$0xf]
  %v130 = vld [vmem:[%s1 + $0x18c] sm:$0xf]
  %v131 = vld [vmem:[%s1 + $0x190] sm:$0xf]
  %v132 = vld [vmem:[%s1 + $0x194] sm:$0xf]
  %v133 = vld [vmem:[%s1 + $0x198] sm:$0xf]
  %v134 = vld [vmem:[%s1 + $0x19c] sm:$0xf]
  %v135 = vld [vmem:[%s1 + $0x1a0] sm:$0xf]
  %v136 = vld [vmem:[%s1 + $0x1a4] sm:$0xf]
  %v137 = vld [vmem:[%s1 + $0x1a8] sm:$0xf]
  %v138 = vld [vmem:[%s1 + $0x1ac] sm:$0xf]
  %v139 = vld [vmem:[%s1 + $0x1b0] sm:$0xf]
  %v140 = vld [vmem:[%s1 + $0x1b4] sm:$0xf]
  %v141 = vld [vmem:[%s1 + $0x1b8] sm:$0xf]
  %v142 = vld [vmem:[%s1 + $0x1bc] sm:$0xf]
  %v143 = vld [vmem:[%s1 + $0x1c0] sm:$0xf]
  %v144 = vld [vmem:[%s1 + $0x1c4] sm:$0xf]
  %v145 = vld [vmem:[%s1 + $0x1c8] sm:$0xf]
  %v146 = vld [vmem:[%s1 + $0x1cc] sm:$0xf]
  %v147 = vld [vmem:[%s1 + $0x1d0] sm:$0xf]
  %v148 = vld [vmem:[%s1 + $0x1d4] sm:$0xf]
  %v149 = vld [vmem:[%s1 + $0x1d8] sm:$0xf]
  %v150 = vld [vmem:[%s1 + $0x1dc] sm:$0xf]
  %v151 = vld [vmem:[%s1 + $0x1e0] sm:$0xf]
  %v152 = vld [vmem:[%s1 + $0x1e4] sm:$0xf]
  %v153 = vld [vmem:[%s1 + $0x1e8] sm:$0xf]
  %v154 = vld [vmem:[%s1 + $0x1ec] sm:$0xf]
  %v155 = vld [vmem:[%s1 + $0x1f0] sm:$0xf]
  %v156 = vld [vmem:[%s1 + $0x1f4] sm:$0xf]
  %v157 = vld [vmem:[%s1 + $0x1f8] sm:$0xf]
  %v158 = vld [vmem:[%s1 + $0x1fc] sm:$0xf]
  %v159 = vld [vmem:[%s1 + $0x200] sm:$0xf]
  %v160 = vld [vmem:[%s1 + $0x204] sm:$0xf]
  %v161 = vld [vmem:[%s1 + $0x208] sm:$0xf]
  %v162 = vld [vmem:[%s1 + $0x20c] sm:$0xf]
  %v163 = vld [vmem:[%s1 + $0x210] sm:$0xf]
  %v164 = vld [vmem:[%s1 + $0x214] sm:$0xf]
  %v165 = vld [vmem:[%s1 + $0x218] sm:$0xf]
  %v166 = vld [vmem:[%s1 + $0x21c] sm:$0xf]
  %v167 = vld [vmem:[%s1 + $0x220] sm:$0xf]
  %v168 = vld [vmem:[%s1 + $0x224] sm:$0xf]
  %v169 = vld [vmem:[%s1 + $0x228] sm:$0xf]
  %v170 = vld [vmem:[%s1 + $0x22c] sm:$0xf]
  %v171 = vld [vmem:[%s1 + $0x230] sm:$0xf]
  %v172 = vld [vmem:[%s1 + $0x234] sm:$0xf]
  %v173 = vld [vmem:[%s1 + $0x238] sm:$0xf]
  %v174 = vld [vmem:[%s1 + $0x23c] sm:$0xf]
  %v195 = vunpack.c.l.b16 %v11
  %v196 = vunpack.c.h.b16 %v11
  %v197 = vunpack.c.l.b16 %v12
  %v198 = vunpack.c.h.b16 %v12
  %v199 = vunpack.c.l.b16 %v13
  %v200 = vunpack.c.h.b16 %v13
  %v201 = vunpack.c.l.b16 %v14
  %v202 = vunpack.c.h.b16 %v14
  %v203 = vunpack.c.l.b16 %v15
  %v204 = vunpack.c.l.b16 %v16
  %v205 = vunpack.c.h.b16 %v16
  %v206 = vunpack.c.l.b16 %v17
  %v207 = vunpack.c.h.b16 %v17
  %v208 = vunpack.c.l.b16 %v18
  %v209 = vunpack.c.h.b16 %v18
  %v210 = vunpack.c.l.b16 %v19
  %v211 = vunpack.c.h.b16 %v19
  %v212 = vunpack.c.l.b16 %v20
  %v213 = vunpack.c.l.b16 %v21
  %v214 = vunpack.c.h.b16 %v21
  %v215 = vunpack.c.l.b16 %v22
  %v216 = vunpack.c.h.b16 %v22
  %v217 = vunpack.c.l.b16 %v23
  %v218 = vunpack.c.h.b16 %v23
  %v219 = vunpack.c.l.b16 %v24
  %v220 = vunpack.c.h.b16 %v24
  %v221 = vunpack.c.l.b16 %v25
  %v222 = vunpack.c.l.b16 %v26
  %v223 = vunpack.c.h.b16 %v26
  %v224 = vunpack.c.l.b16 %v27
  %v225 = vunpack.c.h.b16 %v27
  %v226 = vunpack.c.l.b16 %v28
  %v227 = vunpack.c.h.b16 %v28
  %v228 = vunpack.c.l.b16 %v29
  %v229 = vunpack.c.h.b16 %v29
  %v230 = vunpack.c.l.b16 %v30
  %v231 = vpack.c.b16 %v204, %v195
  %v232 = vpack.c.b16 %v205, %v196
  %v233 = vpack.c.b16 %v206, %v197
  %v234 = vpack.c.b16 %v207, %v198
  %v235 = vpack.c.b16 %v208, %v199
  %v236 = vpack.c.b16 %v209, %v200
  %v237 = vpack.c.b16 %v210, %v201
  %v238 = vpack.c.b16 %v211, %v202
  %v239 = vpack.c.b16 %v212, %v203
  %v240 = vpack.c.b16 %v222, %v213
  %v241 = vpack.c.b16 %v223, %v214
  %v242 = vpack.c.b16 %v224, %v215
  %v243 = vpack.c.b16 %v225, %v216
  %v244 = vpack.c.b16 %v226, %v217
  %v245 = vpack.c.b16 %v227, %v218
  %v246 = vpack.c.b16 %v228, %v219
  %v247 = vpack.c.b16 %v229, %v220
  %v248 = vpack.c.b16 %v230, %v221
  %v411 = vunpack.c.l.b16 %v31
  %v412 = vunpack.c.l.b16 %v32
  %v413 = vunpack.c.l.b16 %v33
  %v414 = vunpack.c.l.b16 %v34
  %v415 = vunpack.c.l.b16 %v35
  %v416 = vunpack.c.l.b16 %v36
  %v417 = vunpack.c.l.b16 %v37
  %v418 = vunpack.c.l.b16 %v38
  %v419 = vunpack.c.l.b16 %v39
  %v420 = vunpack.c.l.b16 %v40
  %v421 = vunpack.c.l.b16 %v41
  %v422 = vunpack.c.l.b16 %v42
  %v423 = vunpack.c.l.b16 %v43
  %v424 = vunpack.c.l.b16 %v44
  %v425 = vunpack.c.l.b16 %v45
  %v426 = vunpack.c.l.b16 %v46
  %v427 = vunpack.c.l.b16 %v47
  %v428 = vunpack.c.l.b16 %v48
  %v429 = vunpack.c.l.b16 %v49
  %v430 = vunpack.c.l.b16 %v50
  %v431 = vunpack.c.l.b16 %v51
  %v432 = vunpack.c.l.b16 %v52
  %v433 = vunpack.c.l.b16 %v53
  %v434 = vunpack.c.l.b16 %v54
  %v435 = vunpack.c.l.b16 %v55
  %v436 = vunpack.c.l.b16 %v56
  %v437 = vunpack.c.l.b16 %v57
  %v438 = vunpack.c.l.b16 %v58
  %v439 = vunpack.c.l.b16 %v59
  %v440 = vunpack.c.l.b16 %v60
  %v441 = vunpack.c.l.b16 %v61
  %v442 = vunpack.c.l.b16 %v62
  %v443 = vunpack.c.l.b16 %v63
  %v444 = vunpack.c.l.b16 %v64
  %v445 = vunpack.c.l.b16 %v65
  %v446 = vunpack.c.l.b16 %v66
  %v447 = vunpack.c.l.b16 %v67
  %v448 = vunpack.c.l.b16 %v68
  %v449 = vunpack.c.l.b16 %v69
  %v450 = vunpack.c.l.b16 %v70
  %v451 = vunpack.c.l.b16 %v71
  %v452 = vunpack.c.l.b16 %v72
  %v453 = vunpack.c.l.b16 %v73
  %v454 = vunpack.c.l.b16 %v74
  %v455 = vunpack.c.l.b16 %v75
  %v456 = vunpack.c.l.b16 %v76
  %v457 = vunpack.c.l.b16 %v77
  %v458 = vunpack.c.l.b16 %v78
  %v459 = vunpack.c.l.b16 %v79
  %v460 = vunpack.c.l.b16 %v80
  %v461 = vunpack.c.l.b16 %v81
  %v462 = vunpack.c.l.b16 %v82
  %v463 = vunpack.c.l.b16 %v83
  %v464 = vunpack.c.l.b16 %v84
  %v465 = vunpack.c.l.b16 %v85
  %v466 = vunpack.c.l.b16 %v86
  %v467 = vunpack.c.l.b16 %v87
  %v468 = vunpack.c.l.b16 %v88
  %v469 = vunpack.c.l.b16 %v89
  %v470 = vunpack.c.l.b16 %v90
  %v471 = vunpack.c.l.b16 %v91
  %v472 = vunpack.c.l.b16 %v92
  %v473 = vunpack.c.l.b16 %v93
  %v474 = vunpack.c.l.b16 %v94
  %v475 = vunpack.c.l.b16 %v95
  %v476 = vunpack.c.l.b16 %v96
  %v477 = vunpack.c.l.b16 %v97
  %v478 = vunpack.c.l.b16 %v98
  %v479 = vunpack.c.l.b16 %v99
  %v480 = vunpack.c.l.b16 %v100
  %v481 = vunpack.c.l.b16 %v101
  %v482 = vunpack.c.l.b16 %v102
  %v483 = vunpack.c.l.b16 %v103
  %v484 = vunpack.c.l.b16 %v104
  %v485 = vunpack.c.l.b16 %v105
  %v486 = vunpack.c.l.b16 %v106
  %v487 = vunpack.c.l.b16 %v107
  %v488 = vunpack.c.l.b16 %v108
  %v489 = vunpack.c.l.b16 %v109
  %v490 = vunpack.c.l.b16 %v110
  %v491 = vunpack.c.l.b16 %v111
  %v492 = vunpack.c.l.b16 %v112
  %v493 = vunpack.c.l.b16 %v113
  %v494 = vunpack.c.l.b16 %v114
  %v495 = vunpack.c.l.b16 %v115
  %v496 = vunpack.c.l.b16 %v116
  %v497 = vunpack.c.l.b16 %v117
  %v498 = vunpack.c.l.b16 %v118
  %v499 = vunpack.c.l.b16 %v119
  %v500 = vunpack.c.l.b16 %v120
  %v501 = vunpack.c.l.b16 %v121
  %v502 = vunpack.c.l.b16 %v122
  %v503 = vunpack.c.l.b16 %v123
  %v504 = vunpack.c.l.b16 %v124
  %v505 = vunpack.c.l.b16 %v125
  %v506 = vunpack.c.l.b16 %v126
  %v507 = vunpack.c.l.b16 %v127
  %v508 = vunpack.c.l.b16 %v128
  %v509 = vunpack.c.l.b16 %v129
  %v510 = vunpack.c.l.b16 %v130
  %v511 = vunpack.c.l.b16 %v131
  %v512 = vunpack.c.l.b16 %v132
  %v513 = vunpack.c.l.b16 %v133
  %v514 = vunpack.c.l.b16 %v134
  %v515 = vunpack.c.l.b16 %v135
  %v516 = vunpack.c.l.b16 %v136
  %v517 = vunpack.c.l.b16 %v137
  %v518 = vunpack.c.l.b16 %v138
  %v519 = vunpack.c.l.b16 %v139
  %v520 = vunpack.c.l.b16 %v140
  %v521 = vunpack.c.l.b16 %v141
  %v522 = vunpack.c.l.b16 %v142
  %v523 = vunpack.c.l.b16 %v143
  %v524 = vunpack.c.l.b16 %v144
  %v525 = vunpack.c.l.b16 %v145
  %v526 = vunpack.c.l.b16 %v146
  %v527 = vunpack.c.l.b16 %v147
  %v528 = vunpack.c.l.b16 %v148
  %v529 = vunpack.c.l.b16 %v149
  %v530 = vunpack.c.l.b16 %v150
  %v531 = vunpack.c.l.b16 %v151
  %v532 = vunpack.c.l.b16 %v152
  %v533 = vunpack.c.l.b16 %v153
  %v534 = vunpack.c.l.b16 %v154
  %v535 = vunpack.c.l.b16 %v155
  %v536 = vunpack.c.l.b16 %v156
  %v537 = vunpack.c.l.b16 %v157
  %v538 = vunpack.c.l.b16 %v158
  %v539 = vunpack.c.l.b16 %v159
  %v540 = vunpack.c.l.b16 %v160
  %v541 = vunpack.c.l.b16 %v161
  %v542 = vunpack.c.l.b16 %v162
  %v543 = vunpack.c.l.b16 %v163
  %v544 = vunpack.c.l.b16 %v164
  %v545 = vunpack.c.l.b16 %v165
  %v546 = vunpack.c.l.b16 %v166
  %v547 = vunpack.c.l.b16 %v167
  %v548 = vunpack.c.l.b16 %v168
  %v549 = vunpack.c.l.b16 %v169
  %v550 = vunpack.c.l.b16 %v170
  %v551 = vunpack.c.l.b16 %v171
  %v552 = vunpack.c.l.b16 %v172
  %v553 = vunpack.c.l.b16 %v173
  %v554 = vunpack.c.l.b16 %v174
  %v555 = vpack.c.b16 %v412, %v411
  %v556 = vpack.c.b16 %v414, %v413
  %v557 = vpack.c.b16 %v416, %v415
  %v558 = vpack.c.b16 %v418, %v417
  %v559 = vpack.c.b16 %v420, %v419
  %v560 = vpack.c.b16 %v422, %v421
  %v561 = vpack.c.b16 %v424, %v423
  %v562 = vpack.c.b16 %v426, %v425
  %v563 = vpack.c.b16 %v428, %v427
  %v564 = vpack.c.b16 %v430, %v429
  %v565 = vpack.c.b16 %v432, %v431
  %v566 = vpack.c.b16 %v434, %v433
  %v567 = vpack.c.b16 %v436, %v435
  %v568 = vpack.c.b16 %v438, %v437
  %v569 = vpack.c.b16 %v440, %v439
  %v570 = vpack.c.b16 %v442, %v441
  %v571 = vpack.c.b16 %v444, %v443
  %v572 = vpack.c.b16 %v446, %v445
  %v573 = vpack.c.b16 %v448, %v447
  %v574 = vpack.c.b16 %v450, %v449
  %v575 = vpack.c.b16 %v452, %v451
  %v576 = vpack.c.b16 %v454, %v453
  %v577 = vpack.c.b16 %v456, %v455
  %v578 = vpack.c.b16 %v458, %v457
  %v579 = vpack.c.b16 %v460, %v459
  %v580 = vpack.c.b16 %v462, %v461
  %v581 = vpack.c.b16 %v464, %v463
  %v582 = vpack.c.b16 %v466, %v465
  %v583 = vpack.c.b16 %v468, %v467
  %v584 = vpack.c.b16 %v470, %v469
  %v585 = vpack.c.b16 %v472, %v471
  %v586 = vpack.c.b16 %v474, %v473
  %v587 = vpack.c.b16 %v476, %v475
  %v588 = vpack.c.b16 %v478, %v477
  %v589 = vpack.c.b16 %v480, %v479
  %v590 = vpack.c.b16 %v482, %v481
  %v591 = vpack.c.b16 %v484, %v483
  %v592 = vpack.c.b16 %v486, %v485
  %v593 = vpack.c.b16 %v488, %v487
  %v594 = vpack.c.b16 %v490, %v489
  %v595 = vpack.c.b16 %v492, %v491
  %v596 = vpack.c.b16 %v494, %v493
  %v597 = vpack.c.b16 %v496, %v495
  %v598 = vpack.c.b16 %v498, %v497
  %v599 = vpack.c.b16 %v500, %v499
  %v600 = vpack.c.b16 %v502, %v501
  %v601 = vpack.c.b16 %v504, %v503
  %v602 = vpack.c.b16 %v506, %v505
  %v603 = vpack.c.b16 %v508, %v507
  %v604 = vpack.c.b16 %v510, %v509
  %v605 = vpack.c.b16 %v512, %v511
  %v606 = vpack.c.b16 %v514, %v513
  %v607 = vpack.c.b16 %v516, %v515
  %v608 = vpack.c.b16 %v518, %v517
  %v609 = vpack.c.b16 %v520, %v519
  %v610 = vpack.c.b16 %v522, %v521
  %v611 = vpack.c.b16 %v524, %v523
  %v612 = vpack.c.b16 %v526, %v525
  %v613 = vpack.c.b16 %v528, %v527
  %v614 = vpack.c.b16 %v530, %v529
  %v615 = vpack.c.b16 %v532, %v531
  %v616 = vpack.c.b16 %v534, %v533
  %v617 = vpack.c.b16 %v536, %v535
  %v618 = vpack.c.b16 %v538, %v537
  %v619 = vpack.c.b16 %v540, %v539
  %v620 = vpack.c.b16 %v542, %v541
  %v621 = vpack.c.b16 %v544, %v543
  %v622 = vpack.c.b16 %v546, %v545
  %v623 = vpack.c.b16 %v548, %v547
  %v624 = vpack.c.b16 %v550, %v549
  %v625 = vpack.c.b16 %v552, %v551
  %v626 = vpack.c.b16 %v554, %v553
  %699 = vmatpush.bf16.msra.mxu0 %v562
  %700 = vmatpush.bf16.msra.mxu0 %v561
  %701 = vmatpush.bf16.msra.mxu0 %v560
  %702 = vmatpush.bf16.msra.mxu0 %v559
  %703 = vmatpush.bf16.msra.mxu0 %v558
  %704 = vmatpush.bf16.msra.mxu0 %v557
  %705 = vmatpush.bf16.msra.mxu0 %v556
  %706 = vmatpush.bf16.msra.mxu0 %v555
  %707 = vmatmul.bf16.gmra.mxu0 %v231
  %v708 = vpop.f32.mrf.mxu0
  %v709 = vadd.f32 0.0, %v708
  %v710 = vpop.f32.mrf.mxu0
  %v711 = vadd.f32 0.0, %v710
  %712 = vmatmul.bf16.gmra.mxu0 %v240
  %v713 = vpop.f32.mrf.mxu0
  %v714 = vadd.f32 0.0, %v713
  %v715 = vpop.f32.mrf.mxu0
  %v716 = vadd.f32 0.0, %v715
  %717 = vdwg.mxu0
  %718 = vmatpush.bf16.msra.mxu0 %v570
  %719 = vmatpush.bf16.msra.mxu0 %v569
  %720 = vmatpush.bf16.msra.mxu0 %v568
  %721 = vmatpush.bf16.msra.mxu0 %v567
  %722 = vmatpush.bf16.msra.mxu0 %v566
  %723 = vmatpush.bf16.msra.mxu0 %v565
  %724 = vmatpush.bf16.msra.mxu0 %v564
  %725 = vmatpush.bf16.msra.mxu0 %v563
  %726 = vmatmul.bf16.gmra.mxu0 %v232
  %v727 = vpop.f32.mrf.mxu0
  %v728 = vadd.f32 %v709, %v727
  %v729 = vpop.f32.mrf.mxu0
  %v730 = vadd.f32 %v711, %v729
  %731 = vmatmul.bf16.gmra.mxu0 %v241
  %v732 = vpop.f32.mrf.mxu0
  %v733 = vadd.f32 %v714, %v732
  %v734 = vpop.f32.mrf.mxu0
  %v735 = vadd.f32 %v716, %v734
  %736 = vdwg.mxu0
  %737 = vmatpush.bf16.msra.mxu0 %v578
  %738 = vmatpush.bf16.msra.mxu0 %v577
  %739 = vmatpush.bf16.msra.mxu0 %v576
  %740 = vmatpush.bf16.msra.mxu0 %v575
  %741 = vmatpush.bf16.msra.mxu0 %v574
  %742 = vmatpush.bf16.msra.mxu0 %v573
  %743 = vmatpush.bf16.msra.mxu0 %v572
  %744 = vmatpush.bf16.msra.mxu0 %v571
  %745 = vmatmul.bf16.gmra.mxu0 %v233
  %v746 = vpop.f32.mrf.mxu0
  %v747 = vadd.f32 %v728, %v746
  %v748 = vpop.f32.mrf.mxu0
  %v749 = vadd.f32 %v730, %v748
  %750 = vmatmul.bf16.gmra.mxu0 %v242
  %v751 = vpop.f32.mrf.mxu0
  %v752 = vadd.f32 %v733, %v751
  %v753 = vpop.f32.mrf.mxu0
  %v754 = vadd.f32 %v735, %v753
  %755 = vdwg.mxu0
  %756 = vmatpush.bf16.msra.mxu0 %v586
  %757 = vmatpush.bf16.msra.mxu0 %v585
  %758 = vmatpush.bf16.msra.mxu0 %v584
  %759 = vmatpush.bf16.msra.mxu0 %v583
  %760 = vmatpush.bf16.msra.mxu0 %v582
  %761 = vmatpush.bf16.msra.mxu0 %v581
  %762 = vmatpush.bf16.msra.mxu0 %v580
  %763 = vmatpush.bf16.msra.mxu0 %v579
  %764 = vmatmul.bf16.gmra.mxu0 %v234
  %v765 = vpop.f32.mrf.mxu0
  %v766 = vadd.f32 %v747, %v765
  %v767 = vpop.f32.mrf.mxu0
  %v768 = vadd.f32 %v749, %v767
  %769 = vmatmul.bf16.gmra.mxu0 %v243
  %v770 = vpop.f32.mrf.mxu0
  %v771 = vadd.f32 %v752, %v770
  %v772 = vpop.f32.mrf.mxu0
  %v773 = vadd.f32 %v754, %v772
  %774 = vdwg.mxu0
  %775 = vmatpush.bf16.msra.mxu0 %v594
  %776 = vmatpush.bf16.msra.mxu0 %v593
  %777 = vmatpush.bf16.msra.mxu0 %v592
  %778 = vmatpush.bf16.msra.mxu0 %v591
  %779 = vmatpush.bf16.msra.mxu0 %v590
  %780 = vmatpush.bf16.msra.mxu0 %v589
  %781 = vmatpush.bf16.msra.mxu0 %v588
  %782 = vmatpush.bf16.msra.mxu0 %v587
  %783 = vmatmul.bf16.gmra.mxu0 %v235
  %v784 = vpop.f32.mrf.mxu0
  %v785 = vadd.f32 %v766, %v784
  %v786 = vpop.f32.mrf.mxu0
  %v787 = vadd.f32 %v768, %v786
  %788 = vmatmul.bf16.gmra.mxu0 %v244
  %v789 = vpop.f32.mrf.mxu0
  %v790 = vadd.f32 %v771, %v789
  %v791 = vpop.f32.mrf.mxu0
  %v792 = vadd.f32 %v773, %v791
  %793 = vdwg.mxu0
  %794 = vmatpush.bf16.msra.mxu0 %v602
  %795 = vmatpush.bf16.msra.mxu0 %v601
  %796 = vmatpush.bf16.msra.mxu0 %v600
  %797 = vmatpush.bf16.msra.mxu0 %v599
  %798 = vmatpush.bf16.msra.mxu0 %v598
  %799 = vmatpush.bf16.msra.mxu0 %v597
  %800 = vmatpush.bf16.msra.mxu0 %v596
  %801 = vmatpush.bf16.msra.mxu0 %v595
  %802 = vmatmul.bf16.gmra.mxu0 %v236
  %v803 = vpop.f32.mrf.mxu0
  %v804 = vadd.f32 %v785, %v803
  %v805 = vpop.f32.mrf.mxu0
  %v806 = vadd.f32 %v787, %v805
  %807 = vmatmul.bf16.gmra.mxu0 %v245
  %v808 = vpop.f32.mrf.mxu0
  %v809 = vadd.f32 %v790, %v808
  %v810 = vpop.f32.mrf.mxu0
  %v811 = vadd.f32 %v792, %v810
  %812 = vdwg.mxu0
  %813 = vmatpush.bf16.msra.mxu0 %v610
  %814 = vmatpush.bf16.msra.mxu0 %v609
  %815 = vmatpush.bf16.msra.mxu0 %v608
  %816 = vmatpush.bf16.msra.mxu0 %v607
  %817 = vmatpush.bf16.msra.mxu0 %v606
  %818 = vmatpush.bf16.msra.mxu0 %v605
  %819 = vmatpush.bf16.msra.mxu0 %v604
  %820 = vmatpush.bf16.msra.mxu0 %v603
  %821 = vmatmul.bf16.gmra.mxu0 %v237
  %v822 = vpop.f32.mrf.mxu0
  %v823 = vadd.f32 %v804, %v822
  %v824 = vpop.f32.mrf.mxu0
  %v825 = vadd.f32 %v806, %v824
  %826 = vmatmul.bf16.gmra.mxu0 %v246
  %v827 = vpop.f32.mrf.mxu0
  %v828 = vadd.f32 %v809, %v827
  %v829 = vpop.f32.mrf.mxu0
  %v830 = vadd.f32 %v811, %v829
  %831 = vdwg.mxu0
  %832 = vmatpush.bf16.msra.mxu0 %v618
  %833 = vmatpush.bf16.msra.mxu0 %v617
  %834 = vmatpush.bf16.msra.mxu0 %v616
  %835 = vmatpush.bf16.msra.mxu0 %v615
  %836 = vmatpush.bf16.msra.mxu0 %v614
  %837 = vmatpush.bf16.msra.mxu0 %v613
  %838 = vmatpush.bf16.msra.mxu0 %v612
  %839 = vmatpush.bf16.msra.mxu0 %v611
  %840 = vmatmul.bf16.gmra.mxu0 %v238
  %v841 = vpop.f32.mrf.mxu0
  %v842 = vadd.f32 %v823, %v841
  %v843 = vpop.f32.mrf.mxu0
  %v844 = vadd.f32 %v825, %v843
  %845 = vmatmul.bf16.gmra.mxu0 %v247
  %v846 = vpop.f32.mrf.mxu0
  %v847 = vadd.f32 %v828, %v846
  %v848 = vpop.f32.mrf.mxu0
  %v849 = vadd.f32 %v830, %v848
  %850 = vdwg.mxu0
  %851 = vmatpush.bf16.msra.mxu0 %v626
  %852 = vmatpush.bf16.msra.mxu0 %v625
  %853 = vmatpush.bf16.msra.mxu0 %v624
  %854 = vmatpush.bf16.msra.mxu0 %v623
  %855 = vmatpush.bf16.msra.mxu0 %v622
  %856 = vmatpush.bf16.msra.mxu0 %v621
  %857 = vmatpush.bf16.msra.mxu0 %v620
  %858 = vmatpush.bf16.msra.mxu0 %v619
  %859 = vmatmul.bf16.gmra.mxu0 %v239
  %v860 = vpop.f32.mrf.mxu0
  %v861 = vadd.f32 %v842, %v860
  %v862 = vpop.f32.mrf.mxu0
  %v863 = vadd.f32 %v844, %v862
  %864 = vmatmul.bf16.gmra.mxu0 %v248
  %v865 = vpop.f32.mrf.mxu0
  %v866 = vadd.f32 %v847, %v865
  %v867 = vpop.f32.mrf.mxu0
  %v868 = vadd.f32 %v849, %v867
  %869 = vdwg.mxu0
  %870 = vst [vmem:[%s2] sm:$0xff] %v861
  %871 = vst [vmem:[%s2 + $0x8] sm:$0xff] %v863
  %872 = vst [vmem:[%s2 + $0x10] sm:$0xff] %v866
  %873 = vst [vmem:[%s2 + $0x18] sm:$0xff] %v868
  // Predicated region
  $region10: #{_lambda_.50} parent=0 // pred_check
    _
  $region11: #{_lambda_.50} parent=0 // pred_check_branch
    %875 = sbr.rel (0) target = $region13
  $region12: #{_lambda_.50} parent=0 // pred_region
    _
  $region13: #{_lambda_.50} parent=0 // pred_fallthru
    _
  // Predicated region
  $region14: #{_lambda_.50} parent=0 // pred_check
    _
  $region15: #{_lambda_.50} parent=0 // pred_check_branch
    %877 = sbr.rel (0) target = $region17
  $region16: #{_lambda_.50} parent=0 // pred_region
    _
  $region17: #{_lambda_.50} parent=0 // pred_fallthru
    _

// kernel: _lambda_.49
$region0: #{_lambda_.49}
  #allocation0 [shape = 'u32[]', space=smem, size = 0x4, offset = 0x4, fixed_abs, tag = 'smem constant byte address 0x4 - core index']
  #allocation1 [shape = 'u32[72,128]{1,0:T(1,128)}', space=vmem, size = 0x9000, scoped, tag = 'internal scratch']
  %s0 = inlined_call_operand.vmem [shape: bf16[32,128], index: 0, kind: input, shape index: {}]
  %s1 = inlined_call_operand.vmem [shape: bf16[128,128], index: 1, kind: input, shape index: {}]
  %s2 = inlined_call_operand.vmem [shape: f32[32,128], index: 2, kind: output, shape index: {}]
  %s3 = sld [smem:[#allocation0]]
  $region18: #{_lambda_.49} parent=0
    _
  %s5 = ssub.s32 1, %s3
  %s6 = scalar_select 0, %s5, %s3
  // Predicated region
  $region2: #{_lambda_.49} parent=0 // pred_check
    _
  $region3: #{_lambda_.49} parent=0 // pred_check_branch
    %8 = sbr.rel (0) target = $region5
  $region4: #{_lambda_.49} parent=0 // pred_region
    _
  $region5: #{_lambda_.49} parent=0 // pred_fallthru
    _
  // Predicated region
  $region6: #{_lambda_.49} parent=0 // pred_check
    _
  $region7: #{_lambda_.49} parent=0 // pred_check_branch
    %10 = sbr.rel (0) target = $region9
  $region8: #{_lambda_.49} parent=0 // pred_region
    _
  $region9: #{_lambda_.49} parent=0 // pred_fallthru
    _
  %v11 = vld [vmem:[%s0] sm:$0xf]
  %v12 = vld [vmem:[%s0 + $0x4] sm:$0xf]
  %v13 = vld [vmem:[%s0 + $0x8] sm:$0xf]
  %v14 = vld [vmem:[%s0 + $0xc] sm:$0xf]
  %v15 = vld [vmem:[%s1] sm:$0xf]
  %v16 = vld [vmem:[%s1 + $0x4] sm:$0xf]
  %v17 = vld [vmem:[%s1 + $0x8] sm:$0xf]
  %v18 = vld [vmem:[%s1 + $0xc] sm:$0xf]
  %v19 = vld [vmem:[%s1 + $0x10] sm:$0xf]
  %v20 = vld [vmem:[%s1 + $0x14] sm:$0xf]
  %v21 = vld [vmem:[%s1 + $0x18] sm:$0xf]
  %v22 = vld [vmem:[%s1 + $0x1c] sm:$0xf]
  %v23 = vld [vmem:[%s1 + $0x20] sm:$0xf]
  %v24 = vld [vmem:[%s1 + $0x24] sm:$0xf]
  %v25 = vld [vmem:[%s1 + $0x28] sm:$0xf]
  %v26 = vld [vmem:[%s1 + $0x2c] sm:$0xf]
  %v27 = vld [vmem:[%s1 + $0x30] sm:$0xf]
  %v28 = vld [vmem:[%s1 + $0x34] sm:$0xf]
  %v29 = vld [vmem:[%s1 + $0x38] sm:$0xf]
  %v30 = vld [vmem:[%s1 + $0x3c] sm:$0xf]
  %v35 = vunpack.c.l.b16 %v11
  %v36 = vunpack.c.l.b16 %v12
  %v37 = vunpack.c.l.b16 %v13
  %v38 = vunpack.c.l.b16 %v14
  %v39 = vpack.c.b16 %v36, %v35
  %v40 = vpack.c.b16 %v38, %v37
  %v59 = vunpack.c.l.b16 %v15
  %v60 = vunpack.c.l.b16 %v16
  %v61 = vunpack.c.l.b16 %v17
  %v62 = vunpack.c.l.b16 %v18
  %v63 = vunpack.c.l.b16 %v19
  %v64 = vunpack.c.l.b16 %v20
  %v65 = vunpack.c.l.b16 %v21
  %v66 = vunpack.c.l.b16 %v22
  %v67 = vunpack.c.l.b16 %v23
  %v68 = vunpack.c.l.b16 %v24
  %v69 = vunpack.c.l.b16 %v25
  %v70 = vunpack.c.l.b16 %v26
  %v71 = vunpack.c.l.b16 %v27
  %v72 = vunpack.c.l.b16 %v28
  %v73 = vunpack.c.l.b16 %v29
  %v74 = vunpack.c.l.b16 %v30
  %v75 = vpack.c.b16 %v60, %v59
  %v76 = vpack.c.b16 %v62, %v61
  %v77 = vpack.c.b16 %v64, %v63
  %v78 = vpack.c.b16 %v66, %v65
  %v79 = vpack.c.b16 %v68, %v67
  %v80 = vpack.c.b16 %v70, %v69
  %v81 = vpack.c.b16 %v72, %v71
  %v82 = vpack.c.b16 %v74, %v73
  %91 = vmatpush.bf16.msra.mxu0 %v82
  %92 = vmatpush.bf16.msra.mxu0 %v81
  %93 = vmatpush.bf16.msra.mxu0 %v80
  %94 = vmatpush.bf16.msra.mxu0 %v79
  %95 = vmatpush.bf16.msra.mxu0 %v78
  %96 = vmatpush.bf16.msra.mxu0 %v77
  %97 = vmatpush.bf16.msra.mxu0 %v76
  %98 = vmatpush.bf16.msra.mxu0 %v75
  %99 = vmatmul.bf16.gmra.mxu0 %v39
  %v100 = vpop.f32.mrf.mxu0
  %v101 = vadd.f32 0.0, %v100
  %v102 = vpop.f32.mrf.mxu0
  %v103 = vadd.f32 0.0, %v102
  %104 = vmatmul.bf16.gmra.mxu0 %v40
  %v105 = vpop.f32.mrf.mxu0
  %v106 = vadd.f32 0.0, %v105
  %v107 = vpop.f32.mrf.mxu0
  %v108 = vadd.f32 0.0, %v107
  %109 = vdwg.mxu0
  %110 = vst [vmem:[%s2] sm:$0xff] %v101
  %111 = vst [vmem:[%s2 + $0x8] sm:$0xff] %v103
  %112 = vst [vmem:[%s2 + $0x10] sm:$0xff] %v106
  %113 = vst [vmem:[%s2 + $0x18] sm:$0xff] %v108
  // Predicated region
  $region10: #{_lambda_.49} parent=0 // pred_check
    _
  $region11: #{_lambda_.49} parent=0 // pred_check_branch
    %115 = sbr.rel (0) target = $region13
  $region12: #{_lambda_.49} parent=0 // pred_region
    _
  $region13: #{_lambda_.49} parent=0 // pred_fallthru
    _
  // Predicated region
  $region14: #{_lambda_.49} parent=0 // pred_check
    _
  $region15: #{_lambda_.49} parent=0 // pred_check_branch
    %117 = sbr.rel (0) target = $region17
  $region16: #{_lambda_.49} parent=0 // pred_region
    _
  $region17: #{_lambda_.49} parent=0 // pred_fallthru
    _

// kernel: _lambda_.58
$region0: #{_lambda_.58}
  #allocation0 [shape = 'u32[]', space=smem, size = 0x4, offset = 0x4, fixed_abs, tag = 'smem constant byte address 0x4 - core index']
  #allocation1 [shape = 'u32[72,128]{1,0:T(1,128)}', space=vmem, size = 0x9000, scoped, tag = 'internal scratch']
  %s0 = inlined_call_operand.vmem [shape: f32[8,128], index: 0, kind: input, shape index: {}]
  %s1 = inlined_call_operand.vmem [shape: f32[1,128], index: 1, kind: output, shape index: {0}]
  %s2 = inlined_call_operand.vmem [shape: f32[1,128], index: 2, kind: output, shape index: {1}]
  %3 = xla_tuple %s1, %s2
  %s4 = sld [smem:[#allocation0]]
  $region26: #{_lambda_.58} parent=0
    _
  %s6 = ssub.s32 1, %s4
  %s7 = scalar_select 0, %s6, %s4
  // Predicated region
  $region2: #{_lambda_.58} parent=0 // pred_check
    _
  $region3: #{_lambda_.58} parent=0 // pred_check_branch
    %9 = sbr.rel (0) target = $region5
  $region4: #{_lambda_.58} parent=0 // pred_region
    _
  $region5: #{_lambda_.58} parent=0 // pred_fallthru
    _
  %p10 = scmp.eq.s32.totalorder 0, 0
  // Predicated region
  $region6: #{_lambda_.58} parent=0 // pred_check
    %p11 = pneg %p10
  $region7: #{_lambda_.58} parent=0 // pred_check_branch
    %13 = sbr.rel (%p11) target = $region9
  $region8: #{_lambda_.58} parent=0 // pred_region
    %14 = vst [vmem:[%s1] sm:$0x1] 0.0
    %15 = vst [vmem:[%s2] sm:$0x1] 0.0
  $region9: #{_lambda_.58} parent=0 // pred_fallthru
    _
  %v16 = vld [vmem:[%s0] sm:$0xff]
  %v17 = vld [vmem:[%s1] sm:$0x1]
  %v18 = vrot.slane %v16, 4
  %v19 = vadd.f32 %v16, %v18
  %v20 = vrot.slane %v19, 2
  %v21 = vadd.f32 %v19, %v20
  %v22 = vrot.slane %v21, 1
  %v23 = vadd.f32 %v21, %v22
  %v24 = vadd.f32 %v17, %v23
  %25 = vst [vmem:[%s1] sm:$0x1] %v24
  %v26 = vld [vmem:[%s2] sm:$0x1]
  %v27 = vmul.f32 %v16, %v16
  %v28 = vrot.slane %v27, 4
  %v29 = vadd.f32 %v27, %v28
  %v30 = vrot.slane %v29, 2
  %v31 = vadd.f32 %v29, %v30
  %v32 = vrot.slane %v31, 1
  %v33 = vadd.f32 %v31, %v32
  %v34 = vadd.f32 %v26, %v33
  %35 = vst [vmem:[%s2] sm:$0x1] %v34
  // Predicated region
  $region10: #{_lambda_.58} parent=0 // pred_check
    _
  $region11: #{_lambda_.58} parent=0 // pred_check_branch
    %37 = sbr.rel (0) target = $region13
  $region12: #{_lambda_.58} parent=0 // pred_region
    _
  $region13: #{_lambda_.58} parent=0 // pred_fallthru
    _
  // Predicated region
  $region14: #{_lambda_.58} parent=0 // pred_check
    _
  $region15: #{_lambda_.58} parent=0 // pred_check_branch
    %39 = sbr.rel (0) target = $region17
  $region16: #{_lambda_.58} parent=0 // pred_region
    _
  $region17: #{_lambda_.58} parent=0 // pred_fallthru
    _
  // Predicated region
  $region18: #{_lambda_.58} parent=0 // pred_check
    _
  $region19: #{_lambda_.58} parent=0 // pred_check_branch
    %41 = sbr.rel (0) target = $region21
  $region20: #{_lambda_.58} parent=0 // pred_region
    _
  $region21: #{_lambda_.58} parent=0 // pred_fallthru
    _
  // Predicated region
  $region22: #{_lambda_.58} parent=0 // pred_check
    _
  $region23: #{_lambda_.58} parent=0 // pred_check_branch
    %43 = sbr.rel (0) target = $region25
  $region24: #{_lambda_.58} parent=0 // pred_region
    _
  $region25: #{_lambda_.58} parent=0 // pred_fallthru
    _

// kernel: _lambda_.59
$region0: #{_lambda_.59}
  #allocation0 [shape = 'u32[]', space=smem, size = 0x4, offset = 0x4, fixed_abs, tag = 'smem constant byte address 0x4 - core index']
  #allocation1 [shape = 'u32[72,128]{1,0:T(1,128)}', space=vmem, size = 0x9000, scoped, tag = 'internal scratch']
  %s0 = inlined_call_operand.vmem [shape: f32[8,128], index: 0, kind: input, shape index: {}]
  %s1 = inlined_call_operand.vmem [shape: f32[1,128], index: 1, kind: input, shape index: {}]
  %s2 = inlined_call_operand.vmem [shape: f32[1,128], index: 2, kind: input, shape index: {}]
  %s3 = inlined_call_operand.vmem [shape: f32[8,128], index: 3, kind: output, shape index: {}]
  %s4 = sld [smem:[#allocation0]]
  $region22: #{_lambda_.59} parent=0
    _
  %s6 = ssub.s32 1, %s4
  %s7 = scalar_select 0, %s6, %s4
  // Predicated region
  $region2: #{_lambda_.59} parent=0 // pred_check
    _
  $region3: #{_lambda_.59} parent=0 // pred_check_branch
    %9 = sbr.rel (0) target = $region5
  $region4: #{_lambda_.59} parent=0 // pred_region
    _
  $region5: #{_lambda_.59} parent=0 // pred_fallthru
    _
  // Predicated region
  $region6: #{_lambda_.59} parent=0 // pred_check
    _
  $region7: #{_lambda_.59} parent=0 // pred_check_branch
    %11 = sbr.rel (0) target = $region9
  $region8: #{_lambda_.59} parent=0 // pred_region
    _
  $region9: #{_lambda_.59} parent=0 // pred_fallthru
    _
  // Predicated region
  $region10: #{_lambda_.59} parent=0 // pred_check
    _
  $region11: #{_lambda_.59} parent=0 // pred_check_branch
    %13 = sbr.rel (0) target = $region13
  $region12: #{_lambda_.59} parent=0 // pred_region
    _
  $region13: #{_lambda_.59} parent=0 // pred_fallthru
    _
  %v14 = vld [vmem:[%s0] sm:$0xff]
  %v15 = vld [vmem:[%s1] sm:$0x1]
  %v17 = vperm.slane %v15, 0
  %v19 = vmul.f32 %v14, %v17
  %v20 = vld [vmem:[%s2] sm:$0x1]
  %v22 = vperm.slane %v20, 0
  %v24 = vadd.f32 %v19, %v22
  %v25 = vmax.f32 %v24, 0.0
  %26 = vst [vmem:[%s3] sm:$0xff] %v25
  // Predicated region
  $region14: #{_lambda_.59} parent=0 // pred_check
    _
  $region15: #{_lambda_.59} parent=0 // pred_check_branch
    %28 = sbr.rel (0) target = $region17
  $region16: #{_lambda_.59} parent=0 // pred_region
    _
  $region17: #{_lambda_.59} parent=0 // pred_fallthru
    _
  // Predicated region
  $region18: #{_lambda_.59} parent=0 // pred_check
    _
  $region19: #{_lambda_.59} parent=0 // pred_check_branch
    %30 = sbr.rel (0) target = $region21
  $region20: #{_lambda_.59} parent=0 // pred_region
    _
  $region21: #{_lambda_.59} parent=0 // pred_fallthru
    _

// kernel: _lambda_.57
$region0: #{_lambda_.57}
  #allocation0 [shape = 'u32[]', space=smem, size = 0x4, offset = 0x4, fixed_abs, tag = 'smem constant byte address 0x4 - core index']
  #allocation1 [shape = 'u32[72,128]{1,0:T(1,128)}', space=vmem, size = 0x9000, scoped, tag = 'internal scratch']
  %s0 = inlined_call_operand.vmem [shape: bf16[8,1152], index: 0, kind: input, shape index: {}]
  %s1 = inlined_call_operand.vmem [shape: bf16[1152,128], index: 1, kind: input, shape index: {}]
  %s2 = inlined_call_operand.vmem [shape: f32[8,128], index: 2, kind: output, shape index: {}]
  %s3 = sld [smem:[#allocation0]]
  $region18: #{_lambda_.57} parent=0
    _
  %s5 = ssub.s32 1, %s3
  %s6 = scalar_select 0, %s5, %s3
  // Predicated region
  $region2: #{_lambda_.57} parent=0 // pred_check
    _
  $region3: #{_lambda_.57} parent=0 // pred_check_branch
    %8 = sbr.rel (0) target = $region5
  $region4: #{_lambda_.57} parent=0 // pred_region
    _
  $region5: #{_lambda_.57} parent=0 // pred_fallthru
    _
  // Predicated region
  $region6: #{_lambda_.57} parent=0 // pred_check
    _
  $region7: #{_lambda_.57} parent=0 // pred_check_branch
    %10 = sbr.rel (0) target = $region9
  $region8: #{_lambda_.57} parent=0 // pred_region
    _
  $region9: #{_lambda_.57} parent=0 // pred_fallthru
    _
  %v11 = vld [vmem:[%s0] sm:$0xff]
  %v12 = vld [vmem:[%s0 + $0x8] sm:$0xff]
  %v13 = vld [vmem:[%s0 + $0x10] sm:$0xff]
  %v14 = vld [vmem:[%s0 + $0x18] sm:$0xff]
  %v15 = vld [vmem:[%s0 + $0x20] sm:$0xf]
  %v16 = vld [vmem:[%s1] sm:$0xf]
  %v17 = vld [vmem:[%s1 + $0x4] sm:$0xf]
  %v18 = vld [vmem:[%s1 + $0x8] sm:$0xf]
  %v19 = vld [vmem:[%s1 + $0xc] sm:$0xf]
  %v20 = vld [vmem:[%s1 + $0x10] sm:$0xf]
  %v21 = vld [vmem:[%s1 + $0x14] sm:$0xf]
  %v22 = vld [vmem:[%s1 + $0x18] sm:$0xf]
  %v23 = vld [vmem:[%s1 + $0x1c] sm:$0xf]
  %v24 = vld [vmem:[%s1 + $0x20] sm:$0xf]
  %v25 = vld [vmem:[%s1 + $0x24] sm:$0xf]
  %v26 = vld [vmem:[%s1 + $0x28] sm:$0xf]
  %v27 = vld [vmem:[%s1 + $0x2c] sm:$0xf]
  %v28 = vld [vmem:[%s1 + $0x30] sm:$0xf]
  %v29 = vld [vmem:[%s1 + $0x34] sm:$0xf]
  %v30 = vld [vmem:[%s1 + $0x38] sm:$0xf]
  %v31 = vld [vmem:[%s1 + $0x3c] sm:$0xf]
  %v32 = vld [vmem:[%s1 + $0x40] sm:$0xf]
  %v33 = vld [vmem:[%s1 + $0x44] sm:$0xf]
  %v34 = vld [vmem:[%s1 + $0x48] sm:$0xf]
  %v35 = vld [vmem:[%s1 + $0x4c] sm:$0xf]
  %v36 = vld [vmem:[%s1 + $0x50] sm:$0xf]
  %v37 = vld [vmem:[%s1 + $0x54] sm:$0xf]
  %v38 = vld [vmem:[%s1 + $0x58] sm:$0xf]
  %v39 = vld [vmem:[%s1 + $0x5c] sm:$0xf]
  %v40 = vld [vmem:[%s1 + $0x60] sm:$0xf]
  %v41 = vld [vmem:[%s1 + $0x64] sm:$0xf]
  %v42 = vld [vmem:[%s1 + $0x68] sm:$0xf]
  %v43 = vld [vmem:[%s1 + $0x6c] sm:$0xf]
  %v44 = vld [vmem:[%s1 + $0x70] sm:$0xf]
  %v45 = vld [vmem:[%s1 + $0x74] sm:$0xf]
  %v46 = vld [vmem:[%s1 + $0x78] sm:$0xf]
  %v47 = vld [vmem:[%s1 + $0x7c] sm:$0xf]
  %v48 = vld [vmem:[%s1 + $0x80] sm:$0xf]
  %v49 = vld [vmem:[%s1 + $0x84] sm:$0xf]
  %v50 = vld [vmem:[%s1 + $0x88] sm:$0xf]
  %v51 = vld [vmem:[%s1 + $0x8c] sm:$0xf]
  %v52 = vld [vmem:[%s1 + $0x90] sm:$0xf]
  %v53 = vld [vmem:[%s1 + $0x94] sm:$0xf]
  %v54 = vld [vmem:[%s1 + $0x98] sm:$0xf]
  %v55 = vld [vmem:[%s1 + $0x9c] sm:$0xf]
  %v56 = vld [vmem:[%s1 + $0xa0] sm:$0xf]
  %v57 = vld [vmem:[%s1 + $0xa4] sm:$0xf]
  %v58 = vld [vmem:[%s1 + $0xa8] sm:$0xf]
  %v59 = vld [vmem:[%s1 + $0xac] sm:$0xf]
  %v60 = vld [vmem:[%s1 + $0xb0] sm:$0xf]
  %v61 = vld [vmem:[%s1 + $0xb4] sm:$0xf]
  %v62 = vld [vmem:[%s1 + $0xb8] sm:$0xf]
  %v63 = vld [vmem:[%s1 + $0xbc] sm:$0xf]
  %v64 = vld [vmem:[%s1 + $0xc0] sm:$0xf]
  %v65 = vld [vmem:[%s1 + $0xc4] sm:$0xf]
  %v66 = vld [vmem:[%s1 + $0xc8] sm:$0xf]
  %v67 = vld [vmem:[%s1 + $0xcc] sm:$0xf]
  %v68 = vld [vmem:[%s1 + $0xd0] sm:$0xf]
  %v69 = vld [vmem:[%s1 + $0xd4] sm:$0xf]
  %v70 = vld [vmem:[%s1 + $0xd8] sm:$0xf]
  %v71 = vld [vmem:[%s1 + $0xdc] sm:$0xf]
  %v72 = vld [vmem:[%s1 + $0xe0] sm:$0xf]
  %v73 = vld [vmem:[%s1 + $0xe4] sm:$0xf]
  %v74 = vld [vmem:[%s1 + $0xe8] sm:$0xf]
  %v75 = vld [vmem:[%s1 + $0xec] sm:$0xf]
  %v76 = vld [vmem:[%s1 + $0xf0] sm:$0xf]
  %v77 = vld [vmem:[%s1 + $0xf4] sm:$0xf]
  %v78 = vld [vmem:[%s1 + $0xf8] sm:$0xf]
  %v79 = vld [vmem:[%s1 + $0xfc] sm:$0xf]
  %v80 = vld [vmem:[%s1 + $0x100] sm:$0xf]
  %v81 = vld [vmem:[%s1 + $0x104] sm:$0xf]
  %v82 = vld [vmem:[%s1 + $0x108] sm:$0xf]
  %v83 = vld [vmem:[%s1 + $0x10c] sm:$0xf]
  %v84 = vld [vmem:[%s1 + $0x110] sm:$0xf]
  %v85 = vld [vmem:[%s1 + $0x114] sm:$0xf]
  %v86 = vld [vmem:[%s1 + $0x118] sm:$0xf]
  %v87 = vld [vmem:[%s1 + $0x11c] sm:$0xf]
  %v88 = vld [vmem:[%s1 + $0x120] sm:$0xf]
  %v89 = vld [vmem:[%s1 + $0x124] sm:$0xf]
  %v90 = vld [vmem:[%s1 + $0x128] sm:$0xf]
  %v91 = vld [vmem:[%s1 + $0x12c] sm:$0xf]
  %v92 = vld [vmem:[%s1 + $0x130] sm:$0xf]
  %v93 = vld [vmem:[%s1 + $0x134] sm:$0xf]
  %v94 = vld [vmem:[%s1 + $0x138] sm:$0xf]
  %v95 = vld [vmem:[%s1 + $0x13c] sm:$0xf]
  %v96 = vld [vmem:[%s1 + $0x140] sm:$0xf]
  %v97 = vld [vmem:[%s1 + $0x144] sm:$0xf]
  %v98 = vld [vmem:[%s1 + $0x148] sm:$0xf]
  %v99 = vld [vmem:[%s1 + $0x14c] sm:$0xf]
  %v100 = vld [vmem:[%s1 + $0x150] sm:$0xf]
  %v101 = vld [vmem:[%s1 + $0x154] sm:$0xf]
  %v102 = vld [vmem:[%s1 + $0x158] sm:$0xf]
  %v103 = vld [vmem:[%s1 + $0x15c] sm:$0xf]
  %v104 = vld [vmem:[%s1 + $0x160] sm:$0xf]
  %v105 = vld [vmem:[%s1 + $0x164] sm:$0xf]
  %v106 = vld [vmem:[%s1 + $0x168] sm:$0xf]
  %v107 = vld [vmem:[%s1 + $0x16c] sm:$0xf]
  %v108 = vld [vmem:[%s1 + $0x170] sm:$0xf]
  %v109 = vld [vmem:[%s1 + $0x174] sm:$0xf]
  %v110 = vld [vmem:[%s1 + $0x178] sm:$0xf]
  %v111 = vld [vmem:[%s1 + $0x17c] sm:$0xf]
  %v112 = vld [vmem:[%s1 + $0x180] sm:$0xf]
  %v113 = vld [vmem:[%s1 + $0x184] sm:$0xf]
  %v114 = vld [vmem:[%s1 + $0x188] sm:$0xf]
  %v115 = vld [vmem:[%s1 + $0x18c] sm:$0xf]
  %v116 = vld [vmem:[%s1 + $0x190] sm:$0xf]
  %v117 = vld [vmem:[%s1 + $0x194] sm:$0xf]
  %v118 = vld [vmem:[%s1 + $0x198] sm:$0xf]
  %v119 = vld [vmem:[%s1 + $0x19c] sm:$0xf]
  %v120 = vld [vmem:[%s1 + $0x1a0] sm:$0xf]
  %v121 = vld [vmem:[%s1 + $0x1a4] sm:$0xf]
  %v122 = vld [vmem:[%s1 + $0x1a8] sm:$0xf]
  %v123 = vld [vmem:[%s1 + $0x1ac] sm:$0xf]
  %v124 = vld [vmem:[%s1 + $0x1b0] sm:$0xf]
  %v125 = vld [vmem:[%s1 + $0x1b4] sm:$0xf]
  %v126 = vld [vmem:[%s1 + $0x1b8] sm:$0xf]
  %v127 = vld [vmem:[%s1 + $0x1bc] sm:$0xf]
  %v128 = vld [vmem:[%s1 + $0x1c0] sm:$0xf]
  %v129 = vld [vmem:[%s1 + $0x1c4] sm:$0xf]
  %v130 = vld [vmem:[%s1 + $0x1c8] sm:$0xf]
  %v131 = vld [vmem:[%s1 + $0x1cc] sm:$0xf]
  %v132 = vld [vmem:[%s1 + $0x1d0] sm:$0xf]
  %v133 = vld [vmem:[%s1 + $0x1d4] sm:$0xf]
  %v134 = vld [vmem:[%s1 + $0x1d8] sm:$0xf]
  %v135 = vld [vmem:[%s1 + $0x1dc] sm:$0xf]
  %v136 = vld [vmem:[%s1 + $0x1e0] sm:$0xf]
  %v137 = vld [vmem:[%s1 + $0x1e4] sm:$0xf]
  %v138 = vld [vmem:[%s1 + $0x1e8] sm:$0xf]
  %v139 = vld [vmem:[%s1 + $0x1ec] sm:$0xf]
  %v140 = vld [vmem:[%s1 + $0x1f0] sm:$0xf]
  %v141 = vld [vmem:[%s1 + $0x1f4] sm:$0xf]
  %v142 = vld [vmem:[%s1 + $0x1f8] sm:$0xf]
  %v143 = vld [vmem:[%s1 + $0x1fc] sm:$0xf]
  %v144 = vld [vmem:[%s1 + $0x200] sm:$0xf]
  %v145 = vld [vmem:[%s1 + $0x204] sm:$0xf]
  %v146 = vld [vmem:[%s1 + $0x208] sm:$0xf]
  %v147 = vld [vmem:[%s1 + $0x20c] sm:$0xf]
  %v148 = vld [vmem:[%s1 + $0x210] sm:$0xf]
  %v149 = vld [vmem:[%s1 + $0x214] sm:$0xf]
  %v150 = vld [vmem:[%s1 + $0x218] sm:$0xf]
  %v151 = vld [vmem:[%s1 + $0x21c] sm:$0xf]
  %v152 = vld [vmem:[%s1 + $0x220] sm:$0xf]
  %v153 = vld [vmem:[%s1 + $0x224] sm:$0xf]
  %v154 = vld [vmem:[%s1 + $0x228] sm:$0xf]
  %v155 = vld [vmem:[%s1 + $0x22c] sm:$0xf]
  %v156 = vld [vmem:[%s1 + $0x230] sm:$0xf]
  %v157 = vld [vmem:[%s1 + $0x234] sm:$0xf]
  %v158 = vld [vmem:[%s1 + $0x238] sm:$0xf]
  %v159 = vld [vmem:[%s1 + $0x23c] sm:$0xf]
  %v165 = vunpack.c.l.b16 %v11
  %v166 = vunpack.c.h.b16 %v11
  %v167 = vunpack.c.l.b16 %v12
  %v168 = vunpack.c.h.b16 %v12
  %v169 = vunpack.c.l.b16 %v13
  %v170 = vunpack.c.h.b16 %v13
  %v171 = vunpack.c.l.b16 %v14
  %v172 = vunpack.c.h.b16 %v14
  %v173 = vunpack.c.l.b16 %v15
  %v174 = vpack.c.b16 %v165, %v165
  %v175 = vpack.c.b16 %v166, %v166
  %v176 = vpack.c.b16 %v167, %v167
  %v177 = vpack.c.b16 %v168, %v168
  %v178 = vpack.c.b16 %v169, %v169
  %v179 = vpack.c.b16 %v170, %v170
  %v180 = vpack.c.b16 %v171, %v171
  %v181 = vpack.c.b16 %v172, %v172
  %v182 = vpack.c.b16 %v173, %v173
  %v336 = vunpack.c.l.b16 %v16
  %v337 = vunpack.c.l.b16 %v17
  %v338 = vunpack.c.l.b16 %v18
  %v339 = vunpack.c.l.b16 %v19
  %v340 = vunpack.c.l.b16 %v20
  %v341 = vunpack.c.l.b16 %v21
  %v342 = vunpack.c.l.b16 %v22
  %v343 = vunpack.c.l.b16 %v23
  %v344 = vunpack.c.l.b16 %v24
  %v345 = vunpack.c.l.b16 %v25
  %v346 = vunpack.c.l.b16 %v26
  %v347 = vunpack.c.l.b16 %v27
  %v348 = vunpack.c.l.b16 %v28
  %v349 = vunpack.c.l.b16 %v29
  %v350 = vunpack.c.l.b16 %v30
  %v351 = vunpack.c.l.b16 %v31
  %v352 = vunpack.c.l.b16 %v32
  %v353 = vunpack.c.l.b16 %v33
  %v354 = vunpack.c.l.b16 %v34
  %v355 = vunpack.c.l.b16 %v35
  %v356 = vunpack.c.l.b16 %v36
  %v357 = vunpack.c.l.b16 %v37
  %v358 = vunpack.c.l.b16 %v38
  %v359 = vunpack.c.l.b16 %v39
  %v360 = vunpack.c.l.b16 %v40
  %v361 = vunpack.c.l.b16 %v41
  %v362 = vunpack.c.l.b16 %v42
  %v363 = vunpack.c.l.b16 %v43
  %v364 = vunpack.c.l.b16 %v44
  %v365 = vunpack.c.l.b16 %v45
  %v366 = vunpack.c.l.b16 %v46
  %v367 = vunpack.c.l.b16 %v47
  %v368 = vunpack.c.l.b16 %v48
  %v369 = vunpack.c.l.b16 %v49
  %v370 = vunpack.c.l.b16 %v50
  %v371 = vunpack.c.l.b16 %v51
  %v372 = vunpack.c.l.b16 %v52
  %v373 = vunpack.c.l.b16 %v53
  %v374 = vunpack.c.l.b16 %v54
  %v375 = vunpack.c.l.b16 %v55
  %v376 = vunpack.c.l.b16 %v56
  %v377 = vunpack.c.l.b16 %v57
  %v378 = vunpack.c.l.b16 %v58
  %v379 = vunpack.c.l.b16 %v59
  %v380 = vunpack.c.l.b16 %v60
  %v381 = vunpack.c.l.b16 %v61
  %v382 = vunpack.c.l.b16 %v62
  %v383 = vunpack.c.l.b16 %v63
  %v384 = vunpack.c.l.b16 %v64
  %v385 = vunpack.c.l.b16 %v65
  %v386 = vunpack.c.l.b16 %v66
  %v387 = vunpack.c.l.b16 %v67
  %v388 = vunpack.c.l.b16 %v68
  %v389 = vunpack.c.l.b16 %v69
  %v390 = vunpack.c.l.b16 %v70
  %v391 = vunpack.c.l.b16 %v71
  %v392 = vunpack.c.l.b16 %v72
  %v393 = vunpack.c.l.b16 %v73
  %v394 = vunpack.c.l.b16 %v74
  %v395 = vunpack.c.l.b16 %v75
  %v396 = vunpack.c.l.b16 %v76
  %v397 = vunpack.c.l.b16 %v77
  %v398 = vunpack.c.l.b16 %v78
  %v399 = vunpack.c.l.b16 %v79
  %v400 = vunpack.c.l.b16 %v80
  %v401 = vunpack.c.l.b16 %v81
  %v402 = vunpack.c.l.b16 %v82
  %v403 = vunpack.c.l.b16 %v83
  %v404 = vunpack.c.l.b16 %v84
  %v405 = vunpack.c.l.b16 %v85
  %v406 = vunpack.c.l.b16 %v86
  %v407 = vunpack.c.l.b16 %v87
  %v408 = vunpack.c.l.b16 %v88
  %v409 = vunpack.c.l.b16 %v89
  %v410 = vunpack.c.l.b16 %v90
  %v411 = vunpack.c.l.b16 %v91
  %v412 = vunpack.c.l.b16 %v92
  %v413 = vunpack.c.l.b16 %v93
  %v414 = vunpack.c.l.b16 %v94
  %v415 = vunpack.c.l.b16 %v95
  %v416 = vunpack.c.l.b16 %v96
  %v417 = vunpack.c.l.b16 %v97
  %v418 = vunpack.c.l.b16 %v98
  %v419 = vunpack.c.l.b16 %v99
  %v420 = vunpack.c.l.b16 %v100
  %v421 = vunpack.c.l.b16 %v101
  %v422 = vunpack.c.l.b16 %v102
  %v423 = vunpack.c.l.b16 %v103
  %v424 = vunpack.c.l.b16 %v104
  %v425 = vunpack.c.l.b16 %v105
  %v426 = vunpack.c.l.b16 %v106
  %v427 = vunpack.c.l.b16 %v107
  %v428 = vunpack.c.l.b16 %v108
  %v429 = vunpack.c.l.b16 %v109
  %v430 = vunpack.c.l.b16 %v110
  %v431 = vunpack.c.l.b16 %v111
  %v432 = vunpack.c.l.b16 %v112
  %v433 = vunpack.c.l.b16 %v113
  %v434 = vunpack.c.l.b16 %v114
  %v435 = vunpack.c.l.b16 %v115
  %v436 = vunpack.c.l.b16 %v116
  %v437 = vunpack.c.l.b16 %v117
  %v438 = vunpack.c.l.b16 %v118
  %v439 = vunpack.c.l.b16 %v119
  %v440 = vunpack.c.l.b16 %v120
  %v441 = vunpack.c.l.b16 %v121
  %v442 = vunpack.c.l.b16 %v122
  %v443 = vunpack.c.l.b16 %v123
  %v444 = vunpack.c.l.b16 %v124
  %v445 = vunpack.c.l.b16 %v125
  %v446 = vunpack.c.l.b16 %v126
  %v447 = vunpack.c.l.b16 %v127
  %v448 = vunpack.c.l.b16 %v128
  %v449 = vunpack.c.l.b16 %v129
  %v450 = vunpack.c.l.b16 %v130
  %v451 = vunpack.c.l.b16 %v131
  %v452 = vunpack.c.l.b16 %v132
  %v453 = vunpack.c.l.b16 %v133
  %v454 = vunpack.c.l.b16 %v134
  %v455 = vunpack.c.l.b16 %v135
  %v456 = vunpack.c.l.b16 %v136
  %v457 = vunpack.c.l.b16 %v137
  %v458 = vunpack.c.l.b16 %v138
  %v459 = vunpack.c.l.b16 %v139
  %v460 = vunpack.c.l.b16 %v140
  %v461 = vunpack.c.l.b16 %v141
  %v462 = vunpack.c.l.b16 %v142
  %v463 = vunpack.c.l.b16 %v143
  %v464 = vunpack.c.l.b16 %v144
  %v465 = vunpack.c.l.b16 %v145
  %v466 = vunpack.c.l.b16 %v146
  %v467 = vunpack.c.l.b16 %v147
  %v468 = vunpack.c.l.b16 %v148
  %v469 = vunpack.c.l.b16 %v149
  %v470 = vunpack.c.l.b16 %v150
  %v471 = vunpack.c.l.b16 %v151
  %v472 = vunpack.c.l.b16 %v152
  %v473 = vunpack.c.l.b16 %v153
  %v474 = vunpack.c.l.b16 %v154
  %v475 = vunpack.c.l.b16 %v155
  %v476 = vunpack.c.l.b16 %v156
  %v477 = vunpack.c.l.b16 %v157
  %v478 = vunpack.c.l.b16 %v158
  %v479 = vunpack.c.l.b16 %v159
  %v480 = vpack.c.b16 %v337, %v336
  %v481 = vpack.c.b16 %v339, %v338
  %v482 = vpack.c.b16 %v341, %v340
  %v483 = vpack.c.b16 %v343, %v342
  %v484 = vpack.c.b16 %v345, %v344
  %v485 = vpack.c.b16 %v347, %v346
  %v486 = vpack.c.b16 %v349, %v348
  %v487 = vpack.c.b16 %v351, %v350
  %v488 = vpack.c.b16 %v353, %v352
  %v489 = vpack.c.b16 %v355, %v354
  %v490 = vpack.c.b16 %v357, %v356
  %v491 = vpack.c.b16 %v359, %v358
  %v492 = vpack.c.b16 %v361, %v360
  %v493 = vpack.c.b16 %v363, %v362
  %v494 = vpack.c.b16 %v365, %v364
  %v495 = vpack.c.b16 %v367, %v366
  %v496 = vpack.c.b16 %v369, %v368
  %v497 = vpack.c.b16 %v371, %v370
  %v498 = vpack.c.b16 %v373, %v372
  %v499 = vpack.c.b16 %v375, %v374
  %v500 = vpack.c.b16 %v377, %v376
  %v501 = vpack.c.b16 %v379, %v378
  %v502 = vpack.c.b16 %v381, %v380
  %v503 = vpack.c.b16 %v383, %v382
  %v504 = vpack.c.b16 %v385, %v384
  %v505 = vpack.c.b16 %v387, %v386
  %v506 = vpack.c.b16 %v389, %v388
  %v507 = vpack.c.b16 %v391, %v390
  %v508 = vpack.c.b16 %v393, %v392
  %v509 = vpack.c.b16 %v395, %v394
  %v510 = vpack.c.b16 %v397, %v396
  %v511 = vpack.c.b16 %v399, %v398
  %v512 = vpack.c.b16 %v401, %v400
  %v513 = vpack.c.b16 %v403, %v402
  %v514 = vpack.c.b16 %v405, %v404
  %v515 = vpack.c.b16 %v407, %v406
  %v516 = vpack.c.b16 %v409, %v408
  %v517 = vpack.c.b16 %v411, %v410
  %v518 = vpack.c.b16 %v413, %v412
  %v519 = vpack.c.b16 %v415, %v414
  %v520 = vpack.c.b16 %v417, %v416
  %v521 = vpack.c.b16 %v419, %v418
  %v522 = vpack.c.b16 %v421, %v420
  %v523 = vpack.c.b16 %v423, %v422
  %v524 = vpack.c.b16 %v425, %v424
  %v525 = vpack.c.b16 %v427, %v426
  %v526 = vpack.c.b16 %v429, %v428
  %v527 = vpack.c.b16 %v431, %v430
  %v528 = vpack.c.b16 %v433, %v432
  %v529 = vpack.c.b16 %v435, %v434
  %v530 = vpack.c.b16 %v437, %v436
  %v531 = vpack.c.b16 %v439, %v438
  %v532 = vpack.c.b16 %v441, %v440
  %v533 = vpack.c.b16 %v443, %v442
  %v534 = vpack.c.b16 %v445, %v444
  %v535 = vpack.c.b16 %v447, %v446
  %v536 = vpack.c.b16 %v449, %v448
  %v537 = vpack.c.b16 %v451, %v450
  %v538 = vpack.c.b16 %v453, %v452
  %v539 = vpack.c.b16 %v455, %v454
  %v540 = vpack.c.b16 %v457, %v456
  %v541 = vpack.c.b16 %v459, %v458
  %v542 = vpack.c.b16 %v461, %v460
  %v543 = vpack.c.b16 %v463, %v462
  %v544 = vpack.c.b16 %v465, %v464
  %v545 = vpack.c.b16 %v467, %v466
  %v546 = vpack.c.b16 %v469, %v468
  %v547 = vpack.c.b16 %v471, %v470
  %v548 = vpack.c.b16 %v473, %v472
  %v549 = vpack.c.b16 %v475, %v474
  %v550 = vpack.c.b16 %v477, %v476
  %v551 = vpack.c.b16 %v479, %v478
  %624 = vmatpush.bf16.msra.mxu0 %v487
  %625 = vmatpush.bf16.msra.mxu0 %v486
  %626 = vmatpush.bf16.msra.mxu0 %v485
  %627 = vmatpush.bf16.msra.mxu0 %v484
  %628 = vmatpush.bf16.msra.mxu0 %v483
  %629 = vmatpush.bf16.msra.mxu0 %v482
  %630 = vmatpush.bf16.msra.mxu0 %v481
  %631 = vmatpush.bf16.msra.mxu0 %v480
  %632 = vmatmul.bf16.gmra.mxu0 %v174
  %v633 = vpop.f32.mrf.mxu0
  %v634 = vadd.f32 0.0, %v633
  %v635 = vpop.f32.mrf.mxu0
  %636 = vdwg.mxu0
  %637 = vmatpush.bf16.msra.mxu0 %v495
  %638 = vmatpush.bf16.msra.mxu0 %v494
  %639 = vmatpush.bf16.msra.mxu0 %v493
  %640 = vmatpush.bf16.msra.mxu0 %v492
  %641 = vmatpush.bf16.msra.mxu0 %v491
  %642 = vmatpush.bf16.msra.mxu0 %v490
  %643 = vmatpush.bf16.msra.mxu0 %v489
  %644 = vmatpush.bf16.msra.mxu0 %v488
  %645 = vmatmul.bf16.gmra.mxu0 %v175
  %v646 = vpop.f32.mrf.mxu0
  %v647 = vadd.f32 %v634, %v646
  %v648 = vpop.f32.mrf.mxu0
  %649 = vdwg.mxu0
  %650 = vmatpush.bf16.msra.mxu0 %v503
  %651 = vmatpush.bf16.msra.mxu0 %v502
  %652 = vmatpush.bf16.msra.mxu0 %v501
  %653 = vmatpush.bf16.msra.mxu0 %v500
  %654 = vmatpush.bf16.msra.mxu0 %v499
  %655 = vmatpush.bf16.msra.mxu0 %v498
  %656 = vmatpush.bf16.msra.mxu0 %v497
  %657 = vmatpush.bf16.msra.mxu0 %v496
  %658 = vmatmul.bf16.gmra.mxu0 %v176
  %v659 = vpop.f32.mrf.mxu0
  %v660 = vadd.f32 %v647, %v659
  %v661 = vpop.f32.mrf.mxu0
  %662 = vdwg.mxu0
  %663 = vmatpush.bf16.msra.mxu0 %v511
  %664 = vmatpush.bf16.msra.mxu0 %v510
  %665 = vmatpush.bf16.msra.mxu0 %v509
  %666 = vmatpush.bf16.msra.mxu0 %v508
  %667 = vmatpush.bf16.msra.mxu0 %v507
  %668 = vmatpush.bf16.msra.mxu0 %v506
  %669 = vmatpush.bf16.msra.mxu0 %v505
  %670 = vmatpush.bf16.msra.mxu0 %v504
  %671 = vmatmul.bf16.gmra.mxu0 %v177
  %v672 = vpop.f32.mrf.mxu0
  %v673 = vadd.f32 %v660, %v672
  %v674 = vpop.f32.mrf.mxu0
  %675 = vdwg.mxu0
  %676 = vmatpush.bf16.msra.mxu0 %v519
  %677 = vmatpush.bf16.msra.mxu0 %v518
  %678 = vmatpush.bf16.msra.mxu0 %v517
  %679 = vmatpush.bf16.msra.mxu0 %v516
  %680 = vmatpush.bf16.msra.mxu0 %v515
  %681 = vmatpush.bf16.msra.mxu0 %v514
  %682 = vmatpush.bf16.msra.mxu0 %v513
  %683 = vmatpush.bf16.msra.mxu0 %v512
  %684 = vmatmul.bf16.gmra.mxu0 %v178
  %v685 = vpop.f32.mrf.mxu0
  %v686 = vadd.f32 %v673, %v685
  %v687 = vpop.f32.mrf.mxu0
  %688 = vdwg.mxu0
  %689 = vmatpush.bf16.msra.mxu0 %v527
  %690 = vmatpush.bf16.msra.mxu0 %v526
  %691 = vmatpush.bf16.msra.mxu0 %v525
  %692 = vmatpush.bf16.msra.mxu0 %v524
  %693 = vmatpush.bf16.msra.mxu0 %v523
  %694 = vmatpush.bf16.msra.mxu0 %v522
  %695 = vmatpush.bf16.msra.mxu0 %v521
  %696 = vmatpush.bf16.msra.mxu0 %v520
  %697 = vmatmul.bf16.gmra.mxu0 %v179
  %v698 = vpop.f32.mrf.mxu0
  %v699 = vadd.f32 %v686, %v698
  %v700 = vpop.f32.mrf.mxu0
  %701 = vdwg.mxu0
  %702 = vmatpush.bf16.msra.mxu0 %v535
  %703 = vmatpush.bf16.msra.mxu0 %v534
  %704 = vmatpush.bf16.msra.mxu0 %v533
  %705 = vmatpush.bf16.msra.mxu0 %v532
  %706 = vmatpush.bf16.msra.mxu0 %v531
  %707 = vmatpush.bf16.msra.mxu0 %v530
  %708 = vmatpush.bf16.msra.mxu0 %v529
  %709 = vmatpush.bf16.msra.mxu0 %v528
  %710 = vmatmul.bf16.gmra.mxu0 %v180
  %v711 = vpop.f32.mrf.mxu0
  %v712 = vadd.f32 %v699, %v711
  %v713 = vpop.f32.mrf.mxu0
  %714 = vdwg.mxu0
  %715 = vmatpush.bf16.msra.mxu0 %v543
  %716 = vmatpush.bf16.msra.mxu0 %v542
  %717 = vmatpush.bf16.msra.mxu0 %v541
  %718 = vmatpush.bf16.msra.mxu0 %v540
  %719 = vmatpush.bf16.msra.mxu0 %v539
  %720 = vmatpush.bf16.msra.mxu0 %v538
  %721 = vmatpush.bf16.msra.mxu0 %v537
  %722 = vmatpush.bf16.msra.mxu0 %v536
  %723 = vmatmul.bf16.gmra.mxu0 %v181
  %v724 = vpop.f32.mrf.mxu0
  %v725 = vadd.f32 %v712, %v724
  %v726 = vpop.f32.mrf.mxu0
  %727 = vdwg.mxu0
  %728 = vmatpush.bf16.msra.mxu0 %v551
  %729 = vmatpush.bf16.msra.mxu0 %v550
  %730 = vmatpush.bf16.msra.mxu0 %v549
  %731 = vmatpush.bf16.msra.mxu0 %v548
  %732 = vmatpush.bf16.msra.mxu0 %v547
  %733 = vmatpush.bf16.msra.mxu0 %v546
  %734 = vmatpush.bf16.msra.mxu0 %v545
  %735 = vmatpush.bf16.msra.mxu0 %v544
  %736 = vmatmul.bf16.gmra.mxu0 %v182
  %v737 = vpop.f32.mrf.mxu0
  %v738 = vadd.f32 %v725, %v737
  %v739 = vpop.f32.mrf.mxu0
  %740 = vdwg.mxu0
  %741 = vst [vmem:[%s2] sm:$0xff] %v738
  // Predicated region
  $region10: #{_lambda_.57} parent=0 // pred_check
    _
  $region11: #{_lambda_.57} parent=0 // pred_check_branch
    %743 = sbr.rel (0) target = $region13
  $region12: #{_lambda_.57} parent=0 // pred_region
    _
  $region13: #{_lambda_.57} parent=0 // pred_fallthru
    _
  // Predicated region
  $region14: #{_lambda_.57} parent=0 // pred_check
    _
  $region15: #{_lambda_.57} parent=0 // pred_check_branch
    %745 = sbr.rel (0) target = $region17
  $region16: #{_lambda_.57} parent=0 // pred_region
    _
  $region17: #{_lambda_.57} parent=0 // pred_fallthru
    _

// kernel: _lambda_.56
$region0: #{_lambda_.56}
  #allocation0 [shape = 'u32[]', space=smem, size = 0x4, offset = 0x4, fixed_abs, tag = 'smem constant byte address 0x4 - core index']
  #allocation1 [shape = 'u32[72,128]{1,0:T(1,128)}', space=vmem, size = 0x9000, scoped, tag = 'internal scratch']
  %s0 = inlined_call_operand.vmem [shape: bf16[8,128], index: 0, kind: input, shape index: {}]
  %s1 = inlined_call_operand.vmem [shape: bf16[128,128], index: 1, kind: input, shape index: {}]
  %s2 = inlined_call_operand.vmem [shape: f32[8,128], index: 2, kind: output, shape index: {}]
  %s3 = sld [smem:[#allocation0]]
  $region18: #{_lambda_.56} parent=0
    _
  %s5 = ssub.s32 1, %s3
  %s6 = scalar_select 0, %s5, %s3
  // Predicated region
  $region2: #{_lambda_.56} parent=0 // pred_check
    _
  $region3: #{_lambda_.56} parent=0 // pred_check_branch
    %8 = sbr.rel (0) target = $region5
  $region4: #{_lambda_.56} parent=0 // pred_region
    _
  $region5: #{_lambda_.56} parent=0 // pred_fallthru
    _
  // Predicated region
  $region6: #{_lambda_.56} parent=0 // pred_check
    _
  $region7: #{_lambda_.56} parent=0 // pred_check_branch
    %10 = sbr.rel (0) target = $region9
  $region8: #{_lambda_.56} parent=0 // pred_region
    _
  $region9: #{_lambda_.56} parent=0 // pred_fallthru
    _
  %v11 = vld [vmem:[%s0] sm:$0xf]
  %v12 = vld [vmem:[%s1] sm:$0xf]
  %v13 = vld [vmem:[%s1 + $0x4] sm:$0xf]
  %v14 = vld [vmem:[%s1 + $0x8] sm:$0xf]
  %v15 = vld [vmem:[%s1 + $0xc] sm:$0xf]
  %v16 = vld [vmem:[%s1 + $0x10] sm:$0xf]
  %v17 = vld [vmem:[%s1 + $0x14] sm:$0xf]
  %v18 = vld [vmem:[%s1 + $0x18] sm:$0xf]
  %v19 = vld [vmem:[%s1 + $0x1c] sm:$0xf]
  %v20 = vld [vmem:[%s1 + $0x20] sm:$0xf]
  %v21 = vld [vmem:[%s1 + $0x24] sm:$0xf]
  %v22 = vld [vmem:[%s1 + $0x28] sm:$0xf]
  %v23 = vld [vmem:[%s1 + $0x2c] sm:$0xf]
  %v24 = vld [vmem:[%s1 + $0x30] sm:$0xf]
  %v25 = vld [vmem:[%s1 + $0x34] sm:$0xf]
  %v26 = vld [vmem:[%s1 + $0x38] sm:$0xf]
  %v27 = vld [vmem:[%s1 + $0x3c] sm:$0xf]
  %v44 = vunpack.c.l.b16 %v12
  %v45 = vunpack.c.l.b16 %v13
  %v46 = vunpack.c.l.b16 %v14
  %v47 = vunpack.c.l.b16 %v15
  %v48 = vunpack.c.l.b16 %v16
  %v49 = vunpack.c.l.b16 %v17
  %v50 = vunpack.c.l.b16 %v18
  %v51 = vunpack.c.l.b16 %v19
  %v52 = vunpack.c.l.b16 %v20
  %v53 = vunpack.c.l.b16 %v21
  %v54 = vunpack.c.l.b16 %v22
  %v55 = vunpack.c.l.b16 %v23
  %v56 = vunpack.c.l.b16 %v24
  %v57 = vunpack.c.l.b16 %v25
  %v58 = vunpack.c.l.b16 %v26
  %v59 = vunpack.c.l.b16 %v27
  %v60 = vpack.c.b16 %v45, %v44
  %v61 = vpack.c.b16 %v47, %v46
  %v62 = vpack.c.b16 %v49, %v48
  %v63 = vpack.c.b16 %v51, %v50
  %v64 = vpack.c.b16 %v53, %v52
  %v65 = vpack.c.b16 %v55, %v54
  %v66 = vpack.c.b16 %v57, %v56
  %v67 = vpack.c.b16 %v59, %v58
  %76 = vmatpush.bf16.msra.mxu0 %v67
  %77 = vmatpush.bf16.msra.mxu0 %v66
  %78 = vmatpush.bf16.msra.mxu0 %v65
  %79 = vmatpush.bf16.msra.mxu0 %v64
  %80 = vmatpush.bf16.msra.mxu0 %v63
  %81 = vmatpush.bf16.msra.mxu0 %v62
  %82 = vmatpush.bf16.msra.mxu0 %v61
  %83 = vmatpush.bf16.msra.mxu0 %v60
  %84 = vmatmul.bf16.gmra.mxu0 %v11
  %v85 = vpop.f32.mrf.mxu0
  %v86 = vadd.f32 0.0, %v85
  %v87 = vpop.f32.mrf.mxu0
  %88 = vdwg.mxu0
  %89 = vst [vmem:[%s2] sm:$0xff] %v86
  // Predicated region
  $region10: #{_lambda_.56} parent=0 // pred_check
    _
  $region11: #{_lambda_.56} parent=0 // pred_check_branch
    %91 = sbr.rel (0) target = $region13
  $region12: #{_lambda_.56} parent=0 // pred_region
    _
  $region13: #{_lambda_.56} parent=0 // pred_fallthru
    _
  // Predicated region
  $region14: #{_lambda_.56} parent=0 // pred_check
    _
  $region15: #{_lambda_.56} parent=0 // pred_check_branch
    %93 = sbr.rel (0) target = $region17
  $region16: #{_lambda_.56} parent=0 // pred_region
    _
  $region17: #{_lambda_.56} parent=0 // pred_fallthru
    _

// kernel: _lambda_.63
$region0: #{_lambda_.63}
  #allocation0 [shape = 'u32[]', space=smem, size = 0x4, offset = 0x4, fixed_abs, tag = 'smem constant byte address 0x4 - core index']
  #allocation1 [shape = 'u32[72,128]{1,0:T(1,128)}', space=vmem, size = 0x9000, scoped, tag = 'internal scratch']
  %s0 = inlined_call_operand.vmem [shape: f32[4,256], index: 0, kind: input, shape index: {}]
  %s1 = inlined_call_operand.vmem [shape: f32[1,256], index: 1, kind: output, shape index: {}]
  %s2 = sld [smem:[#allocation0]]
  $region14: #{_lambda_.63} parent=0
    _
  %s4 = ssub.s32 1, %s2
  %s5 = scalar_select 0, %s4, %s2
  // Predicated region
  $region2: #{_lambda_.63} parent=0 // pred_check
    _
  $region3: #{_lambda_.63} parent=0 // pred_check_branch
    %7 = sbr.rel (0) target = $region5
  $region4: #{_lambda_.63} parent=0 // pred_region
    _
  $region5: #{_lambda_.63} parent=0 // pred_fallthru
    _
  %v8 = vld [vmem:[%s0] sm:$0xff]
  %10 = vst [vmem:[#allocation1] ss:$2 sm:$0xff] %v8
  %v11 = vld.sshfl [vmem:[#allocation1] sm:$0xff pattern:$0x75316420]
  %v12 = vld.sshfl [vmem:[#allocation1 + $0x8] sm:$0xff pattern:$0x75316420]
  %vm15 = vcmask 1043456
  %v16 = vsel %vm15, %v11, 0.0
  %v17 = vrot.slane %v16, 4
  %v18 = vadd.f32 %v16, %v17
  %v19 = vrot.slane %v18, 2
  %v20 = vadd.f32 %v18, %v19
  %v21 = vrot.slane %v20, 1
  %v22 = vadd.f32 %v20, %v21
  %v23 = vsel %vm15, %v12, 0.0
  %v24 = vrot.slane %v23, 4
  %v25 = vadd.f32 %v23, %v24
  %v26 = vrot.slane %v25, 2
  %v27 = vadd.f32 %v25, %v26
  %v28 = vrot.slane %v27, 1
  %v29 = vadd.f32 %v27, %v28
  %v30 = vrcp.pop 4.0
  %v31 = vmul.f32 4.0, %v30
  %v32 = vsub.f32 1.0, %v31
  %v33 = vmul.f32 %v30, %v32
  %v34 = vadd.f32 %v30, %v33
  %vm35 = vweird.f32 %v30
  %v36 = vsel %vm35, %v30, %v34
  %v37 = vmul.f32 %v22, %v36
  %v38 = vmul.f32 %v29, %v36
  %v41 = vrot.slane %v38, 7
  %vm42 = vcmask 1040384
  %v43 = vsel %vm42, %v37, %v41
  %v45 = vlaneseq
  %vm46 = vcmp.ge.s32.totalorder %v45, 0
  %vm47 = vcmp.lt.s32.totalorder %v45, 256
  %vm48 = vmand %vm46, %vm47
  %49 = vst.msk [vmem:[%s1] sm:$0x3] %vm48, %v43
  // Predicated region
  $region6: #{_lambda_.63} parent=0 // pred_check
    _
  $region7: #{_lambda_.63} parent=0 // pred_check_branch
    %51 = sbr.rel (0) target = $region9
  $region8: #{_lambda_.63} parent=0 // pred_region
    _
  $region9: #{_lambda_.63} parent=0 // pred_fallthru
    _
  // Predicated region
  $region10: #{_lambda_.63} parent=0 // pred_check
    _
  $region11: #{_lambda_.63} parent=0 // pred_check_branch
    %53 = sbr.rel (0) target = $region13
  $region12: #{_lambda_.63} parent=0 // pred_region
    _
  $region13: #{_lambda_.63} parent=0 // pred_fallthru
    _

// kernel: _lambda_.65
$region0: #{_lambda_.65}
  #allocation0 [shape = 'u32[]', space=smem, size = 0x4, offset = 0x4, fixed_abs, tag = 'smem constant byte address 0x4 - core index']
  #allocation1 [shape = 'u32[72,128]{1,0:T(1,128)}', space=vmem, size = 0x9000, scoped, tag = 'internal scratch']
  %s0 = inlined_call_operand.vmem [shape: f32[2,10], index: 0, kind: input, shape index: {}]
  %s1 = inlined_call_operand.vmem [shape: s32[2,1], index: 1, kind: input, shape index: {}]
  %s2 = inlined_call_operand.hbm [shape: f32[1,1], index: 2, kind: output, shape index: {}]
  %s3 = sld [smem:[#allocation0]]
  $region18: #{_lambda_.65} parent=0
    _
  %s5 = ssub.s32 1, %s3
  %s6 = scalar_select 0, %s5, %s3
  $region1: #{_lambda_.65} parent=0
    #allocation2 [shape = 'u8[512]{0}', space=vmem, size = 0x400, scoped, tag = 'output window, operand 0, single buffered']
    #allocation3 [shape = 's32[1]{0}', space=sflag, size = 0x4, scoped, tag = 'scoped memory for _lambda_.65']
    %7 = vsyncpa [#allocation3], 0
    // Predicated region
    $region2: #{_lambda_.65} parent=1 // pred_check
      _
    $region3: #{_lambda_.65} parent=1 // pred_check_branch
      %9 = sbr.rel (0) target = $region5
    $region4: #{_lambda_.65} parent=1 // pred_region
      _
    $region5: #{_lambda_.65} parent=1 // pred_fallthru
      _
    // Predicated region
    $region6: #{_lambda_.65} parent=1 // pred_check
      _
    $region7: #{_lambda_.65} parent=1 // pred_check_branch
      %11 = sbr.rel (0) target = $region9
    $region8: #{_lambda_.65} parent=1 // pred_region
      _
    $region9: #{_lambda_.65} parent=1 // pred_fallthru
      _
    %v12 = vld [vmem:[%s0] sm:$0x3]
    %v13 = vld [vmem:[%s1] sm:$0x3]
    %vm14 = vcmask 74752
    %v15 = vsel %vm14, %v12, -inf
    %16 = vmax.xlane.f32.xlu0 %v15
    %v17 = vpop.xlane.xlu0 %16
    %v18 = vsub.f32 %v12, %v17
    %v19 = vmul.f32 %v18, 1.442695
    %v20 = vpow.pop %v19
    %v21 = vsel %vm14, %v20, 0.0
    %22 = vadd.xlane.f32.xlu0 %v21
    %v23 = vpop.xlane.xlu0 %22
    %v24 = vlog2.pop %v23
    %v25 = vmul.f32 %v24, 0.6931472
    %v26 = vadd.f32 %v25, %v17
    %v27 = vlaneseq
    %v28 = vand.u32 %v27, 127
    %29 = vset.pattern.permute.xlu0 0
    %30 = vperm.xlu0 %29, %v13
    %v31 = vpop.permute.xlu0 %30
    %vm32 = vcmp.eq.s32.totalorder %v28, %v31
    %v33 = vsel %vm32, %v12, 0.0
    %v34 = vsel %vm14, %v33, 0.0
    %35 = vadd.xlane.f32.xlu0 %v34
    %v36 = vpop.xlane.xlu0 %35
    %v37 = vsub.f32 %v26, %v36
    %vm38 = vcmask 1024
    %v39 = vsel %vm38, %v37, 0.0
    %40 = vadd.xlane.f32.xlu0 %v39
    %v41 = vpop.xlane.xlu0 %40
    %v42 = vrot.slane %v41, 4
    %v43 = vadd.f32 %v41, %v42
    %v44 = vrot.slane %v43, 2
    %v45 = vadd.f32 %v43, %v44
    %v46 = vrot.slane %v45, 1
    %v47 = vadd.f32 %v45, %v46
    %s48 = vtos %v47
    %v49 = vstv %s48
    %v50 = vrcp.pop 2.0
    %v51 = vmul.f32 2.0, %v50
    %v52 = vsub.f32 1.0, %v51
    %v53 = vmul.f32 %v50, %v52
    %v54 = vadd.f32 %v50, %v53
    %vm55 = vweird.f32 %v50
    %v56 = vsel %vm55, %v50, %v54
    %v57 = vmul.f32 %v49, %v56
    %vm58 = vcmask 0
    %59 = vst.msk [vmem:[#allocation2] sm:$0x1] %vm58, %v57
    // Predicated region
    $region10: #{_lambda_.65} parent=1 // pred_check
      _
    $region11: #{_lambda_.65} parent=1 // pred_check_branch
      %61 = sbr.rel (0) target = $region13
    $region12: #{_lambda_.65} parent=1 // pred_region
      %63 = vsyncadd [#allocation3], 0
      %s65 = sshll.u32 [#allocation2], 4
      %s66 = int_to_ptr.vmem [resolvable:$true] %s65
      %s67 = sshll.u32 %s2, 4
      %s68 = int_to_ptr.hbm [resolvable:$true] %s67
      %70 = dma.vmem_to_hbm [thread:$0]  %s66, 16, %s68, [#allocation3]
    $region13: #{_lambda_.65} parent=1 // pred_fallthru
      _
    // Predicated region
    $region14: #{_lambda_.65} parent=1 // pred_check
      _
    $region15: #{_lambda_.65} parent=1 // pred_check_branch
      %72 = sbr.rel (0) target = $region17
    $region16: #{_lambda_.65} parent=1 // pred_region
      %74 = dma.done [#allocation3], 16
    $region17: #{_lambda_.65} parent=1 // pred_fallthru
      _
    %75 = vsyncpa [#allocation3], 1

</llo_original>
